<compile_context>
chip_gen: v7x
topology: tpu7x:2x2x1
jax: 0.10.0
libtpu: 0.0.40
codegen_flags: <defaults>
</compile_context>

<pallas_src>
import functools

import jax
import jax.numpy as jnp
from jax import lax
from jax.experimental import pallas as pl
from jax.experimental.pallas import tpu as pltpu


def _residual_block_kernel(*refs, scale_residual, dims):
    B, H, W, Ci, Co = dims          # Ci/Co are lane-padded channel counts
    if scale_residual:
        (mean_ref, istd_ref, x_ref, w1_ref, b1_ref, w2_ref, b2_ref,
         ws_ref, bs_ref, out_ref, xpad_ref, hpad_ref, col_ref) = refs
    else:
        (mean_ref, istd_ref, x_ref, w1_ref, b1_ref, w2_ref, b2_ref,
         out_ref, xpad_ref, hpad_ref, col_ref) = refs

    HW = H * W
    Kin, Kout = 9 * Ci, 9 * Co

    # --- BatchNorm2d (training mode, affine=False): stats precomputed over
    #     the full batch outside the kernel, passed as (1, Ci).  Single f32
    #     normalize pass, then ONE cast to bf16 for the MXU path.
    x = x_ref[...].reshape(B * HW, Ci)                       # raw input, f32
    xn = ((x - mean_ref[...]) * istd_ref[...]).astype(jnp.bfloat16)

    # --- conv_1: halo-pad xn (zero only the 1-px halo, overwrite interior),
    #     build lane-aligned im2col slabs, then a single K=9*Ci MXU matmul.
    for b in range(B):
        xpad_ref[b, 0:1, :, :] = jnp.zeros((1, W + 2, Ci), jnp.bfloat16)
        xpad_ref[b, H + 1:H + 2, :, :] = jnp.zeros((1, W + 2, Ci), jnp.bfloat16)
        xpad_ref[b, :, 0:1, :] = jnp.zeros((H + 2, 1, Ci), jnp.bfloat16)
        xpad_ref[b, :, W + 1:W + 2, :] = jnp.zeros((H + 2, 1, Ci), jnp.bfloat16)
        xpad_ref[b, 1:H + 1, 1:W + 1, :] = (
            xn[b * HW:(b + 1) * HW, :].reshape(H, W, Ci))
        for kh in range(3):
            for kw in range(3):
                t = kh * 3 + kw
                tap = xpad_ref[b, kh:kh + H, kw:kw + W, :].reshape(HW, Ci)
                col_ref[b * HW:(b + 1) * HW, t * Ci:(t + 1) * Ci] = tap

    acc = jnp.dot(col_ref[:, :Kin], w1_ref[...],
                  preferred_element_type=jnp.float32)
    acc = acc + b1_ref[...]                                   # bias added once

    # --- SiLU: sigmoid via EUP reciprocal; single cast to bf16 for conv_2.
    h = (acc * pl.reciprocal(1.0 + jnp.exp(-acc), approx=True)
         ).astype(jnp.bfloat16)

    # --- conv_2: same halo + im2col trick, single K=9*Co matmul.
    for b in range(B):
        hpad_ref[b, 0:1, :, :] = jnp.zeros((1, W + 2, Co), jnp.bfloat16)
        hpad_ref[b, H + 1:H + 2, :, :] = jnp.zeros((1, W + 2, Co), jnp.bfloat16)
        hpad_ref[b, :, 0:1, :] = jnp.zeros((H + 2, 1, Co), jnp.bfloat16)
        hpad_ref[b, :, W + 1:W + 2, :] = jnp.zeros((H + 2, 1, Co), jnp.bfloat16)
        hpad_ref[b, 1:H + 1, 1:W + 1, :] = (
            h[b * HW:(b + 1) * HW, :].reshape(H, W, Co))
        for kh in range(3):
            for kw in range(3):
                t = kh * 3 + kw
                tap = hpad_ref[b, kh:kh + H, kw:kw + W, :].reshape(HW, Co)
                col_ref[b * HW:(b + 1) * HW, t * Co:(t + 1) * Co] = tap

    # Residual: identity, or 1x1 conv (one MXU matmul) when scale_residual.
    # Re-read x_ref here to keep its live range short (no long-lived vregs).
    xres = x_ref[...].reshape(B * HW, Ci)
    if scale_residual:
        res = (jnp.dot(xres.astype(jnp.bfloat16), ws_ref[...],
                       preferred_element_type=jnp.float32) + bs_ref[...])
    else:
        res = xres

    y = jnp.dot(col_ref[:, :Kout], w2_ref[...],
                preferred_element_type=jnp.float32)
    y = y + b2_ref[...] + res
    out_ref[...] = y.reshape(B, H, W, Co).astype(out_ref.dtype)


def _round_up(v, m):
    return (v + m - 1) // m * m


def _pad_axis(a, axis, target):
    pad = target - a.shape[axis]
    if pad == 0:
        return a
    widths = [(0, 0)] * a.ndim
    widths[axis] = (0, pad)
    return jnp.pad(a, widths)


def _choose_batch_tile(N, H, W, ci, co, budget_bytes=24 << 20):
    """Largest batch tile B (divisor of N) fitting the VMEM budget, with at
    least 2 grid steps when N >= 2 so v7x megacore can split the work."""
    cmax = max(ci, co)
    per_image = (2 * H * W * ci * 4 + 2 * H * W * co * 4      # dbl-buffered blocks
                 + (H + 2) * (W + 2) * (ci + co) * 2          # bf16 halo scratch
                 + H * W * 9 * cmax * 2)                      # bf16 im2col
    b = max(1, budget_bytes // per_image)
    if N >= 2:
        b = min(b, N // 2)
    b = min(b, N)
    while N % b:
        b -= 1
    return b


def _vmem_limit_bytes(B, H, W, ci, co, scale_residual):
    cmax = max(ci, co)
    blocks = 2 * B * H * W * ci * 4 + 2 * B * H * W * co * 4
    scratch = B * (H + 2) * (W + 2) * (ci + co) * 2 + B * H * W * 9 * cmax * 2
    consts = 2 * ((9 * ci + 9 * co) * co * 2 + 3 * co * 4 + 2 * ci * 4)
    if scale_residual:
        consts += 2 * (ci * co * 2 + co * 4)
    total = blocks + scratch + consts + (4 << 20)             # compiler headroom
    return int(min(max(total, 16 << 20), 40 << 20))           # v7x-safe cap


def residual_block(x, params, *, output_channels, scale_residual=False):
    """x: (N, H, W, Cin) float32, NHWC layout."""
    N, H, W, Cin = x.shape
    Cout = output_channels
    if not scale_residual:
        assert Cin == Cout, "identity residual needs Cin == Cout"
    # LazyBatchNorm2d(output_channels, affine=False): first positional is eps.
    eps = float(output_channels)

    # BatchNorm batch statistics over the FULL (unpadded) batch — cheap XLA
    # pre-pass so the Pallas kernel can tile over N without changing results.
    mean = jnp.mean(x, axis=(0, 1, 2)).reshape(1, Cin)
    var = jnp.mean(jnp.square(x - mean.reshape(1, 1, 1, Cin)),
                   axis=(0, 1, 2)).reshape(1, Cin)
    istd = lax.rsqrt(var + eps)

    # Lane-dense channel padding (exact: padded weights/bias/stats are zero).
    LANE = 128
    Ci, Co = _round_up(Cin, LANE), _round_up(Cout, LANE)
    xp = _pad_axis(x, 3, Ci)
    meanp = _pad_axis(mean, 1, Ci)
    istdp = _pad_axis(istd, 1, Ci)

    # Weights as im2col matrices (9*Cpad, Cpad), bf16 for the MXU.
    w1 = _pad_axis(_pad_axis(params["w1"], 2, Ci), 3, Co)
    w1 = w1.reshape(9 * Ci, Co).astype(jnp.bfloat16)
    b1 = _pad_axis(params["b1"], 1, Co)
    w2 = _pad_axis(_pad_axis(params["w2"], 2, Co), 3, Co)
    w2 = w2.reshape(9 * Co, Co).astype(jnp.bfloat16)
    b2 = _pad_axis(params["b2"], 1, Co)

    B = _choose_batch_tile(N, H, W, Ci, Co)
    Cmax = max(Ci, Co)

    args = [meanp, istdp, xp, w1, b1, w2, b2]
    in_specs = [
        pl.BlockSpec((1, Ci), lambda n: (0, 0)),
        pl.BlockSpec((1, Ci), lambda n: (0, 0)),
        pl.BlockSpec((B, H, W, Ci), lambda n: (n, 0, 0, 0)),
        pl.BlockSpec((9 * Ci, Co), lambda n: (0, 0)),
        pl.BlockSpec((1, Co), lambda n: (0, 0)),
        pl.BlockSpec((9 * Co, Co), lambda n: (0, 0)),
        pl.BlockSpec((1, Co), lambda n: (0, 0)),
    ]
    if scale_residual:
        ws = _pad_axis(_pad_axis(params["ws"], 0, Ci), 1, Co).astype(jnp.bfloat16)
        bs = _pad_axis(params["bs"], 1, Co)
        args += [ws, bs]
        in_specs += [
            pl.BlockSpec((Ci, Co), lambda n: (0, 0)),
            pl.BlockSpec((1, Co), lambda n: (0, 0)),
        ]

    flops = 2 * N * H * W * (9 * Ci * Co + 9 * Co * Co
                             + (Ci * Co if scale_residual else 0))
    bytes_accessed = (N * H * W * (Ci + Co) * 4
                      + (9 * Ci + 9 * Co) * Co * 2
                      + (Ci * Co * 2 if scale_residual else 0))
    cost = pl.CostEstimate(flops=flops,
                           transcendentals=N * H * W * Co,
                           bytes_accessed=bytes_accessed)

    kernel = functools.partial(
        _residual_block_kernel,
        scale_residual=scale_residual, dims=(B, H, W, Ci, Co))

    out_padded = pl.pallas_call(
        kernel,
        out_shape=jax.ShapeDtypeStruct((N, H, W, Co), x.dtype),
        grid=(N // B,),                  # batch tiles, pipelined
        in_specs=in_specs,
        out_specs=pl.BlockSpec((B, H, W, Co), lambda n: (n, 0, 0, 0)),
        scratch_shapes=[
            pltpu.VMEM((B, H + 2, W + 2, Ci), jnp.bfloat16),   # padded BN(x)
            pltpu.VMEM((B, H + 2, W + 2, Co), jnp.bfloat16),   # padded silu(h)
            pltpu.VMEM((B * H * W, 9 * Cmax), jnp.bfloat16),   # im2col columns
        ],
        compiler_params=pltpu.CompilerParams(
            dimension_semantics=("parallel",),   # megacore split on v7x
            vmem_limit_bytes=_vmem_limit_bytes(B, H, W, Ci, Co, scale_residual)),
        cost_estimate=cost,
    )(*args)
    return out_padded[..., :Cout]


def init_params(key, c_in, c_out, scale_residual):
    ks = jax.random.split(key, 6)
    p = {
        "w1": jax.random.normal(ks[0], (3, 3, c_in, c_out), jnp.float32) * 0.1,
        "b1": jax.random.normal(ks[1], (1, c_out), jnp.float32) * 0.1,
        "w2": jax.random.normal(ks[2], (3, 3, c_out, c_out), jnp.float32) * 0.1,
        "b2": jax.random.normal(ks[3], (1, c_out), jnp.float32) * 0.1,
    }
    if scale_residual:
        p["ws"] = jax.random.normal(ks[4], (c_in, c_out), jnp.float32) * 0.1
        p["bs"] = jax.random.normal(ks[5], (1, c_out), jnp.float32) * 0.1
    return p


def residual_block_ref(x, params, *, output_channels, scale_residual=False):
    """Pure-JAX f32 reference (NHWC) mirroring the PyTorch forward."""
    eps = float(output_channels)
    mean = jnp.mean(x, axis=(0, 1, 2), keepdims=True)
    var = jnp.mean((x - mean) ** 2, axis=(0, 1, 2), keepdims=True)
    xn = (x - mean) / jnp.sqrt(var + eps)
    dn = ("NHWC", "HWIO", "NHWC")
    h = lax.conv_general_dilated(xn, params["w1"], (1, 1), "SAME",
                                 dimension_numbers=dn)
    h = h + params["b1"].reshape(1, 1, 1, -1)
    h = h * jax.nn.sigmoid(h)
    y = lax.conv_general_dilated(h, params["w2"], (1, 1), "SAME",
                                 dimension_numbers=dn)
    y = y + params["b2"].reshape(1, 1, 1, -1)
    if scale_residual:
        res = jnp.einsum("nhwc,cd->nhwd", x, params["ws"])
        res = res + params["bs"].reshape(1, 1, 1, -1)
    else:
        res = x
    return y + res


if __name__ == "__main__":
    key = jax.random.PRNGKey(0)
    kx, kp1, kp2 = jax.random.split(key, 3)

    N, H, W, C = 2, 16, 16, 4
    x = jax.random.normal(kx, (N, H, W, C), jnp.float32)

    # Tolerance reflects bf16 MXU operands (f32 accumulation) and the EUP
    # approximate reciprocal in the sigmoid vs. the pure-f32 reference.
    RTOL = ATOL = 1e-2

    # Case 1: scale_residual=False (identity residual, Cin == Cout)
    p1 = init_params(kp1, C, C, scale_residual=False)
    out1 = residual_block(x, p1, output_channels=C, scale_residual=False)
    jax.block_until_ready(out1)
    ref1 = residual_block_ref(x, p1, output_channels=C, scale_residual=False)
    assert out1.shape == (N, H, W, C)
    assert jnp.allclose(out1, ref1, rtol=RTOL, atol=ATOL), \
        float(jnp.max(jnp.abs(out1 - ref1)))

    # Case 2: scale_residual=True (1x1 conv on residual, Cin != Cout)
    Cout = 8
    p2 = init_params(kp2, C, Cout, scale_residual=True)
    out2 = residual_block(x, p2, output_channels=Cout, scale_residual=True)
    jax.block_until_ready(out2)
    ref2 = residual_block_ref(x, p2, output_channels=Cout, scale_residual=True)
    assert out2.shape == (N, H, W, Cout)
    assert jnp.allclose(out2, ref2, rtol=RTOL, atol=ATOL), \
        float(jnp.max(jnp.abs(out2 - ref2)))

    print("KERNEL_OK")
</pallas_src>

<mosaic_0001>
module attributes {stable_mosaic.version = 11 : i64} {
  func.func @_residual_block_kernel(%arg0: i32, %arg1: memref<1x128xf32, #tpu.memory_space<vmem>>, %arg2: memref<1x128xf32, #tpu.memory_space<vmem>>, %arg3: memref<1x16x16x128xf32, #tpu.memory_space<vmem>>, %arg4: memref<1152x128xbf16, #tpu.memory_space<vmem>>, %arg5: memref<1x128xf32, #tpu.memory_space<vmem>>, %arg6: memref<1152x128xbf16, #tpu.memory_space<vmem>>, %arg7: memref<1x128xf32, #tpu.memory_space<vmem>>, %arg8: memref<1x16x16x128xf32, #tpu.memory_space<vmem>>, %arg9: memref<1x18x18x128xbf16, #tpu.memory_space<vmem>>, %arg10: memref<1x18x18x128xbf16, #tpu.memory_space<vmem>>, %arg11: memref<256x1152xbf16, #tpu.memory_space<vmem>>) attributes {dimension_semantics = [#tpu.dimension_semantics<parallel>], iteration_bounds = array<i64: 2>, scalar_prefetch = 0 : i64, scratch_operands = 3 : i64, tpu.core_type = #tpu.core_type<tc>, window_params = [{pipeline_mode = #tpu.pipeline_mode<synchronous>, transform_indices = @transform_0, window_bounds = array<i64: 1, 128>}, {pipeline_mode = #tpu.pipeline_mode<synchronous>, transform_indices = @transform_1, window_bounds = array<i64: 1, 128>}, {transform_indices = @transform_2, window_bounds = array<i64: 1, 16, 16, 128>}, {pipeline_mode = #tpu.pipeline_mode<synchronous>, transform_indices = @transform_3, window_bounds = array<i64: 1152, 128>}, {pipeline_mode = #tpu.pipeline_mode<synchronous>, transform_indices = @transform_4, window_bounds = array<i64: 1, 128>}, {pipeline_mode = #tpu.pipeline_mode<synchronous>, transform_indices = @transform_5, window_bounds = array<i64: 1152, 128>}, {pipeline_mode = #tpu.pipeline_mode<synchronous>, transform_indices = @transform_6, window_bounds = array<i64: 1, 128>}, {transform_indices = @transform_7, window_bounds = array<i64: 1, 16, 16, 128>}]} {
    %c0 = arith.constant 0 : index
    %c0_0 = arith.constant 0 : index
    %c0_1 = arith.constant 0 : index
    %c0_2 = arith.constant 0 : index
    %0 = vector.load %arg3[%c0, %c0_0, %c0_1, %c0_2] : memref<1x16x16x128xf32, #tpu.memory_space<vmem>>, vector<1x16x16x128xf32>
    %1 = vector.shape_cast %0 : vector<1x16x16x128xf32> to vector<256x128xf32>
    %c0_3 = arith.constant 0 : index
    %c0_4 = arith.constant 0 : index
    %2 = vector.load %arg1[%c0_3, %c0_4] : memref<1x128xf32, #tpu.memory_space<vmem>>, vector<1x128xf32>
    %3 = vector.broadcast %2 : vector<1x128xf32> to vector<256x128xf32>
    %4 = arith.subf %1, %3 : vector<256x128xf32>
    %c0_5 = arith.constant 0 : index
    %c0_6 = arith.constant 0 : index
    %5 = vector.load %arg2[%c0_5, %c0_6] : memref<1x128xf32, #tpu.memory_space<vmem>>, vector<1x128xf32>
    %6 = vector.broadcast %5 : vector<1x128xf32> to vector<256x128xf32>
    %7 = arith.mulf %4, %6 : vector<256x128xf32>
    %8 = arith.truncf %7 : vector<256x128xf32> to vector<256x128xbf16>
    %cst = arith.constant 0.000000e+00 : bf16
    %9 = vector.broadcast %cst : bf16 to vector<1x18x128xbf16>
    %c0_7 = arith.constant 0 : index
    %c0_8 = arith.constant 0 : index
    %c0_9 = arith.constant 0 : index
    %c0_10 = arith.constant 0 : index
    %10 = vector.load %arg9[%c0_7, %c0_8, %c0_9, %c0_10] : memref<1x18x18x128xbf16, #tpu.memory_space<vmem>>, vector<1x1x18x128xbf16>
    %11 = vector.shape_cast %10 : vector<1x1x18x128xbf16> to vector<1x18x128xbf16>
    %12 = vector.shape_cast %9 : vector<1x18x128xbf16> to vector<1x1x18x128xbf16>
    tpu.vector_store %arg9[%c0_7, %c0_8, %c0_9, %c0_10], %12 {strides = array<i32>} : memref<1x18x18x128xbf16, #tpu.memory_space<vmem>>, vector<1x1x18x128xbf16>,
    %cst_11 = arith.constant 0.000000e+00 : bf16
    %13 = vector.broadcast %cst_11 : bf16 to vector<1x18x128xbf16>
    %c0_12 = arith.constant 0 : index
    %c17 = arith.constant 17 : index
    %c0_13 = arith.constant 0 : index
    %c0_14 = arith.constant 0 : index
    %14 = vector.load %arg9[%c0_12, %c17, %c0_13, %c0_14] : memref<1x18x18x128xbf16, #tpu.memory_space<vmem>>, vector<1x1x18x128xbf16>
    %15 = vector.shape_cast %14 : vector<1x1x18x128xbf16> to vector<1x18x128xbf16>
    %16 = vector.shape_cast %13 : vector<1x18x128xbf16> to vector<1x1x18x128xbf16>
    tpu.vector_store %arg9[%c0_12, %c17, %c0_13, %c0_14], %16 {strides = array<i32>} : memref<1x18x18x128xbf16, #tpu.memory_space<vmem>>, vector<1x1x18x128xbf16>,
    %cst_15 = arith.constant 0.000000e+00 : bf16
    %17 = vector.broadcast %cst_15 : bf16 to vector<18x1x128xbf16>
    %c0_16 = arith.constant 0 : index
    %c0_17 = arith.constant 0 : index
    %c0_18 = arith.constant 0 : index
    %c0_19 = arith.constant 0 : index
    %18 = vector.load %arg9[%c0_16, %c0_17, %c0_18, %c0_19] : memref<1x18x18x128xbf16, #tpu.memory_space<vmem>>, vector<1x18x1x128xbf16>
    %19 = vector.shape_cast %18 : vector<1x18x1x128xbf16> to vector<18x1x128xbf16>
    %20 = vector.shape_cast %17 : vector<18x1x128xbf16> to vector<1x18x1x128xbf16>
    tpu.vector_store %arg9[%c0_16, %c0_17, %c0_18, %c0_19], %20 {strides = array<i32>} : memref<1x18x18x128xbf16, #tpu.memory_space<vmem>>, vector<1x18x1x128xbf16>,
    %cst_20 = arith.constant 0.000000e+00 : bf16
    %21 = vector.broadcast %cst_20 : bf16 to vector<18x1x128xbf16>
    %c0_21 = arith.constant 0 : index
    %c0_22 = arith.constant 0 : index
    %c17_23 = arith.constant 17 : index
    %c0_24 = arith.constant 0 : index
    %22 = vector.load %arg9[%c0_21, %c0_22, %c17_23, %c0_24] : memref<1x18x18x128xbf16, #tpu.memory_space<vmem>>, vector<1x18x1x128xbf16>
    %23 = vector.shape_cast %22 : vector<1x18x1x128xbf16> to vector<18x1x128xbf16>
    %24 = vector.shape_cast %21 : vector<18x1x128xbf16> to vector<1x18x1x128xbf16>
    tpu.vector_store %arg9[%c0_21, %c0_22, %c17_23, %c0_24], %24 {strides = array<i32>} : memref<1x18x18x128xbf16, #tpu.memory_space<vmem>>, vector<1x18x1x128xbf16>,
    %25 = vector.shape_cast %8 : vector<256x128xbf16> to vector<16x16x128xbf16>
    %c0_25 = arith.constant 0 : index
    %c1 = arith.constant 1 : index
    %c1_26 = arith.constant 1 : index
    %c0_27 = arith.constant 0 : index
    %26 = vector.load %arg9[%c0_25, %c1, %c1_26, %c0_27] : memref<1x18x18x128xbf16, #tpu.memory_space<vmem>>, vector<1x16x16x128xbf16>
    %27 = vector.shape_cast %26 : vector<1x16x16x128xbf16> to vector<16x16x128xbf16>
    %28 = vector.shape_cast %25 : vector<16x16x128xbf16> to vector<1x16x16x128xbf16>
    tpu.vector_store %arg9[%c0_25, %c1, %c1_26, %c0_27], %28 {strides = array<i32>} : memref<1x18x18x128xbf16, #tpu.memory_space<vmem>>, vector<1x16x16x128xbf16>,
    %c0_28 = arith.constant 0 : index
    %c0_29 = arith.constant 0 : index
    %c0_30 = arith.constant 0 : index
    %c0_31 = arith.constant 0 : index
    %29 = vector.load %arg9[%c0_28, %c0_29, %c0_30, %c0_31] : memref<1x18x18x128xbf16, #tpu.memory_space<vmem>>, vector<1x16x16x128xbf16>
    %30 = vector.shape_cast %29 : vector<1x16x16x128xbf16> to vector<16x16x128xbf16>
    %31 = vector.shape_cast %30 : vector<16x16x128xbf16> to vector<256x128xbf16>
    %c0_32 = arith.constant 0 : index
    %c0_33 = arith.constant 0 : index
    %32 = vector.load %arg11[%c0_32, %c0_33] : memref<256x1152xbf16, #tpu.memory_space<vmem>>, vector<256x128xbf16>
    tpu.vector_store %arg11[%c0_32, %c0_33], %31 {strides = array<i32>} : memref<256x1152xbf16, #tpu.memory_space<vmem>>, vector<256x128xbf16>,
    %c0_34 = arith.constant 0 : index
    %c0_35 = arith.constant 0 : index
    %c1_36 = arith.constant 1 : index
    %c0_37 = arith.constant 0 : index
    %33 = vector.load %arg9[%c0_34, %c0_35, %c1_36, %c0_37] : memref<1x18x18x128xbf16, #tpu.memory_space<vmem>>, vector<1x16x16x128xbf16>
    %34 = vector.shape_cast %33 : vector<1x16x16x128xbf16> to vector<16x16x128xbf16>
    %35 = vector.shape_cast %34 : vector<16x16x128xbf16> to vector<256x128xbf16>
    %c0_38 = arith.constant 0 : index
    %c128 = arith.constant 128 : index
    %36 = vector.load %arg11[%c0_38, %c128] : memref<256x1152xbf16, #tpu.memory_space<vmem>>, vector<256x128xbf16>
    tpu.vector_store %arg11[%c0_38, %c128], %35 {strides = array<i32>} : memref<256x1152xbf16, #tpu.memory_space<vmem>>, vector<256x128xbf16>,
    %c0_39 = arith.constant 0 : index
    %c0_40 = arith.constant 0 : index
    %c2 = arith.constant 2 : index
    %c0_41 = arith.constant 0 : index
    %37 = vector.load %arg9[%c0_39, %c0_40, %c2, %c0_41] : memref<1x18x18x128xbf16, #tpu.memory_space<vmem>>, vector<1x16x16x128xbf16>
    %38 = vector.shape_cast %37 : vector<1x16x16x128xbf16> to vector<16x16x128xbf16>
    %39 = vector.shape_cast %38 : vector<16x16x128xbf16> to vector<256x128xbf16>
    %c0_42 = arith.constant 0 : index
    %c256 = arith.constant 256 : index
    %40 = vector.load %arg11[%c0_42, %c256] : memref<256x1152xbf16, #tpu.memory_space<vmem>>, vector<256x128xbf16>
    tpu.vector_store %arg11[%c0_42, %c256], %39 {strides = array<i32>} : memref<256x1152xbf16, #tpu.memory_space<vmem>>, vector<256x128xbf16>,
    %c0_43 = arith.constant 0 : index
    %c1_44 = arith.constant 1 : index
    %c0_45 = arith.constant 0 : index
    %c0_46 = arith.constant 0 : index
    %41 = vector.load %arg9[%c0_43, %c1_44, %c0_45, %c0_46] : memref<1x18x18x128xbf16, #tpu.memory_space<vmem>>, vector<1x16x16x128xbf16>
    %42 = vector.shape_cast %41 : vector<1x16x16x128xbf16> to vector<16x16x128xbf16>
    %43 = vector.shape_cast %42 : vector<16x16x128xbf16> to vector<256x128xbf16>
    %c0_47 = arith.constant 0 : index
    %c384 = arith.constant 384 : index
    %44 = vector.load %arg11[%c0_47, %c384] : memref<256x1152xbf16, #tpu.memory_space<vmem>>, vector<256x128xbf16>
    tpu.vector_store %arg11[%c0_47, %c384], %43 {strides = array<i32>} : memref<256x1152xbf16, #tpu.memory_space<vmem>>, vector<256x128xbf16>,
    %c0_48 = arith.constant 0 : index
    %c1_49 = arith.constant 1 : index
    %c1_50 = arith.constant 1 : index
    %c0_51 = arith.constant 0 : index
    %45 = vector.load %arg9[%c0_48, %c1_49, %c1_50, %c0_51] : memref<1x18x18x128xbf16, #tpu.memory_space<vmem>>, vector<1x16x16x128xbf16>
    %46 = vector.shape_cast %45 : vector<1x16x16x128xbf16> to vector<16x16x128xbf16>
    %47 = vector.shape_cast %46 : vector<16x16x128xbf16> to vector<256x128xbf16>
    %c0_52 = arith.constant 0 : index
    %c512 = arith.constant 512 : index
    %48 = vector.load %arg11[%c0_52, %c512] : memref<256x1152xbf16, #tpu.memory_space<vmem>>, vector<256x128xbf16>
    tpu.vector_store %arg11[%c0_52, %c512], %47 {strides = array<i32>} : memref<256x1152xbf16, #tpu.memory_space<vmem>>, vector<256x128xbf16>,
    %c0_53 = arith.constant 0 : index
    %c1_54 = arith.constant 1 : index
    %c2_55 = arith.constant 2 : index
    %c0_56 = arith.constant 0 : index
    %49 = vector.load %arg9[%c0_53, %c1_54, %c2_55, %c0_56] : memref<1x18x18x128xbf16, #tpu.memory_space<vmem>>, vector<1x16x16x128xbf16>
    %50 = vector.shape_cast %49 : vector<1x16x16x128xbf16> to vector<16x16x128xbf16>
    %51 = vector.shape_cast %50 : vector<16x16x128xbf16> to vector<256x128xbf16>
    %c0_57 = arith.constant 0 : index
    %c640 = arith.constant 640 : index
    %52 = vector.load %arg11[%c0_57, %c640] : memref<256x1152xbf16, #tpu.memory_space<vmem>>, vector<256x128xbf16>
    tpu.vector_store %arg11[%c0_57, %c640], %51 {strides = array<i32>} : memref<256x1152xbf16, #tpu.memory_space<vmem>>, vector<256x128xbf16>,
    %c0_58 = arith.constant 0 : index
    %c2_59 = arith.constant 2 : index
    %c0_60 = arith.constant 0 : index
    %c0_61 = arith.constant 0 : index
    %53 = vector.load %arg9[%c0_58, %c2_59, %c0_60, %c0_61] : memref<1x18x18x128xbf16, #tpu.memory_space<vmem>>, vector<1x16x16x128xbf16>
    %54 = vector.shape_cast %53 : vector<1x16x16x128xbf16> to vector<16x16x128xbf16>
    %55 = vector.shape_cast %54 : vector<16x16x128xbf16> to vector<256x128xbf16>
    %c0_62 = arith.constant 0 : index
    %c768 = arith.constant 768 : index
    %56 = vector.load %arg11[%c0_62, %c768] : memref<256x1152xbf16, #tpu.memory_space<vmem>>, vector<256x128xbf16>
    tpu.vector_store %arg11[%c0_62, %c768], %55 {strides = array<i32>} : memref<256x1152xbf16, #tpu.memory_space<vmem>>, vector<256x128xbf16>,
    %c0_63 = arith.constant 0 : index
    %c2_64 = arith.constant 2 : index
    %c1_65 = arith.constant 1 : index
    %c0_66 = arith.constant 0 : index
    %57 = vector.load %arg9[%c0_63, %c2_64, %c1_65, %c0_66] : memref<1x18x18x128xbf16, #tpu.memory_space<vmem>>, vector<1x16x16x128xbf16>
    %58 = vector.shape_cast %57 : vector<1x16x16x128xbf16> to vector<16x16x128xbf16>
    %59 = vector.shape_cast %58 : vector<16x16x128xbf16> to vector<256x128xbf16>
    %c0_67 = arith.constant 0 : index
    %c896 = arith.constant 896 : index
    %60 = vector.load %arg11[%c0_67, %c896] : memref<256x1152xbf16, #tpu.memory_space<vmem>>, vector<256x128xbf16>
    tpu.vector_store %arg11[%c0_67, %c896], %59 {strides = array<i32>} : memref<256x1152xbf16, #tpu.memory_space<vmem>>, vector<256x128xbf16>,
    %c0_68 = arith.constant 0 : index
    %c2_69 = arith.constant 2 : index
    %c2_70 = arith.constant 2 : index
    %c0_71 = arith.constant 0 : index
    %61 = vector.load %arg9[%c0_68, %c2_69, %c2_70, %c0_71] : memref<1x18x18x128xbf16, #tpu.memory_space<vmem>>, vector<1x16x16x128xbf16>
    %62 = vector.shape_cast %61 : vector<1x16x16x128xbf16> to vector<16x16x128xbf16>
    %63 = vector.shape_cast %62 : vector<16x16x128xbf16> to vector<256x128xbf16>
    %c0_72 = arith.constant 0 : index
    %c1024 = arith.constant 1024 : index
    %64 = vector.load %arg11[%c0_72, %c1024] : memref<256x1152xbf16, #tpu.memory_space<vmem>>, vector<256x128xbf16>
    tpu.vector_store %arg11[%c0_72, %c1024], %63 {strides = array<i32>} : memref<256x1152xbf16, #tpu.memory_space<vmem>>, vector<256x128xbf16>,
    %c0_73 = arith.constant 0 : index
    %c0_74 = arith.constant 0 : index
    %65 = vector.load %arg11[%c0_73, %c0_74] : memref<256x1152xbf16, #tpu.memory_space<vmem>>, vector<256x1152xbf16>
    %c0_75 = arith.constant 0 : index
    %c0_76 = arith.constant 0 : index
    %66 = vector.load %arg4[%c0_75, %c0_76] : memref<1152x128xbf16, #tpu.memory_space<vmem>>, vector<1152x128xbf16>
    %cst_77 = arith.constant dense<0.000000e+00> : vector<256x128xf32>
    %67 = tpu.matmul %65, %66, %cst_77 {dimension_numbers = #tpu.dot_dimension_numbers<[1], [0], [0], [1], [0, 0, 1, 1], [], []>} : vector<256x1152xbf16>, vector<1152x128xbf16>, vector<256x128xf32> -> vector<256x128xf32>
    %c0_78 = arith.constant 0 : index
    %c0_79 = arith.constant 0 : index
    %68 = vector.load %arg5[%c0_78, %c0_79] : memref<1x128xf32, #tpu.memory_space<vmem>>, vector<1x128xf32>
    %69 = vector.broadcast %68 : vector<1x128xf32> to vector<256x128xf32>
    %70 = arith.addf %67, %69 : vector<256x128xf32>
    %cst_80 = arith.constant 0.000000e+00 : f32
    %71 = vector.broadcast %cst_80 : f32 to vector<256x128xf32>
    %72 = arith.subf %71, %70 : vector<256x128xf32>
    %73 = math.exp %72 : vector<256x128xf32>
    %cst_81 = arith.constant 1.000000e+00 : f32
    %74 = vector.broadcast %cst_81 : f32 to vector<256x128xf32>
    %75 = arith.addf %74, %73 : vector<256x128xf32>
    %76 = tpu.reciprocal %75 {approx = true} : vector<256x128xf32> -> vector<256x128xf32>
    %77 = arith.mulf %70, %76 : vector<256x128xf32>
    %78 = arith.truncf %77 : vector<256x128xf32> to vector<256x128xbf16>
    %cst_82 = arith.constant 0.000000e+00 : bf16
    %79 = vector.broadcast %cst_82 : bf16 to vector<1x18x128xbf16>
    %c0_83 = arith.constant 0 : index
    %c0_84 = arith.constant 0 : index
    %c0_85 = arith.constant 0 : index
    %c0_86 = arith.constant 0 : index
    %80 = vector.load %arg10[%c0_83, %c0_84, %c0_85, %c0_86] : memref<1x18x18x128xbf16, #tpu.memory_space<vmem>>, vector<1x1x18x128xbf16>
    %81 = vector.shape_cast %80 : vector<1x1x18x128xbf16> to vector<1x18x128xbf16>
    %82 = vector.shape_cast %79 : vector<1x18x128xbf16> to vector<1x1x18x128xbf16>
    tpu.vector_store %arg10[%c0_83, %c0_84, %c0_85, %c0_86], %82 {strides = array<i32>} : memref<1x18x18x128xbf16, #tpu.memory_space<vmem>>, vector<1x1x18x128xbf16>,
    %cst_87 = arith.constant 0.000000e+00 : bf16
    %83 = vector.broadcast %cst_87 : bf16 to vector<1x18x128xbf16>
    %c0_88 = arith.constant 0 : index
    %c17_89 = arith.constant 17 : index
    %c0_90 = arith.constant 0 : index
    %c0_91 = arith.constant 0 : index
    %84 = vector.load %arg10[%c0_88, %c17_89, %c0_90, %c0_91] : memref<1x18x18x128xbf16, #tpu.memory_space<vmem>>, vector<1x1x18x128xbf16>
    %85 = vector.shape_cast %84 : vector<1x1x18x128xbf16> to vector<1x18x128xbf16>
    %86 = vector.shape_cast %83 : vector<1x18x128xbf16> to vector<1x1x18x128xbf16>
    tpu.vector_store %arg10[%c0_88, %c17_89, %c0_90, %c0_91], %86 {strides = array<i32>} : memref<1x18x18x128xbf16, #tpu.memory_space<vmem>>, vector<1x1x18x128xbf16>,
    %cst_92 = arith.constant 0.000000e+00 : bf16
    %87 = vector.broadcast %cst_92 : bf16 to vector<18x1x128xbf16>
    %c0_93 = arith.constant 0 : index
    %c0_94 = arith.constant 0 : index
    %c0_95 = arith.constant 0 : index
    %c0_96 = arith.constant 0 : index
    %88 = vector.load %arg10[%c0_93, %c0_94, %c0_95, %c0_96] : memref<1x18x18x128xbf16, #tpu.memory_space<vmem>>, vector<1x18x1x128xbf16>
    %89 = vector.shape_cast %88 : vector<1x18x1x128xbf16> to vector<18x1x128xbf16>
    %90 = vector.shape_cast %87 : vector<18x1x128xbf16> to vector<1x18x1x128xbf16>
    tpu.vector_store %arg10[%c0_93, %c0_94, %c0_95, %c0_96], %90 {strides = array<i32>} : memref<1x18x18x128xbf16, #tpu.memory_space<vmem>>, vector<1x18x1x128xbf16>,
    %cst_97 = arith.constant 0.000000e+00 : bf16
    %91 = vector.broadcast %cst_97 : bf16 to vector<18x1x128xbf16>
    %c0_98 = arith.constant 0 : index
    %c0_99 = arith.constant 0 : index
    %c17_100 = arith.constant 17 : index
    %c0_101 = arith.constant 0 : index
    %92 = vector.load %arg10[%c0_98, %c0_99, %c17_100, %c0_101] : memref<1x18x18x128xbf16, #tpu.memory_space<vmem>>, vector<1x18x1x128xbf16>
    %93 = vector.shape_cast %92 : vector<1x18x1x128xbf16> to vector<18x1x128xbf16>
    %94 = vector.shape_cast %91 : vector<18x1x128xbf16> to vector<1x18x1x128xbf16>
    tpu.vector_store %arg10[%c0_98, %c0_99, %c17_100, %c0_101], %94 {strides = array<i32>} : memref<1x18x18x128xbf16, #tpu.memory_space<vmem>>, vector<1x18x1x128xbf16>,
    %95 = vector.shape_cast %78 : vector<256x128xbf16> to vector<16x16x128xbf16>
    %c0_102 = arith.constant 0 : index
    %c1_103 = arith.constant 1 : index
    %c1_104 = arith.constant 1 : index
    %c0_105 = arith.constant 0 : index
    %96 = vector.load %arg10[%c0_102, %c1_103, %c1_104, %c0_105] : memref<1x18x18x128xbf16, #tpu.memory_space<vmem>>, vector<1x16x16x128xbf16>
    %97 = vector.shape_cast %96 : vector<1x16x16x128xbf16> to vector<16x16x128xbf16>
    %98 = vector.shape_cast %95 : vector<16x16x128xbf16> to vector<1x16x16x128xbf16>
    tpu.vector_store %arg10[%c0_102, %c1_103, %c1_104, %c0_105], %98 {strides = array<i32>} : memref<1x18x18x128xbf16, #tpu.memory_space<vmem>>, vector<1x16x16x128xbf16>,
    %c0_106 = arith.constant 0 : index
    %c0_107 = arith.constant 0 : index
    %c0_108 = arith.constant 0 : index
    %c0_109 = arith.constant 0 : index
    %99 = vector.load %arg10[%c0_106, %c0_107, %c0_108, %c0_109] : memref<1x18x18x128xbf16, #tpu.memory_space<vmem>>, vector<1x16x16x128xbf16>
    %100 = vector.shape_cast %99 : vector<1x16x16x128xbf16> to vector<16x16x128xbf16>
    %101 = vector.shape_cast %100 : vector<16x16x128xbf16> to vector<256x128xbf16>
    %c0_110 = arith.constant 0 : index
    %c0_111 = arith.constant 0 : index
    %102 = vector.load %arg11[%c0_110, %c0_111] : memref<256x1152xbf16, #tpu.memory_space<vmem>>, vector<256x128xbf16>
    tpu.vector_store %arg11[%c0_110, %c0_111], %101 {strides = array<i32>} : memref<256x1152xbf16, #tpu.memory_space<vmem>>, vector<256x128xbf16>,
    %c0_112 = arith.constant 0 : index
    %c0_113 = arith.constant 0 : index
    %c1_114 = arith.constant 1 : index
    %c0_115 = arith.constant 0 : index
    %103 = vector.load %arg10[%c0_112, %c0_113, %c1_114, %c0_115] : memref<1x18x18x128xbf16, #tpu.memory_space<vmem>>, vector<1x16x16x128xbf16>
    %104 = vector.shape_cast %103 : vector<1x16x16x128xbf16> to vector<16x16x128xbf16>
    %105 = vector.shape_cast %104 : vector<16x16x128xbf16> to vector<256x128xbf16>
    %c0_116 = arith.constant 0 : index
    %c128_117 = arith.constant 128 : index
    %106 = vector.load %arg11[%c0_116, %c128_117] : memref<256x1152xbf16, #tpu.memory_space<vmem>>, vector<256x128xbf16>
    tpu.vector_store %arg11[%c0_116, %c128_117], %105 {strides = array<i32>} : memref<256x1152xbf16, #tpu.memory_space<vmem>>, vector<256x128xbf16>,
    %c0_118 = arith.constant 0 : index
    %c0_119 = arith.constant 0 : index
    %c2_120 = arith.constant 2 : index
    %c0_121 = arith.constant 0 : index
    %107 = vector.load %arg10[%c0_118, %c0_119, %c2_120, %c0_121] : memref<1x18x18x128xbf16, #tpu.memory_space<vmem>>, vector<1x16x16x128xbf16>
    %108 = vector.shape_cast %107 : vector<1x16x16x128xbf16> to vector<16x16x128xbf16>
    %109 = vector.shape_cast %108 : vector<16x16x128xbf16> to vector<256x128xbf16>
    %c0_122 = arith.constant 0 : index
    %c256_123 = arith.constant 256 : index
    %110 = vector.load %arg11[%c0_122, %c256_123] : memref<256x1152xbf16, #tpu.memory_space<vmem>>, vector<256x128xbf16>
    tpu.vector_store %arg11[%c0_122, %c256_123], %109 {strides = array<i32>} : memref<256x1152xbf16, #tpu.memory_space<vmem>>, vector<256x128xbf16>,
    %c0_124 = arith.constant 0 : index
    %c1_125 = arith.constant 1 : index
    %c0_126 = arith.constant 0 : index
    %c0_127 = arith.constant 0 : index
    %111 = vector.load %arg10[%c0_124, %c1_125, %c0_126, %c0_127] : memref<1x18x18x128xbf16, #tpu.memory_space<vmem>>, vector<1x16x16x128xbf16>
    %112 = vector.shape_cast %111 : vector<1x16x16x128xbf16> to vector<16x16x128xbf16>
    %113 = vector.shape_cast %112 : vector<16x16x128xbf16> to vector<256x128xbf16>
    %c0_128 = arith.constant 0 : index
    %c384_129 = arith.constant 384 : index
    %114 = vector.load %arg11[%c0_128, %c384_129] : memref<256x1152xbf16, #tpu.memory_space<vmem>>, vector<256x128xbf16>
    tpu.vector_store %arg11[%c0_128, %c384_129], %113 {strides = array<i32>} : memref<256x1152xbf16, #tpu.memory_space<vmem>>, vector<256x128xbf16>,
    %c0_130 = arith.constant 0 : index
    %c1_131 = arith.constant 1 : index
    %c1_132 = arith.constant 1 : index
    %c0_133 = arith.constant 0 : index
    %115 = vector.load %arg10[%c0_130, %c1_131, %c1_132, %c0_133] : memref<1x18x18x128xbf16, #tpu.memory_space<vmem>>, vector<1x16x16x128xbf16>
    %116 = vector.shape_cast %115 : vector<1x16x16x128xbf16> to vector<16x16x128xbf16>
    %117 = vector.shape_cast %116 : vector<16x16x128xbf16> to vector<256x128xbf16>
    %c0_134 = arith.constant 0 : index
    %c512_135 = arith.constant 512 : index
    %118 = vector.load %arg11[%c0_134, %c512_135] : memref<256x1152xbf16, #tpu.memory_space<vmem>>, vector<256x128xbf16>
    tpu.vector_store %arg11[%c0_134, %c512_135], %117 {strides = array<i32>} : memref<256x1152xbf16, #tpu.memory_space<vmem>>, vector<256x128xbf16>,
    %c0_136 = arith.constant 0 : index
    %c1_137 = arith.constant 1 : index
    %c2_138 = arith.constant 2 : index
    %c0_139 = arith.constant 0 : index
    %119 = vector.load %arg10[%c0_136, %c1_137, %c2_138, %c0_139] : memref<1x18x18x128xbf16, #tpu.memory_space<vmem>>, vector<1x16x16x128xbf16>
    %120 = vector.shape_cast %119 : vector<1x16x16x128xbf16> to vector<16x16x128xbf16>
    %121 = vector.shape_cast %120 : vector<16x16x128xbf16> to vector<256x128xbf16>
    %c0_140 = arith.constant 0 : index
    %c640_141 = arith.constant 640 : index
    %122 = vector.load %arg11[%c0_140, %c640_141] : memref<256x1152xbf16, #tpu.memory_space<vmem>>, vector<256x128xbf16>
    tpu.vector_store %arg11[%c0_140, %c640_141], %121 {strides = array<i32>} : memref<256x1152xbf16, #tpu.memory_space<vmem>>, vector<256x128xbf16>,
    %c0_142 = arith.constant 0 : index
    %c2_143 = arith.constant 2 : index
    %c0_144 = arith.constant 0 : index
    %c0_145 = arith.constant 0 : index
    %123 = vector.load %arg10[%c0_142, %c2_143, %c0_144, %c0_145] : memref<1x18x18x128xbf16, #tpu.memory_space<vmem>>, vector<1x16x16x128xbf16>
    %124 = vector.shape_cast %123 : vector<1x16x16x128xbf16> to vector<16x16x128xbf16>
    %125 = vector.shape_cast %124 : vector<16x16x128xbf16> to vector<256x128xbf16>
    %c0_146 = arith.constant 0 : index
    %c768_147 = arith.constant 768 : index
    %126 = vector.load %arg11[%c0_146, %c768_147] : memref<256x1152xbf16, #tpu.memory_space<vmem>>, vector<256x128xbf16>
    tpu.vector_store %arg11[%c0_146, %c768_147], %125 {strides = array<i32>} : memref<256x1152xbf16, #tpu.memory_space<vmem>>, vector<256x128xbf16>,
    %c0_148 = arith.constant 0 : index
    %c2_149 = arith.constant 2 : index
    %c1_150 = arith.constant 1 : index
    %c0_151 = arith.constant 0 : index
    %127 = vector.load %arg10[%c0_148, %c2_149, %c1_150, %c0_151] : memref<1x18x18x128xbf16, #tpu.memory_space<vmem>>, vector<1x16x16x128xbf16>
    %128 = vector.shape_cast %127 : vector<1x16x16x128xbf16> to vector<16x16x128xbf16>
    %129 = vector.shape_cast %128 : vector<16x16x128xbf16> to vector<256x128xbf16>
    %c0_152 = arith.constant 0 : index
    %c896_153 = arith.constant 896 : index
    %130 = vector.load %arg11[%c0_152, %c896_153] : memref<256x1152xbf16, #tpu.memory_space<vmem>>, vector<256x128xbf16>
    tpu.vector_store %arg11[%c0_152, %c896_153], %129 {strides = array<i32>} : memref<256x1152xbf16, #tpu.memory_space<vmem>>, vector<256x128xbf16>,
    %c0_154 = arith.constant 0 : index
    %c2_155 = arith.constant 2 : index
    %c2_156 = arith.constant 2 : index
    %c0_157 = arith.constant 0 : index
    %131 = vector.load %arg10[%c0_154, %c2_155, %c2_156, %c0_157] : memref<1x18x18x128xbf16, #tpu.memory_space<vmem>>, vector<1x16x16x128xbf16>
    %132 = vector.shape_cast %131 : vector<1x16x16x128xbf16> to vector<16x16x128xbf16>
    %133 = vector.shape_cast %132 : vector<16x16x128xbf16> to vector<256x128xbf16>
    %c0_158 = arith.constant 0 : index
    %c1024_159 = arith.constant 1024 : index
    %134 = vector.load %arg11[%c0_158, %c1024_159] : memref<256x1152xbf16, #tpu.memory_space<vmem>>, vector<256x128xbf16>
    tpu.vector_store %arg11[%c0_158, %c1024_159], %133 {strides = array<i32>} : memref<256x1152xbf16, #tpu.memory_space<vmem>>, vector<256x128xbf16>,
    %c0_160 = arith.constant 0 : index
    %c0_161 = arith.constant 0 : index
    %c0_162 = arith.constant 0 : index
    %c0_163 = arith.constant 0 : index
    %135 = vector.load %arg3[%c0_160, %c0_161, %c0_162, %c0_163] : memref<1x16x16x128xf32, #tpu.memory_space<vmem>>, vector<1x16x16x128xf32>
    %136 = vector.shape_cast %135 : vector<1x16x16x128xf32> to vector<256x128xf32>
    %c0_164 = arith.constant 0 : index
    %c0_165 = arith.constant 0 : index
    %137 = vector.load %arg11[%c0_164, %c0_165] : memref<256x1152xbf16, #tpu.memory_space<vmem>>, vector<256x1152xbf16>
    %c0_166 = arith.constant 0 : index
    %c0_167 = arith.constant 0 : index
    %138 = vector.load %arg6[%c0_166, %c0_167] : memref<1152x128xbf16, #tpu.memory_space<vmem>>, vector<1152x128xbf16>
    %cst_168 = arith.constant dense<0.000000e+00> : vector<256x128xf32>
    %139 = tpu.matmul %137, %138, %cst_168 {dimension_numbers = #tpu.dot_dimension_numbers<[1], [0], [0], [1], [0, 0, 1, 1], [], []>} : vector<256x1152xbf16>, vector<1152x128xbf16>, vector<256x128xf32> -> vector<256x128xf32>
    %c0_169 = arith.constant 0 : index
    %c0_170 = arith.constant 0 : index
    %140 = vector.load %arg7[%c0_169, %c0_170] : memref<1x128xf32, #tpu.memory_space<vmem>>, vector<1x128xf32>
    %141 = vector.broadcast %140 : vector<1x128xf32> to vector<256x128xf32>
    %142 = arith.addf %139, %141 : vector<256x128xf32>
    %143 = arith.addf %142, %136 : vector<256x128xf32>
    %144 = vector.shape_cast %143 : vector<256x128xf32> to vector<1x16x16x128xf32>
    %c0_171 = arith.constant 0 : index
    %c0_172 = arith.constant 0 : index
    %c0_173 = arith.constant 0 : index
    %c0_174 = arith.constant 0 : index
    %145 = vector.load %arg8[%c0_171, %c0_172, %c0_173, %c0_174] : memref<1x16x16x128xf32, #tpu.memory_space<vmem>>, vector<1x16x16x128xf32>
    tpu.vector_store %arg8[%c0_171, %c0_172, %c0_173, %c0_174], %144 {strides = array<i32>} : memref<1x16x16x128xf32, #tpu.memory_space<vmem>>, vector<1x16x16x128xf32>,
    return
  }
  func.func @transform_0(%arg0: i32) -> (i32, i32) {
    %c0_i32 = arith.constant 0 : i32
    %c0_i32_0 = arith.constant 0 : i32
    %c0_i32_1 = arith.constant 0 : i32
    return %c0_i32, %c0_i32_0 : i32, i32
  }
  func.func @transform_1(%arg0: i32) -> (i32, i32) {
    %c0_i32 = arith.constant 0 : i32
    %c0_i32_0 = arith.constant 0 : i32
    %c0_i32_1 = arith.constant 0 : i32
    return %c0_i32, %c0_i32_0 : i32, i32
  }
  func.func @transform_2(%arg0: i32) -> (i32, i32, i32, i32) {
    %c0_i32 = arith.constant 0 : i32
    %c0_i32_0 = arith.constant 0 : i32
    %c0_i32_1 = arith.constant 0 : i32
    %c0_i32_2 = arith.constant 0 : i32
    return %arg0, %c0_i32, %c0_i32_0, %c0_i32_1 : i32, i32, i32, i32
  }
  func.func @transform_3(%arg0: i32) -> (i32, i32) {
    %c0_i32 = arith.constant 0 : i32
    %c0_i32_0 = arith.constant 0 : i32
    %c0_i32_1 = arith.constant 0 : i32
    return %c0_i32, %c0_i32_0 : i32, i32
  }
  func.func @transform_4(%arg0: i32) -> (i32, i32) {
    %c0_i32 = arith.constant 0 : i32
    %c0_i32_0 = arith.constant 0 : i32
    %c0_i32_1 = arith.constant 0 : i32
    return %c0_i32, %c0_i32_0 : i32, i32
  }
  func.func @transform_5(%arg0: i32) -> (i32, i32) {
    %c0_i32 = arith.constant 0 : i32
    %c0_i32_0 = arith.constant 0 : i32
    %c0_i32_1 = arith.constant 0 : i32
    return %c0_i32, %c0_i32_0 : i32, i32
  }
  func.func @transform_6(%arg0: i32) -> (i32, i32) {
    %c0_i32 = arith.constant 0 : i32
    %c0_i32_0 = arith.constant 0 : i32
    %c0_i32_1 = arith.constant 0 : i32
    return %c0_i32, %c0_i32_0 : i32, i32
  }
  func.func @transform_7(%arg0: i32) -> (i32, i32, i32, i32) {
    %c0_i32 = arith.constant 0 : i32
    %c0_i32_0 = arith.constant 0 : i32
    %c0_i32_1 = arith.constant 0 : i32
    %c0_i32_2 = arith.constant 0 : i32
    return %arg0, %c0_i32, %c0_i32_0, %c0_i32_1 : i32, i32, i32, i32
  }
}

</mosaic_0001>

<llo_original>
// kernel: tpu_custom_call.1
$region0: #{tpu_custom_call.1}
  #allocation0 [shape = 'u32[]', space=smem, size = 0x4, offset = 0x4, fixed_abs, tag = 'smem constant byte address 0x4 - core index']
  #allocation1 [shape = 'u32[144,128]{1,0:T(1,128)}', space=vmem, size = 0x12000, scoped, tag = 'internal scratch']
  #allocation2 [shape = 'bf16[1,18,18,128]{3,2,1,0:T(8,128)(2,1)}', space=vmem, size = 0x1b000, scoped, tag = 'scratch operand']
  #allocation3 [shape = 'bf16[1,18,18,128]{3,2,1,0:T(8,128)(2,1)}', space=vmem, size = 0x1b000, scoped, tag = 'scratch operand']
  #allocation4 [shape = 'bf16[256,1152]{1,0:T(16,128)(2,1)}', space=vmem, size = 0x90000, scoped, tag = 'scratch operand']
  %s0 = inlined_call_operand.hbm [shape: f32[1,128], index: 0, kind: input, shape index: {}]
  %s1 = inlined_call_operand.vmem [shape: f32[1,128], index: 1, kind: input, shape index: {}]
  %s2 = inlined_call_operand.hbm [shape: f32[2,16,16,128], index: 2, kind: input, shape index: {}]
  %s3 = inlined_call_operand.hbm [shape: bf16[1152,128], index: 3, kind: input, shape index: {}]
  %s4 = inlined_call_operand.vmem [shape: f32[1,128], index: 4, kind: input, shape index: {}]
  %s5 = inlined_call_operand.hbm [shape: bf16[1152,128], index: 5, kind: input, shape index: {}]
  %s6 = inlined_call_operand.vmem [shape: f32[1,128], index: 6, kind: input, shape index: {}]
  %s7 = inlined_call_operand.hbm [shape: f32[2,16,16,128], index: 7, kind: output, shape index: {}]
  %s8 = sld [smem:[#allocation0]]
  $region77: #{tpu_custom_call.1} parent=0
    _
  %s10 = ssub.s32 1, %s8
  %s11 = scalar_select 0, %s10, %s8
  $region1: #{tpu_custom_call.1} parent=0
    #allocation5 [shape = 'u8[512]{0}', space=vmem, size = 0x400, scoped, tag = 'input window, operand 0, single buffered']
    #allocation6 [shape = 's32[2]{0}', space=sflag, size = 0x8, scoped, tag = 'scoped memory for tpu_custom_call.1']
    #allocation7 [shape = 's32[2]{0}', space=sflag, size = 0x8, scoped, tag = 'scoped memory for tpu_custom_call.1']
    #allocation8 [shape = 'u8[262144]{0}', space=vmem, size = 0x40000, scoped, tag = 'input window, operand 2']
    #allocation9 [shape = 's32[2]{0}', space=sflag, size = 0x8, scoped, tag = 'scoped memory for tpu_custom_call.1']
    #allocation10 [shape = 'u8[294912]{0}', space=vmem, size = 0x48000, scoped, tag = 'input window, operand 3, single buffered']
    #allocation11 [shape = 'u8[294912]{0}', space=vmem, size = 0x48000, scoped, tag = 'input window, operand 5, single buffered']
    #allocation12 [shape = 's32[1]{0}', space=sflag, size = 0x4, scoped, tag = 'scoped memory for tpu_custom_call.1']
    #allocation13 [shape = 'u8[262144]{0}', space=vmem, size = 0x40000, scoped, tag = 'output window, operand 0']
    %12 = vsyncpa [#allocation6], 0
    %13 = vsyncpa [#allocation9], 0
    %s14 = scalar_lea.sflag [#allocation9], 1
    %15 = vsyncpa %s14, 0
    %16 = vsyncpa [#allocation12], 0
    %17 = vsyncpa [#allocation7], 0
    %s18 = scalar_lea.sflag [#allocation7], 1
    %19 = vsyncpa %s18, 0
    loop: start=0, step=1, limit=4
    $region2: #{tpu_custom_call.1} parent=1 // loop_pre_header
      _
    $region3: #{tpu_custom_call.1} parent=1 // loop_header
      %s21 = sphi 0, %s25
      %p22 = scmp.ge.s32.totalorder %s21, 4
      %s29 = sphi 0, %s29
      %s31 = sphi 0, %s29
      %s32 = sphi 0, %s31
      %s46 = sphi 0, %s32
      %s50 = sphi 0, %s50
      %s52 = sphi 0, %s50
      %s53 = sphi 0, %s52
      %s67 = sphi 0, %s53
      %s73 = sphi 0, %s75
      %s76 = sphi 0, %s73
      %s77 = sphi 0, %s76
      %s93 = sphi 0, %s77
      %s97 = sphi 0, %s97
      %s99 = sphi 0, %s97
      %s100 = sphi 0, %s99
      %s114 = sphi 0, %s100
      %s118 = sphi 0, %s118
      %s120 = sphi 0, %s118
      %s121 = sphi 0, %s120
      %s135 = sphi 0, %s121
      %s139 = sphi 0, %s139
      %s141 = sphi 0, %s139
      %s142 = sphi 0, %s141
      %s156 = sphi 0, %s142
      %s160 = sphi 0, %s160
      %s162 = sphi 0, %s160
      %s163 = sphi 0, %s162
      %s177 = sphi 0, %s163
      %s183 = sphi 0, %s185
      %s186 = sphi 0, %s183
      %s187 = sphi 0, %s186
      %s203 = sphi 0, %s187
    $region4: #{tpu_custom_call.1} parent=1 // loop_header_branch
      %24 = sbr.rel (%p22) target = $region8
    $region5: #{tpu_custom_call.1} parent=1 // loop_body
      %s26 = ssub.s32 %s21, 1
      %s27 = ssub.s32 %s21, 2
      %s28 = sadd.s32 %s21, 1
      %s30 = sadd.s32 %s29, 1
      %p33 = scmp.eq.s32.totalorder %s21, 1
      %p34 = scmp.ne.s32.totalorder %s29, %s31
      %p35 = scmp.eq.s32.totalorder %s21, 0
      %p36 = por %p34, %p35
      %p37 = scmp.ne.s32.totalorder %s29, %s31
      %p38 = scmp.eq.s32.totalorder %s26, 1
      %p39 = por %p37, %p38
      %p40 = scmp.ne.s32.totalorder %s31, %s32
      %p41 = scmp.eq.s32.totalorder %s26, 0
      %p42 = por %p40, %p41
      %p43 = scmp.ne.s32.totalorder %s31, %s32
      %p44 = scmp.eq.s32.totalorder %s27, 1
      %p45 = por %p43, %p44
      %p47 = scmp.ne.s32.totalorder %s32, %s46
      %p48 = scmp.eq.s32.totalorder %s27, 0
      %p49 = por %p47, %p48
      %s51 = sadd.s32 %s50, 1
      %p54 = scmp.eq.s32.totalorder %s21, 1
      %p55 = scmp.ne.s32.totalorder %s50, %s52
      %p56 = scmp.eq.s32.totalorder %s21, 0
      %p57 = por %p55, %p56
      %p58 = scmp.ne.s32.totalorder %s50, %s52
      %p59 = scmp.eq.s32.totalorder %s26, 1
      %p60 = por %p58, %p59
      %p61 = scmp.ne.s32.totalorder %s52, %s53
      %p62 = scmp.eq.s32.totalorder %s26, 0
      %p63 = por %p61, %p62
      %p64 = scmp.ne.s32.totalorder %s52, %s53
      %p65 = scmp.eq.s32.totalorder %s27, 1
      %p66 = por %p64, %p65
      %p68 = scmp.ne.s32.totalorder %s53, %s67
      %p69 = scmp.eq.s32.totalorder %s27, 0
      %p70 = por %p68, %p69
      %s71 = ssub.s32 %s21, %s28
      %p72 = scmp.eq.s32.totalorder %s71, 0
      %s74 = sadd.s32 %s73, 1
      %s75 = scalar_select %p72, %s73, %s74
      %p78 = pneg %p72
      %p79 = scmp.eq.s32.totalorder %s21, 1
      %p80 = por %p78, %p79
      %p81 = scmp.ne.s32.totalorder %s73, %s76
      %p82 = scmp.eq.s32.totalorder %s21, 0
      %p83 = por %p81, %p82
      %p84 = scmp.ne.s32.totalorder %s73, %s76
      %p85 = scmp.eq.s32.totalorder %s26, 1
      %p86 = por %p84, %p85
      %p87 = scmp.ne.s32.totalorder %s76, %s77
      %p88 = scmp.eq.s32.totalorder %s26, 0
      %p89 = por %p87, %p88
      %p90 = scmp.ne.s32.totalorder %s76, %s77
      %p91 = scmp.eq.s32.totalorder %s27, 1
      %p92 = por %p90, %p91
      %p94 = scmp.ne.s32.totalorder %s77, %s93
      %p95 = scmp.eq.s32.totalorder %s27, 0
      %p96 = por %p94, %p95
      %s98 = sadd.s32 %s97, 1
      %p101 = scmp.eq.s32.totalorder %s21, 1
      %p102 = scmp.ne.s32.totalorder %s97, %s99
      %p103 = scmp.eq.s32.totalorder %s21, 0
      %p104 = por %p102, %p103
      %p105 = scmp.ne.s32.totalorder %s97, %s99
      %p106 = scmp.eq.s32.totalorder %s26, 1
      %p107 = por %p105, %p106
      %p108 = scmp.ne.s32.totalorder %s99, %s100
      %p109 = scmp.eq.s32.totalorder %s26, 0
      %p110 = por %p108, %p109
      %p111 = scmp.ne.s32.totalorder %s99, %s100
      %p112 = scmp.eq.s32.totalorder %s27, 1
      %p113 = por %p111, %p112
      %p115 = scmp.ne.s32.totalorder %s100, %s114
      %p116 = scmp.eq.s32.totalorder %s27, 0
      %p117 = por %p115, %p116
      %s119 = sadd.s32 %s118, 1
      %p122 = scmp.eq.s32.totalorder %s21, 1
      %p123 = scmp.ne.s32.totalorder %s118, %s120
      %p124 = scmp.eq.s32.totalorder %s21, 0
      %p125 = por %p123, %p124
      %p126 = scmp.ne.s32.totalorder %s118, %s120
      %p127 = scmp.eq.s32.totalorder %s26, 1
      %p128 = por %p126, %p127
      %p129 = scmp.ne.s32.totalorder %s120, %s121
      %p130 = scmp.eq.s32.totalorder %s26, 0
      %p131 = por %p129, %p130
      %p132 = scmp.ne.s32.totalorder %s120, %s121
      %p133 = scmp.eq.s32.totalorder %s27, 1
      %p134 = por %p132, %p133
      %p136 = scmp.ne.s32.totalorder %s121, %s135
      %p137 = scmp.eq.s32.totalorder %s27, 0
      %p138 = por %p136, %p137
      %s140 = sadd.s32 %s139, 1
      %p143 = scmp.eq.s32.totalorder %s21, 1
      %p144 = scmp.ne.s32.totalorder %s139, %s141
      %p145 = scmp.eq.s32.totalorder %s21, 0
      %p146 = por %p144, %p145
      %p147 = scmp.ne.s32.totalorder %s139, %s141
      %p148 = scmp.eq.s32.totalorder %s26, 1
      %p149 = por %p147, %p148
      %p150 = scmp.ne.s32.totalorder %s141, %s142
      %p151 = scmp.eq.s32.totalorder %s26, 0
      %p152 = por %p150, %p151
      %p153 = scmp.ne.s32.totalorder %s141, %s142
      %p154 = scmp.eq.s32.totalorder %s27, 1
      %p155 = por %p153, %p154
      %p157 = scmp.ne.s32.totalorder %s142, %s156
      %p158 = scmp.eq.s32.totalorder %s27, 0
      %p159 = por %p157, %p158
      %s161 = sadd.s32 %s160, 1
      %p164 = scmp.eq.s32.totalorder %s21, 1
      %p165 = scmp.ne.s32.totalorder %s160, %s162
      %p166 = scmp.eq.s32.totalorder %s21, 0
      %p167 = por %p165, %p166
      %p168 = scmp.ne.s32.totalorder %s160, %s162
      %p169 = scmp.eq.s32.totalorder %s26, 1
      %p170 = por %p168, %p169
      %p171 = scmp.ne.s32.totalorder %s162, %s163
      %p172 = scmp.eq.s32.totalorder %s26, 0
      %p173 = por %p171, %p172
      %p174 = scmp.ne.s32.totalorder %s162, %s163
      %p175 = scmp.eq.s32.totalorder %s27, 1
      %p176 = por %p174, %p175
      %p178 = scmp.ne.s32.totalorder %s163, %s177
      %p179 = scmp.eq.s32.totalorder %s27, 0
      %p180 = por %p178, %p179
      %s181 = ssub.s32 %s21, %s28
      %p182 = scmp.eq.s32.totalorder %s181, 0
      %s184 = sadd.s32 %s183, 1
      %s185 = scalar_select %p182, %s183, %s184
      %p188 = pneg %p182
      %p189 = scmp.eq.s32.totalorder %s21, 1
      %p190 = por %p188, %p189
      %p191 = scmp.ne.s32.totalorder %s183, %s186
      %p192 = scmp.eq.s32.totalorder %s21, 0
      %p193 = por %p191, %p192
      %p194 = scmp.ne.s32.totalorder %s183, %s186
      %p195 = scmp.eq.s32.totalorder %s26, 1
      %p196 = por %p194, %p195
      %p197 = scmp.ne.s32.totalorder %s186, %s187
      %p198 = scmp.eq.s32.totalorder %s26, 0
      %p199 = por %p197, %p198
      %p200 = scmp.ne.s32.totalorder %s186, %s187
      %p201 = scmp.eq.s32.totalorder %s27, 1
      %p202 = por %p200, %p201
      %p204 = scmp.ne.s32.totalorder %s187, %s203
      %p205 = scmp.eq.s32.totalorder %s27, 0
      %p206 = por %p204, %p205
      %p207 = scmp.le.s32.totalorder 1, %s21
      %p208 = scmp.lt.s32.totalorder %s21, 3
      %p209 = pnand %p207, %p208
      %p210 = pneg %p209
      // Predicated region
      $region9: #{tpu_custom_call.1} parent=5 // pred_check
        _
      $region10: #{tpu_custom_call.1} parent=5 // pred_check_branch
        %212 = sbr.rel (%p209) target = $region12
      $region11: #{tpu_custom_call.1} parent=5 // pred_region
        %s213 = ssub.s32 %s21, 1
        // Predicated region
        $region13: #{tpu_custom_call.1} parent=11 // pred_check
          %p214 = pneg %p42
        $region14: #{tpu_custom_call.1} parent=11 // pred_check_branch
          %216 = sbr.rel (%p214) target = $region16
        $region15: #{tpu_custom_call.1} parent=11 // pred_region
          %s218 = ssub.s32 16, 16
          %219 = vsyncadd [#allocation6], %s218
          %s221 = sshll.u32 [#allocation5], 4
          %s222 = int_to_ptr.vmem [resolvable:$true] %s221
          %224 = dma.hbm_to_vmem [thread:$0]  %s0, 16, %s222, [#allocation6]
        $region16: #{tpu_custom_call.1} parent=11 // pred_fallthru
          _
        // Predicated region
        $region17: #{tpu_custom_call.1} parent=11 // pred_check
          %p225 = pneg %p63
        $region18: #{tpu_custom_call.1} parent=11 // pred_check_branch
          %227 = sbr.rel (%p225) target = $region20
        $region19: #{tpu_custom_call.1} parent=11 // pred_region
          _
        $region20: #{tpu_custom_call.1} parent=11 // pred_fallthru
          _
        // Predicated region
        $region21: #{tpu_custom_call.1} parent=11 // pred_check
          %p228 = pneg %p110
        $region22: #{tpu_custom_call.1} parent=11 // pred_check_branch
          %230 = sbr.rel (%p228) target = $region24
        $region23: #{tpu_custom_call.1} parent=11 // pred_region
          %s232 = ssub.s32 9216, 9216
          %233 = vsyncadd [#allocation9], %s232
          %s234 = sshll.u32 [#allocation10], 4
          %s235 = int_to_ptr.vmem [resolvable:$true] %s234
          %240 = dma.hbm_to_vmem [thread:$0]  %s3, 9216, %s235, [#allocation9], 64, 64, 4
        $region24: #{tpu_custom_call.1} parent=11 // pred_fallthru
          _
        // Predicated region
        $region25: #{tpu_custom_call.1} parent=11 // pred_check
          %p241 = pneg %p131
        $region26: #{tpu_custom_call.1} parent=11 // pred_check_branch
          %243 = sbr.rel (%p241) target = $region28
        $region27: #{tpu_custom_call.1} parent=11 // pred_region
          _
        $region28: #{tpu_custom_call.1} parent=11 // pred_fallthru
          _
        // Predicated region
        $region29: #{tpu_custom_call.1} parent=11 // pred_check
          %p244 = pneg %p152
        $region30: #{tpu_custom_call.1} parent=11 // pred_check_branch
          %246 = sbr.rel (%p244) target = $region32
        $region31: #{tpu_custom_call.1} parent=11 // pred_region
          %s248 = ssub.s32 9216, 9216
          %249 = vsyncadd [#allocation12], %s248
          %s250 = sshll.u32 [#allocation11], 4
          %s251 = int_to_ptr.vmem [resolvable:$true] %s250
          %256 = dma.hbm_to_vmem [thread:$0]  %s5, 9216, %s251, [#allocation12], 64, 64, 4
        $region32: #{tpu_custom_call.1} parent=11 // pred_fallthru
          _
        // Predicated region
        $region33: #{tpu_custom_call.1} parent=11 // pred_check
          %p257 = pneg %p173
        $region34: #{tpu_custom_call.1} parent=11 // pred_check_branch
          %259 = sbr.rel (%p257) target = $region36
        $region35: #{tpu_custom_call.1} parent=11 // pred_region
          _
        $region36: #{tpu_custom_call.1} parent=11 // pred_fallthru
          _
      $region12: #{tpu_custom_call.1} parent=5 // pred_fallthru
        _
      %p260 = scmp.lt.s32.totalorder %s21, 2
      // Predicated region
      $region37: #{tpu_custom_call.1} parent=5 // pred_check
        %p261 = pneg %p260
      $region38: #{tpu_custom_call.1} parent=5 // pred_check_branch
        %263 = sbr.rel (%p261) target = $region40
      $region39: #{tpu_custom_call.1} parent=5 // pred_region
        // Predicated region
        $region41: #{tpu_custom_call.1} parent=39 // pred_check
          %p264 = pneg %p83
        $region42: #{tpu_custom_call.1} parent=39 // pred_check_branch
          %266 = sbr.rel (%p264) target = $region44
        $region43: #{tpu_custom_call.1} parent=39 // pred_region
          %s267 = sand.u32 %s21, 1
          %s268 = scalar_lea.sflag [#allocation9], %s267
          %s269 = sand.u32 %s73, 1
          %s270 = smul.addr %s269, 256
          %s271 = scalar_lea.vmem [#allocation8], %s270
          %s273 = ssub.s32 4096, 4096
          %274 = vsyncadd %s268, %s273
          %s275 = smul.addr %s21, 32
          %s276 = smul.addr %s275, 128
          %s277 = scalar_lea.hbm %s2, %s276
          %s278 = sshll.u32 %s271, 4
          %s279 = int_to_ptr.vmem [resolvable:$true] %s278
          %284 = dma.hbm_to_vmem [thread:$0]  %s277, 4096, %s279, %s268, 128, 128, 8
        $region44: #{tpu_custom_call.1} parent=39 // pred_fallthru
          _
      $region40: #{tpu_custom_call.1} parent=5 // pred_fallthru
        _
      %p285 = scmp.le.s32.totalorder 1, %s21
      %p286 = scmp.lt.s32.totalorder %s21, 3
      %p287 = pnand %p285, %p286
      %p288 = pneg %p287
      // Predicated region
      $region45: #{tpu_custom_call.1} parent=5 // pred_check
        _
      $region46: #{tpu_custom_call.1} parent=5 // pred_check_branch
        %290 = sbr.rel (%p287) target = $region48
      $region47: #{tpu_custom_call.1} parent=5 // pred_region
        %s291 = ssub.s32 %s21, 1
        // Predicated region
        $region49: #{tpu_custom_call.1} parent=47 // pred_check
          %p292 = pneg %p42
        $region50: #{tpu_custom_call.1} parent=47 // pred_check_branch
          %294 = sbr.rel (%p292) target = $region52
        $region51: #{tpu_custom_call.1} parent=47 // pred_region
          %295 = dma.done [#allocation6], 16
        $region52: #{tpu_custom_call.1} parent=47 // pred_fallthru
          _
        %s296 = sand.u32 %s26, 1
        %s297 = scalar_lea.sflag [#allocation9], %s296
        %s298 = sand.u32 %s76, 1
        %s299 = smul.addr %s298, 256
        %s300 = scalar_lea.vmem [#allocation8], %s299
        // Predicated region
        $region53: #{tpu_custom_call.1} parent=47 // pred_check
          %p301 = pneg %p89
        $region54: #{tpu_custom_call.1} parent=47 // pred_check_branch
          %303 = sbr.rel (%p301) target = $region56
        $region55: #{tpu_custom_call.1} parent=47 // pred_region
          %304 = dma.done %s297, 4096
        $region56: #{tpu_custom_call.1} parent=47 // pred_fallthru
          _
        // Predicated region
        $region57: #{tpu_custom_call.1} parent=47 // pred_check
          %p305 = pneg %p110
        $region58: #{tpu_custom_call.1} parent=47 // pred_check_branch
          %307 = sbr.rel (%p305) target = $region60
        $region59: #{tpu_custom_call.1} parent=47 // pred_region
          %308 = dma.done [#allocation9], 9216
        $region60: #{tpu_custom_call.1} parent=47 // pred_fallthru
          _
        // Predicated region
        $region61: #{tpu_custom_call.1} parent=47 // pred_check
          %p309 = pneg %p152
        $region62: #{tpu_custom_call.1} parent=47 // pred_check_branch
          %311 = sbr.rel (%p309) target = $region64
        $region63: #{tpu_custom_call.1} parent=47 // pred_region
          %312 = dma.done [#allocation12], 9216
        $region64: #{tpu_custom_call.1} parent=47 // pred_fallthru
          _
        %p313 = pneg %p42
        %p314 = pneg %p39
        %p315 = pneg %p63
        %p316 = pneg %p60
        %s317 = sand.u32 %s26, 1
        %s318 = scalar_lea.sflag [#allocation9], %s317
        %s319 = sand.u32 %s76, 1
        %s320 = smul.addr %s319, 256
        %s321 = scalar_lea.vmem [#allocation8], %s320
        %p322 = pneg %p89
        %p323 = pneg %p86
        %p324 = pneg %p110
        %p325 = pneg %p107
        %p326 = pneg %p131
        %p327 = pneg %p128
        %p328 = pneg %p152
        %p329 = pneg %p149
        %p330 = pneg %p173
        %p331 = pneg %p170
        %p332 = pneg %p199
        %p333 = pneg %p196
        %s334 = sand.u32 %s186, 1
        %s335 = scalar_lea.sflag [#allocation7], %s334
        %s336 = sand.u32 %s186, 1
        %s337 = smul.addr %s336, 256
        %s338 = scalar_lea.vmem [#allocation13], %s337
        %v340 = vld [vmem:[%s300] sm:$0xff]
        %v341 = vld [vmem:[%s300 + $0x8] sm:$0xff]
        %v342 = vld [vmem:[%s300 + $0x10] sm:$0xff]
        %v343 = vld [vmem:[%s300 + $0x18] sm:$0xff]
        %v344 = vld [vmem:[%s300 + $0x20] sm:$0xff]
        %v345 = vld [vmem:[%s300 + $0x28] sm:$0xff]
        %v346 = vld [vmem:[%s300 + $0x30] sm:$0xff]
        %v347 = vld [vmem:[%s300 + $0x38] sm:$0xff]
        %v348 = vld [vmem:[%s300 + $0x40] sm:$0xff]
        %v349 = vld [vmem:[%s300 + $0x48] sm:$0xff]
        %v350 = vld [vmem:[%s300 + $0x50] sm:$0xff]
        %v351 = vld [vmem:[%s300 + $0x58] sm:$0xff]
        %v352 = vld [vmem:[%s300 + $0x60] sm:$0xff]
        %v353 = vld [vmem:[%s300 + $0x68] sm:$0xff]
        %v354 = vld [vmem:[%s300 + $0x70] sm:$0xff]
        %v355 = vld [vmem:[%s300 + $0x78] sm:$0xff]
        %v356 = vld [vmem:[%s300 + $0x80] sm:$0xff]
        %v357 = vld [vmem:[%s300 + $0x88] sm:$0xff]
        %v358 = vld [vmem:[%s300 + $0x90] sm:$0xff]
        %v359 = vld [vmem:[%s300 + $0x98] sm:$0xff]
        %v360 = vld [vmem:[%s300 + $0xa0] sm:$0xff]
        %v361 = vld [vmem:[%s300 + $0xa8] sm:$0xff]
        %v362 = vld [vmem:[%s300 + $0xb0] sm:$0xff]
        %v363 = vld [vmem:[%s300 + $0xb8] sm:$0xff]
        %v364 = vld [vmem:[%s300 + $0xc0] sm:$0xff]
        %v365 = vld [vmem:[%s300 + $0xc8] sm:$0xff]
        %v366 = vld [vmem:[%s300 + $0xd0] sm:$0xff]
        %v367 = vld [vmem:[%s300 + $0xd8] sm:$0xff]
        %v368 = vld [vmem:[%s300 + $0xe0] sm:$0xff]
        %v369 = vld [vmem:[%s300 + $0xe8] sm:$0xff]
        %v370 = vld [vmem:[%s300 + $0xf0] sm:$0xff]
        %v371 = vld [vmem:[%s300 + $0xf8] sm:$0xff]
        %v372 = vld [vmem:[#allocation5] sm:$0x1]
        %v374 = vlaneseq
        %v375 = vshrl.u32 %v374, 7
        %v376 = vsub.s32 0, %v375
        %v377 = vrot.slane %v372, %v376
        %v379 = vsub.f32 %v340, %v377
        %v380 = vsub.f32 %v341, %v377
        %v381 = vsub.f32 %v342, %v377
        %v382 = vsub.f32 %v343, %v377
        %v383 = vsub.f32 %v344, %v377
        %v384 = vsub.f32 %v345, %v377
        %v385 = vsub.f32 %v346, %v377
        %v386 = vsub.f32 %v347, %v377
        %v387 = vsub.f32 %v348, %v377
        %v388 = vsub.f32 %v349, %v377
        %v389 = vsub.f32 %v350, %v377
        %v390 = vsub.f32 %v351, %v377
        %v391 = vsub.f32 %v352, %v377
        %v392 = vsub.f32 %v353, %v377
        %v393 = vsub.f32 %v354, %v377
        %v394 = vsub.f32 %v355, %v377
        %v395 = vsub.f32 %v356, %v377
        %v396 = vsub.f32 %v357, %v377
        %v397 = vsub.f32 %v358, %v377
        %v398 = vsub.f32 %v359, %v377
        %v399 = vsub.f32 %v360, %v377
        %v400 = vsub.f32 %v361, %v377
        %v401 = vsub.f32 %v362, %v377
        %v402 = vsub.f32 %v363, %v377
        %v403 = vsub.f32 %v364, %v377
        %v404 = vsub.f32 %v365, %v377
        %v405 = vsub.f32 %v366, %v377
        %v406 = vsub.f32 %v367, %v377
        %v407 = vsub.f32 %v368, %v377
        %v408 = vsub.f32 %v369, %v377
        %v409 = vsub.f32 %v370, %v377
        %v410 = vsub.f32 %v371, %v377
        %v411 = vld [vmem:[%s1] sm:$0x1]
        %v413 = vlaneseq
        %v414 = vshrl.u32 %v413, 7
        %v415 = vsub.s32 0, %v414
        %v416 = vrot.slane %v411, %v415
        %v418 = vmul.f32 %v379, %v416
        %v419 = vmul.f32 %v380, %v416
        %v420 = vmul.f32 %v381, %v416
        %v421 = vmul.f32 %v382, %v416
        %v422 = vmul.f32 %v383, %v416
        %v423 = vmul.f32 %v384, %v416
        %v424 = vmul.f32 %v385, %v416
        %v425 = vmul.f32 %v386, %v416
        %v426 = vmul.f32 %v387, %v416
        %v427 = vmul.f32 %v388, %v416
        %v428 = vmul.f32 %v389, %v416
        %v429 = vmul.f32 %v390, %v416
        %v430 = vmul.f32 %v391, %v416
        %v431 = vmul.f32 %v392, %v416
        %v432 = vmul.f32 %v393, %v416
        %v433 = vmul.f32 %v394, %v416
        %v434 = vmul.f32 %v395, %v416
        %v435 = vmul.f32 %v396, %v416
        %v436 = vmul.f32 %v397, %v416
        %v437 = vmul.f32 %v398, %v416
        %v438 = vmul.f32 %v399, %v416
        %v439 = vmul.f32 %v400, %v416
        %v440 = vmul.f32 %v401, %v416
        %v441 = vmul.f32 %v402, %v416
        %v442 = vmul.f32 %v403, %v416
        %v443 = vmul.f32 %v404, %v416
        %v444 = vmul.f32 %v405, %v416
        %v445 = vmul.f32 %v406, %v416
        %v446 = vmul.f32 %v407, %v416
        %v447 = vmul.f32 %v408, %v416
        %v448 = vmul.f32 %v409, %v416
        %v449 = vmul.f32 %v410, %v416
        %v450 = vpack.c.bf16 %v419, %v418
        %v451 = vpack.c.bf16 %v421, %v420
        %v452 = vpack.c.bf16 %v423, %v422
        %v453 = vpack.c.bf16 %v425, %v424
        %v454 = vpack.c.bf16 %v427, %v426
        %v455 = vpack.c.bf16 %v429, %v428
        %v456 = vpack.c.bf16 %v431, %v430
        %v457 = vpack.c.bf16 %v433, %v432
        %v458 = vpack.c.bf16 %v435, %v434
        %v459 = vpack.c.bf16 %v437, %v436
        %v460 = vpack.c.bf16 %v439, %v438
        %v461 = vpack.c.bf16 %v441, %v440
        %v462 = vpack.c.bf16 %v443, %v442
        %v463 = vpack.c.bf16 %v445, %v444
        %v464 = vpack.c.bf16 %v447, %v446
        %v465 = vpack.c.bf16 %v449, %v448
        %466 = vst [vmem:[#allocation2] sm:$0xf] 0
        %467 = vst [vmem:[#allocation2 + $0x4] sm:$0xf] 0
        %468 = vst [vmem:[#allocation2 + $0x8] sm:$0x1] 0
        %s469 = scalar_lea.vmem [#allocation2], 204
        %470 = vst [vmem:[%s469] sm:$0xf] 0
        %471 = vst [vmem:[%s469 + $0x4] sm:$0xf] 0
        %472 = vst [vmem:[%s469 + $0x8] sm:$0x1] 0
        %vm473 = vcmask 1040384
        %vm474 = vsmask.f32 256
        %vm475 = vmand %vm473, %vm474
        %v476 = vld [vmem:[#allocation2] sm:$0x1]
        %v477 = vsel %vm475, 0, %v476
        %478 = vst [vmem:[#allocation2] sm:$0x1] %v477
        %v479 = vld [vmem:[#allocation2 + $0xc] sm:$0x1]
        %v480 = vsel %vm475, 0, %v479
        %481 = vst [vmem:[#allocation2 + $0xc] sm:$0x1] %v480
        %v482 = vld [vmem:[#allocation2 + $0x18] sm:$0x1]
        %v483 = vsel %vm475, 0, %v482
        %484 = vst [vmem:[#allocation2 + $0x18] sm:$0x1] %v483
        %v485 = vld [vmem:[#allocation2 + $0x24] sm:$0x1]
        %v486 = vsel %vm475, 0, %v485
        %487 = vst [vmem:[#allocation2 + $0x24] sm:$0x1] %v486
        %v488 = vld [vmem:[#allocation2 + $0x30] sm:$0x1]
        %v489 = vsel %vm475, 0, %v488
        %490 = vst [vmem:[#allocation2 + $0x30] sm:$0x1] %v489
        %v491 = vld [vmem:[#allocation2 + $0x3c] sm:$0x1]
        %v492 = vsel %vm475, 0, %v491
        %493 = vst [vmem:[#allocation2 + $0x3c] sm:$0x1] %v492
        %v494 = vld [vmem:[#allocation2 + $0x48] sm:$0x1]
        %v495 = vsel %vm475, 0, %v494
        %496 = vst [vmem:[#allocation2 + $0x48] sm:$0x1] %v495
        %v497 = vld [vmem:[#allocation2 + $0x54] sm:$0x1]
        %v498 = vsel %vm475, 0, %v497
        %499 = vst [vmem:[#allocation2 + $0x54] sm:$0x1] %v498
        %v500 = vld [vmem:[#allocation2 + $0x60] sm:$0x1]
        %v501 = vsel %vm475, 0, %v500
        %502 = vst [vmem:[#allocation2 + $0x60] sm:$0x1] %v501
        %v503 = vld [vmem:[#allocation2 + $0x6c] sm:$0x1]
        %v504 = vsel %vm475, 0, %v503
        %505 = vst [vmem:[#allocation2 + $0x6c] sm:$0x1] %v504
        %v506 = vld [vmem:[#allocation2 + $0x78] sm:$0x1]
        %v507 = vsel %vm475, 0, %v506
        %508 = vst [vmem:[#allocation2 + $0x78] sm:$0x1] %v507
        %v509 = vld [vmem:[#allocation2 + $0x84] sm:$0x1]
        %v510 = vsel %vm475, 0, %v509
        %511 = vst [vmem:[#allocation2 + $0x84] sm:$0x1] %v510
        %v512 = vld [vmem:[#allocation2 + $0x90] sm:$0x1]
        %v513 = vsel %vm475, 0, %v512
        %514 = vst [vmem:[#allocation2 + $0x90] sm:$0x1] %v513
        %v515 = vld [vmem:[#allocation2 + $0x9c] sm:$0x1]
        %v516 = vsel %vm475, 0, %v515
        %517 = vst [vmem:[#allocation2 + $0x9c] sm:$0x1] %v516
        %v518 = vld [vmem:[#allocation2 + $0xa8] sm:$0x1]
        %v519 = vsel %vm475, 0, %v518
        %520 = vst [vmem:[#allocation2 + $0xa8] sm:$0x1] %v519
        %v521 = vld [vmem:[#allocation2 + $0xb4] sm:$0x1]
        %v522 = vsel %vm475, 0, %v521
        %523 = vst [vmem:[#allocation2 + $0xb4] sm:$0x1] %v522
        %v524 = vld [vmem:[#allocation2 + $0xc0] sm:$0x1]
        %v525 = vsel %vm475, 0, %v524
        %526 = vst [vmem:[#allocation2 + $0xc0] sm:$0x1] %v525
        %v527 = vld [vmem:[#allocation2 + $0xcc] sm:$0x1]
        %v528 = vsel %vm475, 0, %v527
        %529 = vst [vmem:[#allocation2 + $0xcc] sm:$0x1] %v528
        %vm530 = vsmask.f32 7938
        %vm531 = vmand %vm473, %vm530
        %v532 = vld [vmem:[#allocation2 + $0x8] sm:$0x1]
        %v533 = vsel %vm531, 0, %v532
        %534 = vst [vmem:[#allocation2 + $0x8] sm:$0x1] %v533
        %v535 = vld [vmem:[#allocation2 + $0x14] sm:$0x1]
        %v536 = vsel %vm531, 0, %v535
        %537 = vst [vmem:[#allocation2 + $0x14] sm:$0x1] %v536
        %v538 = vld [vmem:[#allocation2 + $0x20] sm:$0x1]
        %v539 = vsel %vm531, 0, %v538
        %540 = vst [vmem:[#allocation2 + $0x20] sm:$0x1] %v539
        %v541 = vld [vmem:[#allocation2 + $0x2c] sm:$0x1]
        %v542 = vsel %vm531, 0, %v541
        %543 = vst [vmem:[#allocation2 + $0x2c] sm:$0x1] %v542
        %v544 = vld [vmem:[#allocation2 + $0x38] sm:$0x1]
        %v545 = vsel %vm531, 0, %v544
        %546 = vst [vmem:[#allocation2 + $0x38] sm:$0x1] %v545
        %v547 = vld [vmem:[#allocation2 + $0x44] sm:$0x1]
        %v548 = vsel %vm531, 0, %v547
        %549 = vst [vmem:[#allocation2 + $0x44] sm:$0x1] %v548
        %v550 = vld [vmem:[#allocation2 + $0x50] sm:$0x1]
        %v551 = vsel %vm531, 0, %v550
        %552 = vst [vmem:[#allocation2 + $0x50] sm:$0x1] %v551
        %v553 = vld [vmem:[#allocation2 + $0x5c] sm:$0x1]
        %v554 = vsel %vm531, 0, %v553
        %555 = vst [vmem:[#allocation2 + $0x5c] sm:$0x1] %v554
        %v556 = vld [vmem:[#allocation2 + $0x68] sm:$0x1]
        %v557 = vsel %vm531, 0, %v556
        %558 = vst [vmem:[#allocation2 + $0x68] sm:$0x1] %v557
        %v559 = vld [vmem:[#allocation2 + $0x74] sm:$0x1]
        %v560 = vsel %vm531, 0, %v559
        %561 = vst [vmem:[#allocation2 + $0x74] sm:$0x1] %v560
        %v562 = vld [vmem:[#allocation2 + $0x80] sm:$0x1]
        %v563 = vsel %vm531, 0, %v562
        %564 = vst [vmem:[#allocation2 + $0x80] sm:$0x1] %v563
        %v565 = vld [vmem:[#allocation2 + $0x8c] sm:$0x1]
        %v566 = vsel %vm531, 0, %v565
        %567 = vst [vmem:[#allocation2 + $0x8c] sm:$0x1] %v566
        %v568 = vld [vmem:[#allocation2 + $0x98] sm:$0x1]
        %v569 = vsel %vm531, 0, %v568
        %570 = vst [vmem:[#allocation2 + $0x98] sm:$0x1] %v569
        %v571 = vld [vmem:[#allocation2 + $0xa4] sm:$0x1]
        %v572 = vsel %vm531, 0, %v571
        %573 = vst [vmem:[#allocation2 + $0xa4] sm:$0x1] %v572
        %v574 = vld [vmem:[#allocation2 + $0xb0] sm:$0x1]
        %v575 = vsel %vm531, 0, %v574
        %576 = vst [vmem:[#allocation2 + $0xb0] sm:$0x1] %v575
        %v577 = vld [vmem:[#allocation2 + $0xbc] sm:$0x1]
        %v578 = vsel %vm531, 0, %v577
        %579 = vst [vmem:[#allocation2 + $0xbc] sm:$0x1] %v578
        %v580 = vld [vmem:[#allocation2 + $0xc8] sm:$0x1]
        %v581 = vsel %vm531, 0, %v580
        %582 = vst [vmem:[#allocation2 + $0xc8] sm:$0x1] %v581
        %v583 = vld [vmem:[#allocation2 + $0xd4] sm:$0x1]
        %v584 = vsel %vm531, 0, %v583
        %585 = vst [vmem:[#allocation2 + $0xd4] sm:$0x1] %v584
        %v602 = vunpack.c.l.b16 %v450
        %v603 = vunpack.c.h.b16 %v450
        %v604 = vunpack.c.l.b16 %v451
        %v605 = vunpack.c.h.b16 %v451
        %v606 = vunpack.c.l.b16 %v452
        %v607 = vunpack.c.h.b16 %v452
        %v608 = vunpack.c.l.b16 %v453
        %v609 = vunpack.c.h.b16 %v453
        %v610 = vunpack.c.l.b16 %v454
        %v611 = vunpack.c.h.b16 %v454
        %v612 = vunpack.c.l.b16 %v455
        %v613 = vunpack.c.h.b16 %v455
        %v614 = vunpack.c.l.b16 %v456
        %v615 = vunpack.c.h.b16 %v456
        %v616 = vunpack.c.l.b16 %v457
        %v617 = vunpack.c.h.b16 %v457
        %v618 = vunpack.c.l.b16 %v458
        %v619 = vunpack.c.h.b16 %v458
        %v620 = vunpack.c.l.b16 %v459
        %v621 = vunpack.c.h.b16 %v459
        %v622 = vunpack.c.l.b16 %v460
        %v623 = vunpack.c.h.b16 %v460
        %v624 = vunpack.c.l.b16 %v461
        %v625 = vunpack.c.h.b16 %v461
        %v626 = vunpack.c.l.b16 %v462
        %v627 = vunpack.c.h.b16 %v462
        %v628 = vunpack.c.l.b16 %v463
        %v629 = vunpack.c.h.b16 %v463
        %v630 = vunpack.c.l.b16 %v464
        %v631 = vunpack.c.h.b16 %v464
        %v632 = vunpack.c.l.b16 %v465
        %v633 = vunpack.c.h.b16 %v465
        %v634 = vpack.c.b16 %v602, %v602
        %v635 = vpack.c.b16 %v603, %v603
        %v636 = vpack.c.b16 %v604, %v604
        %v637 = vpack.c.b16 %v605, %v605
        %v638 = vpack.c.b16 %v606, %v606
        %v639 = vpack.c.b16 %v607, %v607
        %v640 = vpack.c.b16 %v608, %v608
        %v641 = vpack.c.b16 %v609, %v609
        %v642 = vpack.c.b16 %v610, %v610
        %v643 = vpack.c.b16 %v611, %v611
        %v644 = vpack.c.b16 %v612, %v612
        %v645 = vpack.c.b16 %v613, %v613
        %v646 = vpack.c.b16 %v614, %v614
        %v647 = vpack.c.b16 %v615, %v615
        %v648 = vpack.c.b16 %v616, %v616
        %v649 = vpack.c.b16 %v617, %v617
        %v650 = vpack.c.b16 %v618, %v618
        %v651 = vpack.c.b16 %v619, %v619
        %v652 = vpack.c.b16 %v620, %v620
        %v653 = vpack.c.b16 %v621, %v621
        %v654 = vpack.c.b16 %v622, %v622
        %v655 = vpack.c.b16 %v623, %v623
        %v656 = vpack.c.b16 %v624, %v624
        %v657 = vpack.c.b16 %v625, %v625
        %v658 = vpack.c.b16 %v626, %v626
        %v659 = vpack.c.b16 %v627, %v627
        %v660 = vpack.c.b16 %v628, %v628
        %v661 = vpack.c.b16 %v629, %v629
        %v662 = vpack.c.b16 %v630, %v630
        %v663 = vpack.c.b16 %v631, %v631
        %v664 = vpack.c.b16 %v632, %v632
        %v665 = vpack.c.b16 %v633, %v633
        %vm666 = vsmask.f32 4368
        %vm667 = vmor %vm474, %vm666
        %v669 = vshrl.u32 %v634, 16
        %v671 = vrot.slane %v669, 7
        %v672 = vshll.u32 %v634, 16
        %v674 = vor.u32 %v671, %v672
        %v675 = vrot.slane %v671, 4
        %v677 = vshrl.u32 %v635, 16
        %v679 = vrot.slane %v677, 7
        %v680 = vshll.u32 %v635, 16
        %v682 = vor.u32 %v679, %v680
        %v683 = vsel %vm667, %v675, %v682
        %v684 = vrot.slane %v679, 4
        %v686 = vshrl.u32 %v636, 16
        %v688 = vrot.slane %v686, 7
        %v689 = vshll.u32 %v636, 16
        %v691 = vor.u32 %v688, %v689
        %v692 = vrot.slane %v688, 4
        %v694 = vshrl.u32 %v637, 16
        %v696 = vrot.slane %v694, 7
        %v697 = vshll.u32 %v637, 16
        %v699 = vor.u32 %v696, %v697
        %v700 = vsel %vm667, %v692, %v699
        %v701 = vrot.slane %v696, 4
        %v703 = vshrl.u32 %v638, 16
        %v705 = vrot.slane %v703, 7
        %v706 = vshll.u32 %v638, 16
        %v708 = vor.u32 %v705, %v706
        %v709 = vrot.slane %v705, 4
        %v711 = vshrl.u32 %v639, 16
        %v713 = vrot.slane %v711, 7
        %v714 = vshll.u32 %v639, 16
        %v716 = vor.u32 %v713, %v714
        %v717 = vsel %vm667, %v709, %v716
        %v718 = vrot.slane %v713, 4
        %v720 = vshrl.u32 %v640, 16
        %v722 = vrot.slane %v720, 7
        %v723 = vshll.u32 %v640, 16
        %v725 = vor.u32 %v722, %v723
        %v726 = vrot.slane %v722, 4
        %v728 = vshrl.u32 %v641, 16
        %v730 = vrot.slane %v728, 7
        %v731 = vshll.u32 %v641, 16
        %v733 = vor.u32 %v730, %v731
        %v734 = vsel %vm667, %v726, %v733
        %v735 = vrot.slane %v730, 4
        %v737 = vshrl.u32 %v642, 16
        %v739 = vrot.slane %v737, 7
        %v740 = vshll.u32 %v642, 16
        %v742 = vor.u32 %v739, %v740
        %v743 = vrot.slane %v739, 4
        %v745 = vshrl.u32 %v643, 16
        %v747 = vrot.slane %v745, 7
        %v748 = vshll.u32 %v643, 16
        %v750 = vor.u32 %v747, %v748
        %v751 = vsel %vm667, %v743, %v750
        %v752 = vrot.slane %v747, 4
        %v754 = vshrl.u32 %v644, 16
        %v756 = vrot.slane %v754, 7
        %v757 = vshll.u32 %v644, 16
        %v759 = vor.u32 %v756, %v757
        %v760 = vrot.slane %v756, 4
        %v762 = vshrl.u32 %v645, 16
        %v764 = vrot.slane %v762, 7
        %v765 = vshll.u32 %v645, 16
        %v767 = vor.u32 %v764, %v765
        %v768 = vsel %vm667, %v760, %v767
        %v769 = vrot.slane %v764, 4
        %v771 = vshrl.u32 %v646, 16
        %v773 = vrot.slane %v771, 7
        %v774 = vshll.u32 %v646, 16
        %v776 = vor.u32 %v773, %v774
        %v777 = vrot.slane %v773, 4
        %v779 = vshrl.u32 %v647, 16
        %v781 = vrot.slane %v779, 7
        %v782 = vshll.u32 %v647, 16
        %v784 = vor.u32 %v781, %v782
        %v785 = vsel %vm667, %v777, %v784
        %v786 = vrot.slane %v781, 4
        %v788 = vshrl.u32 %v648, 16
        %v790 = vrot.slane %v788, 7
        %v791 = vshll.u32 %v648, 16
        %v793 = vor.u32 %v790, %v791
        %v794 = vrot.slane %v790, 4
        %v796 = vshrl.u32 %v649, 16
        %v798 = vrot.slane %v796, 7
        %v799 = vshll.u32 %v649, 16
        %v801 = vor.u32 %v798, %v799
        %v802 = vsel %vm667, %v794, %v801
        %v803 = vrot.slane %v798, 4
        %v805 = vshrl.u32 %v650, 16
        %v807 = vrot.slane %v805, 7
        %v808 = vshll.u32 %v650, 16
        %v810 = vor.u32 %v807, %v808
        %v811 = vrot.slane %v807, 4
        %v813 = vshrl.u32 %v651, 16
        %v815 = vrot.slane %v813, 7
        %v816 = vshll.u32 %v651, 16
        %v818 = vor.u32 %v815, %v816
        %v819 = vsel %vm667, %v811, %v818
        %v820 = vrot.slane %v815, 4
        %v822 = vshrl.u32 %v652, 16
        %v824 = vrot.slane %v822, 7
        %v825 = vshll.u32 %v652, 16
        %v827 = vor.u32 %v824, %v825
        %v828 = vrot.slane %v824, 4
        %v830 = vshrl.u32 %v653, 16
        %v832 = vrot.slane %v830, 7
        %v833 = vshll.u32 %v653, 16
        %v835 = vor.u32 %v832, %v833
        %v836 = vsel %vm667, %v828, %v835
        %v837 = vrot.slane %v832, 4
        %v839 = vshrl.u32 %v654, 16
        %v841 = vrot.slane %v839, 7
        %v842 = vshll.u32 %v654, 16
        %v844 = vor.u32 %v841, %v842
        %v845 = vrot.slane %v841, 4
        %v847 = vshrl.u32 %v655, 16
        %v849 = vrot.slane %v847, 7
        %v850 = vshll.u32 %v655, 16
        %v852 = vor.u32 %v849, %v850
        %v853 = vsel %vm667, %v845, %v852
        %v854 = vrot.slane %v849, 4
        %v856 = vshrl.u32 %v656, 16
        %v858 = vrot.slane %v856, 7
        %v859 = vshll.u32 %v656, 16
        %v861 = vor.u32 %v858, %v859
        %v862 = vrot.slane %v858, 4
        %v864 = vshrl.u32 %v657, 16
        %v866 = vrot.slane %v864, 7
        %v867 = vshll.u32 %v657, 16
        %v869 = vor.u32 %v866, %v867
        %v870 = vsel %vm667, %v862, %v869
        %v871 = vrot.slane %v866, 4
        %v873 = vshrl.u32 %v658, 16
        %v875 = vrot.slane %v873, 7
        %v876 = vshll.u32 %v658, 16
        %v878 = vor.u32 %v875, %v876
        %v879 = vrot.slane %v875, 4
        %v881 = vshrl.u32 %v659, 16
        %v883 = vrot.slane %v881, 7
        %v884 = vshll.u32 %v659, 16
        %v886 = vor.u32 %v883, %v884
        %v887 = vsel %vm667, %v879, %v886
        %v888 = vrot.slane %v883, 4
        %v890 = vshrl.u32 %v660, 16
        %v892 = vrot.slane %v890, 7
        %v893 = vshll.u32 %v660, 16
        %v895 = vor.u32 %v892, %v893
        %v896 = vrot.slane %v892, 4
        %v898 = vshrl.u32 %v661, 16
        %v900 = vrot.slane %v898, 7
        %v901 = vshll.u32 %v661, 16
        %v903 = vor.u32 %v900, %v901
        %v904 = vsel %vm667, %v896, %v903
        %v905 = vrot.slane %v900, 4
        %v907 = vshrl.u32 %v662, 16
        %v909 = vrot.slane %v907, 7
        %v910 = vshll.u32 %v662, 16
        %v912 = vor.u32 %v909, %v910
        %v913 = vrot.slane %v909, 4
        %v915 = vshrl.u32 %v663, 16
        %v917 = vrot.slane %v915, 7
        %v918 = vshll.u32 %v663, 16
        %v920 = vor.u32 %v917, %v918
        %v921 = vsel %vm667, %v913, %v920
        %v922 = vrot.slane %v917, 4
        %v924 = vshrl.u32 %v664, 16
        %v926 = vrot.slane %v924, 7
        %v927 = vshll.u32 %v664, 16
        %v929 = vor.u32 %v926, %v927
        %v930 = vrot.slane %v926, 4
        %v932 = vshrl.u32 %v665, 16
        %v934 = vrot.slane %v932, 7
        %v935 = vshll.u32 %v665, 16
        %v937 = vor.u32 %v934, %v935
        %v938 = vsel %vm667, %v930, %v937
        %v939 = vrot.slane %v934, 4
        %s988 = scalar_lea.vmem [#allocation2], 12
        %vm989 = vcmask 1043456
        %vm990 = vmand %vm989, %vm530
        %v991 = vld [vmem:[%s988] sm:$0xf]
        %v992 = vsel %vm990, %v674, %v991
        %993 = vst [vmem:[%s988] sm:$0xf] %v992
        %994 = vst [vmem:[%s988 + $0x4] sm:$0xf] %v683
        %v995 = vld [vmem:[%s988 + $0x8] sm:$0x1]
        %v996 = vsel %vm475, %v684, %v995
        %997 = vst [vmem:[%s988 + $0x8] sm:$0x1] %v996
        %v998 = vld [vmem:[%s988 + $0xc] sm:$0xf]
        %v999 = vsel %vm990, %v691, %v998
        %1000 = vst [vmem:[%s988 + $0xc] sm:$0xf] %v999
        %1001 = vst [vmem:[%s988 + $0x10] sm:$0xf] %v700
        %v1002 = vld [vmem:[%s988 + $0x14] sm:$0x1]
        %v1003 = vsel %vm475, %v701, %v1002
        %1004 = vst [vmem:[%s988 + $0x14] sm:$0x1] %v1003
        %v1005 = vld [vmem:[%s988 + $0x18] sm:$0xf]
        %v1006 = vsel %vm990, %v708, %v1005
        %1007 = vst [vmem:[%s988 + $0x18] sm:$0xf] %v1006
        %1008 = vst [vmem:[%s988 + $0x1c] sm:$0xf] %v717
        %v1009 = vld [vmem:[%s988 + $0x20] sm:$0x1]
        %v1010 = vsel %vm475, %v718, %v1009
        %1011 = vst [vmem:[%s988 + $0x20] sm:$0x1] %v1010
        %v1012 = vld [vmem:[%s988 + $0x24] sm:$0xf]
        %v1013 = vsel %vm990, %v725, %v1012
        %1014 = vst [vmem:[%s988 + $0x24] sm:$0xf] %v1013
        %1015 = vst [vmem:[%s988 + $0x28] sm:$0xf] %v734
        %v1016 = vld [vmem:[%s988 + $0x2c] sm:$0x1]
        %v1017 = vsel %vm475, %v735, %v1016
        %1018 = vst [vmem:[%s988 + $0x2c] sm:$0x1] %v1017
        %v1019 = vld [vmem:[%s988 + $0x30] sm:$0xf]
        %v1020 = vsel %vm990, %v742, %v1019
        %1021 = vst [vmem:[%s988 + $0x30] sm:$0xf] %v1020
        %1022 = vst [vmem:[%s988 + $0x34] sm:$0xf] %v751
        %v1023 = vld [vmem:[%s988 + $0x38] sm:$0x1]
        %v1024 = vsel %vm475, %v752, %v1023
        %1025 = vst [vmem:[%s988 + $0x38] sm:$0x1] %v1024
        %v1026 = vld [vmem:[%s988 + $0x3c] sm:$0xf]
        %v1027 = vsel %vm990, %v759, %v1026
        %1028 = vst [vmem:[%s988 + $0x3c] sm:$0xf] %v1027
        %1029 = vst [vmem:[%s988 + $0x40] sm:$0xf] %v768
        %v1030 = vld [vmem:[%s988 + $0x44] sm:$0x1]
        %v1031 = vsel %vm475, %v769, %v1030
        %1032 = vst [vmem:[%s988 + $0x44] sm:$0x1] %v1031
        %v1033 = vld [vmem:[%s988 + $0x48] sm:$0xf]
        %v1034 = vsel %vm990, %v776, %v1033
        %1035 = vst [vmem:[%s988 + $0x48] sm:$0xf] %v1034
        %1036 = vst [vmem:[%s988 + $0x4c] sm:$0xf] %v785
        %v1037 = vld [vmem:[%s988 + $0x50] sm:$0x1]
        %v1038 = vsel %vm475, %v786, %v1037
        %1039 = vst [vmem:[%s988 + $0x50] sm:$0x1] %v1038
        %v1040 = vld [vmem:[%s988 + $0x54] sm:$0xf]
        %v1041 = vsel %vm990, %v793, %v1040
        %1042 = vst [vmem:[%s988 + $0x54] sm:$0xf] %v1041
        %1043 = vst [vmem:[%s988 + $0x58] sm:$0xf] %v802
        %v1044 = vld [vmem:[%s988 + $0x5c] sm:$0x1]
        %v1045 = vsel %vm475, %v803, %v1044
        %1046 = vst [vmem:[%s988 + $0x5c] sm:$0x1] %v1045
        %v1047 = vld [vmem:[%s988 + $0x60] sm:$0xf]
        %v1048 = vsel %vm990, %v810, %v1047
        %1049 = vst [vmem:[%s988 + $0x60] sm:$0xf] %v1048
        %1050 = vst [vmem:[%s988 + $0x64] sm:$0xf] %v819
        %v1051 = vld [vmem:[%s988 + $0x68] sm:$0x1]
        %v1052 = vsel %vm475, %v820, %v1051
        %1053 = vst [vmem:[%s988 + $0x68] sm:$0x1] %v1052
        %v1054 = vld [vmem:[%s988 + $0x6c] sm:$0xf]
        %v1055 = vsel %vm990, %v827, %v1054
        %1056 = vst [vmem:[%s988 + $0x6c] sm:$0xf] %v1055
        %1057 = vst [vmem:[%s988 + $0x70] sm:$0xf] %v836
        %v1058 = vld [vmem:[%s988 + $0x74] sm:$0x1]
        %v1059 = vsel %vm475, %v837, %v1058
        %1060 = vst [vmem:[%s988 + $0x74] sm:$0x1] %v1059
        %v1061 = vld [vmem:[%s988 + $0x78] sm:$0xf]
        %v1062 = vsel %vm990, %v844, %v1061
        %1063 = vst [vmem:[%s988 + $0x78] sm:$0xf] %v1062
        %1064 = vst [vmem:[%s988 + $0x7c] sm:$0xf] %v853
        %v1065 = vld [vmem:[%s988 + $0x80] sm:$0x1]
        %v1066 = vsel %vm475, %v854, %v1065
        %1067 = vst [vmem:[%s988 + $0x80] sm:$0x1] %v1066
        %v1068 = vld [vmem:[%s988 + $0x84] sm:$0xf]
        %v1069 = vsel %vm990, %v861, %v1068
        %1070 = vst [vmem:[%s988 + $0x84] sm:$0xf] %v1069
        %1071 = vst [vmem:[%s988 + $0x88] sm:$0xf] %v870
        %v1072 = vld [vmem:[%s988 + $0x8c] sm:$0x1]
        %v1073 = vsel %vm475, %v871, %v1072
        %1074 = vst [vmem:[%s988 + $0x8c] sm:$0x1] %v1073
        %v1075 = vld [vmem:[%s988 + $0x90] sm:$0xf]
        %v1076 = vsel %vm990, %v878, %v1075
        %1077 = vst [vmem:[%s988 + $0x90] sm:$0xf] %v1076
        %1078 = vst [vmem:[%s988 + $0x94] sm:$0xf] %v887
        %v1079 = vld [vmem:[%s988 + $0x98] sm:$0x1]
        %v1080 = vsel %vm475, %v888, %v1079
        %1081 = vst [vmem:[%s988 + $0x98] sm:$0x1] %v1080
        %v1082 = vld [vmem:[%s988 + $0x9c] sm:$0xf]
        %v1083 = vsel %vm990, %v895, %v1082
        %1084 = vst [vmem:[%s988 + $0x9c] sm:$0xf] %v1083
        %1085 = vst [vmem:[%s988 + $0xa0] sm:$0xf] %v904
        %v1086 = vld [vmem:[%s988 + $0xa4] sm:$0x1]
        %v1087 = vsel %vm475, %v905, %v1086
        %1088 = vst [vmem:[%s988 + $0xa4] sm:$0x1] %v1087
        %v1089 = vld [vmem:[%s988 + $0xa8] sm:$0xf]
        %v1090 = vsel %vm990, %v912, %v1089
        %1091 = vst [vmem:[%s988 + $0xa8] sm:$0xf] %v1090
        %1092 = vst [vmem:[%s988 + $0xac] sm:$0xf] %v921
        %v1093 = vld [vmem:[%s988 + $0xb0] sm:$0x1]
        %v1094 = vsel %vm475, %v922, %v1093
        %1095 = vst [vmem:[%s988 + $0xb0] sm:$0x1] %v1094
        %v1096 = vld [vmem:[%s988 + $0xb4] sm:$0xf]
        %v1097 = vsel %vm990, %v929, %v1096
        %1098 = vst [vmem:[%s988 + $0xb4] sm:$0xf] %v1097
        %1099 = vst [vmem:[%s988 + $0xb8] sm:$0xf] %v938
        %v1100 = vld [vmem:[%s988 + $0xbc] sm:$0x1]
        %v1101 = vsel %vm475, %v939, %v1100
        %1102 = vst [vmem:[%s988 + $0xbc] sm:$0x1] %v1101
        %v1103 = vld [vmem:[#allocation2] sm:$0xf]
        %v1104 = vld [vmem:[#allocation2 + $0x4] sm:$0xf]
        %v1105 = vld [vmem:[#allocation2 + $0xc] sm:$0xf]
        %v1106 = vld [vmem:[#allocation2 + $0x10] sm:$0xf]
        %v1107 = vld [vmem:[#allocation2 + $0x18] sm:$0xf]
        %v1108 = vld [vmem:[#allocation2 + $0x1c] sm:$0xf]
        %v1109 = vld [vmem:[#allocation2 + $0x24] sm:$0xf]
        %v1110 = vld [vmem:[#allocation2 + $0x28] sm:$0xf]
        %v1111 = vld [vmem:[#allocation2 + $0x30] sm:$0xf]
        %v1112 = vld [vmem:[#allocation2 + $0x34] sm:$0xf]
        %v1113 = vld [vmem:[#allocation2 + $0x3c] sm:$0xf]
        %v1114 = vld [vmem:[#allocation2 + $0x40] sm:$0xf]
        %v1115 = vld [vmem:[#allocation2 + $0x48] sm:$0xf]
        %v1116 = vld [vmem:[#allocation2 + $0x4c] sm:$0xf]
        %v1117 = vld [vmem:[#allocation2 + $0x54] sm:$0xf]
        %v1118 = vld [vmem:[#allocation2 + $0x58] sm:$0xf]
        %v1119 = vld [vmem:[#allocation2 + $0x60] sm:$0xf]
        %v1120 = vld [vmem:[#allocation2 + $0x64] sm:$0xf]
        %v1121 = vld [vmem:[#allocation2 + $0x6c] sm:$0xf]
        %v1122 = vld [vmem:[#allocation2 + $0x70] sm:$0xf]
        %v1123 = vld [vmem:[#allocation2 + $0x78] sm:$0xf]
        %v1124 = vld [vmem:[#allocation2 + $0x7c] sm:$0xf]
        %v1125 = vld [vmem:[#allocation2 + $0x84] sm:$0xf]
        %v1126 = vld [vmem:[#allocation2 + $0x88] sm:$0xf]
        %v1127 = vld [vmem:[#allocation2 + $0x90] sm:$0xf]
        %v1128 = vld [vmem:[#allocation2 + $0x94] sm:$0xf]
        %v1129 = vld [vmem:[#allocation2 + $0x9c] sm:$0xf]
        %v1130 = vld [vmem:[#allocation2 + $0xa0] sm:$0xf]
        %v1131 = vld [vmem:[#allocation2 + $0xa8] sm:$0xf]
        %v1132 = vld [vmem:[#allocation2 + $0xac] sm:$0xf]
        %v1133 = vld [vmem:[#allocation2 + $0xb4] sm:$0xf]
        %v1134 = vld [vmem:[#allocation2 + $0xb8] sm:$0xf]
        %v1167 = vunpack.c.l.b16 %v1103
        %v1168 = vunpack.c.l.b16 %v1104
        %v1169 = vunpack.c.l.b16 %v1105
        %v1170 = vunpack.c.l.b16 %v1106
        %v1171 = vunpack.c.l.b16 %v1107
        %v1172 = vunpack.c.l.b16 %v1108
        %v1173 = vunpack.c.l.b16 %v1109
        %v1174 = vunpack.c.l.b16 %v1110
        %v1175 = vunpack.c.l.b16 %v1111
        %v1176 = vunpack.c.l.b16 %v1112
        %v1177 = vunpack.c.l.b16 %v1113
        %v1178 = vunpack.c.l.b16 %v1114
        %v1179 = vunpack.c.l.b16 %v1115
        %v1180 = vunpack.c.l.b16 %v1116
        %v1181 = vunpack.c.l.b16 %v1117
        %v1182 = vunpack.c.l.b16 %v1118
        %v1183 = vunpack.c.l.b16 %v1119
        %v1184 = vunpack.c.l.b16 %v1120
        %v1185 = vunpack.c.l.b16 %v1121
        %v1186 = vunpack.c.l.b16 %v1122
        %v1187 = vunpack.c.l.b16 %v1123
        %v1188 = vunpack.c.l.b16 %v1124
        %v1189 = vunpack.c.l.b16 %v1125
        %v1190 = vunpack.c.l.b16 %v1126
        %v1191 = vunpack.c.l.b16 %v1127
        %v1192 = vunpack.c.l.b16 %v1128
        %v1193 = vunpack.c.l.b16 %v1129
        %v1194 = vunpack.c.l.b16 %v1130
        %v1195 = vunpack.c.l.b16 %v1131
        %v1196 = vunpack.c.l.b16 %v1132
        %v1197 = vunpack.c.l.b16 %v1133
        %v1198 = vunpack.c.l.b16 %v1134
        %v1199 = vpack.c.b16 %v1168, %v1167
        %v1200 = vpack.c.b16 %v1170, %v1169
        %v1201 = vpack.c.b16 %v1172, %v1171
        %v1202 = vpack.c.b16 %v1174, %v1173
        %v1203 = vpack.c.b16 %v1176, %v1175
        %v1204 = vpack.c.b16 %v1178, %v1177
        %v1205 = vpack.c.b16 %v1180, %v1179
        %v1206 = vpack.c.b16 %v1182, %v1181
        %v1207 = vpack.c.b16 %v1184, %v1183
        %v1208 = vpack.c.b16 %v1186, %v1185
        %v1209 = vpack.c.b16 %v1188, %v1187
        %v1210 = vpack.c.b16 %v1190, %v1189
        %v1211 = vpack.c.b16 %v1192, %v1191
        %v1212 = vpack.c.b16 %v1194, %v1193
        %v1213 = vpack.c.b16 %v1196, %v1195
        %v1214 = vpack.c.b16 %v1198, %v1197
        %1231 = vst [vmem:[#allocation4] sm:$0xff] %v1199
        %1232 = vst [vmem:[#allocation4 + $0x48] sm:$0xff] %v1200
        %1233 = vst [vmem:[#allocation4 + $0x90] sm:$0xff] %v1201
        %1234 = vst [vmem:[#allocation4 + $0xd8] sm:$0xff] %v1202
        %1235 = vst [vmem:[#allocation4 + $0x120] sm:$0xff] %v1203
        %1236 = vst [vmem:[#allocation4 + $0x168] sm:$0xff] %v1204
        %1237 = vst [vmem:[#allocation4 + $0x1b0] sm:$0xff] %v1205
        %1238 = vst [vmem:[#allocation4 + $0x1f8] sm:$0xff] %v1206
        %1239 = vst [vmem:[#allocation4 + $0x240] sm:$0xff] %v1207
        %1240 = vst [vmem:[#allocation4 + $0x288] sm:$0xff] %v1208
        %1241 = vst [vmem:[#allocation4 + $0x2d0] sm:$0xff] %v1209
        %1242 = vst [vmem:[#allocation4 + $0x318] sm:$0xff] %v1210
        %1243 = vst [vmem:[#allocation4 + $0x360] sm:$0xff] %v1211
        %1244 = vst [vmem:[#allocation4 + $0x3a8] sm:$0xff] %v1212
        %1245 = vst [vmem:[#allocation4 + $0x3f0] sm:$0xff] %v1213
        %1246 = vst [vmem:[#allocation4 + $0x438] sm:$0xff] %v1214
        %v1247 = vld [vmem:[#allocation2] sm:$0xf]
        %v1248 = vld [vmem:[#allocation2 + $0x4] sm:$0xf]
        %v1249 = vld [vmem:[#allocation2 + $0x8] sm:$0x1]
        %v1250 = vld [vmem:[#allocation2 + $0xc] sm:$0xf]
        %v1251 = vld [vmem:[#allocation2 + $0x10] sm:$0xf]
        %v1252 = vld [vmem:[#allocation2 + $0x14] sm:$0x1]
        %v1253 = vld [vmem:[#allocation2 + $0x18] sm:$0xf]
        %v1254 = vld [vmem:[#allocation2 + $0x1c] sm:$0xf]
        %v1255 = vld [vmem:[#allocation2 + $0x20] sm:$0x1]
        %v1256 = vld [vmem:[#allocation2 + $0x24] sm:$0xf]
        %v1257 = vld [vmem:[#allocation2 + $0x28] sm:$0xf]
        %v1258 = vld [vmem:[#allocation2 + $0x2c] sm:$0x1]
        %v1259 = vld [vmem:[#allocation2 + $0x30] sm:$0xf]
        %v1260 = vld [vmem:[#allocation2 + $0x34] sm:$0xf]
        %v1261 = vld [vmem:[#allocation2 + $0x38] sm:$0x1]
        %v1262 = vld [vmem:[#allocation2 + $0x3c] sm:$0xf]
        %v1263 = vld [vmem:[#allocation2 + $0x40] sm:$0xf]
        %v1264 = vld [vmem:[#allocation2 + $0x44] sm:$0x1]
        %v1265 = vld [vmem:[#allocation2 + $0x48] sm:$0xf]
        %v1266 = vld [vmem:[#allocation2 + $0x4c] sm:$0xf]
        %v1267 = vld [vmem:[#allocation2 + $0x50] sm:$0x1]
        %v1268 = vld [vmem:[#allocation2 + $0x54] sm:$0xf]
        %v1269 = vld [vmem:[#allocation2 + $0x58] sm:$0xf]
        %v1270 = vld [vmem:[#allocation2 + $0x5c] sm:$0x1]
        %v1271 = vld [vmem:[#allocation2 + $0x60] sm:$0xf]
        %v1272 = vld [vmem:[#allocation2 + $0x64] sm:$0xf]
        %v1273 = vld [vmem:[#allocation2 + $0x68] sm:$0x1]
        %v1274 = vld [vmem:[#allocation2 + $0x6c] sm:$0xf]
        %v1275 = vld [vmem:[#allocation2 + $0x70] sm:$0xf]
        %v1276 = vld [vmem:[#allocation2 + $0x74] sm:$0x1]
        %v1277 = vld [vmem:[#allocation2 + $0x78] sm:$0xf]
        %v1278 = vld [vmem:[#allocation2 + $0x7c] sm:$0xf]
        %v1279 = vld [vmem:[#allocation2 + $0x80] sm:$0x1]
        %v1280 = vld [vmem:[#allocation2 + $0x84] sm:$0xf]
        %v1281 = vld [vmem:[#allocation2 + $0x88] sm:$0xf]
        %v1282 = vld [vmem:[#allocation2 + $0x8c] sm:$0x1]
        %v1283 = vld [vmem:[#allocation2 + $0x90] sm:$0xf]
        %v1284 = vld [vmem:[#allocation2 + $0x94] sm:$0xf]
        %v1285 = vld [vmem:[#allocation2 + $0x98] sm:$0x1]
        %v1286 = vld [vmem:[#allocation2 + $0x9c] sm:$0xf]
        %v1287 = vld [vmem:[#allocation2 + $0xa0] sm:$0xf]
        %v1288 = vld [vmem:[#allocation2 + $0xa4] sm:$0x1]
        %v1289 = vld [vmem:[#allocation2 + $0xa8] sm:$0xf]
        %v1290 = vld [vmem:[#allocation2 + $0xac] sm:$0xf]
        %v1291 = vld [vmem:[#allocation2 + $0xb0] sm:$0x1]
        %v1292 = vld [vmem:[#allocation2 + $0xb4] sm:$0xf]
        %v1293 = vld [vmem:[#allocation2 + $0xb8] sm:$0xf]
        %v1294 = vld [vmem:[#allocation2 + $0xbc] sm:$0x1]
        %vm1295 = vsmask.f32 3328
        %vm1296 = vsmask.f32 7440
        %vm1297 = vmor %vm1295, %vm1296
        %v1299 = vshrl.u32 %v1247, 16
        %v1301 = vrot.slane %v1299, 4
        %v1302 = vshll.u32 %v1247, 16
        %v1304 = vrot.slane %v1302, 5
        %v1305 = vor.u32 %v1301, %v1304
        %v1306 = vrot.slane %v1305, 4
        %v1308 = vshll.u32 %v1248, 16
        %v1310 = vrot.slane %v1308, 5
        %v1311 = vsel %vm1297, %v1306, %v1310
        %v1312 = vshrl.u32 %v1248, 16
        %v1314 = vrot.slane %v1312, 4
        %v1315 = vor.u32 %v1314, %v1310
        %v1316 = vrot.slane %v1315, 4
        %v1318 = vshll.u32 %v1249, 16
        %v1320 = vrot.slane %v1318, 5
        %v1321 = vsel %vm1297, %v1316, %v1320
        %v1323 = vshrl.u32 %v1250, 16
        %v1325 = vrot.slane %v1323, 4
        %v1326 = vshll.u32 %v1250, 16
        %v1328 = vrot.slane %v1326, 5
        %v1329 = vor.u32 %v1325, %v1328
        %v1330 = vrot.slane %v1329, 4
        %v1332 = vshll.u32 %v1251, 16
        %v1334 = vrot.slane %v1332, 5
        %v1335 = vsel %vm1297, %v1330, %v1334
        %v1336 = vshrl.u32 %v1251, 16
        %v1338 = vrot.slane %v1336, 4
        %v1339 = vor.u32 %v1338, %v1334
        %v1340 = vrot.slane %v1339, 4
        %v1342 = vshll.u32 %v1252, 16
        %v1344 = vrot.slane %v1342, 5
        %v1345 = vsel %vm1297, %v1340, %v1344
        %v1347 = vshrl.u32 %v1253, 16
        %v1349 = vrot.slane %v1347, 4
        %v1350 = vshll.u32 %v1253, 16
        %v1352 = vrot.slane %v1350, 5
        %v1353 = vor.u32 %v1349, %v1352
        %v1354 = vrot.slane %v1353, 4
        %v1356 = vshll.u32 %v1254, 16
        %v1358 = vrot.slane %v1356, 5
        %v1359 = vsel %vm1297, %v1354, %v1358
        %v1360 = vshrl.u32 %v1254, 16
        %v1362 = vrot.slane %v1360, 4
        %v1363 = vor.u32 %v1362, %v1358
        %v1364 = vrot.slane %v1363, 4
        %v1366 = vshll.u32 %v1255, 16
        %v1368 = vrot.slane %v1366, 5
        %v1369 = vsel %vm1297, %v1364, %v1368
        %v1371 = vshrl.u32 %v1256, 16
        %v1373 = vrot.slane %v1371, 4
        %v1374 = vshll.u32 %v1256, 16
        %v1376 = vrot.slane %v1374, 5
        %v1377 = vor.u32 %v1373, %v1376
        %v1378 = vrot.slane %v1377, 4
        %v1380 = vshll.u32 %v1257, 16
        %v1382 = vrot.slane %v1380, 5
        %v1383 = vsel %vm1297, %v1378, %v1382
        %v1384 = vshrl.u32 %v1257, 16
        %v1386 = vrot.slane %v1384, 4
        %v1387 = vor.u32 %v1386, %v1382
        %v1388 = vrot.slane %v1387, 4
        %v1390 = vshll.u32 %v1258, 16
        %v1392 = vrot.slane %v1390, 5
        %v1393 = vsel %vm1297, %v1388, %v1392
        %v1395 = vshrl.u32 %v1259, 16
        %v1397 = vrot.slane %v1395, 4
        %v1398 = vshll.u32 %v1259, 16
        %v1400 = vrot.slane %v1398, 5
        %v1401 = vor.u32 %v1397, %v1400
        %v1402 = vrot.slane %v1401, 4
        %v1404 = vshll.u32 %v1260, 16
        %v1406 = vrot.slane %v1404, 5
        %v1407 = vsel %vm1297, %v1402, %v1406
        %v1408 = vshrl.u32 %v1260, 16
        %v1410 = vrot.slane %v1408, 4
        %v1411 = vor.u32 %v1410, %v1406
        %v1412 = vrot.slane %v1411, 4
        %v1414 = vshll.u32 %v1261, 16
        %v1416 = vrot.slane %v1414, 5
        %v1417 = vsel %vm1297, %v1412, %v1416
        %v1419 = vshrl.u32 %v1262, 16
        %v1421 = vrot.slane %v1419, 4
        %v1422 = vshll.u32 %v1262, 16
        %v1424 = vrot.slane %v1422, 5
        %v1425 = vor.u32 %v1421, %v1424
        %v1426 = vrot.slane %v1425, 4
        %v1428 = vshll.u32 %v1263, 16
        %v1430 = vrot.slane %v1428, 5
        %v1431 = vsel %vm1297, %v1426, %v1430
        %v1432 = vshrl.u32 %v1263, 16
        %v1434 = vrot.slane %v1432, 4
        %v1435 = vor.u32 %v1434, %v1430
        %v1436 = vrot.slane %v1435, 4
        %v1438 = vshll.u32 %v1264, 16
        %v1440 = vrot.slane %v1438, 5
        %v1441 = vsel %vm1297, %v1436, %v1440
        %v1443 = vshrl.u32 %v1265, 16
        %v1445 = vrot.slane %v1443, 4
        %v1446 = vshll.u32 %v1265, 16
        %v1448 = vrot.slane %v1446, 5
        %v1449 = vor.u32 %v1445, %v1448
        %v1450 = vrot.slane %v1449, 4
        %v1452 = vshll.u32 %v1266, 16
        %v1454 = vrot.slane %v1452, 5
        %v1455 = vsel %vm1297, %v1450, %v1454
        %v1456 = vshrl.u32 %v1266, 16
        %v1458 = vrot.slane %v1456, 4
        %v1459 = vor.u32 %v1458, %v1454
        %v1460 = vrot.slane %v1459, 4
        %v1462 = vshll.u32 %v1267, 16
        %v1464 = vrot.slane %v1462, 5
        %v1465 = vsel %vm1297, %v1460, %v1464
        %v1467 = vshrl.u32 %v1268, 16
        %v1469 = vrot.slane %v1467, 4
        %v1470 = vshll.u32 %v1268, 16
        %v1472 = vrot.slane %v1470, 5
        %v1473 = vor.u32 %v1469, %v1472
        %v1474 = vrot.slane %v1473, 4
        %v1476 = vshll.u32 %v1269, 16
        %v1478 = vrot.slane %v1476, 5
        %v1479 = vsel %vm1297, %v1474, %v1478
        %v1480 = vshrl.u32 %v1269, 16
        %v1482 = vrot.slane %v1480, 4
        %v1483 = vor.u32 %v1482, %v1478
        %v1484 = vrot.slane %v1483, 4
        %v1486 = vshll.u32 %v1270, 16
        %v1488 = vrot.slane %v1486, 5
        %v1489 = vsel %vm1297, %v1484, %v1488
        %v1491 = vshrl.u32 %v1271, 16
        %v1493 = vrot.slane %v1491, 4
        %v1494 = vshll.u32 %v1271, 16
        %v1496 = vrot.slane %v1494, 5
        %v1497 = vor.u32 %v1493, %v1496
        %v1498 = vrot.slane %v1497, 4
        %v1500 = vshll.u32 %v1272, 16
        %v1502 = vrot.slane %v1500, 5
        %v1503 = vsel %vm1297, %v1498, %v1502
        %v1504 = vshrl.u32 %v1272, 16
        %v1506 = vrot.slane %v1504, 4
        %v1507 = vor.u32 %v1506, %v1502
        %v1508 = vrot.slane %v1507, 4
        %v1510 = vshll.u32 %v1273, 16
        %v1512 = vrot.slane %v1510, 5
        %v1513 = vsel %vm1297, %v1508, %v1512
        %v1515 = vshrl.u32 %v1274, 16
        %v1517 = vrot.slane %v1515, 4
        %v1518 = vshll.u32 %v1274, 16
        %v1520 = vrot.slane %v1518, 5
        %v1521 = vor.u32 %v1517, %v1520
        %v1522 = vrot.slane %v1521, 4
        %v1524 = vshll.u32 %v1275, 16
        %v1526 = vrot.slane %v1524, 5
        %v1527 = vsel %vm1297, %v1522, %v1526
        %v1528 = vshrl.u32 %v1275, 16
        %v1530 = vrot.slane %v1528, 4
        %v1531 = vor.u32 %v1530, %v1526
        %v1532 = vrot.slane %v1531, 4
        %v1534 = vshll.u32 %v1276, 16
        %v1536 = vrot.slane %v1534, 5
        %v1537 = vsel %vm1297, %v1532, %v1536
        %v1539 = vshrl.u32 %v1277, 16
        %v1541 = vrot.slane %v1539, 4
        %v1542 = vshll.u32 %v1277, 16
        %v1544 = vrot.slane %v1542, 5
        %v1545 = vor.u32 %v1541, %v1544
        %v1546 = vrot.slane %v1545, 4
        %v1548 = vshll.u32 %v1278, 16
        %v1550 = vrot.slane %v1548, 5
        %v1551 = vsel %vm1297, %v1546, %v1550
        %v1552 = vshrl.u32 %v1278, 16
        %v1554 = vrot.slane %v1552, 4
        %v1555 = vor.u32 %v1554, %v1550
        %v1556 = vrot.slane %v1555, 4
        %v1558 = vshll.u32 %v1279, 16
        %v1560 = vrot.slane %v1558, 5
        %v1561 = vsel %vm1297, %v1556, %v1560
        %v1563 = vshrl.u32 %v1280, 16
        %v1565 = vrot.slane %v1563, 4
        %v1566 = vshll.u32 %v1280, 16
        %v1568 = vrot.slane %v1566, 5
        %v1569 = vor.u32 %v1565, %v1568
        %v1570 = vrot.slane %v1569, 4
        %v1572 = vshll.u32 %v1281, 16
        %v1574 = vrot.slane %v1572, 5
        %v1575 = vsel %vm1297, %v1570, %v1574
        %v1576 = vshrl.u32 %v1281, 16
        %v1578 = vrot.slane %v1576, 4
        %v1579 = vor.u32 %v1578, %v1574
        %v1580 = vrot.slane %v1579, 4
        %v1582 = vshll.u32 %v1282, 16
        %v1584 = vrot.slane %v1582, 5
        %v1585 = vsel %vm1297, %v1580, %v1584
        %v1587 = vshrl.u32 %v1283, 16
        %v1589 = vrot.slane %v1587, 4
        %v1590 = vshll.u32 %v1283, 16
        %v1592 = vrot.slane %v1590, 5
        %v1593 = vor.u32 %v1589, %v1592
        %v1594 = vrot.slane %v1593, 4
        %v1596 = vshll.u32 %v1284, 16
        %v1598 = vrot.slane %v1596, 5
        %v1599 = vsel %vm1297, %v1594, %v1598
        %v1600 = vshrl.u32 %v1284, 16
        %v1602 = vrot.slane %v1600, 4
        %v1603 = vor.u32 %v1602, %v1598
        %v1604 = vrot.slane %v1603, 4
        %v1606 = vshll.u32 %v1285, 16
        %v1608 = vrot.slane %v1606, 5
        %v1609 = vsel %vm1297, %v1604, %v1608
        %v1611 = vshrl.u32 %v1286, 16
        %v1613 = vrot.slane %v1611, 4
        %v1614 = vshll.u32 %v1286, 16
        %v1616 = vrot.slane %v1614, 5
        %v1617 = vor.u32 %v1613, %v1616
        %v1618 = vrot.slane %v1617, 4
        %v1620 = vshll.u32 %v1287, 16
        %v1622 = vrot.slane %v1620, 5
        %v1623 = vsel %vm1297, %v1618, %v1622
        %v1624 = vshrl.u32 %v1287, 16
        %v1626 = vrot.slane %v1624, 4
        %v1627 = vor.u32 %v1626, %v1622
        %v1628 = vrot.slane %v1627, 4
        %v1630 = vshll.u32 %v1288, 16
        %v1632 = vrot.slane %v1630, 5
        %v1633 = vsel %vm1297, %v1628, %v1632
        %v1635 = vshrl.u32 %v1289, 16
        %v1637 = vrot.slane %v1635, 4
        %v1638 = vshll.u32 %v1289, 16
        %v1640 = vrot.slane %v1638, 5
        %v1641 = vor.u32 %v1637, %v1640
        %v1642 = vrot.slane %v1641, 4
        %v1644 = vshll.u32 %v1290, 16
        %v1646 = vrot.slane %v1644, 5
        %v1647 = vsel %vm1297, %v1642, %v1646
        %v1648 = vshrl.u32 %v1290, 16
        %v1650 = vrot.slane %v1648, 4
        %v1651 = vor.u32 %v1650, %v1646
        %v1652 = vrot.slane %v1651, 4
        %v1654 = vshll.u32 %v1291, 16
        %v1656 = vrot.slane %v1654, 5
        %v1657 = vsel %vm1297, %v1652, %v1656
        %v1659 = vshrl.u32 %v1292, 16
        %v1661 = vrot.slane %v1659, 4
        %v1662 = vshll.u32 %v1292, 16
        %v1664 = vrot.slane %v1662, 5
        %v1665 = vor.u32 %v1661, %v1664
        %v1666 = vrot.slane %v1665, 4
        %v1668 = vshll.u32 %v1293, 16
        %v1670 = vrot.slane %v1668, 5
        %v1671 = vsel %vm1297, %v1666, %v1670
        %v1672 = vshrl.u32 %v1293, 16
        %v1674 = vrot.slane %v1672, 4
        %v1675 = vor.u32 %v1674, %v1670
        %v1676 = vrot.slane %v1675, 4
        %v1678 = vshll.u32 %v1294, 16
        %v1680 = vrot.slane %v1678, 5
        %v1681 = vsel %vm1297, %v1676, %v1680
        %v1682 = vunpack.c.l.b16 %v1311
        %v1683 = vunpack.c.l.b16 %v1321
        %v1684 = vunpack.c.l.b16 %v1335
        %v1685 = vunpack.c.l.b16 %v1345
        %v1686 = vunpack.c.l.b16 %v1359
        %v1687 = vunpack.c.l.b16 %v1369
        %v1688 = vunpack.c.l.b16 %v1383
        %v1689 = vunpack.c.l.b16 %v1393
        %v1690 = vunpack.c.l.b16 %v1407
        %v1691 = vunpack.c.l.b16 %v1417
        %v1692 = vunpack.c.l.b16 %v1431
        %v1693 = vunpack.c.l.b16 %v1441
        %v1694 = vunpack.c.l.b16 %v1455
        %v1695 = vunpack.c.l.b16 %v1465
        %v1696 = vunpack.c.l.b16 %v1479
        %v1697 = vunpack.c.l.b16 %v1489
        %v1698 = vunpack.c.l.b16 %v1503
        %v1699 = vunpack.c.l.b16 %v1513
        %v1700 = vunpack.c.l.b16 %v1527
        %v1701 = vunpack.c.l.b16 %v1537
        %v1702 = vunpack.c.l.b16 %v1551
        %v1703 = vunpack.c.l.b16 %v1561
        %v1704 = vunpack.c.l.b16 %v1575
        %v1705 = vunpack.c.l.b16 %v1585
        %v1706 = vunpack.c.l.b16 %v1599
        %v1707 = vunpack.c.l.b16 %v1609
        %v1708 = vunpack.c.l.b16 %v1623
        %v1709 = vunpack.c.l.b16 %v1633
        %v1710 = vunpack.c.l.b16 %v1647
        %v1711 = vunpack.c.l.b16 %v1657
        %v1712 = vunpack.c.l.b16 %v1671
        %v1713 = vunpack.c.l.b16 %v1681
        %v1714 = vpack.c.b16 %v1683, %v1682
        %v1715 = vpack.c.b16 %v1685, %v1684
        %v1716 = vpack.c.b16 %v1687, %v1686
        %v1717 = vpack.c.b16 %v1689, %v1688
        %v1718 = vpack.c.b16 %v1691, %v1690
        %v1719 = vpack.c.b16 %v1693, %v1692
        %v1720 = vpack.c.b16 %v1695, %v1694
        %v1721 = vpack.c.b16 %v1697, %v1696
        %v1722 = vpack.c.b16 %v1699, %v1698
        %v1723 = vpack.c.b16 %v1701, %v1700
        %v1724 = vpack.c.b16 %v1703, %v1702
        %v1725 = vpack.c.b16 %v1705, %v1704
        %v1726 = vpack.c.b16 %v1707, %v1706
        %v1727 = vpack.c.b16 %v1709, %v1708
        %v1728 = vpack.c.b16 %v1711, %v1710
        %v1729 = vpack.c.b16 %v1713, %v1712
        %1746 = vst [vmem:[#allocation4 + $0x8] sm:$0xff] %v1714
        %1747 = vst [vmem:[#allocation4 + $0x50] sm:$0xff] %v1715
        %1748 = vst [vmem:[#allocation4 + $0x98] sm:$0xff] %v1716
        %1749 = vst [vmem:[#allocation4 + $0xe0] sm:$0xff] %v1717
        %1750 = vst [vmem:[#allocation4 + $0x128] sm:$0xff] %v1718
        %1751 = vst [vmem:[#allocation4 + $0x170] sm:$0xff] %v1719
        %1752 = vst [vmem:[#allocation4 + $0x1b8] sm:$0xff] %v1720
        %1753 = vst [vmem:[#allocation4 + $0x200] sm:$0xff] %v1721
        %1754 = vst [vmem:[#allocation4 + $0x248] sm:$0xff] %v1722
        %1755 = vst [vmem:[#allocation4 + $0x290] sm:$0xff] %v1723
        %1756 = vst [vmem:[#allocation4 + $0x2d8] sm:$0xff] %v1724
        %1757 = vst [vmem:[#allocation4 + $0x320] sm:$0xff] %v1725
        %1758 = vst [vmem:[#allocation4 + $0x368] sm:$0xff] %v1726
        %1759 = vst [vmem:[#allocation4 + $0x3b0] sm:$0xff] %v1727
        %1760 = vst [vmem:[#allocation4 + $0x3f8] sm:$0xff] %v1728
        %1761 = vst [vmem:[#allocation4 + $0x440] sm:$0xff] %v1729
        %v1762 = vld [vmem:[#allocation2] sm:$0xe]
        %v1763 = vld [vmem:[#allocation2 + $0x4] sm:$0xf]
        %v1764 = vld [vmem:[#allocation2 + $0x8] sm:$0x1]
        %v1765 = vld [vmem:[#allocation2 + $0xc] sm:$0xe]
        %v1766 = vld [vmem:[#allocation2 + $0x10] sm:$0xf]
        %v1767 = vld [vmem:[#allocation2 + $0x14] sm:$0x1]
        %v1768 = vld [vmem:[#allocation2 + $0x18] sm:$0xe]
        %v1769 = vld [vmem:[#allocation2 + $0x1c] sm:$0xf]
        %v1770 = vld [vmem:[#allocation2 + $0x20] sm:$0x1]
        %v1771 = vld [vmem:[#allocation2 + $0x24] sm:$0xe]
        %v1772 = vld [vmem:[#allocation2 + $0x28] sm:$0xf]
        %v1773 = vld [vmem:[#allocation2 + $0x2c] sm:$0x1]
        %v1774 = vld [vmem:[#allocation2 + $0x30] sm:$0xe]
        %v1775 = vld [vmem:[#allocation2 + $0x34] sm:$0xf]
        %v1776 = vld [vmem:[#allocation2 + $0x38] sm:$0x1]
        %v1777 = vld [vmem:[#allocation2 + $0x3c] sm:$0xe]
        %v1778 = vld [vmem:[#allocation2 + $0x40] sm:$0xf]
        %v1779 = vld [vmem:[#allocation2 + $0x44] sm:$0x1]
        %v1780 = vld [vmem:[#allocation2 + $0x48] sm:$0xe]
        %v1781 = vld [vmem:[#allocation2 + $0x4c] sm:$0xf]
        %v1782 = vld [vmem:[#allocation2 + $0x50] sm:$0x1]
        %v1783 = vld [vmem:[#allocation2 + $0x54] sm:$0xe]
        %v1784 = vld [vmem:[#allocation2 + $0x58] sm:$0xf]
        %v1785 = vld [vmem:[#allocation2 + $0x5c] sm:$0x1]
        %v1786 = vld [vmem:[#allocation2 + $0x60] sm:$0xe]
        %v1787 = vld [vmem:[#allocation2 + $0x64] sm:$0xf]
        %v1788 = vld [vmem:[#allocation2 + $0x68] sm:$0x1]
        %v1789 = vld [vmem:[#allocation2 + $0x6c] sm:$0xe]
        %v1790 = vld [vmem:[#allocation2 + $0x70] sm:$0xf]
        %v1791 = vld [vmem:[#allocation2 + $0x74] sm:$0x1]
        %v1792 = vld [vmem:[#allocation2 + $0x78] sm:$0xe]
        %v1793 = vld [vmem:[#allocation2 + $0x7c] sm:$0xf]
        %v1794 = vld [vmem:[#allocation2 + $0x80] sm:$0x1]
        %v1795 = vld [vmem:[#allocation2 + $0x84] sm:$0xe]
        %v1796 = vld [vmem:[#allocation2 + $0x88] sm:$0xf]
        %v1797 = vld [vmem:[#allocation2 + $0x8c] sm:$0x1]
        %v1798 = vld [vmem:[#allocation2 + $0x90] sm:$0xe]
        %v1799 = vld [vmem:[#allocation2 + $0x94] sm:$0xf]
        %v1800 = vld [vmem:[#allocation2 + $0x98] sm:$0x1]
        %v1801 = vld [vmem:[#allocation2 + $0x9c] sm:$0xe]
        %v1802 = vld [vmem:[#allocation2 + $0xa0] sm:$0xf]
        %v1803 = vld [vmem:[#allocation2 + $0xa4] sm:$0x1]
        %v1804 = vld [vmem:[#allocation2 + $0xa8] sm:$0xe]
        %v1805 = vld [vmem:[#allocation2 + $0xac] sm:$0xf]
        %v1806 = vld [vmem:[#allocation2 + $0xb0] sm:$0x1]
        %v1807 = vld [vmem:[#allocation2 + $0xb4] sm:$0xe]
        %v1808 = vld [vmem:[#allocation2 + $0xb8] sm:$0xf]
        %v1809 = vld [vmem:[#allocation2 + $0xbc] sm:$0x1]
        %vm1858 = vcmask 1042432
        %vm1859 = vcmask 1046532
        %vm1860 = vmor %vm1858, %vm1859
        %v1861 = vrot.slane %v1762, 5
        %v1862 = vrot.slane %v1861, 4
        %v1863 = vrot.slane %v1763, 5
        %v1864 = vsel %vm1860, %v1862, %v1863
        %v1865 = vrot.slane %v1863, 4
        %v1866 = vrot.slane %v1764, 5
        %v1867 = vsel %vm1860, %v1865, %v1866
        %v1868 = vrot.slane %v1765, 5
        %v1869 = vrot.slane %v1868, 4
        %v1870 = vrot.slane %v1766, 5
        %v1871 = vsel %vm1860, %v1869, %v1870
        %v1872 = vrot.slane %v1870, 4
        %v1873 = vrot.slane %v1767, 5
        %v1874 = vsel %vm1860, %v1872, %v1873
        %v1875 = vrot.slane %v1768, 5
        %v1876 = vrot.slane %v1875, 4
        %v1877 = vrot.slane %v1769, 5
        %v1878 = vsel %vm1860, %v1876, %v1877
        %v1879 = vrot.slane %v1877, 4
        %v1880 = vrot.slane %v1770, 5
        %v1881 = vsel %vm1860, %v1879, %v1880
        %v1882 = vrot.slane %v1771, 5
        %v1883 = vrot.slane %v1882, 4
        %v1884 = vrot.slane %v1772, 5
        %v1885 = vsel %vm1860, %v1883, %v1884
        %v1886 = vrot.slane %v1884, 4
        %v1887 = vrot.slane %v1773, 5
        %v1888 = vsel %vm1860, %v1886, %v1887
        %v1889 = vrot.slane %v1774, 5
        %v1890 = vrot.slane %v1889, 4
        %v1891 = vrot.slane %v1775, 5
        %v1892 = vsel %vm1860, %v1890, %v1891
        %v1893 = vrot.slane %v1891, 4
        %v1894 = vrot.slane %v1776, 5
        %v1895 = vsel %vm1860, %v1893, %v1894
        %v1896 = vrot.slane %v1777, 5
        %v1897 = vrot.slane %v1896, 4
        %v1898 = vrot.slane %v1778, 5
        %v1899 = vsel %vm1860, %v1897, %v1898
        %v1900 = vrot.slane %v1898, 4
        %v1901 = vrot.slane %v1779, 5
        %v1902 = vsel %vm1860, %v1900, %v1901
        %v1903 = vrot.slane %v1780, 5
        %v1904 = vrot.slane %v1903, 4
        %v1905 = vrot.slane %v1781, 5
        %v1906 = vsel %vm1860, %v1904, %v1905
        %v1907 = vrot.slane %v1905, 4
        %v1908 = vrot.slane %v1782, 5
        %v1909 = vsel %vm1860, %v1907, %v1908
        %v1910 = vrot.slane %v1783, 5
        %v1911 = vrot.slane %v1910, 4
        %v1912 = vrot.slane %v1784, 5
        %v1913 = vsel %vm1860, %v1911, %v1912
        %v1914 = vrot.slane %v1912, 4
        %v1915 = vrot.slane %v1785, 5
        %v1916 = vsel %vm1860, %v1914, %v1915
        %v1917 = vrot.slane %v1786, 5
        %v1918 = vrot.slane %v1917, 4
        %v1919 = vrot.slane %v1787, 5
        %v1920 = vsel %vm1860, %v1918, %v1919
        %v1921 = vrot.slane %v1919, 4
        %v1922 = vrot.slane %v1788, 5
        %v1923 = vsel %vm1860, %v1921, %v1922
        %v1924 = vrot.slane %v1789, 5
        %v1925 = vrot.slane %v1924, 4
        %v1926 = vrot.slane %v1790, 5
        %v1927 = vsel %vm1860, %v1925, %v1926
        %v1928 = vrot.slane %v1926, 4
        %v1929 = vrot.slane %v1791, 5
        %v1930 = vsel %vm1860, %v1928, %v1929
        %v1931 = vrot.slane %v1792, 5
        %v1932 = vrot.slane %v1931, 4
        %v1933 = vrot.slane %v1793, 5
        %v1934 = vsel %vm1860, %v1932, %v1933
        %v1935 = vrot.slane %v1933, 4
        %v1936 = vrot.slane %v1794, 5
        %v1937 = vsel %vm1860, %v1935, %v1936
        %v1938 = vrot.slane %v1795, 5
        %v1939 = vrot.slane %v1938, 4
        %v1940 = vrot.slane %v1796, 5
        %v1941 = vsel %vm1860, %v1939, %v1940
        %v1942 = vrot.slane %v1940, 4
        %v1943 = vrot.slane %v1797, 5
        %v1944 = vsel %vm1860, %v1942, %v1943
        %v1945 = vrot.slane %v1798, 5
        %v1946 = vrot.slane %v1945, 4
        %v1947 = vrot.slane %v1799, 5
        %v1948 = vsel %vm1860, %v1946, %v1947
        %v1949 = vrot.slane %v1947, 4
        %v1950 = vrot.slane %v1800, 5
        %v1951 = vsel %vm1860, %v1949, %v1950
        %v1952 = vrot.slane %v1801, 5
        %v1953 = vrot.slane %v1952, 4
        %v1954 = vrot.slane %v1802, 5
        %v1955 = vsel %vm1860, %v1953, %v1954
        %v1956 = vrot.slane %v1954, 4
        %v1957 = vrot.slane %v1803, 5
        %v1958 = vsel %vm1860, %v1956, %v1957
        %v1959 = vrot.slane %v1804, 5
        %v1960 = vrot.slane %v1959, 4
        %v1961 = vrot.slane %v1805, 5
        %v1962 = vsel %vm1860, %v1960, %v1961
        %v1963 = vrot.slane %v1961, 4
        %v1964 = vrot.slane %v1806, 5
        %v1965 = vsel %vm1860, %v1963, %v1964
        %v1966 = vrot.slane %v1807, 5
        %v1967 = vrot.slane %v1966, 4
        %v1968 = vrot.slane %v1808, 5
        %v1969 = vsel %vm1860, %v1967, %v1968
        %v1970 = vrot.slane %v1968, 4
        %v1971 = vrot.slane %v1809, 5
        %v1972 = vsel %vm1860, %v1970, %v1971
        %v1973 = vunpack.c.l.b16 %v1864
        %v1974 = vunpack.c.l.b16 %v1867
        %v1975 = vunpack.c.l.b16 %v1871
        %v1976 = vunpack.c.l.b16 %v1874
        %v1977 = vunpack.c.l.b16 %v1878
        %v1978 = vunpack.c.l.b16 %v1881
        %v1979 = vunpack.c.l.b16 %v1885
        %v1980 = vunpack.c.l.b16 %v1888
        %v1981 = vunpack.c.l.b16 %v1892
        %v1982 = vunpack.c.l.b16 %v1895
        %v1983 = vunpack.c.l.b16 %v1899
        %v1984 = vunpack.c.l.b16 %v1902
        %v1985 = vunpack.c.l.b16 %v1906
        %v1986 = vunpack.c.l.b16 %v1909
        %v1987 = vunpack.c.l.b16 %v1913
        %v1988 = vunpack.c.l.b16 %v1916
        %v1989 = vunpack.c.l.b16 %v1920
        %v1990 = vunpack.c.l.b16 %v1923
        %v1991 = vunpack.c.l.b16 %v1927
        %v1992 = vunpack.c.l.b16 %v1930
        %v1993 = vunpack.c.l.b16 %v1934
        %v1994 = vunpack.c.l.b16 %v1937
        %v1995 = vunpack.c.l.b16 %v1941
        %v1996 = vunpack.c.l.b16 %v1944
        %v1997 = vunpack.c.l.b16 %v1948
        %v1998 = vunpack.c.l.b16 %v1951
        %v1999 = vunpack.c.l.b16 %v1955
        %v2000 = vunpack.c.l.b16 %v1958
        %v2001 = vunpack.c.l.b16 %v1962
        %v2002 = vunpack.c.l.b16 %v1965
        %v2003 = vunpack.c.l.b16 %v1969
        %v2004 = vunpack.c.l.b16 %v1972
        %v2005 = vpack.c.b16 %v1974, %v1973
        %v2006 = vpack.c.b16 %v1976, %v1975
        %v2007 = vpack.c.b16 %v1978, %v1977
        %v2008 = vpack.c.b16 %v1980, %v1979
        %v2009 = vpack.c.b16 %v1982, %v1981
        %v2010 = vpack.c.b16 %v1984, %v1983
        %v2011 = vpack.c.b16 %v1986, %v1985
        %v2012 = vpack.c.b16 %v1988, %v1987
        %v2013 = vpack.c.b16 %v1990, %v1989
        %v2014 = vpack.c.b16 %v1992, %v1991
        %v2015 = vpack.c.b16 %v1994, %v1993
        %v2016 = vpack.c.b16 %v1996, %v1995
        %v2017 = vpack.c.b16 %v1998, %v1997
        %v2018 = vpack.c.b16 %v2000, %v1999
        %v2019 = vpack.c.b16 %v2002, %v2001
        %v2020 = vpack.c.b16 %v2004, %v2003
        %2037 = vst [vmem:[#allocation4 + $0x10] sm:$0xff] %v2005
        %2038 = vst [vmem:[#allocation4 + $0x58] sm:$0xff] %v2006
        %2039 = vst [vmem:[#allocation4 + $0xa0] sm:$0xff] %v2007
        %2040 = vst [vmem:[#allocation4 + $0xe8] sm:$0xff] %v2008
        %2041 = vst [vmem:[#allocation4 + $0x130] sm:$0xff] %v2009
        %2042 = vst [vmem:[#allocation4 + $0x178] sm:$0xff] %v2010
        %2043 = vst [vmem:[#allocation4 + $0x1c0] sm:$0xff] %v2011
        %2044 = vst [vmem:[#allocation4 + $0x208] sm:$0xff] %v2012
        %2045 = vst [vmem:[#allocation4 + $0x250] sm:$0xff] %v2013
        %2046 = vst [vmem:[#allocation4 + $0x298] sm:$0xff] %v2014
        %2047 = vst [vmem:[#allocation4 + $0x2e0] sm:$0xff] %v2015
        %2048 = vst [vmem:[#allocation4 + $0x328] sm:$0xff] %v2016
        %2049 = vst [vmem:[#allocation4 + $0x370] sm:$0xff] %v2017
        %2050 = vst [vmem:[#allocation4 + $0x3b8] sm:$0xff] %v2018
        %2051 = vst [vmem:[#allocation4 + $0x400] sm:$0xff] %v2019
        %2052 = vst [vmem:[#allocation4 + $0x448] sm:$0xff] %v2020
        %v2053 = vld [vmem:[%s988] sm:$0xf]
        %v2054 = vld [vmem:[%s988 + $0x4] sm:$0xf]
        %v2055 = vld [vmem:[%s988 + $0xc] sm:$0xf]
        %v2056 = vld [vmem:[%s988 + $0x10] sm:$0xf]
        %v2057 = vld [vmem:[%s988 + $0x18] sm:$0xf]
        %v2058 = vld [vmem:[%s988 + $0x1c] sm:$0xf]
        %v2059 = vld [vmem:[%s988 + $0x24] sm:$0xf]
        %v2060 = vld [vmem:[%s988 + $0x28] sm:$0xf]
        %v2061 = vld [vmem:[%s988 + $0x30] sm:$0xf]
        %v2062 = vld [vmem:[%s988 + $0x34] sm:$0xf]
        %v2063 = vld [vmem:[%s988 + $0x3c] sm:$0xf]
        %v2064 = vld [vmem:[%s988 + $0x40] sm:$0xf]
        %v2065 = vld [vmem:[%s988 + $0x48] sm:$0xf]
        %v2066 = vld [vmem:[%s988 + $0x4c] sm:$0xf]
        %v2067 = vld [vmem:[%s988 + $0x54] sm:$0xf]
        %v2068 = vld [vmem:[%s988 + $0x58] sm:$0xf]
        %v2069 = vld [vmem:[%s988 + $0x60] sm:$0xf]
        %v2070 = vld [vmem:[%s988 + $0x64] sm:$0xf]
        %v2071 = vld [vmem:[%s988 + $0x6c] sm:$0xf]
        %v2072 = vld [vmem:[%s988 + $0x70] sm:$0xf]
        %v2073 = vld [vmem:[%s988 + $0x78] sm:$0xf]
        %v2074 = vld [vmem:[%s988 + $0x7c] sm:$0xf]
        %v2075 = vld [vmem:[%s988 + $0x84] sm:$0xf]
        %v2076 = vld [vmem:[%s988 + $0x88] sm:$0xf]
        %v2077 = vld [vmem:[%s988 + $0x90] sm:$0xf]
        %v2078 = vld [vmem:[%s988 + $0x94] sm:$0xf]
        %v2079 = vld [vmem:[%s988 + $0x9c] sm:$0xf]
        %v2080 = vld [vmem:[%s988 + $0xa0] sm:$0xf]
        %v2081 = vld [vmem:[%s988 + $0xa8] sm:$0xf]
        %v2082 = vld [vmem:[%s988 + $0xac] sm:$0xf]
        %v2083 = vld [vmem:[%s988 + $0xb4] sm:$0xf]
        %v2084 = vld [vmem:[%s988 + $0xb8] sm:$0xf]
        %v2117 = vunpack.c.l.b16 %v2053
        %v2118 = vunpack.c.l.b16 %v2054
        %v2119 = vunpack.c.l.b16 %v2055
        %v2120 = vunpack.c.l.b16 %v2056
        %v2121 = vunpack.c.l.b16 %v2057
        %v2122 = vunpack.c.l.b16 %v2058
        %v2123 = vunpack.c.l.b16 %v2059
        %v2124 = vunpack.c.l.b16 %v2060
        %v2125 = vunpack.c.l.b16 %v2061
        %v2126 = vunpack.c.l.b16 %v2062
        %v2127 = vunpack.c.l.b16 %v2063
        %v2128 = vunpack.c.l.b16 %v2064
        %v2129 = vunpack.c.l.b16 %v2065
        %v2130 = vunpack.c.l.b16 %v2066
        %v2131 = vunpack.c.l.b16 %v2067
        %v2132 = vunpack.c.l.b16 %v2068
        %v2133 = vunpack.c.l.b16 %v2069
        %v2134 = vunpack.c.l.b16 %v2070
        %v2135 = vunpack.c.l.b16 %v2071
        %v2136 = vunpack.c.l.b16 %v2072
        %v2137 = vunpack.c.l.b16 %v2073
        %v2138 = vunpack.c.l.b16 %v2074
        %v2139 = vunpack.c.l.b16 %v2075
        %v2140 = vunpack.c.l.b16 %v2076
        %v2141 = vunpack.c.l.b16 %v2077
        %v2142 = vunpack.c.l.b16 %v2078
        %v2143 = vunpack.c.l.b16 %v2079
        %v2144 = vunpack.c.l.b16 %v2080
        %v2145 = vunpack.c.l.b16 %v2081
        %v2146 = vunpack.c.l.b16 %v2082
        %v2147 = vunpack.c.l.b16 %v2083
        %v2148 = vunpack.c.l.b16 %v2084
        %v2149 = vpack.c.b16 %v2118, %v2117
        %v2150 = vpack.c.b16 %v2120, %v2119
        %v2151 = vpack.c.b16 %v2122, %v2121
        %v2152 = vpack.c.b16 %v2124, %v2123
        %v2153 = vpack.c.b16 %v2126, %v2125
        %v2154 = vpack.c.b16 %v2128, %v2127
        %v2155 = vpack.c.b16 %v2130, %v2129
        %v2156 = vpack.c.b16 %v2132, %v2131
        %v2157 = vpack.c.b16 %v2134, %v2133
        %v2158 = vpack.c.b16 %v2136, %v2135
        %v2159 = vpack.c.b16 %v2138, %v2137
        %v2160 = vpack.c.b16 %v2140, %v2139
        %v2161 = vpack.c.b16 %v2142, %v2141
        %v2162 = vpack.c.b16 %v2144, %v2143
        %v2163 = vpack.c.b16 %v2146, %v2145
        %v2164 = vpack.c.b16 %v2148, %v2147
        %2181 = vst [vmem:[#allocation4 + $0x18] sm:$0xff] %v2149
        %2182 = vst [vmem:[#allocation4 + $0x60] sm:$0xff] %v2150
        %2183 = vst [vmem:[#allocation4 + $0xa8] sm:$0xff] %v2151
        %2184 = vst [vmem:[#allocation4 + $0xf0] sm:$0xff] %v2152
        %2185 = vst [vmem:[#allocation4 + $0x138] sm:$0xff] %v2153
        %2186 = vst [vmem:[#allocation4 + $0x180] sm:$0xff] %v2154
        %2187 = vst [vmem:[#allocation4 + $0x1c8] sm:$0xff] %v2155
        %2188 = vst [vmem:[#allocation4 + $0x210] sm:$0xff] %v2156
        %2189 = vst [vmem:[#allocation4 + $0x258] sm:$0xff] %v2157
        %2190 = vst [vmem:[#allocation4 + $0x2a0] sm:$0xff] %v2158
        %2191 = vst [vmem:[#allocation4 + $0x2e8] sm:$0xff] %v2159
        %2192 = vst [vmem:[#allocation4 + $0x330] sm:$0xff] %v2160
        %2193 = vst [vmem:[#allocation4 + $0x378] sm:$0xff] %v2161
        %2194 = vst [vmem:[#allocation4 + $0x3c0] sm:$0xff] %v2162
        %2195 = vst [vmem:[#allocation4 + $0x408] sm:$0xff] %v2163
        %2196 = vst [vmem:[#allocation4 + $0x450] sm:$0xff] %v2164
        %v2197 = vld [vmem:[%s988] sm:$0xf]
        %v2198 = vld [vmem:[%s988 + $0x4] sm:$0xf]
        %v2199 = vld [vmem:[%s988 + $0x8] sm:$0x1]
        %v2200 = vld [vmem:[%s988 + $0xc] sm:$0xf]
        %v2201 = vld [vmem:[%s988 + $0x10] sm:$0xf]
        %v2202 = vld [vmem:[%s988 + $0x14] sm:$0x1]
        %v2203 = vld [vmem:[%s988 + $0x18] sm:$0xf]
        %v2204 = vld [vmem:[%s988 + $0x1c] sm:$0xf]
        %v2205 = vld [vmem:[%s988 + $0x20] sm:$0x1]
        %v2206 = vld [vmem:[%s988 + $0x24] sm:$0xf]
        %v2207 = vld [vmem:[%s988 + $0x28] sm:$0xf]
        %v2208 = vld [vmem:[%s988 + $0x2c] sm:$0x1]
        %v2209 = vld [vmem:[%s988 + $0x30] sm:$0xf]
        %v2210 = vld [vmem:[%s988 + $0x34] sm:$0xf]
        %v2211 = vld [vmem:[%s988 + $0x38] sm:$0x1]
        %v2212 = vld [vmem:[%s988 + $0x3c] sm:$0xf]
        %v2213 = vld [vmem:[%s988 + $0x40] sm:$0xf]
        %v2214 = vld [vmem:[%s988 + $0x44] sm:$0x1]
        %v2215 = vld [vmem:[%s988 + $0x48] sm:$0xf]
        %v2216 = vld [vmem:[%s988 + $0x4c] sm:$0xf]
        %v2217 = vld [vmem:[%s988 + $0x50] sm:$0x1]
        %v2218 = vld [vmem:[%s988 + $0x54] sm:$0xf]
        %v2219 = vld [vmem:[%s988 + $0x58] sm:$0xf]
        %v2220 = vld [vmem:[%s988 + $0x5c] sm:$0x1]
        %v2221 = vld [vmem:[%s988 + $0x60] sm:$0xf]
        %v2222 = vld [vmem:[%s988 + $0x64] sm:$0xf]
        %v2223 = vld [vmem:[%s988 + $0x68] sm:$0x1]
        %v2224 = vld [vmem:[%s988 + $0x6c] sm:$0xf]
        %v2225 = vld [vmem:[%s988 + $0x70] sm:$0xf]
        %v2226 = vld [vmem:[%s988 + $0x74] sm:$0x1]
        %v2227 = vld [vmem:[%s988 + $0x78] sm:$0xf]
        %v2228 = vld [vmem:[%s988 + $0x7c] sm:$0xf]
        %v2229 = vld [vmem:[%s988 + $0x80] sm:$0x1]
        %v2230 = vld [vmem:[%s988 + $0x84] sm:$0xf]
        %v2231 = vld [vmem:[%s988 + $0x88] sm:$0xf]
        %v2232 = vld [vmem:[%s988 + $0x8c] sm:$0x1]
        %v2233 = vld [vmem:[%s988 + $0x90] sm:$0xf]
        %v2234 = vld [vmem:[%s988 + $0x94] sm:$0xf]
        %v2235 = vld [vmem:[%s988 + $0x98] sm:$0x1]
        %v2236 = vld [vmem:[%s988 + $0x9c] sm:$0xf]
        %v2237 = vld [vmem:[%s988 + $0xa0] sm:$0xf]
        %v2238 = vld [vmem:[%s988 + $0xa4] sm:$0x1]
        %v2239 = vld [vmem:[%s988 + $0xa8] sm:$0xf]
        %v2240 = vld [vmem:[%s988 + $0xac] sm:$0xf]
        %v2241 = vld [vmem:[%s988 + $0xb0] sm:$0x1]
        %v2242 = vld [vmem:[%s988 + $0xb4] sm:$0xf]
        %v2243 = vld [vmem:[%s988 + $0xb8] sm:$0xf]
        %v2244 = vld [vmem:[%s988 + $0xbc] sm:$0x1]
        %v2246 = vshrl.u32 %v2197, 16
        %v2248 = vrot.slane %v2246, 4
        %v2249 = vshll.u32 %v2197, 16
        %v2251 = vrot.slane %v2249, 5
        %v2252 = vor.u32 %v2248, %v2251
        %v2253 = vrot.slane %v2252, 4
        %v2255 = vshll.u32 %v2198, 16
        %v2257 = vrot.slane %v2255, 5
        %v2258 = vsel %vm1297, %v2253, %v2257
        %v2259 = vshrl.u32 %v2198, 16
        %v2261 = vrot.slane %v2259, 4
        %v2262 = vor.u32 %v2261, %v2257
        %v2263 = vrot.slane %v2262, 4
        %v2265 = vshll.u32 %v2199, 16
        %v2267 = vrot.slane %v2265, 5
        %v2268 = vsel %vm1297, %v2263, %v2267
        %v2270 = vshrl.u32 %v2200, 16
        %v2272 = vrot.slane %v2270, 4
        %v2273 = vshll.u32 %v2200, 16
        %v2275 = vrot.slane %v2273, 5
        %v2276 = vor.u32 %v2272, %v2275
        %v2277 = vrot.slane %v2276, 4
        %v2279 = vshll.u32 %v2201, 16
        %v2281 = vrot.slane %v2279, 5
        %v2282 = vsel %vm1297, %v2277, %v2281
        %v2283 = vshrl.u32 %v2201, 16
        %v2285 = vrot.slane %v2283, 4
        %v2286 = vor.u32 %v2285, %v2281
        %v2287 = vrot.slane %v2286, 4
        %v2289 = vshll.u32 %v2202, 16
        %v2291 = vrot.slane %v2289, 5
        %v2292 = vsel %vm1297, %v2287, %v2291
        %v2294 = vshrl.u32 %v2203, 16
        %v2296 = vrot.slane %v2294, 4
        %v2297 = vshll.u32 %v2203, 16
        %v2299 = vrot.slane %v2297, 5
        %v2300 = vor.u32 %v2296, %v2299
        %v2301 = vrot.slane %v2300, 4
        %v2303 = vshll.u32 %v2204, 16
        %v2305 = vrot.slane %v2303, 5
        %v2306 = vsel %vm1297, %v2301, %v2305
        %v2307 = vshrl.u32 %v2204, 16
        %v2309 = vrot.slane %v2307, 4
        %v2310 = vor.u32 %v2309, %v2305
        %v2311 = vrot.slane %v2310, 4
        %v2313 = vshll.u32 %v2205, 16
        %v2315 = vrot.slane %v2313, 5
        %v2316 = vsel %vm1297, %v2311, %v2315
        %v2318 = vshrl.u32 %v2206, 16
        %v2320 = vrot.slane %v2318, 4
        %v2321 = vshll.u32 %v2206, 16
        %v2323 = vrot.slane %v2321, 5
        %v2324 = vor.u32 %v2320, %v2323
        %v2325 = vrot.slane %v2324, 4
        %v2327 = vshll.u32 %v2207, 16
        %v2329 = vrot.slane %v2327, 5
        %v2330 = vsel %vm1297, %v2325, %v2329
        %v2331 = vshrl.u32 %v2207, 16
        %v2333 = vrot.slane %v2331, 4
        %v2334 = vor.u32 %v2333, %v2329
        %v2335 = vrot.slane %v2334, 4
        %v2337 = vshll.u32 %v2208, 16
        %v2339 = vrot.slane %v2337, 5
        %v2340 = vsel %vm1297, %v2335, %v2339
        %v2342 = vshrl.u32 %v2209, 16
        %v2344 = vrot.slane %v2342, 4
        %v2345 = vshll.u32 %v2209, 16
        %v2347 = vrot.slane %v2345, 5
        %v2348 = vor.u32 %v2344, %v2347
        %v2349 = vrot.slane %v2348, 4
        %v2351 = vshll.u32 %v2210, 16
        %v2353 = vrot.slane %v2351, 5
        %v2354 = vsel %vm1297, %v2349, %v2353
        %v2355 = vshrl.u32 %v2210, 16
        %v2357 = vrot.slane %v2355, 4
        %v2358 = vor.u32 %v2357, %v2353
        %v2359 = vrot.slane %v2358, 4
        %v2361 = vshll.u32 %v2211, 16
        %v2363 = vrot.slane %v2361, 5
        %v2364 = vsel %vm1297, %v2359, %v2363
        %v2366 = vshrl.u32 %v2212, 16
        %v2368 = vrot.slane %v2366, 4
        %v2369 = vshll.u32 %v2212, 16
        %v2371 = vrot.slane %v2369, 5
        %v2372 = vor.u32 %v2368, %v2371
        %v2373 = vrot.slane %v2372, 4
        %v2375 = vshll.u32 %v2213, 16
        %v2377 = vrot.slane %v2375, 5
        %v2378 = vsel %vm1297, %v2373, %v2377
        %v2379 = vshrl.u32 %v2213, 16
        %v2381 = vrot.slane %v2379, 4
        %v2382 = vor.u32 %v2381, %v2377
        %v2383 = vrot.slane %v2382, 4
        %v2385 = vshll.u32 %v2214, 16
        %v2387 = vrot.slane %v2385, 5
        %v2388 = vsel %vm1297, %v2383, %v2387
        %v2390 = vshrl.u32 %v2215, 16
        %v2392 = vrot.slane %v2390, 4
        %v2393 = vshll.u32 %v2215, 16
        %v2395 = vrot.slane %v2393, 5
        %v2396 = vor.u32 %v2392, %v2395
        %v2397 = vrot.slane %v2396, 4
        %v2399 = vshll.u32 %v2216, 16
        %v2401 = vrot.slane %v2399, 5
        %v2402 = vsel %vm1297, %v2397, %v2401
        %v2403 = vshrl.u32 %v2216, 16
        %v2405 = vrot.slane %v2403, 4
        %v2406 = vor.u32 %v2405, %v2401
        %v2407 = vrot.slane %v2406, 4
        %v2409 = vshll.u32 %v2217, 16
        %v2411 = vrot.slane %v2409, 5
        %v2412 = vsel %vm1297, %v2407, %v2411
        %v2414 = vshrl.u32 %v2218, 16
        %v2416 = vrot.slane %v2414, 4
        %v2417 = vshll.u32 %v2218, 16
        %v2419 = vrot.slane %v2417, 5
        %v2420 = vor.u32 %v2416, %v2419
        %v2421 = vrot.slane %v2420, 4
        %v2423 = vshll.u32 %v2219, 16
        %v2425 = vrot.slane %v2423, 5
        %v2426 = vsel %vm1297, %v2421, %v2425
        %v2427 = vshrl.u32 %v2219, 16
        %v2429 = vrot.slane %v2427, 4
        %v2430 = vor.u32 %v2429, %v2425
        %v2431 = vrot.slane %v2430, 4
        %v2433 = vshll.u32 %v2220, 16
        %v2435 = vrot.slane %v2433, 5
        %v2436 = vsel %vm1297, %v2431, %v2435
        %v2438 = vshrl.u32 %v2221, 16
        %v2440 = vrot.slane %v2438, 4
        %v2441 = vshll.u32 %v2221, 16
        %v2443 = vrot.slane %v2441, 5
        %v2444 = vor.u32 %v2440, %v2443
        %v2445 = vrot.slane %v2444, 4
        %v2447 = vshll.u32 %v2222, 16
        %v2449 = vrot.slane %v2447, 5
        %v2450 = vsel %vm1297, %v2445, %v2449
        %v2451 = vshrl.u32 %v2222, 16
        %v2453 = vrot.slane %v2451, 4
        %v2454 = vor.u32 %v2453, %v2449
        %v2455 = vrot.slane %v2454, 4
        %v2457 = vshll.u32 %v2223, 16
        %v2459 = vrot.slane %v2457, 5
        %v2460 = vsel %vm1297, %v2455, %v2459
        %v2462 = vshrl.u32 %v2224, 16
        %v2464 = vrot.slane %v2462, 4
        %v2465 = vshll.u32 %v2224, 16
        %v2467 = vrot.slane %v2465, 5
        %v2468 = vor.u32 %v2464, %v2467
        %v2469 = vrot.slane %v2468, 4
        %v2471 = vshll.u32 %v2225, 16
        %v2473 = vrot.slane %v2471, 5
        %v2474 = vsel %vm1297, %v2469, %v2473
        %v2475 = vshrl.u32 %v2225, 16
        %v2477 = vrot.slane %v2475, 4
        %v2478 = vor.u32 %v2477, %v2473
        %v2479 = vrot.slane %v2478, 4
        %v2481 = vshll.u32 %v2226, 16
        %v2483 = vrot.slane %v2481, 5
        %v2484 = vsel %vm1297, %v2479, %v2483
        %v2486 = vshrl.u32 %v2227, 16
        %v2488 = vrot.slane %v2486, 4
        %v2489 = vshll.u32 %v2227, 16
        %v2491 = vrot.slane %v2489, 5
        %v2492 = vor.u32 %v2488, %v2491
        %v2493 = vrot.slane %v2492, 4
        %v2495 = vshll.u32 %v2228, 16
        %v2497 = vrot.slane %v2495, 5
        %v2498 = vsel %vm1297, %v2493, %v2497
        %v2499 = vshrl.u32 %v2228, 16
        %v2501 = vrot.slane %v2499, 4
        %v2502 = vor.u32 %v2501, %v2497
        %v2503 = vrot.slane %v2502, 4
        %v2505 = vshll.u32 %v2229, 16
        %v2507 = vrot.slane %v2505, 5
        %v2508 = vsel %vm1297, %v2503, %v2507
        %v2510 = vshrl.u32 %v2230, 16
        %v2512 = vrot.slane %v2510, 4
        %v2513 = vshll.u32 %v2230, 16
        %v2515 = vrot.slane %v2513, 5
        %v2516 = vor.u32 %v2512, %v2515
        %v2517 = vrot.slane %v2516, 4
        %v2519 = vshll.u32 %v2231, 16
        %v2521 = vrot.slane %v2519, 5
        %v2522 = vsel %vm1297, %v2517, %v2521
        %v2523 = vshrl.u32 %v2231, 16
        %v2525 = vrot.slane %v2523, 4
        %v2526 = vor.u32 %v2525, %v2521
        %v2527 = vrot.slane %v2526, 4
        %v2529 = vshll.u32 %v2232, 16
        %v2531 = vrot.slane %v2529, 5
        %v2532 = vsel %vm1297, %v2527, %v2531
        %v2534 = vshrl.u32 %v2233, 16
        %v2536 = vrot.slane %v2534, 4
        %v2537 = vshll.u32 %v2233, 16
        %v2539 = vrot.slane %v2537, 5
        %v2540 = vor.u32 %v2536, %v2539
        %v2541 = vrot.slane %v2540, 4
        %v2543 = vshll.u32 %v2234, 16
        %v2545 = vrot.slane %v2543, 5
        %v2546 = vsel %vm1297, %v2541, %v2545
        %v2547 = vshrl.u32 %v2234, 16
        %v2549 = vrot.slane %v2547, 4
        %v2550 = vor.u32 %v2549, %v2545
        %v2551 = vrot.slane %v2550, 4
        %v2553 = vshll.u32 %v2235, 16
        %v2555 = vrot.slane %v2553, 5
        %v2556 = vsel %vm1297, %v2551, %v2555
        %v2558 = vshrl.u32 %v2236, 16
        %v2560 = vrot.slane %v2558, 4
        %v2561 = vshll.u32 %v2236, 16
        %v2563 = vrot.slane %v2561, 5
        %v2564 = vor.u32 %v2560, %v2563
        %v2565 = vrot.slane %v2564, 4
        %v2567 = vshll.u32 %v2237, 16
        %v2569 = vrot.slane %v2567, 5
        %v2570 = vsel %vm1297, %v2565, %v2569
        %v2571 = vshrl.u32 %v2237, 16
        %v2573 = vrot.slane %v2571, 4
        %v2574 = vor.u32 %v2573, %v2569
        %v2575 = vrot.slane %v2574, 4
        %v2577 = vshll.u32 %v2238, 16
        %v2579 = vrot.slane %v2577, 5
        %v2580 = vsel %vm1297, %v2575, %v2579
        %v2582 = vshrl.u32 %v2239, 16
        %v2584 = vrot.slane %v2582, 4
        %v2585 = vshll.u32 %v2239, 16
        %v2587 = vrot.slane %v2585, 5
        %v2588 = vor.u32 %v2584, %v2587
        %v2589 = vrot.slane %v2588, 4
        %v2591 = vshll.u32 %v2240, 16
        %v2593 = vrot.slane %v2591, 5
        %v2594 = vsel %vm1297, %v2589, %v2593
        %v2595 = vshrl.u32 %v2240, 16
        %v2597 = vrot.slane %v2595, 4
        %v2598 = vor.u32 %v2597, %v2593
        %v2599 = vrot.slane %v2598, 4
        %v2601 = vshll.u32 %v2241, 16
        %v2603 = vrot.slane %v2601, 5
        %v2604 = vsel %vm1297, %v2599, %v2603
        %v2606 = vshrl.u32 %v2242, 16
        %v2608 = vrot.slane %v2606, 4
        %v2609 = vshll.u32 %v2242, 16
        %v2611 = vrot.slane %v2609, 5
        %v2612 = vor.u32 %v2608, %v2611
        %v2613 = vrot.slane %v2612, 4
        %v2615 = vshll.u32 %v2243, 16
        %v2617 = vrot.slane %v2615, 5
        %v2618 = vsel %vm1297, %v2613, %v2617
        %v2619 = vshrl.u32 %v2243, 16
        %v2621 = vrot.slane %v2619, 4
        %v2622 = vor.u32 %v2621, %v2617
        %v2623 = vrot.slane %v2622, 4
        %v2625 = vshll.u32 %v2244, 16
        %v2627 = vrot.slane %v2625, 5
        %v2628 = vsel %vm1297, %v2623, %v2627
        %v2629 = vunpack.c.l.b16 %v2258
        %v2630 = vunpack.c.l.b16 %v2268
        %v2631 = vunpack.c.l.b16 %v2282
        %v2632 = vunpack.c.l.b16 %v2292
        %v2633 = vunpack.c.l.b16 %v2306
        %v2634 = vunpack.c.l.b16 %v2316
        %v2635 = vunpack.c.l.b16 %v2330
        %v2636 = vunpack.c.l.b16 %v2340
        %v2637 = vunpack.c.l.b16 %v2354
        %v2638 = vunpack.c.l.b16 %v2364
        %v2639 = vunpack.c.l.b16 %v2378
        %v2640 = vunpack.c.l.b16 %v2388
        %v2641 = vunpack.c.l.b16 %v2402
        %v2642 = vunpack.c.l.b16 %v2412
        %v2643 = vunpack.c.l.b16 %v2426
        %v2644 = vunpack.c.l.b16 %v2436
        %v2645 = vunpack.c.l.b16 %v2450
        %v2646 = vunpack.c.l.b16 %v2460
        %v2647 = vunpack.c.l.b16 %v2474
        %v2648 = vunpack.c.l.b16 %v2484
        %v2649 = vunpack.c.l.b16 %v2498
        %v2650 = vunpack.c.l.b16 %v2508
        %v2651 = vunpack.c.l.b16 %v2522
        %v2652 = vunpack.c.l.b16 %v2532
        %v2653 = vunpack.c.l.b16 %v2546
        %v2654 = vunpack.c.l.b16 %v2556
        %v2655 = vunpack.c.l.b16 %v2570
        %v2656 = vunpack.c.l.b16 %v2580
        %v2657 = vunpack.c.l.b16 %v2594
        %v2658 = vunpack.c.l.b16 %v2604
        %v2659 = vunpack.c.l.b16 %v2618
        %v2660 = vunpack.c.l.b16 %v2628
        %v2661 = vpack.c.b16 %v2630, %v2629
        %v2662 = vpack.c.b16 %v2632, %v2631
        %v2663 = vpack.c.b16 %v2634, %v2633
        %v2664 = vpack.c.b16 %v2636, %v2635
        %v2665 = vpack.c.b16 %v2638, %v2637
        %v2666 = vpack.c.b16 %v2640, %v2639
        %v2667 = vpack.c.b16 %v2642, %v2641
        %v2668 = vpack.c.b16 %v2644, %v2643
        %v2669 = vpack.c.b16 %v2646, %v2645
        %v2670 = vpack.c.b16 %v2648, %v2647
        %v2671 = vpack.c.b16 %v2650, %v2649
        %v2672 = vpack.c.b16 %v2652, %v2651
        %v2673 = vpack.c.b16 %v2654, %v2653
        %v2674 = vpack.c.b16 %v2656, %v2655
        %v2675 = vpack.c.b16 %v2658, %v2657
        %v2676 = vpack.c.b16 %v2660, %v2659
        %2693 = vst [vmem:[#allocation4 + $0x20] sm:$0xff] %v2661
        %2694 = vst [vmem:[#allocation4 + $0x68] sm:$0xff] %v2662
        %2695 = vst [vmem:[#allocation4 + $0xb0] sm:$0xff] %v2663
        %2696 = vst [vmem:[#allocation4 + $0xf8] sm:$0xff] %v2664
        %2697 = vst [vmem:[#allocation4 + $0x140] sm:$0xff] %v2665
        %2698 = vst [vmem:[#allocation4 + $0x188] sm:$0xff] %v2666
        %2699 = vst [vmem:[#allocation4 + $0x1d0] sm:$0xff] %v2667
        %2700 = vst [vmem:[#allocation4 + $0x218] sm:$0xff] %v2668
        %2701 = vst [vmem:[#allocation4 + $0x260] sm:$0xff] %v2669
        %2702 = vst [vmem:[#allocation4 + $0x2a8] sm:$0xff] %v2670
        %2703 = vst [vmem:[#allocation4 + $0x2f0] sm:$0xff] %v2671
        %2704 = vst [vmem:[#allocation4 + $0x338] sm:$0xff] %v2672
        %2705 = vst [vmem:[#allocation4 + $0x380] sm:$0xff] %v2673
        %2706 = vst [vmem:[#allocation4 + $0x3c8] sm:$0xff] %v2674
        %2707 = vst [vmem:[#allocation4 + $0x410] sm:$0xff] %v2675
        %2708 = vst [vmem:[#allocation4 + $0x458] sm:$0xff] %v2676
        %v2709 = vld [vmem:[%s988] sm:$0xe]
        %v2710 = vld [vmem:[%s988 + $0x4] sm:$0xf]
        %v2711 = vld [vmem:[%s988 + $0x8] sm:$0x1]
        %v2712 = vld [vmem:[%s988 + $0xc] sm:$0xe]
        %v2713 = vld [vmem:[%s988 + $0x10] sm:$0xf]
        %v2714 = vld [vmem:[%s988 + $0x14] sm:$0x1]
        %v2715 = vld [vmem:[%s988 + $0x18] sm:$0xe]
        %v2716 = vld [vmem:[%s988 + $0x1c] sm:$0xf]
        %v2717 = vld [vmem:[%s988 + $0x20] sm:$0x1]
        %v2718 = vld [vmem:[%s988 + $0x24] sm:$0xe]
        %v2719 = vld [vmem:[%s988 + $0x28] sm:$0xf]
        %v2720 = vld [vmem:[%s988 + $0x2c] sm:$0x1]
        %v2721 = vld [vmem:[%s988 + $0x30] sm:$0xe]
        %v2722 = vld [vmem:[%s988 + $0x34] sm:$0xf]
        %v2723 = vld [vmem:[%s988 + $0x38] sm:$0x1]
        %v2724 = vld [vmem:[%s988 + $0x3c] sm:$0xe]
        %v2725 = vld [vmem:[%s988 + $0x40] sm:$0xf]
        %v2726 = vld [vmem:[%s988 + $0x44] sm:$0x1]
        %v2727 = vld [vmem:[%s988 + $0x48] sm:$0xe]
        %v2728 = vld [vmem:[%s988 + $0x4c] sm:$0xf]
        %v2729 = vld [vmem:[%s988 + $0x50] sm:$0x1]
        %v2730 = vld [vmem:[%s988 + $0x54] sm:$0xe]
        %v2731 = vld [vmem:[%s988 + $0x58] sm:$0xf]
        %v2732 = vld [vmem:[%s988 + $0x5c] sm:$0x1]
        %v2733 = vld [vmem:[%s988 + $0x60] sm:$0xe]
        %v2734 = vld [vmem:[%s988 + $0x64] sm:$0xf]
        %v2735 = vld [vmem:[%s988 + $0x68] sm:$0x1]
        %v2736 = vld [vmem:[%s988 + $0x6c] sm:$0xe]
        %v2737 = vld [vmem:[%s988 + $0x70] sm:$0xf]
        %v2738 = vld [vmem:[%s988 + $0x74] sm:$0x1]
        %v2739 = vld [vmem:[%s988 + $0x78] sm:$0xe]
        %v2740 = vld [vmem:[%s988 + $0x7c] sm:$0xf]
        %v2741 = vld [vmem:[%s988 + $0x80] sm:$0x1]
        %v2742 = vld [vmem:[%s988 + $0x84] sm:$0xe]
        %v2743 = vld [vmem:[%s988 + $0x88] sm:$0xf]
        %v2744 = vld [vmem:[%s988 + $0x8c] sm:$0x1]
        %v2745 = vld [vmem:[%s988 + $0x90] sm:$0xe]
        %v2746 = vld [vmem:[%s988 + $0x94] sm:$0xf]
        %v2747 = vld [vmem:[%s988 + $0x98] sm:$0x1]
        %v2748 = vld [vmem:[%s988 + $0x9c] sm:$0xe]
        %v2749 = vld [vmem:[%s988 + $0xa0] sm:$0xf]
        %v2750 = vld [vmem:[%s988 + $0xa4] sm:$0x1]
        %v2751 = vld [vmem:[%s988 + $0xa8] sm:$0xe]
        %v2752 = vld [vmem:[%s988 + $0xac] sm:$0xf]
        %v2753 = vld [vmem:[%s988 + $0xb0] sm:$0x1]
        %v2754 = vld [vmem:[%s988 + $0xb4] sm:$0xe]
        %v2755 = vld [vmem:[%s988 + $0xb8] sm:$0xf]
        %v2756 = vld [vmem:[%s988 + $0xbc] sm:$0x1]
        %v2805 = vrot.slane %v2709, 5
        %v2806 = vrot.slane %v2805, 4
        %v2807 = vrot.slane %v2710, 5
        %v2808 = vsel %vm1860, %v2806, %v2807
        %v2809 = vrot.slane %v2807, 4
        %v2810 = vrot.slane %v2711, 5
        %v2811 = vsel %vm1860, %v2809, %v2810
        %v2812 = vrot.slane %v2712, 5
        %v2813 = vrot.slane %v2812, 4
        %v2814 = vrot.slane %v2713, 5
        %v2815 = vsel %vm1860, %v2813, %v2814
        %v2816 = vrot.slane %v2814, 4
        %v2817 = vrot.slane %v2714, 5
        %v2818 = vsel %vm1860, %v2816, %v2817
        %v2819 = vrot.slane %v2715, 5
        %v2820 = vrot.slane %v2819, 4
        %v2821 = vrot.slane %v2716, 5
        %v2822 = vsel %vm1860, %v2820, %v2821
        %v2823 = vrot.slane %v2821, 4
        %v2824 = vrot.slane %v2717, 5
        %v2825 = vsel %vm1860, %v2823, %v2824
        %v2826 = vrot.slane %v2718, 5
        %v2827 = vrot.slane %v2826, 4
        %v2828 = vrot.slane %v2719, 5
        %v2829 = vsel %vm1860, %v2827, %v2828
        %v2830 = vrot.slane %v2828, 4
        %v2831 = vrot.slane %v2720, 5
        %v2832 = vsel %vm1860, %v2830, %v2831
        %v2833 = vrot.slane %v2721, 5
        %v2834 = vrot.slane %v2833, 4
        %v2835 = vrot.slane %v2722, 5
        %v2836 = vsel %vm1860, %v2834, %v2835
        %v2837 = vrot.slane %v2835, 4
        %v2838 = vrot.slane %v2723, 5
        %v2839 = vsel %vm1860, %v2837, %v2838
        %v2840 = vrot.slane %v2724, 5
        %v2841 = vrot.slane %v2840, 4
        %v2842 = vrot.slane %v2725, 5
        %v2843 = vsel %vm1860, %v2841, %v2842
        %v2844 = vrot.slane %v2842, 4
        %v2845 = vrot.slane %v2726, 5
        %v2846 = vsel %vm1860, %v2844, %v2845
        %v2847 = vrot.slane %v2727, 5
        %v2848 = vrot.slane %v2847, 4
        %v2849 = vrot.slane %v2728, 5
        %v2850 = vsel %vm1860, %v2848, %v2849
        %v2851 = vrot.slane %v2849, 4
        %v2852 = vrot.slane %v2729, 5
        %v2853 = vsel %vm1860, %v2851, %v2852
        %v2854 = vrot.slane %v2730, 5
        %v2855 = vrot.slane %v2854, 4
        %v2856 = vrot.slane %v2731, 5
        %v2857 = vsel %vm1860, %v2855, %v2856
        %v2858 = vrot.slane %v2856, 4
        %v2859 = vrot.slane %v2732, 5
        %v2860 = vsel %vm1860, %v2858, %v2859
        %v2861 = vrot.slane %v2733, 5
        %v2862 = vrot.slane %v2861, 4
        %v2863 = vrot.slane %v2734, 5
        %v2864 = vsel %vm1860, %v2862, %v2863
        %v2865 = vrot.slane %v2863, 4
        %v2866 = vrot.slane %v2735, 5
        %v2867 = vsel %vm1860, %v2865, %v2866
        %v2868 = vrot.slane %v2736, 5
        %v2869 = vrot.slane %v2868, 4
        %v2870 = vrot.slane %v2737, 5
        %v2871 = vsel %vm1860, %v2869, %v2870
        %v2872 = vrot.slane %v2870, 4
        %v2873 = vrot.slane %v2738, 5
        %v2874 = vsel %vm1860, %v2872, %v2873
        %v2875 = vrot.slane %v2739, 5
        %v2876 = vrot.slane %v2875, 4
        %v2877 = vrot.slane %v2740, 5
        %v2878 = vsel %vm1860, %v2876, %v2877
        %v2879 = vrot.slane %v2877, 4
        %v2880 = vrot.slane %v2741, 5
        %v2881 = vsel %vm1860, %v2879, %v2880
        %v2882 = vrot.slane %v2742, 5
        %v2883 = vrot.slane %v2882, 4
        %v2884 = vrot.slane %v2743, 5
        %v2885 = vsel %vm1860, %v2883, %v2884
        %v2886 = vrot.slane %v2884, 4
        %v2887 = vrot.slane %v2744, 5
        %v2888 = vsel %vm1860, %v2886, %v2887
        %v2889 = vrot.slane %v2745, 5
        %v2890 = vrot.slane %v2889, 4
        %v2891 = vrot.slane %v2746, 5
        %v2892 = vsel %vm1860, %v2890, %v2891
        %v2893 = vrot.slane %v2891, 4
        %v2894 = vrot.slane %v2747, 5
        %v2895 = vsel %vm1860, %v2893, %v2894
        %v2896 = vrot.slane %v2748, 5
        %v2897 = vrot.slane %v2896, 4
        %v2898 = vrot.slane %v2749, 5
        %v2899 = vsel %vm1860, %v2897, %v2898
        %v2900 = vrot.slane %v2898, 4
        %v2901 = vrot.slane %v2750, 5
        %v2902 = vsel %vm1860, %v2900, %v2901
        %v2903 = vrot.slane %v2751, 5
        %v2904 = vrot.slane %v2903, 4
        %v2905 = vrot.slane %v2752, 5
        %v2906 = vsel %vm1860, %v2904, %v2905
        %v2907 = vrot.slane %v2905, 4
        %v2908 = vrot.slane %v2753, 5
        %v2909 = vsel %vm1860, %v2907, %v2908
        %v2910 = vrot.slane %v2754, 5
        %v2911 = vrot.slane %v2910, 4
        %v2912 = vrot.slane %v2755, 5
        %v2913 = vsel %vm1860, %v2911, %v2912
        %v2914 = vrot.slane %v2912, 4
        %v2915 = vrot.slane %v2756, 5
        %v2916 = vsel %vm1860, %v2914, %v2915
        %v2917 = vunpack.c.l.b16 %v2808
        %v2918 = vunpack.c.l.b16 %v2811
        %v2919 = vunpack.c.l.b16 %v2815
        %v2920 = vunpack.c.l.b16 %v2818
        %v2921 = vunpack.c.l.b16 %v2822
        %v2922 = vunpack.c.l.b16 %v2825
        %v2923 = vunpack.c.l.b16 %v2829
        %v2924 = vunpack.c.l.b16 %v2832
        %v2925 = vunpack.c.l.b16 %v2836
        %v2926 = vunpack.c.l.b16 %v2839
        %v2927 = vunpack.c.l.b16 %v2843
        %v2928 = vunpack.c.l.b16 %v2846
        %v2929 = vunpack.c.l.b16 %v2850
        %v2930 = vunpack.c.l.b16 %v2853
        %v2931 = vunpack.c.l.b16 %v2857
        %v2932 = vunpack.c.l.b16 %v2860
        %v2933 = vunpack.c.l.b16 %v2864
        %v2934 = vunpack.c.l.b16 %v2867
        %v2935 = vunpack.c.l.b16 %v2871
        %v2936 = vunpack.c.l.b16 %v2874
        %v2937 = vunpack.c.l.b16 %v2878
        %v2938 = vunpack.c.l.b16 %v2881
        %v2939 = vunpack.c.l.b16 %v2885
        %v2940 = vunpack.c.l.b16 %v2888
        %v2941 = vunpack.c.l.b16 %v2892
        %v2942 = vunpack.c.l.b16 %v2895
        %v2943 = vunpack.c.l.b16 %v2899
        %v2944 = vunpack.c.l.b16 %v2902
        %v2945 = vunpack.c.l.b16 %v2906
        %v2946 = vunpack.c.l.b16 %v2909
        %v2947 = vunpack.c.l.b16 %v2913
        %v2948 = vunpack.c.l.b16 %v2916
        %v2949 = vpack.c.b16 %v2918, %v2917
        %v2950 = vpack.c.b16 %v2920, %v2919
        %v2951 = vpack.c.b16 %v2922, %v2921
        %v2952 = vpack.c.b16 %v2924, %v2923
        %v2953 = vpack.c.b16 %v2926, %v2925
        %v2954 = vpack.c.b16 %v2928, %v2927
        %v2955 = vpack.c.b16 %v2930, %v2929
        %v2956 = vpack.c.b16 %v2932, %v2931
        %v2957 = vpack.c.b16 %v2934, %v2933
        %v2958 = vpack.c.b16 %v2936, %v2935
        %v2959 = vpack.c.b16 %v2938, %v2937
        %v2960 = vpack.c.b16 %v2940, %v2939
        %v2961 = vpack.c.b16 %v2942, %v2941
        %v2962 = vpack.c.b16 %v2944, %v2943
        %v2963 = vpack.c.b16 %v2946, %v2945
        %v2964 = vpack.c.b16 %v2948, %v2947
        %2981 = vst [vmem:[#allocation4 + $0x28] sm:$0xff] %v2949
        %2982 = vst [vmem:[#allocation4 + $0x70] sm:$0xff] %v2950
        %2983 = vst [vmem:[#allocation4 + $0xb8] sm:$0xff] %v2951
        %2984 = vst [vmem:[#allocation4 + $0x100] sm:$0xff] %v2952
        %2985 = vst [vmem:[#allocation4 + $0x148] sm:$0xff] %v2953
        %2986 = vst [vmem:[#allocation4 + $0x190] sm:$0xff] %v2954
        %2987 = vst [vmem:[#allocation4 + $0x1d8] sm:$0xff] %v2955
        %2988 = vst [vmem:[#allocation4 + $0x220] sm:$0xff] %v2956
        %2989 = vst [vmem:[#allocation4 + $0x268] sm:$0xff] %v2957
        %2990 = vst [vmem:[#allocation4 + $0x2b0] sm:$0xff] %v2958
        %2991 = vst [vmem:[#allocation4 + $0x2f8] sm:$0xff] %v2959
        %2992 = vst [vmem:[#allocation4 + $0x340] sm:$0xff] %v2960
        %2993 = vst [vmem:[#allocation4 + $0x388] sm:$0xff] %v2961
        %2994 = vst [vmem:[#allocation4 + $0x3d0] sm:$0xff] %v2962
        %2995 = vst [vmem:[#allocation4 + $0x418] sm:$0xff] %v2963
        %2996 = vst [vmem:[#allocation4 + $0x460] sm:$0xff] %v2964
        %s2997 = scalar_lea.vmem [#allocation2], 24
        %v2998 = vld [vmem:[%s2997] sm:$0xf]
        %v2999 = vld [vmem:[%s2997 + $0x4] sm:$0xf]
        %v3000 = vld [vmem:[%s2997 + $0xc] sm:$0xf]
        %v3001 = vld [vmem:[%s2997 + $0x10] sm:$0xf]
        %v3002 = vld [vmem:[%s2997 + $0x18] sm:$0xf]
        %v3003 = vld [vmem:[%s2997 + $0x1c] sm:$0xf]
        %v3004 = vld [vmem:[%s2997 + $0x24] sm:$0xf]
        %v3005 = vld [vmem:[%s2997 + $0x28] sm:$0xf]
        %v3006 = vld [vmem:[%s2997 + $0x30] sm:$0xf]
        %v3007 = vld [vmem:[%s2997 + $0x34] sm:$0xf]
        %v3008 = vld [vmem:[%s2997 + $0x3c] sm:$0xf]
        %v3009 = vld [vmem:[%s2997 + $0x40] sm:$0xf]
        %v3010 = vld [vmem:[%s2997 + $0x48] sm:$0xf]
        %v3011 = vld [vmem:[%s2997 + $0x4c] sm:$0xf]
        %v3012 = vld [vmem:[%s2997 + $0x54] sm:$0xf]
        %v3013 = vld [vmem:[%s2997 + $0x58] sm:$0xf]
        %v3014 = vld [vmem:[%s2997 + $0x60] sm:$0xf]
        %v3015 = vld [vmem:[%s2997 + $0x64] sm:$0xf]
        %v3016 = vld [vmem:[%s2997 + $0x6c] sm:$0xf]
        %v3017 = vld [vmem:[%s2997 + $0x70] sm:$0xf]
        %v3018 = vld [vmem:[%s2997 + $0x78] sm:$0xf]
        %v3019 = vld [vmem:[%s2997 + $0x7c] sm:$0xf]
        %v3020 = vld [vmem:[%s2997 + $0x84] sm:$0xf]
        %v3021 = vld [vmem:[%s2997 + $0x88] sm:$0xf]
        %v3022 = vld [vmem:[%s2997 + $0x90] sm:$0xf]
        %v3023 = vld [vmem:[%s2997 + $0x94] sm:$0xf]
        %v3024 = vld [vmem:[%s2997 + $0x9c] sm:$0xf]
        %v3025 = vld [vmem:[%s2997 + $0xa0] sm:$0xf]
        %v3026 = vld [vmem:[%s2997 + $0xa8] sm:$0xf]
        %v3027 = vld [vmem:[%s2997 + $0xac] sm:$0xf]
        %v3028 = vld [vmem:[%s2997 + $0xb4] sm:$0xf]
        %v3029 = vld [vmem:[%s2997 + $0xb8] sm:$0xf]
        %v3062 = vunpack.c.l.b16 %v2998
        %v3063 = vunpack.c.l.b16 %v2999
        %v3064 = vunpack.c.l.b16 %v3000
        %v3065 = vunpack.c.l.b16 %v3001
        %v3066 = vunpack.c.l.b16 %v3002
        %v3067 = vunpack.c.l.b16 %v3003
        %v3068 = vunpack.c.l.b16 %v3004
        %v3069 = vunpack.c.l.b16 %v3005
        %v3070 = vunpack.c.l.b16 %v3006
        %v3071 = vunpack.c.l.b16 %v3007
        %v3072 = vunpack.c.l.b16 %v3008
        %v3073 = vunpack.c.l.b16 %v3009
        %v3074 = vunpack.c.l.b16 %v3010
        %v3075 = vunpack.c.l.b16 %v3011
        %v3076 = vunpack.c.l.b16 %v3012
        %v3077 = vunpack.c.l.b16 %v3013
        %v3078 = vunpack.c.l.b16 %v3014
        %v3079 = vunpack.c.l.b16 %v3015
        %v3080 = vunpack.c.l.b16 %v3016
        %v3081 = vunpack.c.l.b16 %v3017
        %v3082 = vunpack.c.l.b16 %v3018
        %v3083 = vunpack.c.l.b16 %v3019
        %v3084 = vunpack.c.l.b16 %v3020
        %v3085 = vunpack.c.l.b16 %v3021
        %v3086 = vunpack.c.l.b16 %v3022
        %v3087 = vunpack.c.l.b16 %v3023
        %v3088 = vunpack.c.l.b16 %v3024
        %v3089 = vunpack.c.l.b16 %v3025
        %v3090 = vunpack.c.l.b16 %v3026
        %v3091 = vunpack.c.l.b16 %v3027
        %v3092 = vunpack.c.l.b16 %v3028
        %v3093 = vunpack.c.l.b16 %v3029
        %v3094 = vpack.c.b16 %v3063, %v3062
        %v3095 = vpack.c.b16 %v3065, %v3064
        %v3096 = vpack.c.b16 %v3067, %v3066
        %v3097 = vpack.c.b16 %v3069, %v3068
        %v3098 = vpack.c.b16 %v3071, %v3070
        %v3099 = vpack.c.b16 %v3073, %v3072
        %v3100 = vpack.c.b16 %v3075, %v3074
        %v3101 = vpack.c.b16 %v3077, %v3076
        %v3102 = vpack.c.b16 %v3079, %v3078
        %v3103 = vpack.c.b16 %v3081, %v3080
        %v3104 = vpack.c.b16 %v3083, %v3082
        %v3105 = vpack.c.b16 %v3085, %v3084
        %v3106 = vpack.c.b16 %v3087, %v3086
        %v3107 = vpack.c.b16 %v3089, %v3088
        %v3108 = vpack.c.b16 %v3091, %v3090
        %v3109 = vpack.c.b16 %v3093, %v3092
        %3126 = vst [vmem:[#allocation4 + $0x30] sm:$0xff] %v3094
        %3127 = vst [vmem:[#allocation4 + $0x78] sm:$0xff] %v3095
        %3128 = vst [vmem:[#allocation4 + $0xc0] sm:$0xff] %v3096
        %3129 = vst [vmem:[#allocation4 + $0x108] sm:$0xff] %v3097
        %3130 = vst [vmem:[#allocation4 + $0x150] sm:$0xff] %v3098
        %3131 = vst [vmem:[#allocation4 + $0x198] sm:$0xff] %v3099
        %3132 = vst [vmem:[#allocation4 + $0x1e0] sm:$0xff] %v3100
        %3133 = vst [vmem:[#allocation4 + $0x228] sm:$0xff] %v3101
        %3134 = vst [vmem:[#allocation4 + $0x270] sm:$0xff] %v3102
        %3135 = vst [vmem:[#allocation4 + $0x2b8] sm:$0xff] %v3103
        %3136 = vst [vmem:[#allocation4 + $0x300] sm:$0xff] %v3104
        %3137 = vst [vmem:[#allocation4 + $0x348] sm:$0xff] %v3105
        %3138 = vst [vmem:[#allocation4 + $0x390] sm:$0xff] %v3106
        %3139 = vst [vmem:[#allocation4 + $0x3d8] sm:$0xff] %v3107
        %3140 = vst [vmem:[#allocation4 + $0x420] sm:$0xff] %v3108
        %3141 = vst [vmem:[#allocation4 + $0x468] sm:$0xff] %v3109
        %v3142 = vld [vmem:[%s2997] sm:$0xf]
        %v3143 = vld [vmem:[%s2997 + $0x4] sm:$0xf]
        %v3144 = vld [vmem:[%s2997 + $0x8] sm:$0x1]
        %v3145 = vld [vmem:[%s2997 + $0xc] sm:$0xf]
        %v3146 = vld [vmem:[%s2997 + $0x10] sm:$0xf]
        %v3147 = vld [vmem:[%s2997 + $0x14] sm:$0x1]
        %v3148 = vld [vmem:[%s2997 + $0x18] sm:$0xf]
        %v3149 = vld [vmem:[%s2997 + $0x1c] sm:$0xf]
        %v3150 = vld [vmem:[%s2997 + $0x20] sm:$0x1]
        %v3151 = vld [vmem:[%s2997 + $0x24] sm:$0xf]
        %v3152 = vld [vmem:[%s2997 + $0x28] sm:$0xf]
        %v3153 = vld [vmem:[%s2997 + $0x2c] sm:$0x1]
        %v3154 = vld [vmem:[%s2997 + $0x30] sm:$0xf]
        %v3155 = vld [vmem:[%s2997 + $0x34] sm:$0xf]
        %v3156 = vld [vmem:[%s2997 + $0x38] sm:$0x1]
        %v3157 = vld [vmem:[%s2997 + $0x3c] sm:$0xf]
        %v3158 = vld [vmem:[%s2997 + $0x40] sm:$0xf]
        %v3159 = vld [vmem:[%s2997 + $0x44] sm:$0x1]
        %v3160 = vld [vmem:[%s2997 + $0x48] sm:$0xf]
        %v3161 = vld [vmem:[%s2997 + $0x4c] sm:$0xf]
        %v3162 = vld [vmem:[%s2997 + $0x50] sm:$0x1]
        %v3163 = vld [vmem:[%s2997 + $0x54] sm:$0xf]
        %v3164 = vld [vmem:[%s2997 + $0x58] sm:$0xf]
        %v3165 = vld [vmem:[%s2997 + $0x5c] sm:$0x1]
        %v3166 = vld [vmem:[%s2997 + $0x60] sm:$0xf]
        %v3167 = vld [vmem:[%s2997 + $0x64] sm:$0xf]
        %v3168 = vld [vmem:[%s2997 + $0x68] sm:$0x1]
        %v3169 = vld [vmem:[%s2997 + $0x6c] sm:$0xf]
        %v3170 = vld [vmem:[%s2997 + $0x70] sm:$0xf]
        %v3171 = vld [vmem:[%s2997 + $0x74] sm:$0x1]
        %v3172 = vld [vmem:[%s2997 + $0x78] sm:$0xf]
        %v3173 = vld [vmem:[%s2997 + $0x7c] sm:$0xf]
        %v3174 = vld [vmem:[%s2997 + $0x80] sm:$0x1]
        %v3175 = vld [vmem:[%s2997 + $0x84] sm:$0xf]
        %v3176 = vld [vmem:[%s2997 + $0x88] sm:$0xf]
        %v3177 = vld [vmem:[%s2997 + $0x8c] sm:$0x1]
        %v3178 = vld [vmem:[%s2997 + $0x90] sm:$0xf]
        %v3179 = vld [vmem:[%s2997 + $0x94] sm:$0xf]
        %v3180 = vld [vmem:[%s2997 + $0x98] sm:$0x1]
        %v3181 = vld [vmem:[%s2997 + $0x9c] sm:$0xf]
        %v3182 = vld [vmem:[%s2997 + $0xa0] sm:$0xf]
        %v3183 = vld [vmem:[%s2997 + $0xa4] sm:$0x1]
        %v3184 = vld [vmem:[%s2997 + $0xa8] sm:$0xf]
        %v3185 = vld [vmem:[%s2997 + $0xac] sm:$0xf]
        %v3186 = vld [vmem:[%s2997 + $0xb0] sm:$0x1]
        %v3187 = vld [vmem:[%s2997 + $0xb4] sm:$0xf]
        %v3188 = vld [vmem:[%s2997 + $0xb8] sm:$0xf]
        %v3189 = vld [vmem:[%s2997 + $0xbc] sm:$0x1]
        %v3191 = vshrl.u32 %v3142, 16
        %v3193 = vrot.slane %v3191, 4
        %v3194 = vshll.u32 %v3142, 16
        %v3196 = vrot.slane %v3194, 5
        %v3197 = vor.u32 %v3193, %v3196
        %v3198 = vrot.slane %v3197, 4
        %v3200 = vshll.u32 %v3143, 16
        %v3202 = vrot.slane %v3200, 5
        %v3203 = vsel %vm1297, %v3198, %v3202
        %v3204 = vshrl.u32 %v3143, 16
        %v3206 = vrot.slane %v3204, 4
        %v3207 = vor.u32 %v3206, %v3202
        %v3208 = vrot.slane %v3207, 4
        %v3210 = vshll.u32 %v3144, 16
        %v3212 = vrot.slane %v3210, 5
        %v3213 = vsel %vm1297, %v3208, %v3212
        %v3215 = vshrl.u32 %v3145, 16
        %v3217 = vrot.slane %v3215, 4
        %v3218 = vshll.u32 %v3145, 16
        %v3220 = vrot.slane %v3218, 5
        %v3221 = vor.u32 %v3217, %v3220
        %v3222 = vrot.slane %v3221, 4
        %v3224 = vshll.u32 %v3146, 16
        %v3226 = vrot.slane %v3224, 5
        %v3227 = vsel %vm1297, %v3222, %v3226
        %v3228 = vshrl.u32 %v3146, 16
        %v3230 = vrot.slane %v3228, 4
        %v3231 = vor.u32 %v3230, %v3226
        %v3232 = vrot.slane %v3231, 4
        %v3234 = vshll.u32 %v3147, 16
        %v3236 = vrot.slane %v3234, 5
        %v3237 = vsel %vm1297, %v3232, %v3236
        %v3239 = vshrl.u32 %v3148, 16
        %v3241 = vrot.slane %v3239, 4
        %v3242 = vshll.u32 %v3148, 16
        %v3244 = vrot.slane %v3242, 5
        %v3245 = vor.u32 %v3241, %v3244
        %v3246 = vrot.slane %v3245, 4
        %v3248 = vshll.u32 %v3149, 16
        %v3250 = vrot.slane %v3248, 5
        %v3251 = vsel %vm1297, %v3246, %v3250
        %v3252 = vshrl.u32 %v3149, 16
        %v3254 = vrot.slane %v3252, 4
        %v3255 = vor.u32 %v3254, %v3250
        %v3256 = vrot.slane %v3255, 4
        %v3258 = vshll.u32 %v3150, 16
        %v3260 = vrot.slane %v3258, 5
        %v3261 = vsel %vm1297, %v3256, %v3260
        %v3263 = vshrl.u32 %v3151, 16
        %v3265 = vrot.slane %v3263, 4
        %v3266 = vshll.u32 %v3151, 16
        %v3268 = vrot.slane %v3266, 5
        %v3269 = vor.u32 %v3265, %v3268
        %v3270 = vrot.slane %v3269, 4
        %v3272 = vshll.u32 %v3152, 16
        %v3274 = vrot.slane %v3272, 5
        %v3275 = vsel %vm1297, %v3270, %v3274
        %v3276 = vshrl.u32 %v3152, 16
        %v3278 = vrot.slane %v3276, 4
        %v3279 = vor.u32 %v3278, %v3274
        %v3280 = vrot.slane %v3279, 4
        %v3282 = vshll.u32 %v3153, 16
        %v3284 = vrot.slane %v3282, 5
        %v3285 = vsel %vm1297, %v3280, %v3284
        %v3287 = vshrl.u32 %v3154, 16
        %v3289 = vrot.slane %v3287, 4
        %v3290 = vshll.u32 %v3154, 16
        %v3292 = vrot.slane %v3290, 5
        %v3293 = vor.u32 %v3289, %v3292
        %v3294 = vrot.slane %v3293, 4
        %v3296 = vshll.u32 %v3155, 16
        %v3298 = vrot.slane %v3296, 5
        %v3299 = vsel %vm1297, %v3294, %v3298
        %v3300 = vshrl.u32 %v3155, 16
        %v3302 = vrot.slane %v3300, 4
        %v3303 = vor.u32 %v3302, %v3298
        %v3304 = vrot.slane %v3303, 4
        %v3306 = vshll.u32 %v3156, 16
        %v3308 = vrot.slane %v3306, 5
        %v3309 = vsel %vm1297, %v3304, %v3308
        %v3311 = vshrl.u32 %v3157, 16
        %v3313 = vrot.slane %v3311, 4
        %v3314 = vshll.u32 %v3157, 16
        %v3316 = vrot.slane %v3314, 5
        %v3317 = vor.u32 %v3313, %v3316
        %v3318 = vrot.slane %v3317, 4
        %v3320 = vshll.u32 %v3158, 16
        %v3322 = vrot.slane %v3320, 5
        %v3323 = vsel %vm1297, %v3318, %v3322
        %v3324 = vshrl.u32 %v3158, 16
        %v3326 = vrot.slane %v3324, 4
        %v3327 = vor.u32 %v3326, %v3322
        %v3328 = vrot.slane %v3327, 4
        %v3330 = vshll.u32 %v3159, 16
        %v3332 = vrot.slane %v3330, 5
        %v3333 = vsel %vm1297, %v3328, %v3332
        %v3335 = vshrl.u32 %v3160, 16
        %v3337 = vrot.slane %v3335, 4
        %v3338 = vshll.u32 %v3160, 16
        %v3340 = vrot.slane %v3338, 5
        %v3341 = vor.u32 %v3337, %v3340
        %v3342 = vrot.slane %v3341, 4
        %v3344 = vshll.u32 %v3161, 16
        %v3346 = vrot.slane %v3344, 5
        %v3347 = vsel %vm1297, %v3342, %v3346
        %v3348 = vshrl.u32 %v3161, 16
        %v3350 = vrot.slane %v3348, 4
        %v3351 = vor.u32 %v3350, %v3346
        %v3352 = vrot.slane %v3351, 4
        %v3354 = vshll.u32 %v3162, 16
        %v3356 = vrot.slane %v3354, 5
        %v3357 = vsel %vm1297, %v3352, %v3356
        %v3359 = vshrl.u32 %v3163, 16
        %v3361 = vrot.slane %v3359, 4
        %v3362 = vshll.u32 %v3163, 16
        %v3364 = vrot.slane %v3362, 5
        %v3365 = vor.u32 %v3361, %v3364
        %v3366 = vrot.slane %v3365, 4
        %v3368 = vshll.u32 %v3164, 16
        %v3370 = vrot.slane %v3368, 5
        %v3371 = vsel %vm1297, %v3366, %v3370
        %v3372 = vshrl.u32 %v3164, 16
        %v3374 = vrot.slane %v3372, 4
        %v3375 = vor.u32 %v3374, %v3370
        %v3376 = vrot.slane %v3375, 4
        %v3378 = vshll.u32 %v3165, 16
        %v3380 = vrot.slane %v3378, 5
        %v3381 = vsel %vm1297, %v3376, %v3380
        %v3383 = vshrl.u32 %v3166, 16
        %v3385 = vrot.slane %v3383, 4
        %v3386 = vshll.u32 %v3166, 16
        %v3388 = vrot.slane %v3386, 5
        %v3389 = vor.u32 %v3385, %v3388
        %v3390 = vrot.slane %v3389, 4
        %v3392 = vshll.u32 %v3167, 16
        %v3394 = vrot.slane %v3392, 5
        %v3395 = vsel %vm1297, %v3390, %v3394
        %v3396 = vshrl.u32 %v3167, 16
        %v3398 = vrot.slane %v3396, 4
        %v3399 = vor.u32 %v3398, %v3394
        %v3400 = vrot.slane %v3399, 4
        %v3402 = vshll.u32 %v3168, 16
        %v3404 = vrot.slane %v3402, 5
        %v3405 = vsel %vm1297, %v3400, %v3404
        %v3407 = vshrl.u32 %v3169, 16
        %v3409 = vrot.slane %v3407, 4
        %v3410 = vshll.u32 %v3169, 16
        %v3412 = vrot.slane %v3410, 5
        %v3413 = vor.u32 %v3409, %v3412
        %v3414 = vrot.slane %v3413, 4
        %v3416 = vshll.u32 %v3170, 16
        %v3418 = vrot.slane %v3416, 5
        %v3419 = vsel %vm1297, %v3414, %v3418
        %v3420 = vshrl.u32 %v3170, 16
        %v3422 = vrot.slane %v3420, 4
        %v3423 = vor.u32 %v3422, %v3418
        %v3424 = vrot.slane %v3423, 4
        %v3426 = vshll.u32 %v3171, 16
        %v3428 = vrot.slane %v3426, 5
        %v3429 = vsel %vm1297, %v3424, %v3428
        %v3431 = vshrl.u32 %v3172, 16
        %v3433 = vrot.slane %v3431, 4
        %v3434 = vshll.u32 %v3172, 16
        %v3436 = vrot.slane %v3434, 5
        %v3437 = vor.u32 %v3433, %v3436
        %v3438 = vrot.slane %v3437, 4
        %v3440 = vshll.u32 %v3173, 16
        %v3442 = vrot.slane %v3440, 5
        %v3443 = vsel %vm1297, %v3438, %v3442
        %v3444 = vshrl.u32 %v3173, 16
        %v3446 = vrot.slane %v3444, 4
        %v3447 = vor.u32 %v3446, %v3442
        %v3448 = vrot.slane %v3447, 4
        %v3450 = vshll.u32 %v3174, 16
        %v3452 = vrot.slane %v3450, 5
        %v3453 = vsel %vm1297, %v3448, %v3452
        %v3455 = vshrl.u32 %v3175, 16
        %v3457 = vrot.slane %v3455, 4
        %v3458 = vshll.u32 %v3175, 16
        %v3460 = vrot.slane %v3458, 5
        %v3461 = vor.u32 %v3457, %v3460
        %v3462 = vrot.slane %v3461, 4
        %v3464 = vshll.u32 %v3176, 16
        %v3466 = vrot.slane %v3464, 5
        %v3467 = vsel %vm1297, %v3462, %v3466
        %v3468 = vshrl.u32 %v3176, 16
        %v3470 = vrot.slane %v3468, 4
        %v3471 = vor.u32 %v3470, %v3466
        %v3472 = vrot.slane %v3471, 4
        %v3474 = vshll.u32 %v3177, 16
        %v3476 = vrot.slane %v3474, 5
        %v3477 = vsel %vm1297, %v3472, %v3476
        %v3479 = vshrl.u32 %v3178, 16
        %v3481 = vrot.slane %v3479, 4
        %v3482 = vshll.u32 %v3178, 16
        %v3484 = vrot.slane %v3482, 5
        %v3485 = vor.u32 %v3481, %v3484
        %v3486 = vrot.slane %v3485, 4
        %v3488 = vshll.u32 %v3179, 16
        %v3490 = vrot.slane %v3488, 5
        %v3491 = vsel %vm1297, %v3486, %v3490
        %v3492 = vshrl.u32 %v3179, 16
        %v3494 = vrot.slane %v3492, 4
        %v3495 = vor.u32 %v3494, %v3490
        %v3496 = vrot.slane %v3495, 4
        %v3498 = vshll.u32 %v3180, 16
        %v3500 = vrot.slane %v3498, 5
        %v3501 = vsel %vm1297, %v3496, %v3500
        %v3503 = vshrl.u32 %v3181, 16
        %v3505 = vrot.slane %v3503, 4
        %v3506 = vshll.u32 %v3181, 16
        %v3508 = vrot.slane %v3506, 5
        %v3509 = vor.u32 %v3505, %v3508
        %v3510 = vrot.slane %v3509, 4
        %v3512 = vshll.u32 %v3182, 16
        %v3514 = vrot.slane %v3512, 5
        %v3515 = vsel %vm1297, %v3510, %v3514
        %v3516 = vshrl.u32 %v3182, 16
        %v3518 = vrot.slane %v3516, 4
        %v3519 = vor.u32 %v3518, %v3514
        %v3520 = vrot.slane %v3519, 4
        %v3522 = vshll.u32 %v3183, 16
        %v3524 = vrot.slane %v3522, 5
        %v3525 = vsel %vm1297, %v3520, %v3524
        %v3527 = vshrl.u32 %v3184, 16
        %v3529 = vrot.slane %v3527, 4
        %v3530 = vshll.u32 %v3184, 16
        %v3532 = vrot.slane %v3530, 5
        %v3533 = vor.u32 %v3529, %v3532
        %v3534 = vrot.slane %v3533, 4
        %v3536 = vshll.u32 %v3185, 16
        %v3538 = vrot.slane %v3536, 5
        %v3539 = vsel %vm1297, %v3534, %v3538
        %v3540 = vshrl.u32 %v3185, 16
        %v3542 = vrot.slane %v3540, 4
        %v3543 = vor.u32 %v3542, %v3538
        %v3544 = vrot.slane %v3543, 4
        %v3546 = vshll.u32 %v3186, 16
        %v3548 = vrot.slane %v3546, 5
        %v3549 = vsel %vm1297, %v3544, %v3548
        %v3551 = vshrl.u32 %v3187, 16
        %v3553 = vrot.slane %v3551, 4
        %v3554 = vshll.u32 %v3187, 16
        %v3556 = vrot.slane %v3554, 5
        %v3557 = vor.u32 %v3553, %v3556
        %v3558 = vrot.slane %v3557, 4
        %v3560 = vshll.u32 %v3188, 16
        %v3562 = vrot.slane %v3560, 5
        %v3563 = vsel %vm1297, %v3558, %v3562
        %v3564 = vshrl.u32 %v3188, 16
        %v3566 = vrot.slane %v3564, 4
        %v3567 = vor.u32 %v3566, %v3562
        %v3568 = vrot.slane %v3567, 4
        %v3570 = vshll.u32 %v3189, 16
        %v3572 = vrot.slane %v3570, 5
        %v3573 = vsel %vm1297, %v3568, %v3572
        %v3574 = vunpack.c.l.b16 %v3203
        %v3575 = vunpack.c.l.b16 %v3213
        %v3576 = vunpack.c.l.b16 %v3227
        %v3577 = vunpack.c.l.b16 %v3237
        %v3578 = vunpack.c.l.b16 %v3251
        %v3579 = vunpack.c.l.b16 %v3261
        %v3580 = vunpack.c.l.b16 %v3275
        %v3581 = vunpack.c.l.b16 %v3285
        %v3582 = vunpack.c.l.b16 %v3299
        %v3583 = vunpack.c.l.b16 %v3309
        %v3584 = vunpack.c.l.b16 %v3323
        %v3585 = vunpack.c.l.b16 %v3333
        %v3586 = vunpack.c.l.b16 %v3347
        %v3587 = vunpack.c.l.b16 %v3357
        %v3588 = vunpack.c.l.b16 %v3371
        %v3589 = vunpack.c.l.b16 %v3381
        %v3590 = vunpack.c.l.b16 %v3395
        %v3591 = vunpack.c.l.b16 %v3405
        %v3592 = vunpack.c.l.b16 %v3419
        %v3593 = vunpack.c.l.b16 %v3429
        %v3594 = vunpack.c.l.b16 %v3443
        %v3595 = vunpack.c.l.b16 %v3453
        %v3596 = vunpack.c.l.b16 %v3467
        %v3597 = vunpack.c.l.b16 %v3477
        %v3598 = vunpack.c.l.b16 %v3491
        %v3599 = vunpack.c.l.b16 %v3501
        %v3600 = vunpack.c.l.b16 %v3515
        %v3601 = vunpack.c.l.b16 %v3525
        %v3602 = vunpack.c.l.b16 %v3539
        %v3603 = vunpack.c.l.b16 %v3549
        %v3604 = vunpack.c.l.b16 %v3563
        %v3605 = vunpack.c.l.b16 %v3573
        %v3606 = vpack.c.b16 %v3575, %v3574
        %v3607 = vpack.c.b16 %v3577, %v3576
        %v3608 = vpack.c.b16 %v3579, %v3578
        %v3609 = vpack.c.b16 %v3581, %v3580
        %v3610 = vpack.c.b16 %v3583, %v3582
        %v3611 = vpack.c.b16 %v3585, %v3584
        %v3612 = vpack.c.b16 %v3587, %v3586
        %v3613 = vpack.c.b16 %v3589, %v3588
        %v3614 = vpack.c.b16 %v3591, %v3590
        %v3615 = vpack.c.b16 %v3593, %v3592
        %v3616 = vpack.c.b16 %v3595, %v3594
        %v3617 = vpack.c.b16 %v3597, %v3596
        %v3618 = vpack.c.b16 %v3599, %v3598
        %v3619 = vpack.c.b16 %v3601, %v3600
        %v3620 = vpack.c.b16 %v3603, %v3602
        %v3621 = vpack.c.b16 %v3605, %v3604
        %3638 = vst [vmem:[#allocation4 + $0x38] sm:$0xff] %v3606
        %3639 = vst [vmem:[#allocation4 + $0x80] sm:$0xff] %v3607
        %3640 = vst [vmem:[#allocation4 + $0xc8] sm:$0xff] %v3608
        %3641 = vst [vmem:[#allocation4 + $0x110] sm:$0xff] %v3609
        %3642 = vst [vmem:[#allocation4 + $0x158] sm:$0xff] %v3610
        %3643 = vst [vmem:[#allocation4 + $0x1a0] sm:$0xff] %v3611
        %3644 = vst [vmem:[#allocation4 + $0x1e8] sm:$0xff] %v3612
        %3645 = vst [vmem:[#allocation4 + $0x230] sm:$0xff] %v3613
        %3646 = vst [vmem:[#allocation4 + $0x278] sm:$0xff] %v3614
        %3647 = vst [vmem:[#allocation4 + $0x2c0] sm:$0xff] %v3615
        %3648 = vst [vmem:[#allocation4 + $0x308] sm:$0xff] %v3616
        %3649 = vst [vmem:[#allocation4 + $0x350] sm:$0xff] %v3617
        %3650 = vst [vmem:[#allocation4 + $0x398] sm:$0xff] %v3618
        %3651 = vst [vmem:[#allocation4 + $0x3e0] sm:$0xff] %v3619
        %3652 = vst [vmem:[#allocation4 + $0x428] sm:$0xff] %v3620
        %3653 = vst [vmem:[#allocation4 + $0x470] sm:$0xff] %v3621
        %v3654 = vld [vmem:[%s2997] sm:$0xe]
        %v3655 = vld [vmem:[%s2997 + $0x4] sm:$0xf]
        %v3656 = vld [vmem:[%s2997 + $0x8] sm:$0x1]
        %v3657 = vld [vmem:[%s2997 + $0xc] sm:$0xe]
        %v3658 = vld [vmem:[%s2997 + $0x10] sm:$0xf]
        %v3659 = vld [vmem:[%s2997 + $0x14] sm:$0x1]
        %v3660 = vld [vmem:[%s2997 + $0x18] sm:$0xe]
        %v3661 = vld [vmem:[%s2997 + $0x1c] sm:$0xf]
        %v3662 = vld [vmem:[%s2997 + $0x20] sm:$0x1]
        %v3663 = vld [vmem:[%s2997 + $0x24] sm:$0xe]
        %v3664 = vld [vmem:[%s2997 + $0x28] sm:$0xf]
        %v3665 = vld [vmem:[%s2997 + $0x2c] sm:$0x1]
        %v3666 = vld [vmem:[%s2997 + $0x30] sm:$0xe]
        %v3667 = vld [vmem:[%s2997 + $0x34] sm:$0xf]
        %v3668 = vld [vmem:[%s2997 + $0x38] sm:$0x1]
        %v3669 = vld [vmem:[%s2997 + $0x3c] sm:$0xe]
        %v3670 = vld [vmem:[%s2997 + $0x40] sm:$0xf]
        %v3671 = vld [vmem:[%s2997 + $0x44] sm:$0x1]
        %v3672 = vld [vmem:[%s2997 + $0x48] sm:$0xe]
        %v3673 = vld [vmem:[%s2997 + $0x4c] sm:$0xf]
        %v3674 = vld [vmem:[%s2997 + $0x50] sm:$0x1]
        %v3675 = vld [vmem:[%s2997 + $0x54] sm:$0xe]
        %v3676 = vld [vmem:[%s2997 + $0x58] sm:$0xf]
        %v3677 = vld [vmem:[%s2997 + $0x5c] sm:$0x1]
        %v3678 = vld [vmem:[%s2997 + $0x60] sm:$0xe]
        %v3679 = vld [vmem:[%s2997 + $0x64] sm:$0xf]
        %v3680 = vld [vmem:[%s2997 + $0x68] sm:$0x1]
        %v3681 = vld [vmem:[%s2997 + $0x6c] sm:$0xe]
        %v3682 = vld [vmem:[%s2997 + $0x70] sm:$0xf]
        %v3683 = vld [vmem:[%s2997 + $0x74] sm:$0x1]
        %v3684 = vld [vmem:[%s2997 + $0x78] sm:$0xe]
        %v3685 = vld [vmem:[%s2997 + $0x7c] sm:$0xf]
        %v3686 = vld [vmem:[%s2997 + $0x80] sm:$0x1]
        %v3687 = vld [vmem:[%s2997 + $0x84] sm:$0xe]
        %v3688 = vld [vmem:[%s2997 + $0x88] sm:$0xf]
        %v3689 = vld [vmem:[%s2997 + $0x8c] sm:$0x1]
        %v3690 = vld [vmem:[%s2997 + $0x90] sm:$0xe]
        %v3691 = vld [vmem:[%s2997 + $0x94] sm:$0xf]
        %v3692 = vld [vmem:[%s2997 + $0x98] sm:$0x1]
        %v3693 = vld [vmem:[%s2997 + $0x9c] sm:$0xe]
        %v3694 = vld [vmem:[%s2997 + $0xa0] sm:$0xf]
        %v3695 = vld [vmem:[%s2997 + $0xa4] sm:$0x1]
        %v3696 = vld [vmem:[%s2997 + $0xa8] sm:$0xe]
        %v3697 = vld [vmem:[%s2997 + $0xac] sm:$0xf]
        %v3698 = vld [vmem:[%s2997 + $0xb0] sm:$0x1]
        %v3699 = vld [vmem:[%s2997 + $0xb4] sm:$0xe]
        %v3700 = vld [vmem:[%s2997 + $0xb8] sm:$0xf]
        %v3701 = vld [vmem:[%s2997 + $0xbc] sm:$0x1]
        %v3750 = vrot.slane %v3654, 5
        %v3751 = vrot.slane %v3750, 4
        %v3752 = vrot.slane %v3655, 5
        %v3753 = vsel %vm1860, %v3751, %v3752
        %v3754 = vrot.slane %v3752, 4
        %v3755 = vrot.slane %v3656, 5
        %v3756 = vsel %vm1860, %v3754, %v3755
        %v3757 = vrot.slane %v3657, 5
        %v3758 = vrot.slane %v3757, 4
        %v3759 = vrot.slane %v3658, 5
        %v3760 = vsel %vm1860, %v3758, %v3759
        %v3761 = vrot.slane %v3759, 4
        %v3762 = vrot.slane %v3659, 5
        %v3763 = vsel %vm1860, %v3761, %v3762
        %v3764 = vrot.slane %v3660, 5
        %v3765 = vrot.slane %v3764, 4
        %v3766 = vrot.slane %v3661, 5
        %v3767 = vsel %vm1860, %v3765, %v3766
        %v3768 = vrot.slane %v3766, 4
        %v3769 = vrot.slane %v3662, 5
        %v3770 = vsel %vm1860, %v3768, %v3769
        %v3771 = vrot.slane %v3663, 5
        %v3772 = vrot.slane %v3771, 4
        %v3773 = vrot.slane %v3664, 5
        %v3774 = vsel %vm1860, %v3772, %v3773
        %v3775 = vrot.slane %v3773, 4
        %v3776 = vrot.slane %v3665, 5
        %v3777 = vsel %vm1860, %v3775, %v3776
        %v3778 = vrot.slane %v3666, 5
        %v3779 = vrot.slane %v3778, 4
        %v3780 = vrot.slane %v3667, 5
        %v3781 = vsel %vm1860, %v3779, %v3780
        %v3782 = vrot.slane %v3780, 4
        %v3783 = vrot.slane %v3668, 5
        %v3784 = vsel %vm1860, %v3782, %v3783
        %v3785 = vrot.slane %v3669, 5
        %v3786 = vrot.slane %v3785, 4
        %v3787 = vrot.slane %v3670, 5
        %v3788 = vsel %vm1860, %v3786, %v3787
        %v3789 = vrot.slane %v3787, 4
        %v3790 = vrot.slane %v3671, 5
        %v3791 = vsel %vm1860, %v3789, %v3790
        %v3792 = vrot.slane %v3672, 5
        %v3793 = vrot.slane %v3792, 4
        %v3794 = vrot.slane %v3673, 5
        %v3795 = vsel %vm1860, %v3793, %v3794
        %v3796 = vrot.slane %v3794, 4
        %v3797 = vrot.slane %v3674, 5
        %v3798 = vsel %vm1860, %v3796, %v3797
        %v3799 = vrot.slane %v3675, 5
        %v3800 = vrot.slane %v3799, 4
        %v3801 = vrot.slane %v3676, 5
        %v3802 = vsel %vm1860, %v3800, %v3801
        %v3803 = vrot.slane %v3801, 4
        %v3804 = vrot.slane %v3677, 5
        %v3805 = vsel %vm1860, %v3803, %v3804
        %v3806 = vrot.slane %v3678, 5
        %v3807 = vrot.slane %v3806, 4
        %v3808 = vrot.slane %v3679, 5
        %v3809 = vsel %vm1860, %v3807, %v3808
        %v3810 = vrot.slane %v3808, 4
        %v3811 = vrot.slane %v3680, 5
        %v3812 = vsel %vm1860, %v3810, %v3811
        %v3813 = vrot.slane %v3681, 5
        %v3814 = vrot.slane %v3813, 4
        %v3815 = vrot.slane %v3682, 5
        %v3816 = vsel %vm1860, %v3814, %v3815
        %v3817 = vrot.slane %v3815, 4
        %v3818 = vrot.slane %v3683, 5
        %v3819 = vsel %vm1860, %v3817, %v3818
        %v3820 = vrot.slane %v3684, 5
        %v3821 = vrot.slane %v3820, 4
        %v3822 = vrot.slane %v3685, 5
        %v3823 = vsel %vm1860, %v3821, %v3822
        %v3824 = vrot.slane %v3822, 4
        %v3825 = vrot.slane %v3686, 5
        %v3826 = vsel %vm1860, %v3824, %v3825
        %v3827 = vrot.slane %v3687, 5
        %v3828 = vrot.slane %v3827, 4
        %v3829 = vrot.slane %v3688, 5
        %v3830 = vsel %vm1860, %v3828, %v3829
        %v3831 = vrot.slane %v3829, 4
        %v3832 = vrot.slane %v3689, 5
        %v3833 = vsel %vm1860, %v3831, %v3832
        %v3834 = vrot.slane %v3690, 5
        %v3835 = vrot.slane %v3834, 4
        %v3836 = vrot.slane %v3691, 5
        %v3837 = vsel %vm1860, %v3835, %v3836
        %v3838 = vrot.slane %v3836, 4
        %v3839 = vrot.slane %v3692, 5
        %v3840 = vsel %vm1860, %v3838, %v3839
        %v3841 = vrot.slane %v3693, 5
        %v3842 = vrot.slane %v3841, 4
        %v3843 = vrot.slane %v3694, 5
        %v3844 = vsel %vm1860, %v3842, %v3843
        %v3845 = vrot.slane %v3843, 4
        %v3846 = vrot.slane %v3695, 5
        %v3847 = vsel %vm1860, %v3845, %v3846
        %v3848 = vrot.slane %v3696, 5
        %v3849 = vrot.slane %v3848, 4
        %v3850 = vrot.slane %v3697, 5
        %v3851 = vsel %vm1860, %v3849, %v3850
        %v3852 = vrot.slane %v3850, 4
        %v3853 = vrot.slane %v3698, 5
        %v3854 = vsel %vm1860, %v3852, %v3853
        %v3855 = vrot.slane %v3699, 5
        %v3856 = vrot.slane %v3855, 4
        %v3857 = vrot.slane %v3700, 5
        %v3858 = vsel %vm1860, %v3856, %v3857
        %v3859 = vrot.slane %v3857, 4
        %v3860 = vrot.slane %v3701, 5
        %v3861 = vsel %vm1860, %v3859, %v3860
        %v3862 = vunpack.c.l.b16 %v3753
        %v3863 = vunpack.c.l.b16 %v3756
        %v3864 = vunpack.c.l.b16 %v3760
        %v3865 = vunpack.c.l.b16 %v3763
        %v3866 = vunpack.c.l.b16 %v3767
        %v3867 = vunpack.c.l.b16 %v3770
        %v3868 = vunpack.c.l.b16 %v3774
        %v3869 = vunpack.c.l.b16 %v3777
        %v3870 = vunpack.c.l.b16 %v3781
        %v3871 = vunpack.c.l.b16 %v3784
        %v3872 = vunpack.c.l.b16 %v3788
        %v3873 = vunpack.c.l.b16 %v3791
        %v3874 = vunpack.c.l.b16 %v3795
        %v3875 = vunpack.c.l.b16 %v3798
        %v3876 = vunpack.c.l.b16 %v3802
        %v3877 = vunpack.c.l.b16 %v3805
        %v3878 = vunpack.c.l.b16 %v3809
        %v3879 = vunpack.c.l.b16 %v3812
        %v3880 = vunpack.c.l.b16 %v3816
        %v3881 = vunpack.c.l.b16 %v3819
        %v3882 = vunpack.c.l.b16 %v3823
        %v3883 = vunpack.c.l.b16 %v3826
        %v3884 = vunpack.c.l.b16 %v3830
        %v3885 = vunpack.c.l.b16 %v3833
        %v3886 = vunpack.c.l.b16 %v3837
        %v3887 = vunpack.c.l.b16 %v3840
        %v3888 = vunpack.c.l.b16 %v3844
        %v3889 = vunpack.c.l.b16 %v3847
        %v3890 = vunpack.c.l.b16 %v3851
        %v3891 = vunpack.c.l.b16 %v3854
        %v3892 = vunpack.c.l.b16 %v3858
        %v3893 = vunpack.c.l.b16 %v3861
        %v3894 = vpack.c.b16 %v3863, %v3862
        %v3895 = vpack.c.b16 %v3865, %v3864
        %v3896 = vpack.c.b16 %v3867, %v3866
        %v3897 = vpack.c.b16 %v3869, %v3868
        %v3898 = vpack.c.b16 %v3871, %v3870
        %v3899 = vpack.c.b16 %v3873, %v3872
        %v3900 = vpack.c.b16 %v3875, %v3874
        %v3901 = vpack.c.b16 %v3877, %v3876
        %v3902 = vpack.c.b16 %v3879, %v3878
        %v3903 = vpack.c.b16 %v3881, %v3880
        %v3904 = vpack.c.b16 %v3883, %v3882
        %v3905 = vpack.c.b16 %v3885, %v3884
        %v3906 = vpack.c.b16 %v3887, %v3886
        %v3907 = vpack.c.b16 %v3889, %v3888
        %v3908 = vpack.c.b16 %v3891, %v3890
        %v3909 = vpack.c.b16 %v3893, %v3892
        %3926 = vst [vmem:[#allocation4 + $0x40] sm:$0xff] %v3894
        %3927 = vst [vmem:[#allocation4 + $0x88] sm:$0xff] %v3895
        %3928 = vst [vmem:[#allocation4 + $0xd0] sm:$0xff] %v3896
        %3929 = vst [vmem:[#allocation4 + $0x118] sm:$0xff] %v3897
        %3930 = vst [vmem:[#allocation4 + $0x160] sm:$0xff] %v3898
        %3931 = vst [vmem:[#allocation4 + $0x1a8] sm:$0xff] %v3899
        %3932 = vst [vmem:[#allocation4 + $0x1f0] sm:$0xff] %v3900
        %3933 = vst [vmem:[#allocation4 + $0x238] sm:$0xff] %v3901
        %3934 = vst [vmem:[#allocation4 + $0x280] sm:$0xff] %v3902
        %3935 = vst [vmem:[#allocation4 + $0x2c8] sm:$0xff] %v3903
        %3936 = vst [vmem:[#allocation4 + $0x310] sm:$0xff] %v3904
        %3937 = vst [vmem:[#allocation4 + $0x358] sm:$0xff] %v3905
        %3938 = vst [vmem:[#allocation4 + $0x3a0] sm:$0xff] %v3906
        %3939 = vst [vmem:[#allocation4 + $0x3e8] sm:$0xff] %v3907
        %3940 = vst [vmem:[#allocation4 + $0x430] sm:$0xff] %v3908
        %3941 = vst [vmem:[#allocation4 + $0x478] sm:$0xff] %v3909
        %v3942 = vld [vmem:[#allocation4] sm:$0xff]
        %v3943 = vld [vmem:[#allocation4 + $0x8] sm:$0xff]
        %v3944 = vld [vmem:[#allocation4 + $0x10] sm:$0xff]
        %v3945 = vld [vmem:[#allocation4 + $0x18] sm:$0xff]
        %v3946 = vld [vmem:[#allocation4 + $0x20] sm:$0xff]
        %v3947 = vld [vmem:[#allocation4 + $0x28] sm:$0xff]
        %v3948 = vld [vmem:[#allocation4 + $0x30] sm:$0xff]
        %v3949 = vld [vmem:[#allocation4 + $0x38] sm:$0xff]
        %v3950 = vld [vmem:[#allocation4 + $0x40] sm:$0xff]
        %v3951 = vld [vmem:[#allocation4 + $0x48] sm:$0xff]
        %v3952 = vld [vmem:[#allocation4 + $0x50] sm:$0xff]
        %v3953 = vld [vmem:[#allocation4 + $0x58] sm:$0xff]
        %v3954 = vld [vmem:[#allocation4 + $0x60] sm:$0xff]
        %v3955 = vld [vmem:[#allocation4 + $0x68] sm:$0xff]
        %v3956 = vld [vmem:[#allocation4 + $0x70] sm:$0xff]
        %v3957 = vld [vmem:[#allocation4 + $0x78] sm:$0xff]
        %v3958 = vld [vmem:[#allocation4 + $0x80] sm:$0xff]
        %v3959 = vld [vmem:[#allocation4 + $0x88] sm:$0xff]
        %v3960 = vld [vmem:[#allocation4 + $0x90] sm:$0xff]
        %v3961 = vld [vmem:[#allocation4 + $0x98] sm:$0xff]
        %v3962 = vld [vmem:[#allocation4 + $0xa0] sm:$0xff]
        %v3963 = vld [vmem:[#allocation4 + $0xa8] sm:$0xff]
        %v3964 = vld [vmem:[#allocation4 + $0xb0] sm:$0xff]
        %v3965 = vld [vmem:[#allocation4 + $0xb8] sm:$0xff]
        %v3966 = vld [vmem:[#allocation4 + $0xc0] sm:$0xff]
        %v3967 = vld [vmem:[#allocation4 + $0xc8] sm:$0xff]
        %v3968 = vld [vmem:[#allocation4 + $0xd0] sm:$0xff]
        %v3969 = vld [vmem:[#allocation4 + $0xd8] sm:$0xff]
        %v3970 = vld [vmem:[#allocation4 + $0xe0] sm:$0xff]
        %v3971 = vld [vmem:[#allocation4 + $0xe8] sm:$0xff]
        %v3972 = vld [vmem:[#allocation4 + $0xf0] sm:$0xff]
        %v3973 = vld [vmem:[#allocation4 + $0xf8] sm:$0xff]
        %v3974 = vld [vmem:[#allocation4 + $0x100] sm:$0xff]
        %v3975 = vld [vmem:[#allocation4 + $0x108] sm:$0xff]
        %v3976 = vld [vmem:[#allocation4 + $0x110] sm:$0xff]
        %v3977 = vld [vmem:[#allocation4 + $0x118] sm:$0xff]
        %v3978 = vld [vmem:[#allocation4 + $0x120] sm:$0xff]
        %v3979 = vld [vmem:[#allocation4 + $0x128] sm:$0xff]
        %v3980 = vld [vmem:[#allocation4 + $0x130] sm:$0xff]
        %v3981 = vld [vmem:[#allocation4 + $0x138] sm:$0xff]
        %v3982 = vld [vmem:[#allocation4 + $0x140] sm:$0xff]
        %v3983 = vld [vmem:[#allocation4 + $0x148] sm:$0xff]
        %v3984 = vld [vmem:[#allocation4 + $0x150] sm:$0xff]
        %v3985 = vld [vmem:[#allocation4 + $0x158] sm:$0xff]
        %v3986 = vld [vmem:[#allocation4 + $0x160] sm:$0xff]
        %v3987 = vld [vmem:[#allocation4 + $0x168] sm:$0xff]
        %v3988 = vld [vmem:[#allocation4 + $0x170] sm:$0xff]
        %v3989 = vld [vmem:[#allocation4 + $0x178] sm:$0xff]
        %v3990 = vld [vmem:[#allocation4 + $0x180] sm:$0xff]
        %v3991 = vld [vmem:[#allocation4 + $0x188] sm:$0xff]
        %v3992 = vld [vmem:[#allocation4 + $0x190] sm:$0xff]
        %v3993 = vld [vmem:[#allocation4 + $0x198] sm:$0xff]
        %v3994 = vld [vmem:[#allocation4 + $0x1a0] sm:$0xff]
        %v3995 = vld [vmem:[#allocation4 + $0x1a8] sm:$0xff]
        %v3996 = vld [vmem:[#allocation4 + $0x1b0] sm:$0xff]
        %v3997 = vld [vmem:[#allocation4 + $0x1b8] sm:$0xff]
        %v3998 = vld [vmem:[#allocation4 + $0x1c0] sm:$0xff]
        %v3999 = vld [vmem:[#allocation4 + $0x1c8] sm:$0xff]
        %v4000 = vld [vmem:[#allocation4 + $0x1d0] sm:$0xff]
        %v4001 = vld [vmem:[#allocation4 + $0x1d8] sm:$0xff]
        %v4002 = vld [vmem:[#allocation4 + $0x1e0] sm:$0xff]
        %v4003 = vld [vmem:[#allocation4 + $0x1e8] sm:$0xff]
        %v4004 = vld [vmem:[#allocation4 + $0x1f0] sm:$0xff]
        %v4005 = vld [vmem:[#allocation4 + $0x1f8] sm:$0xff]
        %v4006 = vld [vmem:[#allocation4 + $0x200] sm:$0xff]
        %v4007 = vld [vmem:[#allocation4 + $0x208] sm:$0xff]
        %v4008 = vld [vmem:[#allocation4 + $0x210] sm:$0xff]
        %v4009 = vld [vmem:[#allocation4 + $0x218] sm:$0xff]
        %v4010 = vld [vmem:[#allocation4 + $0x220] sm:$0xff]
        %v4011 = vld [vmem:[#allocation4 + $0x228] sm:$0xff]
        %v4012 = vld [vmem:[#allocation4 + $0x230] sm:$0xff]
        %v4013 = vld [vmem:[#allocation4 + $0x238] sm:$0xff]
        %v4014 = vld [vmem:[#allocation4 + $0x240] sm:$0xff]
        %v4015 = vld [vmem:[#allocation4 + $0x248] sm:$0xff]
        %v4016 = vld [vmem:[#allocation4 + $0x250] sm:$0xff]
        %v4017 = vld [vmem:[#allocation4 + $0x258] sm:$0xff]
        %v4018 = vld [vmem:[#allocation4 + $0x260] sm:$0xff]
        %v4019 = vld [vmem:[#allocation4 + $0x268] sm:$0xff]
        %v4020 = vld [vmem:[#allocation4 + $0x270] sm:$0xff]
        %v4021 = vld [vmem:[#allocation4 + $0x278] sm:$0xff]
        %v4022 = vld [vmem:[#allocation4 + $0x280] sm:$0xff]
        %v4023 = vld [vmem:[#allocation4 + $0x288] sm:$0xff]
        %v4024 = vld [vmem:[#allocation4 + $0x290] sm:$0xff]
        %v4025 = vld [vmem:[#allocation4 + $0x298] sm:$0xff]
        %v4026 = vld [vmem:[#allocation4 + $0x2a0] sm:$0xff]
        %v4027 = vld [vmem:[#allocation4 + $0x2a8] sm:$0xff]
        %v4028 = vld [vmem:[#allocation4 + $0x2b0] sm:$0xff]
        %v4029 = vld [vmem:[#allocation4 + $0x2b8] sm:$0xff]
        %v4030 = vld [vmem:[#allocation4 + $0x2c0] sm:$0xff]
        %v4031 = vld [vmem:[#allocation4 + $0x2c8] sm:$0xff]
        %v4032 = vld [vmem:[#allocation4 + $0x2d0] sm:$0xff]
        %v4033 = vld [vmem:[#allocation4 + $0x2d8] sm:$0xff]
        %v4034 = vld [vmem:[#allocation4 + $0x2e0] sm:$0xff]
        %v4035 = vld [vmem:[#allocation4 + $0x2e8] sm:$0xff]
        %v4036 = vld [vmem:[#allocation4 + $0x2f0] sm:$0xff]
        %v4037 = vld [vmem:[#allocation4 + $0x2f8] sm:$0xff]
        %v4038 = vld [vmem:[#allocation4 + $0x300] sm:$0xff]
        %v4039 = vld [vmem:[#allocation4 + $0x308] sm:$0xff]
        %v4040 = vld [vmem:[#allocation4 + $0x310] sm:$0xff]
        %v4041 = vld [vmem:[#allocation4 + $0x318] sm:$0xff]
        %v4042 = vld [vmem:[#allocation4 + $0x320] sm:$0xff]
        %v4043 = vld [vmem:[#allocation4 + $0x328] sm:$0xff]
        %v4044 = vld [vmem:[#allocation4 + $0x330] sm:$0xff]
        %v4045 = vld [vmem:[#allocation4 + $0x338] sm:$0xff]
        %v4046 = vld [vmem:[#allocation4 + $0x340] sm:$0xff]
        %v4047 = vld [vmem:[#allocation4 + $0x348] sm:$0xff]
        %v4048 = vld [vmem:[#allocation4 + $0x350] sm:$0xff]
        %v4049 = vld [vmem:[#allocation4 + $0x358] sm:$0xff]
        %v4050 = vld [vmem:[#allocation4 + $0x360] sm:$0xff]
        %v4051 = vld [vmem:[#allocation4 + $0x368] sm:$0xff]
        %v4052 = vld [vmem:[#allocation4 + $0x370] sm:$0xff]
        %v4053 = vld [vmem:[#allocation4 + $0x378] sm:$0xff]
        %v4054 = vld [vmem:[#allocation4 + $0x380] sm:$0xff]
        %v4055 = vld [vmem:[#allocation4 + $0x388] sm:$0xff]
        %v4056 = vld [vmem:[#allocation4 + $0x390] sm:$0xff]
        %v4057 = vld [vmem:[#allocation4 + $0x398] sm:$0xff]
        %v4058 = vld [vmem:[#allocation4 + $0x3a0] sm:$0xff]
        %v4059 = vld [vmem:[#allocation4 + $0x3a8] sm:$0xff]
        %v4060 = vld [vmem:[#allocation4 + $0x3b0] sm:$0xff]
        %v4061 = vld [vmem:[#allocation4 + $0x3b8] sm:$0xff]
        %v4062 = vld [vmem:[#allocation4 + $0x3c0] sm:$0xff]
        %v4063 = vld [vmem:[#allocation4 + $0x3c8] sm:$0xff]
        %v4064 = vld [vmem:[#allocation4 + $0x3d0] sm:$0xff]
        %v4065 = vld [vmem:[#allocation4 + $0x3d8] sm:$0xff]
        %v4066 = vld [vmem:[#allocation4 + $0x3e0] sm:$0xff]
        %v4067 = vld [vmem:[#allocation4 + $0x3e8] sm:$0xff]
        %v4068 = vld [vmem:[#allocation4 + $0x3f0] sm:$0xff]
        %v4069 = vld [vmem:[#allocation4 + $0x3f8] sm:$0xff]
        %v4070 = vld [vmem:[#allocation4 + $0x400] sm:$0xff]
        %v4071 = vld [vmem:[#allocation4 + $0x408] sm:$0xff]
        %v4072 = vld [vmem:[#allocation4 + $0x410] sm:$0xff]
        %v4073 = vld [vmem:[#allocation4 + $0x418] sm:$0xff]
        %v4074 = vld [vmem:[#allocation4 + $0x420] sm:$0xff]
        %v4075 = vld [vmem:[#allocation4 + $0x428] sm:$0xff]
        %v4076 = vld [vmem:[#allocation4 + $0x430] sm:$0xff]
        %v4077 = vld [vmem:[#allocation4 + $0x438] sm:$0xff]
        %v4078 = vld [vmem:[#allocation4 + $0x440] sm:$0xff]
        %v4079 = vld [vmem:[#allocation4 + $0x448] sm:$0xff]
        %v4080 = vld [vmem:[#allocation4 + $0x450] sm:$0xff]
        %v4081 = vld [vmem:[#allocation4 + $0x458] sm:$0xff]
        %v4082 = vld [vmem:[#allocation4 + $0x460] sm:$0xff]
        %v4083 = vld [vmem:[#allocation4 + $0x468] sm:$0xff]
        %v4084 = vld [vmem:[#allocation4 + $0x470] sm:$0xff]
        %v4085 = vld [vmem:[#allocation4 + $0x478] sm:$0xff]
        %v4086 = vld [vmem:[#allocation10] sm:$0xf]
        %v4087 = vld [vmem:[#allocation10 + $0x4] sm:$0xf]
        %v4088 = vld [vmem:[#allocation10 + $0x8] sm:$0xf]
        %v4089 = vld [vmem:[#allocation10 + $0xc] sm:$0xf]
        %v4090 = vld [vmem:[#allocation10 + $0x10] sm:$0xf]
        %v4091 = vld [vmem:[#allocation10 + $0x14] sm:$0xf]
        %v4092 = vld [vmem:[#allocation10 + $0x18] sm:$0xf]
        %v4093 = vld [vmem:[#allocation10 + $0x1c] sm:$0xf]
        %v4094 = vld [vmem:[#allocation10 + $0x20] sm:$0xf]
        %v4095 = vld [vmem:[#allocation10 + $0x24] sm:$0xf]
        %v4096 = vld [vmem:[#allocation10 + $0x28] sm:$0xf]
        %v4097 = vld [vmem:[#allocation10 + $0x2c] sm:$0xf]
        %v4098 = vld [vmem:[#allocation10 + $0x30] sm:$0xf]
        %v4099 = vld [vmem:[#allocation10 + $0x34] sm:$0xf]
        %v4100 = vld [vmem:[#allocation10 + $0x38] sm:$0xf]
        %v4101 = vld [vmem:[#allocation10 + $0x3c] sm:$0xf]
        %v4102 = vld [vmem:[#allocation10 + $0x40] sm:$0xf]
        %v4103 = vld [vmem:[#allocation10 + $0x44] sm:$0xf]
        %v4104 = vld [vmem:[#allocation10 + $0x48] sm:$0xf]
        %v4105 = vld [vmem:[#allocation10 + $0x4c] sm:$0xf]
        %v4106 = vld [vmem:[#allocation10 + $0x50] sm:$0xf]
        %v4107 = vld [vmem:[#allocation10 + $0x54] sm:$0xf]
        %v4108 = vld [vmem:[#allocation10 + $0x58] sm:$0xf]
        %v4109 = vld [vmem:[#allocation10 + $0x5c] sm:$0xf]
        %v4110 = vld [vmem:[#allocation10 + $0x60] sm:$0xf]
        %v4111 = vld [vmem:[#allocation10 + $0x64] sm:$0xf]
        %v4112 = vld [vmem:[#allocation10 + $0x68] sm:$0xf]
        %v4113 = vld [vmem:[#allocation10 + $0x6c] sm:$0xf]
        %v4114 = vld [vmem:[#allocation10 + $0x70] sm:$0xf]
        %v4115 = vld [vmem:[#allocation10 + $0x74] sm:$0xf]
        %v4116 = vld [vmem:[#allocation10 + $0x78] sm:$0xf]
        %v4117 = vld [vmem:[#allocation10 + $0x7c] sm:$0xf]
        %v4118 = vld [vmem:[#allocation10 + $0x80] sm:$0xf]
        %v4119 = vld [vmem:[#allocation10 + $0x84] sm:$0xf]
        %v4120 = vld [vmem:[#allocation10 + $0x88] sm:$0xf]
        %v4121 = vld [vmem:[#allocation10 + $0x8c] sm:$0xf]
        %v4122 = vld [vmem:[#allocation10 + $0x90] sm:$0xf]
        %v4123 = vld [vmem:[#allocation10 + $0x94] sm:$0xf]
        %v4124 = vld [vmem:[#allocation10 + $0x98] sm:$0xf]
        %v4125 = vld [vmem:[#allocation10 + $0x9c] sm:$0xf]
        %v4126 = vld [vmem:[#allocation10 + $0xa0] sm:$0xf]
        %v4127 = vld [vmem:[#allocation10 + $0xa4] sm:$0xf]
        %v4128 = vld [vmem:[#allocation10 + $0xa8] sm:$0xf]
        %v4129 = vld [vmem:[#allocation10 + $0xac] sm:$0xf]
        %v4130 = vld [vmem:[#allocation10 + $0xb0] sm:$0xf]
        %v4131 = vld [vmem:[#allocation10 + $0xb4] sm:$0xf]
        %v4132 = vld [vmem:[#allocation10 + $0xb8] sm:$0xf]
        %v4133 = vld [vmem:[#allocation10 + $0xbc] sm:$0xf]
        %v4134 = vld [vmem:[#allocation10 + $0xc0] sm:$0xf]
        %v4135 = vld [vmem:[#allocation10 + $0xc4] sm:$0xf]
        %v4136 = vld [vmem:[#allocation10 + $0xc8] sm:$0xf]
        %v4137 = vld [vmem:[#allocation10 + $0xcc] sm:$0xf]
        %v4138 = vld [vmem:[#allocation10 + $0xd0] sm:$0xf]
        %v4139 = vld [vmem:[#allocation10 + $0xd4] sm:$0xf]
        %v4140 = vld [vmem:[#allocation10 + $0xd8] sm:$0xf]
        %v4141 = vld [vmem:[#allocation10 + $0xdc] sm:$0xf]
        %v4142 = vld [vmem:[#allocation10 + $0xe0] sm:$0xf]
        %v4143 = vld [vmem:[#allocation10 + $0xe4] sm:$0xf]
        %v4144 = vld [vmem:[#allocation10 + $0xe8] sm:$0xf]
        %v4145 = vld [vmem:[#allocation10 + $0xec] sm:$0xf]
        %v4146 = vld [vmem:[#allocation10 + $0xf0] sm:$0xf]
        %v4147 = vld [vmem:[#allocation10 + $0xf4] sm:$0xf]
        %v4148 = vld [vmem:[#allocation10 + $0xf8] sm:$0xf]
        %v4149 = vld [vmem:[#allocation10 + $0xfc] sm:$0xf]
        %v4150 = vld [vmem:[#allocation10 + $0x100] sm:$0xf]
        %v4151 = vld [vmem:[#allocation10 + $0x104] sm:$0xf]
        %v4152 = vld [vmem:[#allocation10 + $0x108] sm:$0xf]
        %v4153 = vld [vmem:[#allocation10 + $0x10c] sm:$0xf]
        %v4154 = vld [vmem:[#allocation10 + $0x110] sm:$0xf]
        %v4155 = vld [vmem:[#allocation10 + $0x114] sm:$0xf]
        %v4156 = vld [vmem:[#allocation10 + $0x118] sm:$0xf]
        %v4157 = vld [vmem:[#allocation10 + $0x11c] sm:$0xf]
        %v4158 = vld [vmem:[#allocation10 + $0x120] sm:$0xf]
        %v4159 = vld [vmem:[#allocation10 + $0x124] sm:$0xf]
        %v4160 = vld [vmem:[#allocation10 + $0x128] sm:$0xf]
        %v4161 = vld [vmem:[#allocation10 + $0x12c] sm:$0xf]
        %v4162 = vld [vmem:[#allocation10 + $0x130] sm:$0xf]
        %v4163 = vld [vmem:[#allocation10 + $0x134] sm:$0xf]
        %v4164 = vld [vmem:[#allocation10 + $0x138] sm:$0xf]
        %v4165 = vld [vmem:[#allocation10 + $0x13c] sm:$0xf]
        %v4166 = vld [vmem:[#allocation10 + $0x140] sm:$0xf]
        %v4167 = vld [vmem:[#allocation10 + $0x144] sm:$0xf]
        %v4168 = vld [vmem:[#allocation10 + $0x148] sm:$0xf]
        %v4169 = vld [vmem:[#allocation10 + $0x14c] sm:$0xf]
        %v4170 = vld [vmem:[#allocation10 + $0x150] sm:$0xf]
        %v4171 = vld [vmem:[#allocation10 + $0x154] sm:$0xf]
        %v4172 = vld [vmem:[#allocation10 + $0x158] sm:$0xf]
        %v4173 = vld [vmem:[#allocation10 + $0x15c] sm:$0xf]
        %v4174 = vld [vmem:[#allocation10 + $0x160] sm:$0xf]
        %v4175 = vld [vmem:[#allocation10 + $0x164] sm:$0xf]
        %v4176 = vld [vmem:[#allocation10 + $0x168] sm:$0xf]
        %v4177 = vld [vmem:[#allocation10 + $0x16c] sm:$0xf]
        %v4178 = vld [vmem:[#allocation10 + $0x170] sm:$0xf]
        %v4179 = vld [vmem:[#allocation10 + $0x174] sm:$0xf]
        %v4180 = vld [vmem:[#allocation10 + $0x178] sm:$0xf]
        %v4181 = vld [vmem:[#allocation10 + $0x17c] sm:$0xf]
        %v4182 = vld [vmem:[#allocation10 + $0x180] sm:$0xf]
        %v4183 = vld [vmem:[#allocation10 + $0x184] sm:$0xf]
        %v4184 = vld [vmem:[#allocation10 + $0x188] sm:$0xf]
        %v4185 = vld [vmem:[#allocation10 + $0x18c] sm:$0xf]
        %v4186 = vld [vmem:[#allocation10 + $0x190] sm:$0xf]
        %v4187 = vld [vmem:[#allocation10 + $0x194] sm:$0xf]
        %v4188 = vld [vmem:[#allocation10 + $0x198] sm:$0xf]
        %v4189 = vld [vmem:[#allocation10 + $0x19c] sm:$0xf]
        %v4190 = vld [vmem:[#allocation10 + $0x1a0] sm:$0xf]
        %v4191 = vld [vmem:[#allocation10 + $0x1a4] sm:$0xf]
        %v4192 = vld [vmem:[#allocation10 + $0x1a8] sm:$0xf]
        %v4193 = vld [vmem:[#allocation10 + $0x1ac] sm:$0xf]
        %v4194 = vld [vmem:[#allocation10 + $0x1b0] sm:$0xf]
        %v4195 = vld [vmem:[#allocation10 + $0x1b4] sm:$0xf]
        %v4196 = vld [vmem:[#allocation10 + $0x1b8] sm:$0xf]
        %v4197 = vld [vmem:[#allocation10 + $0x1bc] sm:$0xf]
        %v4198 = vld [vmem:[#allocation10 + $0x1c0] sm:$0xf]
        %v4199 = vld [vmem:[#allocation10 + $0x1c4] sm:$0xf]
        %v4200 = vld [vmem:[#allocation10 + $0x1c8] sm:$0xf]
        %v4201 = vld [vmem:[#allocation10 + $0x1cc] sm:$0xf]
        %v4202 = vld [vmem:[#allocation10 + $0x1d0] sm:$0xf]
        %v4203 = vld [vmem:[#allocation10 + $0x1d4] sm:$0xf]
        %v4204 = vld [vmem:[#allocation10 + $0x1d8] sm:$0xf]
        %v4205 = vld [vmem:[#allocation10 + $0x1dc] sm:$0xf]
        %v4206 = vld [vmem:[#allocation10 + $0x1e0] sm:$0xf]
        %v4207 = vld [vmem:[#allocation10 + $0x1e4] sm:$0xf]
        %v4208 = vld [vmem:[#allocation10 + $0x1e8] sm:$0xf]
        %v4209 = vld [vmem:[#allocation10 + $0x1ec] sm:$0xf]
        %v4210 = vld [vmem:[#allocation10 + $0x1f0] sm:$0xf]
        %v4211 = vld [vmem:[#allocation10 + $0x1f4] sm:$0xf]
        %v4212 = vld [vmem:[#allocation10 + $0x1f8] sm:$0xf]
        %v4213 = vld [vmem:[#allocation10 + $0x1fc] sm:$0xf]
        %v4214 = vld [vmem:[#allocation10 + $0x200] sm:$0xf]
        %v4215 = vld [vmem:[#allocation10 + $0x204] sm:$0xf]
        %v4216 = vld [vmem:[#allocation10 + $0x208] sm:$0xf]
        %v4217 = vld [vmem:[#allocation10 + $0x20c] sm:$0xf]
        %v4218 = vld [vmem:[#allocation10 + $0x210] sm:$0xf]
        %v4219 = vld [vmem:[#allocation10 + $0x214] sm:$0xf]
        %v4220 = vld [vmem:[#allocation10 + $0x218] sm:$0xf]
        %v4221 = vld [vmem:[#allocation10 + $0x21c] sm:$0xf]
        %v4222 = vld [vmem:[#allocation10 + $0x220] sm:$0xf]
        %v4223 = vld [vmem:[#allocation10 + $0x224] sm:$0xf]
        %v4224 = vld [vmem:[#allocation10 + $0x228] sm:$0xf]
        %v4225 = vld [vmem:[#allocation10 + $0x22c] sm:$0xf]
        %v4226 = vld [vmem:[#allocation10 + $0x230] sm:$0xf]
        %v4227 = vld [vmem:[#allocation10 + $0x234] sm:$0xf]
        %v4228 = vld [vmem:[#allocation10 + $0x238] sm:$0xf]
        %v4229 = vld [vmem:[#allocation10 + $0x23c] sm:$0xf]
        %v4230 = vld [vmem:[%s4] sm:$0x1]
        %v4232 = vlaneseq
        %v4233 = vshrl.u32 %v4232, 7
        %v4234 = vsub.s32 0, %v4233
        %v4235 = vrot.slane %v4230, %v4234
        %v4381 = vunpack.c.l.b16 %v4086
        %v4382 = vunpack.c.l.b16 %v4087
        %v4383 = vunpack.c.l.b16 %v4088
        %v4384 = vunpack.c.l.b16 %v4089
        %v4385 = vunpack.c.l.b16 %v4090
        %v4386 = vunpack.c.l.b16 %v4091
        %v4387 = vunpack.c.l.b16 %v4092
        %v4388 = vunpack.c.l.b16 %v4093
        %v4389 = vunpack.c.l.b16 %v4094
        %v4390 = vunpack.c.l.b16 %v4095
        %v4391 = vunpack.c.l.b16 %v4096
        %v4392 = vunpack.c.l.b16 %v4097
        %v4393 = vunpack.c.l.b16 %v4098
        %v4394 = vunpack.c.l.b16 %v4099
        %v4395 = vunpack.c.l.b16 %v4100
        %v4396 = vunpack.c.l.b16 %v4101
        %v4397 = vunpack.c.l.b16 %v4102
        %v4398 = vunpack.c.l.b16 %v4103
        %v4399 = vunpack.c.l.b16 %v4104
        %v4400 = vunpack.c.l.b16 %v4105
        %v4401 = vunpack.c.l.b16 %v4106
        %v4402 = vunpack.c.l.b16 %v4107
        %v4403 = vunpack.c.l.b16 %v4108
        %v4404 = vunpack.c.l.b16 %v4109
        %v4405 = vunpack.c.l.b16 %v4110
        %v4406 = vunpack.c.l.b16 %v4111
        %v4407 = vunpack.c.l.b16 %v4112
        %v4408 = vunpack.c.l.b16 %v4113
        %v4409 = vunpack.c.l.b16 %v4114
        %v4410 = vunpack.c.l.b16 %v4115
        %v4411 = vunpack.c.l.b16 %v4116
        %v4412 = vunpack.c.l.b16 %v4117
        %v4413 = vunpack.c.l.b16 %v4118
        %v4414 = vunpack.c.l.b16 %v4119
        %v4415 = vunpack.c.l.b16 %v4120
        %v4416 = vunpack.c.l.b16 %v4121
        %v4417 = vunpack.c.l.b16 %v4122
        %v4418 = vunpack.c.l.b16 %v4123
        %v4419 = vunpack.c.l.b16 %v4124
        %v4420 = vunpack.c.l.b16 %v4125
        %v4421 = vunpack.c.l.b16 %v4126
        %v4422 = vunpack.c.l.b16 %v4127
        %v4423 = vunpack.c.l.b16 %v4128
        %v4424 = vunpack.c.l.b16 %v4129
        %v4425 = vunpack.c.l.b16 %v4130
        %v4426 = vunpack.c.l.b16 %v4131
        %v4427 = vunpack.c.l.b16 %v4132
        %v4428 = vunpack.c.l.b16 %v4133
        %v4429 = vunpack.c.l.b16 %v4134
        %v4430 = vunpack.c.l.b16 %v4135
        %v4431 = vunpack.c.l.b16 %v4136
        %v4432 = vunpack.c.l.b16 %v4137
        %v4433 = vunpack.c.l.b16 %v4138
        %v4434 = vunpack.c.l.b16 %v4139
        %v4435 = vunpack.c.l.b16 %v4140
        %v4436 = vunpack.c.l.b16 %v4141
        %v4437 = vunpack.c.l.b16 %v4142
        %v4438 = vunpack.c.l.b16 %v4143
        %v4439 = vunpack.c.l.b16 %v4144
        %v4440 = vunpack.c.l.b16 %v4145
        %v4441 = vunpack.c.l.b16 %v4146
        %v4442 = vunpack.c.l.b16 %v4147
        %v4443 = vunpack.c.l.b16 %v4148
        %v4444 = vunpack.c.l.b16 %v4149
        %v4445 = vunpack.c.l.b16 %v4150
        %v4446 = vunpack.c.l.b16 %v4151
        %v4447 = vunpack.c.l.b16 %v4152
        %v4448 = vunpack.c.l.b16 %v4153
        %v4449 = vunpack.c.l.b16 %v4154
        %v4450 = vunpack.c.l.b16 %v4155
        %v4451 = vunpack.c.l.b16 %v4156
        %v4452 = vunpack.c.l.b16 %v4157
        %v4453 = vunpack.c.l.b16 %v4158
        %v4454 = vunpack.c.l.b16 %v4159
        %v4455 = vunpack.c.l.b16 %v4160
        %v4456 = vunpack.c.l.b16 %v4161
        %v4457 = vunpack.c.l.b16 %v4162
        %v4458 = vunpack.c.l.b16 %v4163
        %v4459 = vunpack.c.l.b16 %v4164
        %v4460 = vunpack.c.l.b16 %v4165
        %v4461 = vunpack.c.l.b16 %v4166
        %v4462 = vunpack.c.l.b16 %v4167
        %v4463 = vunpack.c.l.b16 %v4168
        %v4464 = vunpack.c.l.b16 %v4169
        %v4465 = vunpack.c.l.b16 %v4170
        %v4466 = vunpack.c.l.b16 %v4171
        %v4467 = vunpack.c.l.b16 %v4172
        %v4468 = vunpack.c.l.b16 %v4173
        %v4469 = vunpack.c.l.b16 %v4174
        %v4470 = vunpack.c.l.b16 %v4175
        %v4471 = vunpack.c.l.b16 %v4176
        %v4472 = vunpack.c.l.b16 %v4177
        %v4473 = vunpack.c.l.b16 %v4178
        %v4474 = vunpack.c.l.b16 %v4179
        %v4475 = vunpack.c.l.b16 %v4180
        %v4476 = vunpack.c.l.b16 %v4181
        %v4477 = vunpack.c.l.b16 %v4182
        %v4478 = vunpack.c.l.b16 %v4183
        %v4479 = vunpack.c.l.b16 %v4184
        %v4480 = vunpack.c.l.b16 %v4185
        %v4481 = vunpack.c.l.b16 %v4186
        %v4482 = vunpack.c.l.b16 %v4187
        %v4483 = vunpack.c.l.b16 %v4188
        %v4484 = vunpack.c.l.b16 %v4189
        %v4485 = vunpack.c.l.b16 %v4190
        %v4486 = vunpack.c.l.b16 %v4191
        %v4487 = vunpack.c.l.b16 %v4192
        %v4488 = vunpack.c.l.b16 %v4193
        %v4489 = vunpack.c.l.b16 %v4194
        %v4490 = vunpack.c.l.b16 %v4195
        %v4491 = vunpack.c.l.b16 %v4196
        %v4492 = vunpack.c.l.b16 %v4197
        %v4493 = vunpack.c.l.b16 %v4198
        %v4494 = vunpack.c.l.b16 %v4199
        %v4495 = vunpack.c.l.b16 %v4200
        %v4496 = vunpack.c.l.b16 %v4201
        %v4497 = vunpack.c.l.b16 %v4202
        %v4498 = vunpack.c.l.b16 %v4203
        %v4499 = vunpack.c.l.b16 %v4204
        %v4500 = vunpack.c.l.b16 %v4205
        %v4501 = vunpack.c.l.b16 %v4206
        %v4502 = vunpack.c.l.b16 %v4207
        %v4503 = vunpack.c.l.b16 %v4208
        %v4504 = vunpack.c.l.b16 %v4209
        %v4505 = vunpack.c.l.b16 %v4210
        %v4506 = vunpack.c.l.b16 %v4211
        %v4507 = vunpack.c.l.b16 %v4212
        %v4508 = vunpack.c.l.b16 %v4213
        %v4509 = vunpack.c.l.b16 %v4214
        %v4510 = vunpack.c.l.b16 %v4215
        %v4511 = vunpack.c.l.b16 %v4216
        %v4512 = vunpack.c.l.b16 %v4217
        %v4513 = vunpack.c.l.b16 %v4218
        %v4514 = vunpack.c.l.b16 %v4219
        %v4515 = vunpack.c.l.b16 %v4220
        %v4516 = vunpack.c.l.b16 %v4221
        %v4517 = vunpack.c.l.b16 %v4222
        %v4518 = vunpack.c.l.b16 %v4223
        %v4519 = vunpack.c.l.b16 %v4224
        %v4520 = vunpack.c.l.b16 %v4225
        %v4521 = vunpack.c.l.b16 %v4226
        %v4522 = vunpack.c.l.b16 %v4227
        %v4523 = vunpack.c.l.b16 %v4228
        %v4524 = vunpack.c.l.b16 %v4229
        %v4525 = vpack.c.b16 %v4382, %v4381
        %v4526 = vpack.c.b16 %v4384, %v4383
        %v4527 = vpack.c.b16 %v4386, %v4385
        %v4528 = vpack.c.b16 %v4388, %v4387
        %v4529 = vpack.c.b16 %v4390, %v4389
        %v4530 = vpack.c.b16 %v4392, %v4391
        %v4531 = vpack.c.b16 %v4394, %v4393
        %v4532 = vpack.c.b16 %v4396, %v4395
        %v4533 = vpack.c.b16 %v4398, %v4397
        %v4534 = vpack.c.b16 %v4400, %v4399
        %v4535 = vpack.c.b16 %v4402, %v4401
        %v4536 = vpack.c.b16 %v4404, %v4403
        %v4537 = vpack.c.b16 %v4406, %v4405
        %v4538 = vpack.c.b16 %v4408, %v4407
        %v4539 = vpack.c.b16 %v4410, %v4409
        %v4540 = vpack.c.b16 %v4412, %v4411
        %v4541 = vpack.c.b16 %v4414, %v4413
        %v4542 = vpack.c.b16 %v4416, %v4415
        %v4543 = vpack.c.b16 %v4418, %v4417
        %v4544 = vpack.c.b16 %v4420, %v4419
        %v4545 = vpack.c.b16 %v4422, %v4421
        %v4546 = vpack.c.b16 %v4424, %v4423
        %v4547 = vpack.c.b16 %v4426, %v4425
        %v4548 = vpack.c.b16 %v4428, %v4427
        %v4549 = vpack.c.b16 %v4430, %v4429
        %v4550 = vpack.c.b16 %v4432, %v4431
        %v4551 = vpack.c.b16 %v4434, %v4433
        %v4552 = vpack.c.b16 %v4436, %v4435
        %v4553 = vpack.c.b16 %v4438, %v4437
        %v4554 = vpack.c.b16 %v4440, %v4439
        %v4555 = vpack.c.b16 %v4442, %v4441
        %v4556 = vpack.c.b16 %v4444, %v4443
        %v4557 = vpack.c.b16 %v4446, %v4445
        %v4558 = vpack.c.b16 %v4448, %v4447
        %v4559 = vpack.c.b16 %v4450, %v4449
        %v4560 = vpack.c.b16 %v4452, %v4451
        %v4561 = vpack.c.b16 %v4454, %v4453
        %v4562 = vpack.c.b16 %v4456, %v4455
        %v4563 = vpack.c.b16 %v4458, %v4457
        %v4564 = vpack.c.b16 %v4460, %v4459
        %v4565 = vpack.c.b16 %v4462, %v4461
        %v4566 = vpack.c.b16 %v4464, %v4463
        %v4567 = vpack.c.b16 %v4466, %v4465
        %v4568 = vpack.c.b16 %v4468, %v4467
        %v4569 = vpack.c.b16 %v4470, %v4469
        %v4570 = vpack.c.b16 %v4472, %v4471
        %v4571 = vpack.c.b16 %v4474, %v4473
        %v4572 = vpack.c.b16 %v4476, %v4475
        %v4573 = vpack.c.b16 %v4478, %v4477
        %v4574 = vpack.c.b16 %v4480, %v4479
        %v4575 = vpack.c.b16 %v4482, %v4481
        %v4576 = vpack.c.b16 %v4484, %v4483
        %v4577 = vpack.c.b16 %v4486, %v4485
        %v4578 = vpack.c.b16 %v4488, %v4487
        %v4579 = vpack.c.b16 %v4490, %v4489
        %v4580 = vpack.c.b16 %v4492, %v4491
        %v4581 = vpack.c.b16 %v4494, %v4493
        %v4582 = vpack.c.b16 %v4496, %v4495
        %v4583 = vpack.c.b16 %v4498, %v4497
        %v4584 = vpack.c.b16 %v4500, %v4499
        %v4585 = vpack.c.b16 %v4502, %v4501
        %v4586 = vpack.c.b16 %v4504, %v4503
        %v4587 = vpack.c.b16 %v4506, %v4505
        %v4588 = vpack.c.b16 %v4508, %v4507
        %v4589 = vpack.c.b16 %v4510, %v4509
        %v4590 = vpack.c.b16 %v4512, %v4511
        %v4591 = vpack.c.b16 %v4514, %v4513
        %v4592 = vpack.c.b16 %v4516, %v4515
        %v4593 = vpack.c.b16 %v4518, %v4517
        %v4594 = vpack.c.b16 %v4520, %v4519
        %v4595 = vpack.c.b16 %v4522, %v4521
        %v4596 = vpack.c.b16 %v4524, %v4523
        %4669 = vmatprep.subr.bf16.mxu0 0
        %4670 = vmatpush1.bf16.msra.mxu0 %v4525
        %4671 = vmatprep.subr.bf16.mxu0 0
        %4672 = vmatpush1.bf16.msra.mxu0 %v4526
        %4673 = vmatprep.subr.bf16.mxu0 0
        %4674 = vmatpush1.bf16.msra.mxu0 %v4527
        %4675 = vmatprep.subr.bf16.mxu0 0
        %4676 = vmatpush1.bf16.msra.mxu0 %v4528
        %4677 = vmatprep.subr.bf16.mxu0 0
        %4678 = vmatpush1.bf16.msra.mxu0 %v4529
        %4679 = vmatprep.subr.bf16.mxu0 0
        %4680 = vmatpush1.bf16.msra.mxu0 %v4530
        %4681 = vmatprep.subr.bf16.mxu0 0
        %4682 = vmatpush1.bf16.msra.mxu0 %v4531
        %4683 = vmatprep.subr.bf16.mxu0 0
        %4684 = vmatpush1.bf16.msra.mxu0 %v4532
        %4685 = vmatprep.subr.bf16.mxu0 0
        %4686 = vmatpush1.bf16.msra.mxu0 %v4533
        %4687 = vmatprep.subr.bf16.mxu0 0
        %4688 = vmatpush1.bf16.msra.mxu0 %v4534
        %4689 = vmatprep.subr.bf16.mxu0 0
        %4690 = vmatpush1.bf16.msra.mxu0 %v4535
        %4691 = vmatprep.subr.bf16.mxu0 0
        %4692 = vmatpush1.bf16.msra.mxu0 %v4536
        %4693 = vmatprep.subr.bf16.mxu0 0
        %4694 = vmatpush1.bf16.msra.mxu0 %v4537
        %4695 = vmatprep.subr.bf16.mxu0 0
        %4696 = vmatpush1.bf16.msra.mxu0 %v4538
        %4697 = vmatprep.subr.bf16.mxu0 0
        %4698 = vmatpush1.bf16.msra.mxu0 %v4539
        %4699 = vmatprep.subr.bf16.mxu0 0
        %4700 = vmatpush1.bf16.msra.mxu0 %v4540
        %4701 = vmatprep.mubr.bf16.mxu0 %v3943
        %4702 = vmatmul.mubr.bf16.gmra.mrb[0].mxu0 %v3942
        %v4703 = vpop.f32.mrb[0].mxu0
        %v4704 = vadd.f32 %v4235, %v4703
        %v4705 = vpop.f32.mrb[0].mxu0
        %v4706 = vpop.f32.mrb[0].mxu0
        %v4707 = vadd.f32 %v4235, %v4706
        %v4708 = vpop.f32.mrb[0].mxu0
        %4709 = vmatprep.mubr.bf16.mxu0 %v3952
        %4710 = vmatmul.mubr.bf16.gmra.mrb[0].mxu0 %v3951
        %v4711 = vpop.f32.mrb[0].mxu0
        %v4712 = vadd.f32 %v4235, %v4711
        %v4713 = vpop.f32.mrb[0].mxu0
        %v4714 = vpop.f32.mrb[0].mxu0
        %v4715 = vadd.f32 %v4235, %v4714
        %v4716 = vpop.f32.mrb[0].mxu0
        %4717 = vmatprep.mubr.bf16.mxu0 %v3961
        %4718 = vmatmul.mubr.bf16.gmra.mrb[0].mxu0 %v3960
        %v4719 = vpop.f32.mrb[0].mxu0
        %v4720 = vadd.f32 %v4235, %v4719
        %v4721 = vpop.f32.mrb[0].mxu0
        %v4722 = vpop.f32.mrb[0].mxu0
        %v4723 = vadd.f32 %v4235, %v4722
        %v4724 = vpop.f32.mrb[0].mxu0
        %4725 = vmatprep.mubr.bf16.mxu0 %v3970
        %4726 = vmatmul.mubr.bf16.gmra.mrb[0].mxu0 %v3969
        %v4727 = vpop.f32.mrb[0].mxu0
        %v4728 = vadd.f32 %v4235, %v4727
        %v4729 = vpop.f32.mrb[0].mxu0
        %v4730 = vpop.f32.mrb[0].mxu0
        %v4731 = vadd.f32 %v4235, %v4730
        %v4732 = vpop.f32.mrb[0].mxu0
        %4733 = vmatprep.mubr.bf16.mxu0 %v3979
        %4734 = vmatmul.mubr.bf16.gmra.mrb[0].mxu0 %v3978
        %v4735 = vpop.f32.mrb[0].mxu0
        %v4736 = vadd.f32 %v4235, %v4735
        %v4737 = vpop.f32.mrb[0].mxu0
        %v4738 = vpop.f32.mrb[0].mxu0
        %v4739 = vadd.f32 %v4235, %v4738
        %v4740 = vpop.f32.mrb[0].mxu0
        %4741 = vmatprep.mubr.bf16.mxu0 %v3988
        %4742 = vmatmul.mubr.bf16.gmra.mrb[0].mxu0 %v3987
        %v4743 = vpop.f32.mrb[0].mxu0
        %v4744 = vadd.f32 %v4235, %v4743
        %v4745 = vpop.f32.mrb[0].mxu0
        %v4746 = vpop.f32.mrb[0].mxu0
        %v4747 = vadd.f32 %v4235, %v4746
        %v4748 = vpop.f32.mrb[0].mxu0
        %4749 = vmatprep.mubr.bf16.mxu0 %v3997
        %4750 = vmatmul.mubr.bf16.gmra.mrb[0].mxu0 %v3996
        %v4751 = vpop.f32.mrb[0].mxu0
        %v4752 = vadd.f32 %v4235, %v4751
        %v4753 = vpop.f32.mrb[0].mxu0
        %v4754 = vpop.f32.mrb[0].mxu0
        %v4755 = vadd.f32 %v4235, %v4754
        %v4756 = vpop.f32.mrb[0].mxu0
        %4757 = vmatprep.mubr.bf16.mxu0 %v4006
        %4758 = vmatmul.mubr.bf16.gmra.mrb[0].mxu0 %v4005
        %v4759 = vpop.f32.mrb[0].mxu0
        %v4760 = vadd.f32 %v4235, %v4759
        %v4761 = vpop.f32.mrb[0].mxu0
        %v4762 = vpop.f32.mrb[0].mxu0
        %v4763 = vadd.f32 %v4235, %v4762
        %v4764 = vpop.f32.mrb[0].mxu0
        %4765 = vmatprep.mubr.bf16.mxu0 %v4015
        %4766 = vmatmul.mubr.bf16.gmra.mrb[0].mxu0 %v4014
        %v4767 = vpop.f32.mrb[0].mxu0
        %v4768 = vadd.f32 %v4235, %v4767
        %v4769 = vpop.f32.mrb[0].mxu0
        %v4770 = vpop.f32.mrb[0].mxu0
        %v4771 = vadd.f32 %v4235, %v4770
        %v4772 = vpop.f32.mrb[0].mxu0
        %4773 = vmatprep.mubr.bf16.mxu0 %v4024
        %4774 = vmatmul.mubr.bf16.gmra.mrb[0].mxu0 %v4023
        %v4775 = vpop.f32.mrb[0].mxu0
        %v4776 = vadd.f32 %v4235, %v4775
        %v4777 = vpop.f32.mrb[0].mxu0
        %v4778 = vpop.f32.mrb[0].mxu0
        %v4779 = vadd.f32 %v4235, %v4778
        %v4780 = vpop.f32.mrb[0].mxu0
        %4781 = vmatprep.mubr.bf16.mxu0 %v4033
        %4782 = vmatmul.mubr.bf16.gmra.mrb[0].mxu0 %v4032
        %v4783 = vpop.f32.mrb[0].mxu0
        %v4784 = vadd.f32 %v4235, %v4783
        %v4785 = vpop.f32.mrb[0].mxu0
        %v4786 = vpop.f32.mrb[0].mxu0
        %v4787 = vadd.f32 %v4235, %v4786
        %v4788 = vpop.f32.mrb[0].mxu0
        %4789 = vmatprep.mubr.bf16.mxu0 %v4042
        %4790 = vmatmul.mubr.bf16.gmra.mrb[0].mxu0 %v4041
        %v4791 = vpop.f32.mrb[0].mxu0
        %v4792 = vadd.f32 %v4235, %v4791
        %v4793 = vpop.f32.mrb[0].mxu0
        %v4794 = vpop.f32.mrb[0].mxu0
        %v4795 = vadd.f32 %v4235, %v4794
        %v4796 = vpop.f32.mrb[0].mxu0
        %4797 = vmatprep.mubr.bf16.mxu0 %v4051
        %4798 = vmatmul.mubr.bf16.gmra.mrb[0].mxu0 %v4050
        %v4799 = vpop.f32.mrb[0].mxu0
        %v4800 = vadd.f32 %v4235, %v4799
        %v4801 = vpop.f32.mrb[0].mxu0
        %v4802 = vpop.f32.mrb[0].mxu0
        %v4803 = vadd.f32 %v4235, %v4802
        %v4804 = vpop.f32.mrb[0].mxu0
        %4805 = vmatprep.mubr.bf16.mxu0 %v4060
        %4806 = vmatmul.mubr.bf16.gmra.mrb[0].mxu0 %v4059
        %v4807 = vpop.f32.mrb[0].mxu0
        %v4808 = vadd.f32 %v4235, %v4807
        %v4809 = vpop.f32.mrb[0].mxu0
        %v4810 = vpop.f32.mrb[0].mxu0
        %v4811 = vadd.f32 %v4235, %v4810
        %v4812 = vpop.f32.mrb[0].mxu0
        %4813 = vmatprep.mubr.bf16.mxu0 %v4069
        %4814 = vmatmul.mubr.bf16.gmra.mrb[0].mxu0 %v4068
        %v4815 = vpop.f32.mrb[0].mxu0
        %v4816 = vadd.f32 %v4235, %v4815
        %v4817 = vpop.f32.mrb[0].mxu0
        %v4818 = vpop.f32.mrb[0].mxu0
        %v4819 = vadd.f32 %v4235, %v4818
        %v4820 = vpop.f32.mrb[0].mxu0
        %4821 = vmatprep.mubr.bf16.mxu0 %v4078
        %4822 = vmatmul.mubr.bf16.gmra.mrb[0].mxu0 %v4077
        %v4823 = vpop.f32.mrb[0].mxu0
        %v4824 = vadd.f32 %v4235, %v4823
        %v4825 = vpop.f32.mrb[0].mxu0
        %v4826 = vpop.f32.mrb[0].mxu0
        %v4827 = vadd.f32 %v4235, %v4826
        %v4828 = vpop.f32.mrb[0].mxu0
        %4829 = vdwg.mxu0
        %4830 = vmatprep.subr.bf16.mxu0 0
        %4831 = vmatpush1.bf16.msra.mxu0 %v4541
        %4832 = vmatprep.subr.bf16.mxu0 0
        %4833 = vmatpush1.bf16.msra.mxu0 %v4542
        %4834 = vmatprep.subr.bf16.mxu0 0
        %4835 = vmatpush1.bf16.msra.mxu0 %v4543
        %4836 = vmatprep.subr.bf16.mxu0 0
        %4837 = vmatpush1.bf16.msra.mxu0 %v4544
        %4838 = vmatprep.subr.bf16.mxu0 0
        %4839 = vmatpush1.bf16.msra.mxu0 %v4545
        %4840 = vmatprep.subr.bf16.mxu0 0
        %4841 = vmatpush1.bf16.msra.mxu0 %v4546
        %4842 = vmatprep.subr.bf16.mxu0 0
        %4843 = vmatpush1.bf16.msra.mxu0 %v4547
        %4844 = vmatprep.subr.bf16.mxu0 0
        %4845 = vmatpush1.bf16.msra.mxu0 %v4548
        %4846 = vmatprep.subr.bf16.mxu0 0
        %4847 = vmatpush1.bf16.msra.mxu0 %v4549
        %4848 = vmatprep.subr.bf16.mxu0 0
        %4849 = vmatpush1.bf16.msra.mxu0 %v4550
        %4850 = vmatprep.subr.bf16.mxu0 0
        %4851 = vmatpush1.bf16.msra.mxu0 %v4551
        %4852 = vmatprep.subr.bf16.mxu0 0
        %4853 = vmatpush1.bf16.msra.mxu0 %v4552
        %4854 = vmatprep.subr.bf16.mxu0 0
        %4855 = vmatpush1.bf16.msra.mxu0 %v4553
        %4856 = vmatprep.subr.bf16.mxu0 0
        %4857 = vmatpush1.bf16.msra.mxu0 %v4554
        %4858 = vmatprep.subr.bf16.mxu0 0
        %4859 = vmatpush1.bf16.msra.mxu0 %v4555
        %4860 = vmatprep.subr.bf16.mxu0 0
        %4861 = vmatpush1.bf16.msra.mxu0 %v4556
        %4862 = vmatprep.mubr.bf16.mxu0 %v3945
        %4863 = vmatmul.mubr.bf16.gmra.mrb[0].mxu0 %v3944
        %v4864 = vpop.f32.mrb[0].mxu0
        %v4865 = vadd.f32 %v4704, %v4864
        %v4866 = vpop.f32.mrb[0].mxu0
        %v4867 = vpop.f32.mrb[0].mxu0
        %v4868 = vadd.f32 %v4707, %v4867
        %v4869 = vpop.f32.mrb[0].mxu0
        %4870 = vmatprep.mubr.bf16.mxu0 %v3954
        %4871 = vmatmul.mubr.bf16.gmra.mrb[0].mxu0 %v3953
        %v4872 = vpop.f32.mrb[0].mxu0
        %v4873 = vadd.f32 %v4712, %v4872
        %v4874 = vpop.f32.mrb[0].mxu0
        %v4875 = vpop.f32.mrb[0].mxu0
        %v4876 = vadd.f32 %v4715, %v4875
        %v4877 = vpop.f32.mrb[0].mxu0
        %4878 = vmatprep.mubr.bf16.mxu0 %v3963
        %4879 = vmatmul.mubr.bf16.gmra.mrb[0].mxu0 %v3962
        %v4880 = vpop.f32.mrb[0].mxu0
        %v4881 = vadd.f32 %v4720, %v4880
        %v4882 = vpop.f32.mrb[0].mxu0
        %v4883 = vpop.f32.mrb[0].mxu0
        %v4884 = vadd.f32 %v4723, %v4883
        %v4885 = vpop.f32.mrb[0].mxu0
        %4886 = vmatprep.mubr.bf16.mxu0 %v3972
        %4887 = vmatmul.mubr.bf16.gmra.mrb[0].mxu0 %v3971
        %v4888 = vpop.f32.mrb[0].mxu0
        %v4889 = vadd.f32 %v4728, %v4888
        %v4890 = vpop.f32.mrb[0].mxu0
        %v4891 = vpop.f32.mrb[0].mxu0
        %v4892 = vadd.f32 %v4731, %v4891
        %v4893 = vpop.f32.mrb[0].mxu0
        %4894 = vmatprep.mubr.bf16.mxu0 %v3981
        %4895 = vmatmul.mubr.bf16.gmra.mrb[0].mxu0 %v3980
        %v4896 = vpop.f32.mrb[0].mxu0
        %v4897 = vadd.f32 %v4736, %v4896
        %v4898 = vpop.f32.mrb[0].mxu0
        %v4899 = vpop.f32.mrb[0].mxu0
        %v4900 = vadd.f32 %v4739, %v4899
        %v4901 = vpop.f32.mrb[0].mxu0
        %4902 = vmatprep.mubr.bf16.mxu0 %v3990
        %4903 = vmatmul.mubr.bf16.gmra.mrb[0].mxu0 %v3989
        %v4904 = vpop.f32.mrb[0].mxu0
        %v4905 = vadd.f32 %v4744, %v4904
        %v4906 = vpop.f32.mrb[0].mxu0
        %v4907 = vpop.f32.mrb[0].mxu0
        %v4908 = vadd.f32 %v4747, %v4907
        %v4909 = vpop.f32.mrb[0].mxu0
        %4910 = vmatprep.mubr.bf16.mxu0 %v3999
        %4911 = vmatmul.mubr.bf16.gmra.mrb[0].mxu0 %v3998
        %v4912 = vpop.f32.mrb[0].mxu0
        %v4913 = vadd.f32 %v4752, %v4912
        %v4914 = vpop.f32.mrb[0].mxu0
        %v4915 = vpop.f32.mrb[0].mxu0
        %v4916 = vadd.f32 %v4755, %v4915
        %v4917 = vpop.f32.mrb[0].mxu0
        %4918 = vmatprep.mubr.bf16.mxu0 %v4008
        %4919 = vmatmul.mubr.bf16.gmra.mrb[0].mxu0 %v4007
        %v4920 = vpop.f32.mrb[0].mxu0
        %v4921 = vadd.f32 %v4760, %v4920
        %v4922 = vpop.f32.mrb[0].mxu0
        %v4923 = vpop.f32.mrb[0].mxu0
        %v4924 = vadd.f32 %v4763, %v4923
        %v4925 = vpop.f32.mrb[0].mxu0
        %4926 = vmatprep.mubr.bf16.mxu0 %v4017
        %4927 = vmatmul.mubr.bf16.gmra.mrb[0].mxu0 %v4016
        %v4928 = vpop.f32.mrb[0].mxu0
        %v4929 = vadd.f32 %v4768, %v4928
        %v4930 = vpop.f32.mrb[0].mxu0
        %v4931 = vpop.f32.mrb[0].mxu0
        %v4932 = vadd.f32 %v4771, %v4931
        %v4933 = vpop.f32.mrb[0].mxu0
        %4934 = vmatprep.mubr.bf16.mxu0 %v4026
        %4935 = vmatmul.mubr.bf16.gmra.mrb[0].mxu0 %v4025
        %v4936 = vpop.f32.mrb[0].mxu0
        %v4937 = vadd.f32 %v4776, %v4936
        %v4938 = vpop.f32.mrb[0].mxu0
        %v4939 = vpop.f32.mrb[0].mxu0
        %v4940 = vadd.f32 %v4779, %v4939
        %v4941 = vpop.f32.mrb[0].mxu0
        %4942 = vmatprep.mubr.bf16.mxu0 %v4035
        %4943 = vmatmul.mubr.bf16.gmra.mrb[0].mxu0 %v4034
        %v4944 = vpop.f32.mrb[0].mxu0
        %v4945 = vadd.f32 %v4784, %v4944
        %v4946 = vpop.f32.mrb[0].mxu0
        %v4947 = vpop.f32.mrb[0].mxu0
        %v4948 = vadd.f32 %v4787, %v4947
        %v4949 = vpop.f32.mrb[0].mxu0
        %4950 = vmatprep.mubr.bf16.mxu0 %v4044
        %4951 = vmatmul.mubr.bf16.gmra.mrb[0].mxu0 %v4043
        %v4952 = vpop.f32.mrb[0].mxu0
        %v4953 = vadd.f32 %v4792, %v4952
        %v4954 = vpop.f32.mrb[0].mxu0
        %v4955 = vpop.f32.mrb[0].mxu0
        %v4956 = vadd.f32 %v4795, %v4955
        %v4957 = vpop.f32.mrb[0].mxu0
        %4958 = vmatprep.mubr.bf16.mxu0 %v4053
        %4959 = vmatmul.mubr.bf16.gmra.mrb[0].mxu0 %v4052
        %v4960 = vpop.f32.mrb[0].mxu0
        %v4961 = vadd.f32 %v4800, %v4960
        %v4962 = vpop.f32.mrb[0].mxu0
        %v4963 = vpop.f32.mrb[0].mxu0
        %v4964 = vadd.f32 %v4803, %v4963
        %v4965 = vpop.f32.mrb[0].mxu0
        %4966 = vmatprep.mubr.bf16.mxu0 %v4062
        %4967 = vmatmul.mubr.bf16.gmra.mrb[0].mxu0 %v4061
        %v4968 = vpop.f32.mrb[0].mxu0
        %v4969 = vadd.f32 %v4808, %v4968
        %v4970 = vpop.f32.mrb[0].mxu0
        %v4971 = vpop.f32.mrb[0].mxu0
        %v4972 = vadd.f32 %v4811, %v4971
        %v4973 = vpop.f32.mrb[0].mxu0
        %4974 = vmatprep.mubr.bf16.mxu0 %v4071
        %4975 = vmatmul.mubr.bf16.gmra.mrb[0].mxu0 %v4070
        %v4976 = vpop.f32.mrb[0].mxu0
        %v4977 = vadd.f32 %v4816, %v4976
        %v4978 = vpop.f32.mrb[0].mxu0
        %v4979 = vpop.f32.mrb[0].mxu0
        %v4980 = vadd.f32 %v4819, %v4979
        %v4981 = vpop.f32.mrb[0].mxu0
        %4982 = vmatprep.mubr.bf16.mxu0 %v4080
        %4983 = vmatmul.mubr.bf16.gmra.mrb[0].mxu0 %v4079
        %v4984 = vpop.f32.mrb[0].mxu0
        %v4985 = vadd.f32 %v4824, %v4984
        %v4986 = vpop.f32.mrb[0].mxu0
        %v4987 = vpop.f32.mrb[0].mxu0
        %v4988 = vadd.f32 %v4827, %v4987
        %v4989 = vpop.f32.mrb[0].mxu0
        %4990 = vdwg.mxu0
        %4991 = vmatprep.subr.bf16.mxu0 0
        %4992 = vmatpush1.bf16.msra.mxu0 %v4557
        %4993 = vmatprep.subr.bf16.mxu0 0
        %4994 = vmatpush1.bf16.msra.mxu0 %v4558
        %4995 = vmatprep.subr.bf16.mxu0 0
        %4996 = vmatpush1.bf16.msra.mxu0 %v4559
        %4997 = vmatprep.subr.bf16.mxu0 0
        %4998 = vmatpush1.bf16.msra.mxu0 %v4560
        %4999 = vmatprep.subr.bf16.mxu0 0
        %5000 = vmatpush1.bf16.msra.mxu0 %v4561
        %5001 = vmatprep.subr.bf16.mxu0 0
        %5002 = vmatpush1.bf16.msra.mxu0 %v4562
        %5003 = vmatprep.subr.bf16.mxu0 0
        %5004 = vmatpush1.bf16.msra.mxu0 %v4563
        %5005 = vmatprep.subr.bf16.mxu0 0
        %5006 = vmatpush1.bf16.msra.mxu0 %v4564
        %5007 = vmatprep.subr.bf16.mxu0 0
        %5008 = vmatpush1.bf16.msra.mxu0 %v4565
        %5009 = vmatprep.subr.bf16.mxu0 0
        %5010 = vmatpush1.bf16.msra.mxu0 %v4566
        %5011 = vmatprep.subr.bf16.mxu0 0
        %5012 = vmatpush1.bf16.msra.mxu0 %v4567
        %5013 = vmatprep.subr.bf16.mxu0 0
        %5014 = vmatpush1.bf16.msra.mxu0 %v4568
        %5015 = vmatprep.subr.bf16.mxu0 0
        %5016 = vmatpush1.bf16.msra.mxu0 %v4569
        %5017 = vmatprep.subr.bf16.mxu0 0
        %5018 = vmatpush1.bf16.msra.mxu0 %v4570
        %5019 = vmatprep.subr.bf16.mxu0 0
        %5020 = vmatpush1.bf16.msra.mxu0 %v4571
        %5021 = vmatprep.subr.bf16.mxu0 0
        %5022 = vmatpush1.bf16.msra.mxu0 %v4572
        %5023 = vmatprep.mubr.bf16.mxu0 %v3947
        %5024 = vmatmul.mubr.bf16.gmra.mrb[0].mxu0 %v3946
        %v5025 = vpop.f32.mrb[0].mxu0
        %v5026 = vadd.f32 %v4865, %v5025
        %v5027 = vpop.f32.mrb[0].mxu0
        %v5028 = vpop.f32.mrb[0].mxu0
        %v5029 = vadd.f32 %v4868, %v5028
        %v5030 = vpop.f32.mrb[0].mxu0
        %5031 = vmatprep.mubr.bf16.mxu0 %v3956
        %5032 = vmatmul.mubr.bf16.gmra.mrb[0].mxu0 %v3955
        %v5033 = vpop.f32.mrb[0].mxu0
        %v5034 = vadd.f32 %v4873, %v5033
        %v5035 = vpop.f32.mrb[0].mxu0
        %v5036 = vpop.f32.mrb[0].mxu0
        %v5037 = vadd.f32 %v4876, %v5036
        %v5038 = vpop.f32.mrb[0].mxu0
        %5039 = vmatprep.mubr.bf16.mxu0 %v3965
        %5040 = vmatmul.mubr.bf16.gmra.mrb[0].mxu0 %v3964
        %v5041 = vpop.f32.mrb[0].mxu0
        %v5042 = vadd.f32 %v4881, %v5041
        %v5043 = vpop.f32.mrb[0].mxu0
        %v5044 = vpop.f32.mrb[0].mxu0
        %v5045 = vadd.f32 %v4884, %v5044
        %v5046 = vpop.f32.mrb[0].mxu0
        %5047 = vmatprep.mubr.bf16.mxu0 %v3974
        %5048 = vmatmul.mubr.bf16.gmra.mrb[0].mxu0 %v3973
        %v5049 = vpop.f32.mrb[0].mxu0
        %v5050 = vadd.f32 %v4889, %v5049
        %v5051 = vpop.f32.mrb[0].mxu0
        %v5052 = vpop.f32.mrb[0].mxu0
        %v5053 = vadd.f32 %v4892, %v5052
        %v5054 = vpop.f32.mrb[0].mxu0
        %5055 = vmatprep.mubr.bf16.mxu0 %v3983
        %5056 = vmatmul.mubr.bf16.gmra.mrb[0].mxu0 %v3982
        %v5057 = vpop.f32.mrb[0].mxu0
        %v5058 = vadd.f32 %v4897, %v5057
        %v5059 = vpop.f32.mrb[0].mxu0
        %v5060 = vpop.f32.mrb[0].mxu0
        %v5061 = vadd.f32 %v4900, %v5060
        %v5062 = vpop.f32.mrb[0].mxu0
        %5063 = vmatprep.mubr.bf16.mxu0 %v3992
        %5064 = vmatmul.mubr.bf16.gmra.mrb[0].mxu0 %v3991
        %v5065 = vpop.f32.mrb[0].mxu0
        %v5066 = vadd.f32 %v4905, %v5065
        %v5067 = vpop.f32.mrb[0].mxu0
        %v5068 = vpop.f32.mrb[0].mxu0
        %v5069 = vadd.f32 %v4908, %v5068
        %v5070 = vpop.f32.mrb[0].mxu0
        %5071 = vmatprep.mubr.bf16.mxu0 %v4001
        %5072 = vmatmul.mubr.bf16.gmra.mrb[0].mxu0 %v4000
        %v5073 = vpop.f32.mrb[0].mxu0
        %v5074 = vadd.f32 %v4913, %v5073
        %v5075 = vpop.f32.mrb[0].mxu0
        %v5076 = vpop.f32.mrb[0].mxu0
        %v5077 = vadd.f32 %v4916, %v5076
        %v5078 = vpop.f32.mrb[0].mxu0
        %5079 = vmatprep.mubr.bf16.mxu0 %v4010
        %5080 = vmatmul.mubr.bf16.gmra.mrb[0].mxu0 %v4009
        %v5081 = vpop.f32.mrb[0].mxu0
        %v5082 = vadd.f32 %v4921, %v5081
        %v5083 = vpop.f32.mrb[0].mxu0
        %v5084 = vpop.f32.mrb[0].mxu0
        %v5085 = vadd.f32 %v4924, %v5084
        %v5086 = vpop.f32.mrb[0].mxu0
        %5087 = vmatprep.mubr.bf16.mxu0 %v4019
        %5088 = vmatmul.mubr.bf16.gmra.mrb[0].mxu0 %v4018
        %v5089 = vpop.f32.mrb[0].mxu0
        %v5090 = vadd.f32 %v4929, %v5089
        %v5091 = vpop.f32.mrb[0].mxu0
        %v5092 = vpop.f32.mrb[0].mxu0
        %v5093 = vadd.f32 %v4932, %v5092
        %v5094 = vpop.f32.mrb[0].mxu0
        %5095 = vmatprep.mubr.bf16.mxu0 %v4028
        %5096 = vmatmul.mubr.bf16.gmra.mrb[0].mxu0 %v4027
        %v5097 = vpop.f32.mrb[0].mxu0
        %v5098 = vadd.f32 %v4937, %v5097
        %v5099 = vpop.f32.mrb[0].mxu0
        %v5100 = vpop.f32.mrb[0].mxu0
        %v5101 = vadd.f32 %v4940, %v5100
        %v5102 = vpop.f32.mrb[0].mxu0
        %5103 = vmatprep.mubr.bf16.mxu0 %v4037
        %5104 = vmatmul.mubr.bf16.gmra.mrb[0].mxu0 %v4036
        %v5105 = vpop.f32.mrb[0].mxu0
        %v5106 = vadd.f32 %v4945, %v5105
        %v5107 = vpop.f32.mrb[0].mxu0
        %v5108 = vpop.f32.mrb[0].mxu0
        %v5109 = vadd.f32 %v4948, %v5108
        %v5110 = vpop.f32.mrb[0].mxu0
        %5111 = vmatprep.mubr.bf16.mxu0 %v4046
        %5112 = vmatmul.mubr.bf16.gmra.mrb[0].mxu0 %v4045
        %v5113 = vpop.f32.mrb[0].mxu0
        %v5114 = vadd.f32 %v4953, %v5113
        %v5115 = vpop.f32.mrb[0].mxu0
        %v5116 = vpop.f32.mrb[0].mxu0
        %v5117 = vadd.f32 %v4956, %v5116
        %v5118 = vpop.f32.mrb[0].mxu0
        %5119 = vmatprep.mubr.bf16.mxu0 %v4055
        %5120 = vmatmul.mubr.bf16.gmra.mrb[0].mxu0 %v4054
        %v5121 = vpop.f32.mrb[0].mxu0
        %v5122 = vadd.f32 %v4961, %v5121
        %v5123 = vpop.f32.mrb[0].mxu0
        %v5124 = vpop.f32.mrb[0].mxu0
        %v5125 = vadd.f32 %v4964, %v5124
        %v5126 = vpop.f32.mrb[0].mxu0
        %5127 = vmatprep.mubr.bf16.mxu0 %v4064
        %5128 = vmatmul.mubr.bf16.gmra.mrb[0].mxu0 %v4063
        %v5129 = vpop.f32.mrb[0].mxu0
        %v5130 = vadd.f32 %v4969, %v5129
        %v5131 = vpop.f32.mrb[0].mxu0
        %v5132 = vpop.f32.mrb[0].mxu0
        %v5133 = vadd.f32 %v4972, %v5132
        %v5134 = vpop.f32.mrb[0].mxu0
        %5135 = vmatprep.mubr.bf16.mxu0 %v4073
        %5136 = vmatmul.mubr.bf16.gmra.mrb[0].mxu0 %v4072
        %v5137 = vpop.f32.mrb[0].mxu0
        %v5138 = vadd.f32 %v4977, %v5137
        %v5139 = vpop.f32.mrb[0].mxu0
        %v5140 = vpop.f32.mrb[0].mxu0
        %v5141 = vadd.f32 %v4980, %v5140
        %v5142 = vpop.f32.mrb[0].mxu0
        %5143 = vmatprep.mubr.bf16.mxu0 %v4082
        %5144 = vmatmul.mubr.bf16.gmra.mrb[0].mxu0 %v4081
        %v5145 = vpop.f32.mrb[0].mxu0
        %v5146 = vadd.f32 %v4985, %v5145
        %v5147 = vpop.f32.mrb[0].mxu0
        %v5148 = vpop.f32.mrb[0].mxu0
        %v5149 = vadd.f32 %v4988, %v5148
        %v5150 = vpop.f32.mrb[0].mxu0
        %5151 = vdwg.mxu0
        %5152 = vmatprep.subr.bf16.mxu0 0
        %5153 = vmatpush1.bf16.msra.mxu0 %v4573
        %5154 = vmatprep.subr.bf16.mxu0 0
        %5155 = vmatpush1.bf16.msra.mxu0 %v4574
        %5156 = vmatprep.subr.bf16.mxu0 0
        %5157 = vmatpush1.bf16.msra.mxu0 %v4575
        %5158 = vmatprep.subr.bf16.mxu0 0
        %5159 = vmatpush1.bf16.msra.mxu0 %v4576
        %5160 = vmatprep.subr.bf16.mxu0 0
        %5161 = vmatpush1.bf16.msra.mxu0 %v4577
        %5162 = vmatprep.subr.bf16.mxu0 0
        %5163 = vmatpush1.bf16.msra.mxu0 %v4578
        %5164 = vmatprep.subr.bf16.mxu0 0
        %5165 = vmatpush1.bf16.msra.mxu0 %v4579
        %5166 = vmatprep.subr.bf16.mxu0 0
        %5167 = vmatpush1.bf16.msra.mxu0 %v4580
        %5168 = vmatprep.subr.bf16.mxu0 0
        %5169 = vmatpush1.bf16.msra.mxu0 %v4581
        %5170 = vmatprep.subr.bf16.mxu0 0
        %5171 = vmatpush1.bf16.msra.mxu0 %v4582
        %5172 = vmatprep.subr.bf16.mxu0 0
        %5173 = vmatpush1.bf16.msra.mxu0 %v4583
        %5174 = vmatprep.subr.bf16.mxu0 0
        %5175 = vmatpush1.bf16.msra.mxu0 %v4584
        %5176 = vmatprep.subr.bf16.mxu0 0
        %5177 = vmatpush1.bf16.msra.mxu0 %v4585
        %5178 = vmatprep.subr.bf16.mxu0 0
        %5179 = vmatpush1.bf16.msra.mxu0 %v4586
        %5180 = vmatprep.subr.bf16.mxu0 0
        %5181 = vmatpush1.bf16.msra.mxu0 %v4587
        %5182 = vmatprep.subr.bf16.mxu0 0
        %5183 = vmatpush1.bf16.msra.mxu0 %v4588
        %5184 = vmatprep.mubr.bf16.mxu0 %v3949
        %5185 = vmatmul.mubr.bf16.gmra.mrb[0].mxu0 %v3948
        %v5186 = vpop.f32.mrb[0].mxu0
        %v5187 = vadd.f32 %v5026, %v5186
        %v5188 = vpop.f32.mrb[0].mxu0
        %v5189 = vpop.f32.mrb[0].mxu0
        %v5190 = vadd.f32 %v5029, %v5189
        %v5191 = vpop.f32.mrb[0].mxu0
        %5192 = vmatprep.mubr.bf16.mxu0 %v3958
        %5193 = vmatmul.mubr.bf16.gmra.mrb[0].mxu0 %v3957
        %v5194 = vpop.f32.mrb[0].mxu0
        %v5195 = vadd.f32 %v5034, %v5194
        %v5196 = vpop.f32.mrb[0].mxu0
        %v5197 = vpop.f32.mrb[0].mxu0
        %v5198 = vadd.f32 %v5037, %v5197
        %v5199 = vpop.f32.mrb[0].mxu0
        %5200 = vmatprep.mubr.bf16.mxu0 %v3967
        %5201 = vmatmul.mubr.bf16.gmra.mrb[0].mxu0 %v3966
        %v5202 = vpop.f32.mrb[0].mxu0
        %v5203 = vadd.f32 %v5042, %v5202
        %v5204 = vpop.f32.mrb[0].mxu0
        %v5205 = vpop.f32.mrb[0].mxu0
        %v5206 = vadd.f32 %v5045, %v5205
        %v5207 = vpop.f32.mrb[0].mxu0
        %5208 = vmatprep.mubr.bf16.mxu0 %v3976
        %5209 = vmatmul.mubr.bf16.gmra.mrb[0].mxu0 %v3975
        %v5210 = vpop.f32.mrb[0].mxu0
        %v5211 = vadd.f32 %v5050, %v5210
        %v5212 = vpop.f32.mrb[0].mxu0
        %v5213 = vpop.f32.mrb[0].mxu0
        %v5214 = vadd.f32 %v5053, %v5213
        %v5215 = vpop.f32.mrb[0].mxu0
        %5216 = vmatprep.mubr.bf16.mxu0 %v3985
        %5217 = vmatmul.mubr.bf16.gmra.mrb[0].mxu0 %v3984
        %v5218 = vpop.f32.mrb[0].mxu0
        %v5219 = vadd.f32 %v5058, %v5218
        %v5220 = vpop.f32.mrb[0].mxu0
        %v5221 = vpop.f32.mrb[0].mxu0
        %v5222 = vadd.f32 %v5061, %v5221
        %v5223 = vpop.f32.mrb[0].mxu0
        %5224 = vmatprep.mubr.bf16.mxu0 %v3994
        %5225 = vmatmul.mubr.bf16.gmra.mrb[0].mxu0 %v3993
        %v5226 = vpop.f32.mrb[0].mxu0
        %v5227 = vadd.f32 %v5066, %v5226
        %v5228 = vpop.f32.mrb[0].mxu0
        %v5229 = vpop.f32.mrb[0].mxu0
        %v5230 = vadd.f32 %v5069, %v5229
        %v5231 = vpop.f32.mrb[0].mxu0
        %5232 = vmatprep.mubr.bf16.mxu0 %v4003
        %5233 = vmatmul.mubr.bf16.gmra.mrb[0].mxu0 %v4002
        %v5234 = vpop.f32.mrb[0].mxu0
        %v5235 = vadd.f32 %v5074, %v5234
        %v5236 = vpop.f32.mrb[0].mxu0
        %v5237 = vpop.f32.mrb[0].mxu0
        %v5238 = vadd.f32 %v5077, %v5237
        %v5239 = vpop.f32.mrb[0].mxu0
        %5240 = vmatprep.mubr.bf16.mxu0 %v4012
        %5241 = vmatmul.mubr.bf16.gmra.mrb[0].mxu0 %v4011
        %v5242 = vpop.f32.mrb[0].mxu0
        %v5243 = vadd.f32 %v5082, %v5242
        %v5244 = vpop.f32.mrb[0].mxu0
        %v5245 = vpop.f32.mrb[0].mxu0
        %v5246 = vadd.f32 %v5085, %v5245
        %v5247 = vpop.f32.mrb[0].mxu0
        %5248 = vmatprep.mubr.bf16.mxu0 %v4021
        %5249 = vmatmul.mubr.bf16.gmra.mrb[0].mxu0 %v4020
        %v5250 = vpop.f32.mrb[0].mxu0
        %v5251 = vadd.f32 %v5090, %v5250
        %v5252 = vpop.f32.mrb[0].mxu0
        %v5253 = vpop.f32.mrb[0].mxu0
        %v5254 = vadd.f32 %v5093, %v5253
        %v5255 = vpop.f32.mrb[0].mxu0
        %5256 = vmatprep.mubr.bf16.mxu0 %v4030
        %5257 = vmatmul.mubr.bf16.gmra.mrb[0].mxu0 %v4029
        %v5258 = vpop.f32.mrb[0].mxu0
        %v5259 = vadd.f32 %v5098, %v5258
        %v5260 = vpop.f32.mrb[0].mxu0
        %v5261 = vpop.f32.mrb[0].mxu0
        %v5262 = vadd.f32 %v5101, %v5261
        %v5263 = vpop.f32.mrb[0].mxu0
        %5264 = vmatprep.mubr.bf16.mxu0 %v4039
        %5265 = vmatmul.mubr.bf16.gmra.mrb[0].mxu0 %v4038
        %v5266 = vpop.f32.mrb[0].mxu0
        %v5267 = vadd.f32 %v5106, %v5266
        %v5268 = vpop.f32.mrb[0].mxu0
        %v5269 = vpop.f32.mrb[0].mxu0
        %v5270 = vadd.f32 %v5109, %v5269
        %v5271 = vpop.f32.mrb[0].mxu0
        %5272 = vmatprep.mubr.bf16.mxu0 %v4048
        %5273 = vmatmul.mubr.bf16.gmra.mrb[0].mxu0 %v4047
        %v5274 = vpop.f32.mrb[0].mxu0
        %v5275 = vadd.f32 %v5114, %v5274
        %v5276 = vpop.f32.mrb[0].mxu0
        %v5277 = vpop.f32.mrb[0].mxu0
        %v5278 = vadd.f32 %v5117, %v5277
        %v5279 = vpop.f32.mrb[0].mxu0
        %5280 = vmatprep.mubr.bf16.mxu0 %v4057
        %5281 = vmatmul.mubr.bf16.gmra.mrb[0].mxu0 %v4056
        %v5282 = vpop.f32.mrb[0].mxu0
        %v5283 = vadd.f32 %v5122, %v5282
        %v5284 = vpop.f32.mrb[0].mxu0
        %v5285 = vpop.f32.mrb[0].mxu0
        %v5286 = vadd.f32 %v5125, %v5285
        %v5287 = vpop.f32.mrb[0].mxu0
        %5288 = vmatprep.mubr.bf16.mxu0 %v4066
        %5289 = vmatmul.mubr.bf16.gmra.mrb[0].mxu0 %v4065
        %v5290 = vpop.f32.mrb[0].mxu0
        %v5291 = vadd.f32 %v5130, %v5290
        %v5292 = vpop.f32.mrb[0].mxu0
        %v5293 = vpop.f32.mrb[0].mxu0
        %v5294 = vadd.f32 %v5133, %v5293
        %v5295 = vpop.f32.mrb[0].mxu0
        %5296 = vmatprep.mubr.bf16.mxu0 %v4075
        %5297 = vmatmul.mubr.bf16.gmra.mrb[0].mxu0 %v4074
        %v5298 = vpop.f32.mrb[0].mxu0
        %v5299 = vadd.f32 %v5138, %v5298
        %v5300 = vpop.f32.mrb[0].mxu0
        %v5301 = vpop.f32.mrb[0].mxu0
        %v5302 = vadd.f32 %v5141, %v5301
        %v5303 = vpop.f32.mrb[0].mxu0
        %5304 = vmatprep.mubr.bf16.mxu0 %v4084
        %5305 = vmatmul.mubr.bf16.gmra.mrb[0].mxu0 %v4083
        %v5306 = vpop.f32.mrb[0].mxu0
        %v5307 = vadd.f32 %v5146, %v5306
        %v5308 = vpop.f32.mrb[0].mxu0
        %v5309 = vpop.f32.mrb[0].mxu0
        %v5310 = vadd.f32 %v5149, %v5309
        %v5311 = vpop.f32.mrb[0].mxu0
        %5312 = vdwg.mxu0
        %5313 = vmatprep.subr.bf16.mxu0 0
        %5314 = vmatpush1.bf16.msra.mxu0 %v4589
        %5315 = vmatprep.subr.bf16.mxu0 0
        %5316 = vmatpush1.bf16.msra.mxu0 %v4590
        %5317 = vmatprep.subr.bf16.mxu0 0
        %5318 = vmatpush1.bf16.msra.mxu0 %v4591
        %5319 = vmatprep.subr.bf16.mxu0 0
        %5320 = vmatpush1.bf16.msra.mxu0 %v4592
        %5321 = vmatprep.subr.bf16.mxu0 0
        %5322 = vmatpush1.bf16.msra.mxu0 %v4593
        %5323 = vmatprep.subr.bf16.mxu0 0
        %5324 = vmatpush1.bf16.msra.mxu0 %v4594
        %5325 = vmatprep.subr.bf16.mxu0 0
        %5326 = vmatpush1.bf16.msra.mxu0 %v4595
        %5327 = vmatprep.subr.bf16.mxu0 0
        %5328 = vmatpush1.bf16.msra.mxu0 %v4596
        %5329 = vmatprep.subr.bf16.mxu0 0
        %5330 = vmatpush1.bf16.msra.mxu0 0
        %5331 = vmatprep.subr.bf16.mxu0 0
        %5332 = vmatpush1.bf16.msra.mxu0 0
        %5333 = vmatprep.subr.bf16.mxu0 0
        %5334 = vmatpush1.bf16.msra.mxu0 0
        %5335 = vmatprep.subr.bf16.mxu0 0
        %5336 = vmatpush1.bf16.msra.mxu0 0
        %5337 = vmatprep.subr.bf16.mxu0 0
        %5338 = vmatpush1.bf16.msra.mxu0 0
        %5339 = vmatprep.subr.bf16.mxu0 0
        %5340 = vmatpush1.bf16.msra.mxu0 0
        %5341 = vmatprep.subr.bf16.mxu0 0
        %5342 = vmatpush1.bf16.msra.mxu0 0
        %5343 = vmatprep.subr.bf16.mxu0 0
        %5344 = vmatpush1.bf16.msra.mxu0 0
        %5345 = vmatprep.mubr.bf16.mxu0 0
        %5346 = vmatmul.mubr.bf16.gmra.mrb[0].mxu0 %v3950
        %v5347 = vpop.f32.mrb[0].mxu0
        %v5348 = vadd.f32 %v5187, %v5347
        %v5349 = vpop.f32.mrb[0].mxu0
        %v5350 = vpop.f32.mrb[0].mxu0
        %v5351 = vadd.f32 %v5190, %v5350
        %v5352 = vpop.f32.mrb[0].mxu0
        %5353 = vmatprep.mubr.bf16.mxu0 0
        %5354 = vmatmul.mubr.bf16.gmra.mrb[0].mxu0 %v3959
        %v5355 = vpop.f32.mrb[0].mxu0
        %v5356 = vadd.f32 %v5195, %v5355
        %v5357 = vpop.f32.mrb[0].mxu0
        %v5358 = vpop.f32.mrb[0].mxu0
        %v5359 = vadd.f32 %v5198, %v5358
        %v5360 = vpop.f32.mrb[0].mxu0
        %5361 = vmatprep.mubr.bf16.mxu0 0
        %5362 = vmatmul.mubr.bf16.gmra.mrb[0].mxu0 %v3968
        %v5363 = vpop.f32.mrb[0].mxu0
        %v5364 = vadd.f32 %v5203, %v5363
        %v5365 = vpop.f32.mrb[0].mxu0
        %v5366 = vpop.f32.mrb[0].mxu0
        %v5367 = vadd.f32 %v5206, %v5366
        %v5368 = vpop.f32.mrb[0].mxu0
        %5369 = vmatprep.mubr.bf16.mxu0 0
        %5370 = vmatmul.mubr.bf16.gmra.mrb[0].mxu0 %v3977
        %v5371 = vpop.f32.mrb[0].mxu0
        %v5372 = vadd.f32 %v5211, %v5371
        %v5373 = vpop.f32.mrb[0].mxu0
        %v5374 = vpop.f32.mrb[0].mxu0
        %v5375 = vadd.f32 %v5214, %v5374
        %v5376 = vpop.f32.mrb[0].mxu0
        %5377 = vmatprep.mubr.bf16.mxu0 0
        %5378 = vmatmul.mubr.bf16.gmra.mrb[0].mxu0 %v3986
        %v5379 = vpop.f32.mrb[0].mxu0
        %v5380 = vadd.f32 %v5219, %v5379
        %v5381 = vpop.f32.mrb[0].mxu0
        %v5382 = vpop.f32.mrb[0].mxu0
        %v5383 = vadd.f32 %v5222, %v5382
        %v5384 = vpop.f32.mrb[0].mxu0
        %5385 = vmatprep.mubr.bf16.mxu0 0
        %5386 = vmatmul.mubr.bf16.gmra.mrb[0].mxu0 %v3995
        %v5387 = vpop.f32.mrb[0].mxu0
        %v5388 = vadd.f32 %v5227, %v5387
        %v5389 = vpop.f32.mrb[0].mxu0
        %v5390 = vpop.f32.mrb[0].mxu0
        %v5391 = vadd.f32 %v5230, %v5390
        %v5392 = vpop.f32.mrb[0].mxu0
        %5393 = vmatprep.mubr.bf16.mxu0 0
        %5394 = vmatmul.mubr.bf16.gmra.mrb[0].mxu0 %v4004
        %v5395 = vpop.f32.mrb[0].mxu0
        %v5396 = vadd.f32 %v5235, %v5395
        %v5397 = vpop.f32.mrb[0].mxu0
        %v5398 = vpop.f32.mrb[0].mxu0
        %v5399 = vadd.f32 %v5238, %v5398
        %v5400 = vpop.f32.mrb[0].mxu0
        %5401 = vmatprep.mubr.bf16.mxu0 0
        %5402 = vmatmul.mubr.bf16.gmra.mrb[0].mxu0 %v4013
        %v5403 = vpop.f32.mrb[0].mxu0
        %v5404 = vadd.f32 %v5243, %v5403
        %v5405 = vpop.f32.mrb[0].mxu0
        %v5406 = vpop.f32.mrb[0].mxu0
        %v5407 = vadd.f32 %v5246, %v5406
        %v5408 = vpop.f32.mrb[0].mxu0
        %5409 = vmatprep.mubr.bf16.mxu0 0
        %5410 = vmatmul.mubr.bf16.gmra.mrb[0].mxu0 %v4022
        %v5411 = vpop.f32.mrb[0].mxu0
        %v5412 = vadd.f32 %v5251, %v5411
        %v5413 = vpop.f32.mrb[0].mxu0
        %v5414 = vpop.f32.mrb[0].mxu0
        %v5415 = vadd.f32 %v5254, %v5414
        %v5416 = vpop.f32.mrb[0].mxu0
        %5417 = vmatprep.mubr.bf16.mxu0 0
        %5418 = vmatmul.mubr.bf16.gmra.mrb[0].mxu0 %v4031
        %v5419 = vpop.f32.mrb[0].mxu0
        %v5420 = vadd.f32 %v5259, %v5419
        %v5421 = vpop.f32.mrb[0].mxu0
        %v5422 = vpop.f32.mrb[0].mxu0
        %v5423 = vadd.f32 %v5262, %v5422
        %v5424 = vpop.f32.mrb[0].mxu0
        %5425 = vmatprep.mubr.bf16.mxu0 0
        %5426 = vmatmul.mubr.bf16.gmra.mrb[0].mxu0 %v4040
        %v5427 = vpop.f32.mrb[0].mxu0
        %v5428 = vadd.f32 %v5267, %v5427
        %v5429 = vpop.f32.mrb[0].mxu0
        %v5430 = vpop.f32.mrb[0].mxu0
        %v5431 = vadd.f32 %v5270, %v5430
        %v5432 = vpop.f32.mrb[0].mxu0
        %5433 = vmatprep.mubr.bf16.mxu0 0
        %5434 = vmatmul.mubr.bf16.gmra.mrb[0].mxu0 %v4049
        %v5435 = vpop.f32.mrb[0].mxu0
        %v5436 = vadd.f32 %v5275, %v5435
        %v5437 = vpop.f32.mrb[0].mxu0
        %v5438 = vpop.f32.mrb[0].mxu0
        %v5439 = vadd.f32 %v5278, %v5438
        %v5440 = vpop.f32.mrb[0].mxu0
        %5441 = vmatprep.mubr.bf16.mxu0 0
        %5442 = vmatmul.mubr.bf16.gmra.mrb[0].mxu0 %v4058
        %v5443 = vpop.f32.mrb[0].mxu0
        %v5444 = vadd.f32 %v5283, %v5443
        %v5445 = vpop.f32.mrb[0].mxu0
        %v5446 = vpop.f32.mrb[0].mxu0
        %v5447 = vadd.f32 %v5286, %v5446
        %v5448 = vpop.f32.mrb[0].mxu0
        %5449 = vmatprep.mubr.bf16.mxu0 0
        %5450 = vmatmul.mubr.bf16.gmra.mrb[0].mxu0 %v4067
        %v5451 = vpop.f32.mrb[0].mxu0
        %v5452 = vadd.f32 %v5291, %v5451
        %v5453 = vpop.f32.mrb[0].mxu0
        %v5454 = vpop.f32.mrb[0].mxu0
        %v5455 = vadd.f32 %v5294, %v5454
        %v5456 = vpop.f32.mrb[0].mxu0
        %5457 = vmatprep.mubr.bf16.mxu0 0
        %5458 = vmatmul.mubr.bf16.gmra.mrb[0].mxu0 %v4076
        %v5459 = vpop.f32.mrb[0].mxu0
        %v5460 = vadd.f32 %v5299, %v5459
        %v5461 = vpop.f32.mrb[0].mxu0
        %v5462 = vpop.f32.mrb[0].mxu0
        %v5463 = vadd.f32 %v5302, %v5462
        %v5464 = vpop.f32.mrb[0].mxu0
        %5465 = vmatprep.mubr.bf16.mxu0 0
        %5466 = vmatmul.mubr.bf16.gmra.mrb[0].mxu0 %v4085
        %v5467 = vpop.f32.mrb[0].mxu0
        %v5468 = vadd.f32 %v5307, %v5467
        %v5469 = vpop.f32.mrb[0].mxu0
        %v5470 = vpop.f32.mrb[0].mxu0
        %v5471 = vadd.f32 %v5310, %v5470
        %v5472 = vpop.f32.mrb[0].mxu0
        %5473 = vdwg.mxu0
        %v5474 = vsub.f32 0.0, %v5348
        %v5475 = vsub.f32 0.0, %v5351
        %v5476 = vsub.f32 0.0, %v5356
        %v5477 = vsub.f32 0.0, %v5359
        %v5478 = vsub.f32 0.0, %v5364
        %v5479 = vsub.f32 0.0, %v5367
        %v5480 = vsub.f32 0.0, %v5372
        %v5481 = vsub.f32 0.0, %v5375
        %v5482 = vsub.f32 0.0, %v5380
        %v5483 = vsub.f32 0.0, %v5383
        %v5484 = vsub.f32 0.0, %v5388
        %v5485 = vsub.f32 0.0, %v5391
        %v5486 = vsub.f32 0.0, %v5396
        %v5487 = vsub.f32 0.0, %v5399
        %v5488 = vsub.f32 0.0, %v5404
        %v5489 = vsub.f32 0.0, %v5407
        %v5490 = vsub.f32 0.0, %v5412
        %v5491 = vsub.f32 0.0, %v5415
        %v5492 = vsub.f32 0.0, %v5420
        %v5493 = vsub.f32 0.0, %v5423
        %v5494 = vsub.f32 0.0, %v5428
        %v5495 = vsub.f32 0.0, %v5431
        %v5496 = vsub.f32 0.0, %v5436
        %v5497 = vsub.f32 0.0, %v5439
        %v5498 = vsub.f32 0.0, %v5444
        %v5499 = vsub.f32 0.0, %v5447
        %v5500 = vsub.f32 0.0, %v5452
        %v5501 = vsub.f32 0.0, %v5455
        %v5502 = vsub.f32 0.0, %v5460
        %v5503 = vsub.f32 0.0, %v5463
        %v5504 = vsub.f32 0.0, %v5468
        %v5505 = vsub.f32 0.0, %v5471
        %v5506 = vmul.f32 %v5474, 1.442695
        %v5507 = vpow.pop %v5506
        %v5508 = vmul.f32 %v5475, 1.442695
        %v5509 = vpow.pop %v5508
        %v5510 = vmul.f32 %v5476, 1.442695
        %v5511 = vpow.pop %v5510
        %v5512 = vmul.f32 %v5477, 1.442695
        %v5513 = vpow.pop %v5512
        %v5514 = vmul.f32 %v5478, 1.442695
        %v5515 = vpow.pop %v5514
        %v5516 = vmul.f32 %v5479, 1.442695
        %v5517 = vpow.pop %v5516
        %v5518 = vmul.f32 %v5480, 1.442695
        %v5519 = vpow.pop %v5518
        %v5520 = vmul.f32 %v5481, 1.442695
        %v5521 = vpow.pop %v5520
        %v5522 = vmul.f32 %v5482, 1.442695
        %v5523 = vpow.pop %v5522
        %v5524 = vmul.f32 %v5483, 1.442695
        %v5525 = vpow.pop %v5524
        %v5526 = vmul.f32 %v5484, 1.442695
        %v5527 = vpow.pop %v5526
        %v5528 = vmul.f32 %v5485, 1.442695
        %v5529 = vpow.pop %v5528
        %v5530 = vmul.f32 %v5486, 1.442695
        %v5531 = vpow.pop %v5530
        %v5532 = vmul.f32 %v5487, 1.442695
        %v5533 = vpow.pop %v5532
        %v5534 = vmul.f32 %v5488, 1.442695
        %v5535 = vpow.pop %v5534
        %v5536 = vmul.f32 %v5489, 1.442695
        %v5537 = vpow.pop %v5536
        %v5538 = vmul.f32 %v5490, 1.442695
        %v5539 = vpow.pop %v5538
        %v5540 = vmul.f32 %v5491, 1.442695
        %v5541 = vpow.pop %v5540
        %v5542 = vmul.f32 %v5492, 1.442695
        %v5543 = vpow.pop %v5542
        %v5544 = vmul.f32 %v5493, 1.442695
        %v5545 = vpow.pop %v5544
        %v5546 = vmul.f32 %v5494, 1.442695
        %v5547 = vpow.pop %v5546
        %v5548 = vmul.f32 %v5495, 1.442695
        %v5549 = vpow.pop %v5548
        %v5550 = vmul.f32 %v5496, 1.442695
        %v5551 = vpow.pop %v5550
        %v5552 = vmul.f32 %v5497, 1.442695
        %v5553 = vpow.pop %v5552
        %v5554 = vmul.f32 %v5498, 1.442695
        %v5555 = vpow.pop %v5554
        %v5556 = vmul.f32 %v5499, 1.442695
        %v5557 = vpow.pop %v5556
        %v5558 = vmul.f32 %v5500, 1.442695
        %v5559 = vpow.pop %v5558
        %v5560 = vmul.f32 %v5501, 1.442695
        %v5561 = vpow.pop %v5560
        %v5562 = vmul.f32 %v5502, 1.442695
        %v5563 = vpow.pop %v5562
        %v5564 = vmul.f32 %v5503, 1.442695
        %v5565 = vpow.pop %v5564
        %v5566 = vmul.f32 %v5504, 1.442695
        %v5567 = vpow.pop %v5566
        %v5568 = vmul.f32 %v5505, 1.442695
        %v5569 = vpow.pop %v5568
        %v5570 = vadd.f32 %v5507, 1.0
        %v5571 = vadd.f32 %v5509, 1.0
        %v5572 = vadd.f32 %v5511, 1.0
        %v5573 = vadd.f32 %v5513, 1.0
        %v5574 = vadd.f32 %v5515, 1.0
        %v5575 = vadd.f32 %v5517, 1.0
        %v5576 = vadd.f32 %v5519, 1.0
        %v5577 = vadd.f32 %v5521, 1.0
        %v5578 = vadd.f32 %v5523, 1.0
        %v5579 = vadd.f32 %v5525, 1.0
        %v5580 = vadd.f32 %v5527, 1.0
        %v5581 = vadd.f32 %v5529, 1.0
        %v5582 = vadd.f32 %v5531, 1.0
        %v5583 = vadd.f32 %v5533, 1.0
        %v5584 = vadd.f32 %v5535, 1.0
        %v5585 = vadd.f32 %v5537, 1.0
        %v5586 = vadd.f32 %v5539, 1.0
        %v5587 = vadd.f32 %v5541, 1.0
        %v5588 = vadd.f32 %v5543, 1.0
        %v5589 = vadd.f32 %v5545, 1.0
        %v5590 = vadd.f32 %v5547, 1.0
        %v5591 = vadd.f32 %v5549, 1.0
        %v5592 = vadd.f32 %v5551, 1.0
        %v5593 = vadd.f32 %v5553, 1.0
        %v5594 = vadd.f32 %v5555, 1.0
        %v5595 = vadd.f32 %v5557, 1.0
        %v5596 = vadd.f32 %v5559, 1.0
        %v5597 = vadd.f32 %v5561, 1.0
        %v5598 = vadd.f32 %v5563, 1.0
        %v5599 = vadd.f32 %v5565, 1.0
        %v5600 = vadd.f32 %v5567, 1.0
        %v5601 = vadd.f32 %v5569, 1.0
        %v5602 = vrcp.pop %v5570
        %v5603 = vrcp.pop %v5571
        %v5604 = vrcp.pop %v5572
        %v5605 = vrcp.pop %v5573
        %v5606 = vrcp.pop %v5574
        %v5607 = vrcp.pop %v5575
        %v5608 = vrcp.pop %v5576
        %v5609 = vrcp.pop %v5577
        %v5610 = vrcp.pop %v5578
        %v5611 = vrcp.pop %v5579
        %v5612 = vrcp.pop %v5580
        %v5613 = vrcp.pop %v5581
        %v5614 = vrcp.pop %v5582
        %v5615 = vrcp.pop %v5583
        %v5616 = vrcp.pop %v5584
        %v5617 = vrcp.pop %v5585
        %v5618 = vrcp.pop %v5586
        %v5619 = vrcp.pop %v5587
        %v5620 = vrcp.pop %v5588
        %v5621 = vrcp.pop %v5589
        %v5622 = vrcp.pop %v5590
        %v5623 = vrcp.pop %v5591
        %v5624 = vrcp.pop %v5592
        %v5625 = vrcp.pop %v5593
        %v5626 = vrcp.pop %v5594
        %v5627 = vrcp.pop %v5595
        %v5628 = vrcp.pop %v5596
        %v5629 = vrcp.pop %v5597
        %v5630 = vrcp.pop %v5598
        %v5631 = vrcp.pop %v5599
        %v5632 = vrcp.pop %v5600
        %v5633 = vrcp.pop %v5601
        %v5634 = vmul.f32 %v5348, %v5602
        %v5635 = vmul.f32 %v5351, %v5603
        %v5636 = vmul.f32 %v5356, %v5604
        %v5637 = vmul.f32 %v5359, %v5605
        %v5638 = vmul.f32 %v5364, %v5606
        %v5639 = vmul.f32 %v5367, %v5607
        %v5640 = vmul.f32 %v5372, %v5608
        %v5641 = vmul.f32 %v5375, %v5609
        %v5642 = vmul.f32 %v5380, %v5610
        %v5643 = vmul.f32 %v5383, %v5611
        %v5644 = vmul.f32 %v5388, %v5612
        %v5645 = vmul.f32 %v5391, %v5613
        %v5646 = vmul.f32 %v5396, %v5614
        %v5647 = vmul.f32 %v5399, %v5615
        %v5648 = vmul.f32 %v5404, %v5616
        %v5649 = vmul.f32 %v5407, %v5617
        %v5650 = vmul.f32 %v5412, %v5618
        %v5651 = vmul.f32 %v5415, %v5619
        %v5652 = vmul.f32 %v5420, %v5620
        %v5653 = vmul.f32 %v5423, %v5621
        %v5654 = vmul.f32 %v5428, %v5622
        %v5655 = vmul.f32 %v5431, %v5623
        %v5656 = vmul.f32 %v5436, %v5624
        %v5657 = vmul.f32 %v5439, %v5625
        %v5658 = vmul.f32 %v5444, %v5626
        %v5659 = vmul.f32 %v5447, %v5627
        %v5660 = vmul.f32 %v5452, %v5628
        %v5661 = vmul.f32 %v5455, %v5629
        %v5662 = vmul.f32 %v5460, %v5630
        %v5663 = vmul.f32 %v5463, %v5631
        %v5664 = vmul.f32 %v5468, %v5632
        %v5665 = vmul.f32 %v5471, %v5633
        %v5666 = vpack.c.bf16 %v5635, %v5634
        %v5667 = vpack.c.bf16 %v5637, %v5636
        %v5668 = vpack.c.bf16 %v5639, %v5638
        %v5669 = vpack.c.bf16 %v5641, %v5640
        %v5670 = vpack.c.bf16 %v5643, %v5642
        %v5671 = vpack.c.bf16 %v5645, %v5644
        %v5672 = vpack.c.bf16 %v5647, %v5646
        %v5673 = vpack.c.bf16 %v5649, %v5648
        %v5674 = vpack.c.bf16 %v5651, %v5650
        %v5675 = vpack.c.bf16 %v5653, %v5652
        %v5676 = vpack.c.bf16 %v5655, %v5654
        %v5677 = vpack.c.bf16 %v5657, %v5656
        %v5678 = vpack.c.bf16 %v5659, %v5658
        %v5679 = vpack.c.bf16 %v5661, %v5660
        %v5680 = vpack.c.bf16 %v5663, %v5662
        %v5681 = vpack.c.bf16 %v5665, %v5664
        %5682 = vst [vmem:[#allocation3] sm:$0xf] 0
        %5683 = vst [vmem:[#allocation3 + $0x4] sm:$0xf] 0
        %5684 = vst [vmem:[#allocation3 + $0x8] sm:$0x1] 0
        %s5685 = scalar_lea.vmem [#allocation3], 204
        %5686 = vst [vmem:[%s5685] sm:$0xf] 0
        %5687 = vst [vmem:[%s5685 + $0x4] sm:$0xf] 0
        %5688 = vst [vmem:[%s5685 + $0x8] sm:$0x1] 0
        %v5689 = vld [vmem:[#allocation3] sm:$0x1]
        %v5690 = vsel %vm475, 0, %v5689
        %5691 = vst [vmem:[#allocation3] sm:$0x1] %v5690
        %v5692 = vld [vmem:[#allocation3 + $0xc] sm:$0x1]
        %v5693 = vsel %vm475, 0, %v5692
        %5694 = vst [vmem:[#allocation3 + $0xc] sm:$0x1] %v5693
        %v5695 = vld [vmem:[#allocation3 + $0x18] sm:$0x1]
        %v5696 = vsel %vm475, 0, %v5695
        %5697 = vst [vmem:[#allocation3 + $0x18] sm:$0x1] %v5696
        %v5698 = vld [vmem:[#allocation3 + $0x24] sm:$0x1]
        %v5699 = vsel %vm475, 0, %v5698
        %5700 = vst [vmem:[#allocation3 + $0x24] sm:$0x1] %v5699
        %v5701 = vld [vmem:[#allocation3 + $0x30] sm:$0x1]
        %v5702 = vsel %vm475, 0, %v5701
        %5703 = vst [vmem:[#allocation3 + $0x30] sm:$0x1] %v5702
        %v5704 = vld [vmem:[#allocation3 + $0x3c] sm:$0x1]
        %v5705 = vsel %vm475, 0, %v5704
        %5706 = vst [vmem:[#allocation3 + $0x3c] sm:$0x1] %v5705
        %v5707 = vld [vmem:[#allocation3 + $0x48] sm:$0x1]
        %v5708 = vsel %vm475, 0, %v5707
        %5709 = vst [vmem:[#allocation3 + $0x48] sm:$0x1] %v5708
        %v5710 = vld [vmem:[#allocation3 + $0x54] sm:$0x1]
        %v5711 = vsel %vm475, 0, %v5710
        %5712 = vst [vmem:[#allocation3 + $0x54] sm:$0x1] %v5711
        %v5713 = vld [vmem:[#allocation3 + $0x60] sm:$0x1]
        %v5714 = vsel %vm475, 0, %v5713
        %5715 = vst [vmem:[#allocation3 + $0x60] sm:$0x1] %v5714
        %v5716 = vld [vmem:[#allocation3 + $0x6c] sm:$0x1]
        %v5717 = vsel %vm475, 0, %v5716
        %5718 = vst [vmem:[#allocation3 + $0x6c] sm:$0x1] %v5717
        %v5719 = vld [vmem:[#allocation3 + $0x78] sm:$0x1]
        %v5720 = vsel %vm475, 0, %v5719
        %5721 = vst [vmem:[#allocation3 + $0x78] sm:$0x1] %v5720
        %v5722 = vld [vmem:[#allocation3 + $0x84] sm:$0x1]
        %v5723 = vsel %vm475, 0, %v5722
        %5724 = vst [vmem:[#allocation3 + $0x84] sm:$0x1] %v5723
        %v5725 = vld [vmem:[#allocation3 + $0x90] sm:$0x1]
        %v5726 = vsel %vm475, 0, %v5725
        %5727 = vst [vmem:[#allocation3 + $0x90] sm:$0x1] %v5726
        %v5728 = vld [vmem:[#allocation3 + $0x9c] sm:$0x1]
        %v5729 = vsel %vm475, 0, %v5728
        %5730 = vst [vmem:[#allocation3 + $0x9c] sm:$0x1] %v5729
        %v5731 = vld [vmem:[#allocation3 + $0xa8] sm:$0x1]
        %v5732 = vsel %vm475, 0, %v5731
        %5733 = vst [vmem:[#allocation3 + $0xa8] sm:$0x1] %v5732
        %v5734 = vld [vmem:[#allocation3 + $0xb4] sm:$0x1]
        %v5735 = vsel %vm475, 0, %v5734
        %5736 = vst [vmem:[#allocation3 + $0xb4] sm:$0x1] %v5735
        %v5737 = vld [vmem:[#allocation3 + $0xc0] sm:$0x1]
        %v5738 = vsel %vm475, 0, %v5737
        %5739 = vst [vmem:[#allocation3 + $0xc0] sm:$0x1] %v5738
        %v5740 = vld [vmem:[#allocation3 + $0xcc] sm:$0x1]
        %v5741 = vsel %vm475, 0, %v5740
        %5742 = vst [vmem:[#allocation3 + $0xcc] sm:$0x1] %v5741
        %v5743 = vld [vmem:[#allocation3 + $0x8] sm:$0x1]
        %v5744 = vsel %vm531, 0, %v5743
        %5745 = vst [vmem:[#allocation3 + $0x8] sm:$0x1] %v5744
        %v5746 = vld [vmem:[#allocation3 + $0x14] sm:$0x1]
        %v5747 = vsel %vm531, 0, %v5746
        %5748 = vst [vmem:[#allocation3 + $0x14] sm:$0x1] %v5747
        %v5749 = vld [vmem:[#allocation3 + $0x20] sm:$0x1]
        %v5750 = vsel %vm531, 0, %v5749
        %5751 = vst [vmem:[#allocation3 + $0x20] sm:$0x1] %v5750
        %v5752 = vld [vmem:[#allocation3 + $0x2c] sm:$0x1]
        %v5753 = vsel %vm531, 0, %v5752
        %5754 = vst [vmem:[#allocation3 + $0x2c] sm:$0x1] %v5753
        %v5755 = vld [vmem:[#allocation3 + $0x38] sm:$0x1]
        %v5756 = vsel %vm531, 0, %v5755
        %5757 = vst [vmem:[#allocation3 + $0x38] sm:$0x1] %v5756
        %v5758 = vld [vmem:[#allocation3 + $0x44] sm:$0x1]
        %v5759 = vsel %vm531, 0, %v5758
        %5760 = vst [vmem:[#allocation3 + $0x44] sm:$0x1] %v5759
        %v5761 = vld [vmem:[#allocation3 + $0x50] sm:$0x1]
        %v5762 = vsel %vm531, 0, %v5761
        %5763 = vst [vmem:[#allocation3 + $0x50] sm:$0x1] %v5762
        %v5764 = vld [vmem:[#allocation3 + $0x5c] sm:$0x1]
        %v5765 = vsel %vm531, 0, %v5764
        %5766 = vst [vmem:[#allocation3 + $0x5c] sm:$0x1] %v5765
        %v5767 = vld [vmem:[#allocation3 + $0x68] sm:$0x1]
        %v5768 = vsel %vm531, 0, %v5767
        %5769 = vst [vmem:[#allocation3 + $0x68] sm:$0x1] %v5768
        %v5770 = vld [vmem:[#allocation3 + $0x74] sm:$0x1]
        %v5771 = vsel %vm531, 0, %v5770
        %5772 = vst [vmem:[#allocation3 + $0x74] sm:$0x1] %v5771
        %v5773 = vld [vmem:[#allocation3 + $0x80] sm:$0x1]
        %v5774 = vsel %vm531, 0, %v5773
        %5775 = vst [vmem:[#allocation3 + $0x80] sm:$0x1] %v5774
        %v5776 = vld [vmem:[#allocation3 + $0x8c] sm:$0x1]
        %v5777 = vsel %vm531, 0, %v5776
        %5778 = vst [vmem:[#allocation3 + $0x8c] sm:$0x1] %v5777
        %v5779 = vld [vmem:[#allocation3 + $0x98] sm:$0x1]
        %v5780 = vsel %vm531, 0, %v5779
        %5781 = vst [vmem:[#allocation3 + $0x98] sm:$0x1] %v5780
        %v5782 = vld [vmem:[#allocation3 + $0xa4] sm:$0x1]
        %v5783 = vsel %vm531, 0, %v5782
        %5784 = vst [vmem:[#allocation3 + $0xa4] sm:$0x1] %v5783
        %v5785 = vld [vmem:[#allocation3 + $0xb0] sm:$0x1]
        %v5786 = vsel %vm531, 0, %v5785
        %5787 = vst [vmem:[#allocation3 + $0xb0] sm:$0x1] %v5786
        %v5788 = vld [vmem:[#allocation3 + $0xbc] sm:$0x1]
        %v5789 = vsel %vm531, 0, %v5788
        %5790 = vst [vmem:[#allocation3 + $0xbc] sm:$0x1] %v5789
        %v5791 = vld [vmem:[#allocation3 + $0xc8] sm:$0x1]
        %v5792 = vsel %vm531, 0, %v5791
        %5793 = vst [vmem:[#allocation3 + $0xc8] sm:$0x1] %v5792
        %v5794 = vld [vmem:[#allocation3 + $0xd4] sm:$0x1]
        %v5795 = vsel %vm531, 0, %v5794
        %5796 = vst [vmem:[#allocation3 + $0xd4] sm:$0x1] %v5795
        %v5813 = vunpack.c.l.b16 %v5666
        %v5814 = vunpack.c.h.b16 %v5666
        %v5815 = vunpack.c.l.b16 %v5667
        %v5816 = vunpack.c.h.b16 %v5667
        %v5817 = vunpack.c.l.b16 %v5668
        %v5818 = vunpack.c.h.b16 %v5668
        %v5819 = vunpack.c.l.b16 %v5669
        %v5820 = vunpack.c.h.b16 %v5669
        %v5821 = vunpack.c.l.b16 %v5670
        %v5822 = vunpack.c.h.b16 %v5670
        %v5823 = vunpack.c.l.b16 %v5671
        %v5824 = vunpack.c.h.b16 %v5671
        %v5825 = vunpack.c.l.b16 %v5672
        %v5826 = vunpack.c.h.b16 %v5672
        %v5827 = vunpack.c.l.b16 %v5673
        %v5828 = vunpack.c.h.b16 %v5673
        %v5829 = vunpack.c.l.b16 %v5674
        %v5830 = vunpack.c.h.b16 %v5674
        %v5831 = vunpack.c.l.b16 %v5675
        %v5832 = vunpack.c.h.b16 %v5675
        %v5833 = vunpack.c.l.b16 %v5676
        %v5834 = vunpack.c.h.b16 %v5676
        %v5835 = vunpack.c.l.b16 %v5677
        %v5836 = vunpack.c.h.b16 %v5677
        %v5837 = vunpack.c.l.b16 %v5678
        %v5838 = vunpack.c.h.b16 %v5678
        %v5839 = vunpack.c.l.b16 %v5679
        %v5840 = vunpack.c.h.b16 %v5679
        %v5841 = vunpack.c.l.b16 %v5680
        %v5842 = vunpack.c.h.b16 %v5680
        %v5843 = vunpack.c.l.b16 %v5681
        %v5844 = vunpack.c.h.b16 %v5681
        %v5845 = vpack.c.b16 %v5813, %v5813
        %v5846 = vpack.c.b16 %v5814, %v5814
        %v5847 = vpack.c.b16 %v5815, %v5815
        %v5848 = vpack.c.b16 %v5816, %v5816
        %v5849 = vpack.c.b16 %v5817, %v5817
        %v5850 = vpack.c.b16 %v5818, %v5818
        %v5851 = vpack.c.b16 %v5819, %v5819
        %v5852 = vpack.c.b16 %v5820, %v5820
        %v5853 = vpack.c.b16 %v5821, %v5821
        %v5854 = vpack.c.b16 %v5822, %v5822
        %v5855 = vpack.c.b16 %v5823, %v5823
        %v5856 = vpack.c.b16 %v5824, %v5824
        %v5857 = vpack.c.b16 %v5825, %v5825
        %v5858 = vpack.c.b16 %v5826, %v5826
        %v5859 = vpack.c.b16 %v5827, %v5827
        %v5860 = vpack.c.b16 %v5828, %v5828
        %v5861 = vpack.c.b16 %v5829, %v5829
        %v5862 = vpack.c.b16 %v5830, %v5830
        %v5863 = vpack.c.b16 %v5831, %v5831
        %v5864 = vpack.c.b16 %v5832, %v5832
        %v5865 = vpack.c.b16 %v5833, %v5833
        %v5866 = vpack.c.b16 %v5834, %v5834
        %v5867 = vpack.c.b16 %v5835, %v5835
        %v5868 = vpack.c.b16 %v5836, %v5836
        %v5869 = vpack.c.b16 %v5837, %v5837
        %v5870 = vpack.c.b16 %v5838, %v5838
        %v5871 = vpack.c.b16 %v5839, %v5839
        %v5872 = vpack.c.b16 %v5840, %v5840
        %v5873 = vpack.c.b16 %v5841, %v5841
        %v5874 = vpack.c.b16 %v5842, %v5842
        %v5875 = vpack.c.b16 %v5843, %v5843
        %v5876 = vpack.c.b16 %v5844, %v5844
        %v5878 = vshrl.u32 %v5845, 16
        %v5880 = vrot.slane %v5878, 7
        %v5881 = vshll.u32 %v5845, 16
        %v5883 = vor.u32 %v5880, %v5881
        %v5884 = vrot.slane %v5880, 4
        %v5886 = vshrl.u32 %v5846, 16
        %v5888 = vrot.slane %v5886, 7
        %v5889 = vshll.u32 %v5846, 16
        %v5891 = vor.u32 %v5888, %v5889
        %v5892 = vsel %vm667, %v5884, %v5891
        %v5893 = vrot.slane %v5888, 4
        %v5895 = vshrl.u32 %v5847, 16
        %v5897 = vrot.slane %v5895, 7
        %v5898 = vshll.u32 %v5847, 16
        %v5900 = vor.u32 %v5897, %v5898
        %v5901 = vrot.slane %v5897, 4
        %v5903 = vshrl.u32 %v5848, 16
        %v5905 = vrot.slane %v5903, 7
        %v5906 = vshll.u32 %v5848, 16
        %v5908 = vor.u32 %v5905, %v5906
        %v5909 = vsel %vm667, %v5901, %v5908
        %v5910 = vrot.slane %v5905, 4
        %v5912 = vshrl.u32 %v5849, 16
        %v5914 = vrot.slane %v5912, 7
        %v5915 = vshll.u32 %v5849, 16
        %v5917 = vor.u32 %v5914, %v5915
        %v5918 = vrot.slane %v5914, 4
        %v5920 = vshrl.u32 %v5850, 16
        %v5922 = vrot.slane %v5920, 7
        %v5923 = vshll.u32 %v5850, 16
        %v5925 = vor.u32 %v5922, %v5923
        %v5926 = vsel %vm667, %v5918, %v5925
        %v5927 = vrot.slane %v5922, 4
        %v5929 = vshrl.u32 %v5851, 16
        %v5931 = vrot.slane %v5929, 7
        %v5932 = vshll.u32 %v5851, 16
        %v5934 = vor.u32 %v5931, %v5932
        %v5935 = vrot.slane %v5931, 4
        %v5937 = vshrl.u32 %v5852, 16
        %v5939 = vrot.slane %v5937, 7
        %v5940 = vshll.u32 %v5852, 16
        %v5942 = vor.u32 %v5939, %v5940
        %v5943 = vsel %vm667, %v5935, %v5942
        %v5944 = vrot.slane %v5939, 4
        %v5946 = vshrl.u32 %v5853, 16
        %v5948 = vrot.slane %v5946, 7
        %v5949 = vshll.u32 %v5853, 16
        %v5951 = vor.u32 %v5948, %v5949
        %v5952 = vrot.slane %v5948, 4
        %v5954 = vshrl.u32 %v5854, 16
        %v5956 = vrot.slane %v5954, 7
        %v5957 = vshll.u32 %v5854, 16
        %v5959 = vor.u32 %v5956, %v5957
        %v5960 = vsel %vm667, %v5952, %v5959
        %v5961 = vrot.slane %v5956, 4
        %v5963 = vshrl.u32 %v5855, 16
        %v5965 = vrot.slane %v5963, 7
        %v5966 = vshll.u32 %v5855, 16
        %v5968 = vor.u32 %v5965, %v5966
        %v5969 = vrot.slane %v5965, 4
        %v5971 = vshrl.u32 %v5856, 16
        %v5973 = vrot.slane %v5971, 7
        %v5974 = vshll.u32 %v5856, 16
        %v5976 = vor.u32 %v5973, %v5974
        %v5977 = vsel %vm667, %v5969, %v5976
        %v5978 = vrot.slane %v5973, 4
        %v5980 = vshrl.u32 %v5857, 16
        %v5982 = vrot.slane %v5980, 7
        %v5983 = vshll.u32 %v5857, 16
        %v5985 = vor.u32 %v5982, %v5983
        %v5986 = vrot.slane %v5982, 4
        %v5988 = vshrl.u32 %v5858, 16
        %v5990 = vrot.slane %v5988, 7
        %v5991 = vshll.u32 %v5858, 16
        %v5993 = vor.u32 %v5990, %v5991
        %v5994 = vsel %vm667, %v5986, %v5993
        %v5995 = vrot.slane %v5990, 4
        %v5997 = vshrl.u32 %v5859, 16
        %v5999 = vrot.slane %v5997, 7
        %v6000 = vshll.u32 %v5859, 16
        %v6002 = vor.u32 %v5999, %v6000
        %v6003 = vrot.slane %v5999, 4
        %v6005 = vshrl.u32 %v5860, 16
        %v6007 = vrot.slane %v6005, 7
        %v6008 = vshll.u32 %v5860, 16
        %v6010 = vor.u32 %v6007, %v6008
        %v6011 = vsel %vm667, %v6003, %v6010
        %v6012 = vrot.slane %v6007, 4
        %v6014 = vshrl.u32 %v5861, 16
        %v6016 = vrot.slane %v6014, 7
        %v6017 = vshll.u32 %v5861, 16
        %v6019 = vor.u32 %v6016, %v6017
        %v6020 = vrot.slane %v6016, 4
        %v6022 = vshrl.u32 %v5862, 16
        %v6024 = vrot.slane %v6022, 7
        %v6025 = vshll.u32 %v5862, 16
        %v6027 = vor.u32 %v6024, %v6025
        %v6028 = vsel %vm667, %v6020, %v6027
        %v6029 = vrot.slane %v6024, 4
        %v6031 = vshrl.u32 %v5863, 16
        %v6033 = vrot.slane %v6031, 7
        %v6034 = vshll.u32 %v5863, 16
        %v6036 = vor.u32 %v6033, %v6034
        %v6037 = vrot.slane %v6033, 4
        %v6039 = vshrl.u32 %v5864, 16
        %v6041 = vrot.slane %v6039, 7
        %v6042 = vshll.u32 %v5864, 16
        %v6044 = vor.u32 %v6041, %v6042
        %v6045 = vsel %vm667, %v6037, %v6044
        %v6046 = vrot.slane %v6041, 4
        %v6048 = vshrl.u32 %v5865, 16
        %v6050 = vrot.slane %v6048, 7
        %v6051 = vshll.u32 %v5865, 16
        %v6053 = vor.u32 %v6050, %v6051
        %v6054 = vrot.slane %v6050, 4
        %v6056 = vshrl.u32 %v5866, 16
        %v6058 = vrot.slane %v6056, 7
        %v6059 = vshll.u32 %v5866, 16
        %v6061 = vor.u32 %v6058, %v6059
        %v6062 = vsel %vm667, %v6054, %v6061
        %v6063 = vrot.slane %v6058, 4
        %v6065 = vshrl.u32 %v5867, 16
        %v6067 = vrot.slane %v6065, 7
        %v6068 = vshll.u32 %v5867, 16
        %v6070 = vor.u32 %v6067, %v6068
        %v6071 = vrot.slane %v6067, 4
        %v6073 = vshrl.u32 %v5868, 16
        %v6075 = vrot.slane %v6073, 7
        %v6076 = vshll.u32 %v5868, 16
        %v6078 = vor.u32 %v6075, %v6076
        %v6079 = vsel %vm667, %v6071, %v6078
        %v6080 = vrot.slane %v6075, 4
        %v6082 = vshrl.u32 %v5869, 16
        %v6084 = vrot.slane %v6082, 7
        %v6085 = vshll.u32 %v5869, 16
        %v6087 = vor.u32 %v6084, %v6085
        %v6088 = vrot.slane %v6084, 4
        %v6090 = vshrl.u32 %v5870, 16
        %v6092 = vrot.slane %v6090, 7
        %v6093 = vshll.u32 %v5870, 16
        %v6095 = vor.u32 %v6092, %v6093
        %v6096 = vsel %vm667, %v6088, %v6095
        %v6097 = vrot.slane %v6092, 4
        %v6099 = vshrl.u32 %v5871, 16
        %v6101 = vrot.slane %v6099, 7
        %v6102 = vshll.u32 %v5871, 16
        %v6104 = vor.u32 %v6101, %v6102
        %v6105 = vrot.slane %v6101, 4
        %v6107 = vshrl.u32 %v5872, 16
        %v6109 = vrot.slane %v6107, 7
        %v6110 = vshll.u32 %v5872, 16
        %v6112 = vor.u32 %v6109, %v6110
        %v6113 = vsel %vm667, %v6105, %v6112
        %v6114 = vrot.slane %v6109, 4
        %v6116 = vshrl.u32 %v5873, 16
        %v6118 = vrot.slane %v6116, 7
        %v6119 = vshll.u32 %v5873, 16
        %v6121 = vor.u32 %v6118, %v6119
        %v6122 = vrot.slane %v6118, 4
        %v6124 = vshrl.u32 %v5874, 16
        %v6126 = vrot.slane %v6124, 7
        %v6127 = vshll.u32 %v5874, 16
        %v6129 = vor.u32 %v6126, %v6127
        %v6130 = vsel %vm667, %v6122, %v6129
        %v6131 = vrot.slane %v6126, 4
        %v6133 = vshrl.u32 %v5875, 16
        %v6135 = vrot.slane %v6133, 7
        %v6136 = vshll.u32 %v5875, 16
        %v6138 = vor.u32 %v6135, %v6136
        %v6139 = vrot.slane %v6135, 4
        %v6141 = vshrl.u32 %v5876, 16
        %v6143 = vrot.slane %v6141, 7
        %v6144 = vshll.u32 %v5876, 16
        %v6146 = vor.u32 %v6143, %v6144
        %v6147 = vsel %vm667, %v6139, %v6146
        %v6148 = vrot.slane %v6143, 4
        %s6197 = scalar_lea.vmem [#allocation3], 12
        %v6198 = vld [vmem:[%s6197] sm:$0xf]
        %v6199 = vsel %vm990, %v5883, %v6198
        %6200 = vst [vmem:[%s6197] sm:$0xf] %v6199
        %6201 = vst [vmem:[%s6197 + $0x4] sm:$0xf] %v5892
        %v6202 = vld [vmem:[%s6197 + $0x8] sm:$0x1]
        %v6203 = vsel %vm475, %v5893, %v6202
        %6204 = vst [vmem:[%s6197 + $0x8] sm:$0x1] %v6203
        %v6205 = vld [vmem:[%s6197 + $0xc] sm:$0xf]
        %v6206 = vsel %vm990, %v5900, %v6205
        %6207 = vst [vmem:[%s6197 + $0xc] sm:$0xf] %v6206
        %6208 = vst [vmem:[%s6197 + $0x10] sm:$0xf] %v5909
        %v6209 = vld [vmem:[%s6197 + $0x14] sm:$0x1]
        %v6210 = vsel %vm475, %v5910, %v6209
        %6211 = vst [vmem:[%s6197 + $0x14] sm:$0x1] %v6210
        %v6212 = vld [vmem:[%s6197 + $0x18] sm:$0xf]
        %v6213 = vsel %vm990, %v5917, %v6212
        %6214 = vst [vmem:[%s6197 + $0x18] sm:$0xf] %v6213
        %6215 = vst [vmem:[%s6197 + $0x1c] sm:$0xf] %v5926
        %v6216 = vld [vmem:[%s6197 + $0x20] sm:$0x1]
        %v6217 = vsel %vm475, %v5927, %v6216
        %6218 = vst [vmem:[%s6197 + $0x20] sm:$0x1] %v6217
        %v6219 = vld [vmem:[%s6197 + $0x24] sm:$0xf]
        %v6220 = vsel %vm990, %v5934, %v6219
        %6221 = vst [vmem:[%s6197 + $0x24] sm:$0xf] %v6220
        %6222 = vst [vmem:[%s6197 + $0x28] sm:$0xf] %v5943
        %v6223 = vld [vmem:[%s6197 + $0x2c] sm:$0x1]
        %v6224 = vsel %vm475, %v5944, %v6223
        %6225 = vst [vmem:[%s6197 + $0x2c] sm:$0x1] %v6224
        %v6226 = vld [vmem:[%s6197 + $0x30] sm:$0xf]
        %v6227 = vsel %vm990, %v5951, %v6226
        %6228 = vst [vmem:[%s6197 + $0x30] sm:$0xf] %v6227
        %6229 = vst [vmem:[%s6197 + $0x34] sm:$0xf] %v5960
        %v6230 = vld [vmem:[%s6197 + $0x38] sm:$0x1]
        %v6231 = vsel %vm475, %v5961, %v6230
        %6232 = vst [vmem:[%s6197 + $0x38] sm:$0x1] %v6231
        %v6233 = vld [vmem:[%s6197 + $0x3c] sm:$0xf]
        %v6234 = vsel %vm990, %v5968, %v6233
        %6235 = vst [vmem:[%s6197 + $0x3c] sm:$0xf] %v6234
        %6236 = vst [vmem:[%s6197 + $0x40] sm:$0xf] %v5977
        %v6237 = vld [vmem:[%s6197 + $0x44] sm:$0x1]
        %v6238 = vsel %vm475, %v5978, %v6237
        %6239 = vst [vmem:[%s6197 + $0x44] sm:$0x1] %v6238
        %v6240 = vld [vmem:[%s6197 + $0x48] sm:$0xf]
        %v6241 = vsel %vm990, %v5985, %v6240
        %6242 = vst [vmem:[%s6197 + $0x48] sm:$0xf] %v6241
        %6243 = vst [vmem:[%s6197 + $0x4c] sm:$0xf] %v5994
        %v6244 = vld [vmem:[%s6197 + $0x50] sm:$0x1]
        %v6245 = vsel %vm475, %v5995, %v6244
        %6246 = vst [vmem:[%s6197 + $0x50] sm:$0x1] %v6245
        %v6247 = vld [vmem:[%s6197 + $0x54] sm:$0xf]
        %v6248 = vsel %vm990, %v6002, %v6247
        %6249 = vst [vmem:[%s6197 + $0x54] sm:$0xf] %v6248
        %6250 = vst [vmem:[%s6197 + $0x58] sm:$0xf] %v6011
        %v6251 = vld [vmem:[%s6197 + $0x5c] sm:$0x1]
        %v6252 = vsel %vm475, %v6012, %v6251
        %6253 = vst [vmem:[%s6197 + $0x5c] sm:$0x1] %v6252
        %v6254 = vld [vmem:[%s6197 + $0x60] sm:$0xf]
        %v6255 = vsel %vm990, %v6019, %v6254
        %6256 = vst [vmem:[%s6197 + $0x60] sm:$0xf] %v6255
        %6257 = vst [vmem:[%s6197 + $0x64] sm:$0xf] %v6028
        %v6258 = vld [vmem:[%s6197 + $0x68] sm:$0x1]
        %v6259 = vsel %vm475, %v6029, %v6258
        %6260 = vst [vmem:[%s6197 + $0x68] sm:$0x1] %v6259
        %v6261 = vld [vmem:[%s6197 + $0x6c] sm:$0xf]
        %v6262 = vsel %vm990, %v6036, %v6261
        %6263 = vst [vmem:[%s6197 + $0x6c] sm:$0xf] %v6262
        %6264 = vst [vmem:[%s6197 + $0x70] sm:$0xf] %v6045
        %v6265 = vld [vmem:[%s6197 + $0x74] sm:$0x1]
        %v6266 = vsel %vm475, %v6046, %v6265
        %6267 = vst [vmem:[%s6197 + $0x74] sm:$0x1] %v6266
        %v6268 = vld [vmem:[%s6197 + $0x78] sm:$0xf]
        %v6269 = vsel %vm990, %v6053, %v6268
        %6270 = vst [vmem:[%s6197 + $0x78] sm:$0xf] %v6269
        %6271 = vst [vmem:[%s6197 + $0x7c] sm:$0xf] %v6062
        %v6272 = vld [vmem:[%s6197 + $0x80] sm:$0x1]
        %v6273 = vsel %vm475, %v6063, %v6272
        %6274 = vst [vmem:[%s6197 + $0x80] sm:$0x1] %v6273
        %v6275 = vld [vmem:[%s6197 + $0x84] sm:$0xf]
        %v6276 = vsel %vm990, %v6070, %v6275
        %6277 = vst [vmem:[%s6197 + $0x84] sm:$0xf] %v6276
        %6278 = vst [vmem:[%s6197 + $0x88] sm:$0xf] %v6079
        %v6279 = vld [vmem:[%s6197 + $0x8c] sm:$0x1]
        %v6280 = vsel %vm475, %v6080, %v6279
        %6281 = vst [vmem:[%s6197 + $0x8c] sm:$0x1] %v6280
        %v6282 = vld [vmem:[%s6197 + $0x90] sm:$0xf]
        %v6283 = vsel %vm990, %v6087, %v6282
        %6284 = vst [vmem:[%s6197 + $0x90] sm:$0xf] %v6283
        %6285 = vst [vmem:[%s6197 + $0x94] sm:$0xf] %v6096
        %v6286 = vld [vmem:[%s6197 + $0x98] sm:$0x1]
        %v6287 = vsel %vm475, %v6097, %v6286
        %6288 = vst [vmem:[%s6197 + $0x98] sm:$0x1] %v6287
        %v6289 = vld [vmem:[%s6197 + $0x9c] sm:$0xf]
        %v6290 = vsel %vm990, %v6104, %v6289
        %6291 = vst [vmem:[%s6197 + $0x9c] sm:$0xf] %v6290
        %6292 = vst [vmem:[%s6197 + $0xa0] sm:$0xf] %v6113
        %v6293 = vld [vmem:[%s6197 + $0xa4] sm:$0x1]
        %v6294 = vsel %vm475, %v6114, %v6293
        %6295 = vst [vmem:[%s6197 + $0xa4] sm:$0x1] %v6294
        %v6296 = vld [vmem:[%s6197 + $0xa8] sm:$0xf]
        %v6297 = vsel %vm990, %v6121, %v6296
        %6298 = vst [vmem:[%s6197 + $0xa8] sm:$0xf] %v6297
        %6299 = vst [vmem:[%s6197 + $0xac] sm:$0xf] %v6130
        %v6300 = vld [vmem:[%s6197 + $0xb0] sm:$0x1]
        %v6301 = vsel %vm475, %v6131, %v6300
        %6302 = vst [vmem:[%s6197 + $0xb0] sm:$0x1] %v6301
        %v6303 = vld [vmem:[%s6197 + $0xb4] sm:$0xf]
        %v6304 = vsel %vm990, %v6138, %v6303
        %6305 = vst [vmem:[%s6197 + $0xb4] sm:$0xf] %v6304
        %6306 = vst [vmem:[%s6197 + $0xb8] sm:$0xf] %v6147
        %v6307 = vld [vmem:[%s6197 + $0xbc] sm:$0x1]
        %v6308 = vsel %vm475, %v6148, %v6307
        %6309 = vst [vmem:[%s6197 + $0xbc] sm:$0x1] %v6308
        %v6310 = vld [vmem:[#allocation3] sm:$0xf]
        %v6311 = vld [vmem:[#allocation3 + $0x4] sm:$0xf]
        %v6312 = vld [vmem:[#allocation3 + $0xc] sm:$0xf]
        %v6313 = vld [vmem:[#allocation3 + $0x10] sm:$0xf]
        %v6314 = vld [vmem:[#allocation3 + $0x18] sm:$0xf]
        %v6315 = vld [vmem:[#allocation3 + $0x1c] sm:$0xf]
        %v6316 = vld [vmem:[#allocation3 + $0x24] sm:$0xf]
        %v6317 = vld [vmem:[#allocation3 + $0x28] sm:$0xf]
        %v6318 = vld [vmem:[#allocation3 + $0x30] sm:$0xf]
        %v6319 = vld [vmem:[#allocation3 + $0x34] sm:$0xf]
        %v6320 = vld [vmem:[#allocation3 + $0x3c] sm:$0xf]
        %v6321 = vld [vmem:[#allocation3 + $0x40] sm:$0xf]
        %v6322 = vld [vmem:[#allocation3 + $0x48] sm:$0xf]
        %v6323 = vld [vmem:[#allocation3 + $0x4c] sm:$0xf]
        %v6324 = vld [vmem:[#allocation3 + $0x54] sm:$0xf]
        %v6325 = vld [vmem:[#allocation3 + $0x58] sm:$0xf]
        %v6326 = vld [vmem:[#allocation3 + $0x60] sm:$0xf]
        %v6327 = vld [vmem:[#allocation3 + $0x64] sm:$0xf]
        %v6328 = vld [vmem:[#allocation3 + $0x6c] sm:$0xf]
        %v6329 = vld [vmem:[#allocation3 + $0x70] sm:$0xf]
        %v6330 = vld [vmem:[#allocation3 + $0x78] sm:$0xf]
        %v6331 = vld [vmem:[#allocation3 + $0x7c] sm:$0xf]
        %v6332 = vld [vmem:[#allocation3 + $0x84] sm:$0xf]
        %v6333 = vld [vmem:[#allocation3 + $0x88] sm:$0xf]
        %v6334 = vld [vmem:[#allocation3 + $0x90] sm:$0xf]
        %v6335 = vld [vmem:[#allocation3 + $0x94] sm:$0xf]
        %v6336 = vld [vmem:[#allocation3 + $0x9c] sm:$0xf]
        %v6337 = vld [vmem:[#allocation3 + $0xa0] sm:$0xf]
        %v6338 = vld [vmem:[#allocation3 + $0xa8] sm:$0xf]
        %v6339 = vld [vmem:[#allocation3 + $0xac] sm:$0xf]
        %v6340 = vld [vmem:[#allocation3 + $0xb4] sm:$0xf]
        %v6341 = vld [vmem:[#allocation3 + $0xb8] sm:$0xf]
        %v6374 = vunpack.c.l.b16 %v6310
        %v6375 = vunpack.c.l.b16 %v6311
        %v6376 = vunpack.c.l.b16 %v6312
        %v6377 = vunpack.c.l.b16 %v6313
        %v6378 = vunpack.c.l.b16 %v6314
        %v6379 = vunpack.c.l.b16 %v6315
        %v6380 = vunpack.c.l.b16 %v6316
        %v6381 = vunpack.c.l.b16 %v6317
        %v6382 = vunpack.c.l.b16 %v6318
        %v6383 = vunpack.c.l.b16 %v6319
        %v6384 = vunpack.c.l.b16 %v6320
        %v6385 = vunpack.c.l.b16 %v6321
        %v6386 = vunpack.c.l.b16 %v6322
        %v6387 = vunpack.c.l.b16 %v6323
        %v6388 = vunpack.c.l.b16 %v6324
        %v6389 = vunpack.c.l.b16 %v6325
        %v6390 = vunpack.c.l.b16 %v6326
        %v6391 = vunpack.c.l.b16 %v6327
        %v6392 = vunpack.c.l.b16 %v6328
        %v6393 = vunpack.c.l.b16 %v6329
        %v6394 = vunpack.c.l.b16 %v6330
        %v6395 = vunpack.c.l.b16 %v6331
        %v6396 = vunpack.c.l.b16 %v6332
        %v6397 = vunpack.c.l.b16 %v6333
        %v6398 = vunpack.c.l.b16 %v6334
        %v6399 = vunpack.c.l.b16 %v6335
        %v6400 = vunpack.c.l.b16 %v6336
        %v6401 = vunpack.c.l.b16 %v6337
        %v6402 = vunpack.c.l.b16 %v6338
        %v6403 = vunpack.c.l.b16 %v6339
        %v6404 = vunpack.c.l.b16 %v6340
        %v6405 = vunpack.c.l.b16 %v6341
        %v6406 = vpack.c.b16 %v6375, %v6374
        %v6407 = vpack.c.b16 %v6377, %v6376
        %v6408 = vpack.c.b16 %v6379, %v6378
        %v6409 = vpack.c.b16 %v6381, %v6380
        %v6410 = vpack.c.b16 %v6383, %v6382
        %v6411 = vpack.c.b16 %v6385, %v6384
        %v6412 = vpack.c.b16 %v6387, %v6386
        %v6413 = vpack.c.b16 %v6389, %v6388
        %v6414 = vpack.c.b16 %v6391, %v6390
        %v6415 = vpack.c.b16 %v6393, %v6392
        %v6416 = vpack.c.b16 %v6395, %v6394
        %v6417 = vpack.c.b16 %v6397, %v6396
        %v6418 = vpack.c.b16 %v6399, %v6398
        %v6419 = vpack.c.b16 %v6401, %v6400
        %v6420 = vpack.c.b16 %v6403, %v6402
        %v6421 = vpack.c.b16 %v6405, %v6404
        %6438 = vst [vmem:[#allocation4] sm:$0xff] %v6406
        %6439 = vst [vmem:[#allocation4 + $0x48] sm:$0xff] %v6407
        %6440 = vst [vmem:[#allocation4 + $0x90] sm:$0xff] %v6408
        %6441 = vst [vmem:[#allocation4 + $0xd8] sm:$0xff] %v6409
        %6442 = vst [vmem:[#allocation4 + $0x120] sm:$0xff] %v6410
        %6443 = vst [vmem:[#allocation4 + $0x168] sm:$0xff] %v6411
        %6444 = vst [vmem:[#allocation4 + $0x1b0] sm:$0xff] %v6412
        %6445 = vst [vmem:[#allocation4 + $0x1f8] sm:$0xff] %v6413
        %6446 = vst [vmem:[#allocation4 + $0x240] sm:$0xff] %v6414
        %6447 = vst [vmem:[#allocation4 + $0x288] sm:$0xff] %v6415
        %6448 = vst [vmem:[#allocation4 + $0x2d0] sm:$0xff] %v6416
        %6449 = vst [vmem:[#allocation4 + $0x318] sm:$0xff] %v6417
        %6450 = vst [vmem:[#allocation4 + $0x360] sm:$0xff] %v6418
        %6451 = vst [vmem:[#allocation4 + $0x3a8] sm:$0xff] %v6419
        %6452 = vst [vmem:[#allocation4 + $0x3f0] sm:$0xff] %v6420
        %6453 = vst [vmem:[#allocation4 + $0x438] sm:$0xff] %v6421
        %v6454 = vld [vmem:[#allocation3] sm:$0xf]
        %v6455 = vld [vmem:[#allocation3 + $0x4] sm:$0xf]
        %v6456 = vld [vmem:[#allocation3 + $0x8] sm:$0x1]
        %v6457 = vld [vmem:[#allocation3 + $0xc] sm:$0xf]
        %v6458 = vld [vmem:[#allocation3 + $0x10] sm:$0xf]
        %v6459 = vld [vmem:[#allocation3 + $0x14] sm:$0x1]
        %v6460 = vld [vmem:[#allocation3 + $0x18] sm:$0xf]
        %v6461 = vld [vmem:[#allocation3 + $0x1c] sm:$0xf]
        %v6462 = vld [vmem:[#allocation3 + $0x20] sm:$0x1]
        %v6463 = vld [vmem:[#allocation3 + $0x24] sm:$0xf]
        %v6464 = vld [vmem:[#allocation3 + $0x28] sm:$0xf]
        %v6465 = vld [vmem:[#allocation3 + $0x2c] sm:$0x1]
        %v6466 = vld [vmem:[#allocation3 + $0x30] sm:$0xf]
        %v6467 = vld [vmem:[#allocation3 + $0x34] sm:$0xf]
        %v6468 = vld [vmem:[#allocation3 + $0x38] sm:$0x1]
        %v6469 = vld [vmem:[#allocation3 + $0x3c] sm:$0xf]
        %v6470 = vld [vmem:[#allocation3 + $0x40] sm:$0xf]
        %v6471 = vld [vmem:[#allocation3 + $0x44] sm:$0x1]
        %v6472 = vld [vmem:[#allocation3 + $0x48] sm:$0xf]
        %v6473 = vld [vmem:[#allocation3 + $0x4c] sm:$0xf]
        %v6474 = vld [vmem:[#allocation3 + $0x50] sm:$0x1]
        %v6475 = vld [vmem:[#allocation3 + $0x54] sm:$0xf]
        %v6476 = vld [vmem:[#allocation3 + $0x58] sm:$0xf]
        %v6477 = vld [vmem:[#allocation3 + $0x5c] sm:$0x1]
        %v6478 = vld [vmem:[#allocation3 + $0x60] sm:$0xf]
        %v6479 = vld [vmem:[#allocation3 + $0x64] sm:$0xf]
        %v6480 = vld [vmem:[#allocation3 + $0x68] sm:$0x1]
        %v6481 = vld [vmem:[#allocation3 + $0x6c] sm:$0xf]
        %v6482 = vld [vmem:[#allocation3 + $0x70] sm:$0xf]
        %v6483 = vld [vmem:[#allocation3 + $0x74] sm:$0x1]
        %v6484 = vld [vmem:[#allocation3 + $0x78] sm:$0xf]
        %v6485 = vld [vmem:[#allocation3 + $0x7c] sm:$0xf]
        %v6486 = vld [vmem:[#allocation3 + $0x80] sm:$0x1]
        %v6487 = vld [vmem:[#allocation3 + $0x84] sm:$0xf]
        %v6488 = vld [vmem:[#allocation3 + $0x88] sm:$0xf]
        %v6489 = vld [vmem:[#allocation3 + $0x8c] sm:$0x1]
        %v6490 = vld [vmem:[#allocation3 + $0x90] sm:$0xf]
        %v6491 = vld [vmem:[#allocation3 + $0x94] sm:$0xf]
        %v6492 = vld [vmem:[#allocation3 + $0x98] sm:$0x1]
        %v6493 = vld [vmem:[#allocation3 + $0x9c] sm:$0xf]
        %v6494 = vld [vmem:[#allocation3 + $0xa0] sm:$0xf]
        %v6495 = vld [vmem:[#allocation3 + $0xa4] sm:$0x1]
        %v6496 = vld [vmem:[#allocation3 + $0xa8] sm:$0xf]
        %v6497 = vld [vmem:[#allocation3 + $0xac] sm:$0xf]
        %v6498 = vld [vmem:[#allocation3 + $0xb0] sm:$0x1]
        %v6499 = vld [vmem:[#allocation3 + $0xb4] sm:$0xf]
        %v6500 = vld [vmem:[#allocation3 + $0xb8] sm:$0xf]
        %v6501 = vld [vmem:[#allocation3 + $0xbc] sm:$0x1]
        %v6503 = vshrl.u32 %v6454, 16
        %v6505 = vrot.slane %v6503, 4
        %v6506 = vshll.u32 %v6454, 16
        %v6508 = vrot.slane %v6506, 5
        %v6509 = vor.u32 %v6505, %v6508
        %v6510 = vrot.slane %v6509, 4
        %v6512 = vshll.u32 %v6455, 16
        %v6514 = vrot.slane %v6512, 5
        %v6515 = vsel %vm1297, %v6510, %v6514
        %v6516 = vshrl.u32 %v6455, 16
        %v6518 = vrot.slane %v6516, 4
        %v6519 = vor.u32 %v6518, %v6514
        %v6520 = vrot.slane %v6519, 4
        %v6522 = vshll.u32 %v6456, 16
        %v6524 = vrot.slane %v6522, 5
        %v6525 = vsel %vm1297, %v6520, %v6524
        %v6527 = vshrl.u32 %v6457, 16
        %v6529 = vrot.slane %v6527, 4
        %v6530 = vshll.u32 %v6457, 16
        %v6532 = vrot.slane %v6530, 5
        %v6533 = vor.u32 %v6529, %v6532
        %v6534 = vrot.slane %v6533, 4
        %v6536 = vshll.u32 %v6458, 16
        %v6538 = vrot.slane %v6536, 5
        %v6539 = vsel %vm1297, %v6534, %v6538
        %v6540 = vshrl.u32 %v6458, 16
        %v6542 = vrot.slane %v6540, 4
        %v6543 = vor.u32 %v6542, %v6538
        %v6544 = vrot.slane %v6543, 4
        %v6546 = vshll.u32 %v6459, 16
        %v6548 = vrot.slane %v6546, 5
        %v6549 = vsel %vm1297, %v6544, %v6548
        %v6551 = vshrl.u32 %v6460, 16
        %v6553 = vrot.slane %v6551, 4
        %v6554 = vshll.u32 %v6460, 16
        %v6556 = vrot.slane %v6554, 5
        %v6557 = vor.u32 %v6553, %v6556
        %v6558 = vrot.slane %v6557, 4
        %v6560 = vshll.u32 %v6461, 16
        %v6562 = vrot.slane %v6560, 5
        %v6563 = vsel %vm1297, %v6558, %v6562
        %v6564 = vshrl.u32 %v6461, 16
        %v6566 = vrot.slane %v6564, 4
        %v6567 = vor.u32 %v6566, %v6562
        %v6568 = vrot.slane %v6567, 4
        %v6570 = vshll.u32 %v6462, 16
        %v6572 = vrot.slane %v6570, 5
        %v6573 = vsel %vm1297, %v6568, %v6572
        %v6575 = vshrl.u32 %v6463, 16
        %v6577 = vrot.slane %v6575, 4
        %v6578 = vshll.u32 %v6463, 16
        %v6580 = vrot.slane %v6578, 5
        %v6581 = vor.u32 %v6577, %v6580
        %v6582 = vrot.slane %v6581, 4
        %v6584 = vshll.u32 %v6464, 16
        %v6586 = vrot.slane %v6584, 5
        %v6587 = vsel %vm1297, %v6582, %v6586
        %v6588 = vshrl.u32 %v6464, 16
        %v6590 = vrot.slane %v6588, 4
        %v6591 = vor.u32 %v6590, %v6586
        %v6592 = vrot.slane %v6591, 4
        %v6594 = vshll.u32 %v6465, 16
        %v6596 = vrot.slane %v6594, 5
        %v6597 = vsel %vm1297, %v6592, %v6596
        %v6599 = vshrl.u32 %v6466, 16
        %v6601 = vrot.slane %v6599, 4
        %v6602 = vshll.u32 %v6466, 16
        %v6604 = vrot.slane %v6602, 5
        %v6605 = vor.u32 %v6601, %v6604
        %v6606 = vrot.slane %v6605, 4
        %v6608 = vshll.u32 %v6467, 16
        %v6610 = vrot.slane %v6608, 5
        %v6611 = vsel %vm1297, %v6606, %v6610
        %v6612 = vshrl.u32 %v6467, 16
        %v6614 = vrot.slane %v6612, 4
        %v6615 = vor.u32 %v6614, %v6610
        %v6616 = vrot.slane %v6615, 4
        %v6618 = vshll.u32 %v6468, 16
        %v6620 = vrot.slane %v6618, 5
        %v6621 = vsel %vm1297, %v6616, %v6620
        %v6623 = vshrl.u32 %v6469, 16
        %v6625 = vrot.slane %v6623, 4
        %v6626 = vshll.u32 %v6469, 16
        %v6628 = vrot.slane %v6626, 5
        %v6629 = vor.u32 %v6625, %v6628
        %v6630 = vrot.slane %v6629, 4
        %v6632 = vshll.u32 %v6470, 16
        %v6634 = vrot.slane %v6632, 5
        %v6635 = vsel %vm1297, %v6630, %v6634
        %v6636 = vshrl.u32 %v6470, 16
        %v6638 = vrot.slane %v6636, 4
        %v6639 = vor.u32 %v6638, %v6634
        %v6640 = vrot.slane %v6639, 4
        %v6642 = vshll.u32 %v6471, 16
        %v6644 = vrot.slane %v6642, 5
        %v6645 = vsel %vm1297, %v6640, %v6644
        %v6647 = vshrl.u32 %v6472, 16
        %v6649 = vrot.slane %v6647, 4
        %v6650 = vshll.u32 %v6472, 16
        %v6652 = vrot.slane %v6650, 5
        %v6653 = vor.u32 %v6649, %v6652
        %v6654 = vrot.slane %v6653, 4
        %v6656 = vshll.u32 %v6473, 16
        %v6658 = vrot.slane %v6656, 5
        %v6659 = vsel %vm1297, %v6654, %v6658
        %v6660 = vshrl.u32 %v6473, 16
        %v6662 = vrot.slane %v6660, 4
        %v6663 = vor.u32 %v6662, %v6658
        %v6664 = vrot.slane %v6663, 4
        %v6666 = vshll.u32 %v6474, 16
        %v6668 = vrot.slane %v6666, 5
        %v6669 = vsel %vm1297, %v6664, %v6668
        %v6671 = vshrl.u32 %v6475, 16
        %v6673 = vrot.slane %v6671, 4
        %v6674 = vshll.u32 %v6475, 16
        %v6676 = vrot.slane %v6674, 5
        %v6677 = vor.u32 %v6673, %v6676
        %v6678 = vrot.slane %v6677, 4
        %v6680 = vshll.u32 %v6476, 16
        %v6682 = vrot.slane %v6680, 5
        %v6683 = vsel %vm1297, %v6678, %v6682
        %v6684 = vshrl.u32 %v6476, 16
        %v6686 = vrot.slane %v6684, 4
        %v6687 = vor.u32 %v6686, %v6682
        %v6688 = vrot.slane %v6687, 4
        %v6690 = vshll.u32 %v6477, 16
        %v6692 = vrot.slane %v6690, 5
        %v6693 = vsel %vm1297, %v6688, %v6692
        %v6695 = vshrl.u32 %v6478, 16
        %v6697 = vrot.slane %v6695, 4
        %v6698 = vshll.u32 %v6478, 16
        %v6700 = vrot.slane %v6698, 5
        %v6701 = vor.u32 %v6697, %v6700
        %v6702 = vrot.slane %v6701, 4
        %v6704 = vshll.u32 %v6479, 16
        %v6706 = vrot.slane %v6704, 5
        %v6707 = vsel %vm1297, %v6702, %v6706
        %v6708 = vshrl.u32 %v6479, 16
        %v6710 = vrot.slane %v6708, 4
        %v6711 = vor.u32 %v6710, %v6706
        %v6712 = vrot.slane %v6711, 4
        %v6714 = vshll.u32 %v6480, 16
        %v6716 = vrot.slane %v6714, 5
        %v6717 = vsel %vm1297, %v6712, %v6716
        %v6719 = vshrl.u32 %v6481, 16
        %v6721 = vrot.slane %v6719, 4
        %v6722 = vshll.u32 %v6481, 16
        %v6724 = vrot.slane %v6722, 5
        %v6725 = vor.u32 %v6721, %v6724
        %v6726 = vrot.slane %v6725, 4
        %v6728 = vshll.u32 %v6482, 16
        %v6730 = vrot.slane %v6728, 5
        %v6731 = vsel %vm1297, %v6726, %v6730
        %v6732 = vshrl.u32 %v6482, 16
        %v6734 = vrot.slane %v6732, 4
        %v6735 = vor.u32 %v6734, %v6730
        %v6736 = vrot.slane %v6735, 4
        %v6738 = vshll.u32 %v6483, 16
        %v6740 = vrot.slane %v6738, 5
        %v6741 = vsel %vm1297, %v6736, %v6740
        %v6743 = vshrl.u32 %v6484, 16
        %v6745 = vrot.slane %v6743, 4
        %v6746 = vshll.u32 %v6484, 16
        %v6748 = vrot.slane %v6746, 5
        %v6749 = vor.u32 %v6745, %v6748
        %v6750 = vrot.slane %v6749, 4
        %v6752 = vshll.u32 %v6485, 16
        %v6754 = vrot.slane %v6752, 5
        %v6755 = vsel %vm1297, %v6750, %v6754
        %v6756 = vshrl.u32 %v6485, 16
        %v6758 = vrot.slane %v6756, 4
        %v6759 = vor.u32 %v6758, %v6754
        %v6760 = vrot.slane %v6759, 4
        %v6762 = vshll.u32 %v6486, 16
        %v6764 = vrot.slane %v6762, 5
        %v6765 = vsel %vm1297, %v6760, %v6764
        %v6767 = vshrl.u32 %v6487, 16
        %v6769 = vrot.slane %v6767, 4
        %v6770 = vshll.u32 %v6487, 16
        %v6772 = vrot.slane %v6770, 5
        %v6773 = vor.u32 %v6769, %v6772
        %v6774 = vrot.slane %v6773, 4
        %v6776 = vshll.u32 %v6488, 16
        %v6778 = vrot.slane %v6776, 5
        %v6779 = vsel %vm1297, %v6774, %v6778
        %v6780 = vshrl.u32 %v6488, 16
        %v6782 = vrot.slane %v6780, 4
        %v6783 = vor.u32 %v6782, %v6778
        %v6784 = vrot.slane %v6783, 4
        %v6786 = vshll.u32 %v6489, 16
        %v6788 = vrot.slane %v6786, 5
        %v6789 = vsel %vm1297, %v6784, %v6788
        %v6791 = vshrl.u32 %v6490, 16
        %v6793 = vrot.slane %v6791, 4
        %v6794 = vshll.u32 %v6490, 16
        %v6796 = vrot.slane %v6794, 5
        %v6797 = vor.u32 %v6793, %v6796
        %v6798 = vrot.slane %v6797, 4
        %v6800 = vshll.u32 %v6491, 16
        %v6802 = vrot.slane %v6800, 5
        %v6803 = vsel %vm1297, %v6798, %v6802
        %v6804 = vshrl.u32 %v6491, 16
        %v6806 = vrot.slane %v6804, 4
        %v6807 = vor.u32 %v6806, %v6802
        %v6808 = vrot.slane %v6807, 4
        %v6810 = vshll.u32 %v6492, 16
        %v6812 = vrot.slane %v6810, 5
        %v6813 = vsel %vm1297, %v6808, %v6812
        %v6815 = vshrl.u32 %v6493, 16
        %v6817 = vrot.slane %v6815, 4
        %v6818 = vshll.u32 %v6493, 16
        %v6820 = vrot.slane %v6818, 5
        %v6821 = vor.u32 %v6817, %v6820
        %v6822 = vrot.slane %v6821, 4
        %v6824 = vshll.u32 %v6494, 16
        %v6826 = vrot.slane %v6824, 5
        %v6827 = vsel %vm1297, %v6822, %v6826
        %v6828 = vshrl.u32 %v6494, 16
        %v6830 = vrot.slane %v6828, 4
        %v6831 = vor.u32 %v6830, %v6826
        %v6832 = vrot.slane %v6831, 4
        %v6834 = vshll.u32 %v6495, 16
        %v6836 = vrot.slane %v6834, 5
        %v6837 = vsel %vm1297, %v6832, %v6836
        %v6839 = vshrl.u32 %v6496, 16
        %v6841 = vrot.slane %v6839, 4
        %v6842 = vshll.u32 %v6496, 16
        %v6844 = vrot.slane %v6842, 5
        %v6845 = vor.u32 %v6841, %v6844
        %v6846 = vrot.slane %v6845, 4
        %v6848 = vshll.u32 %v6497, 16
        %v6850 = vrot.slane %v6848, 5
        %v6851 = vsel %vm1297, %v6846, %v6850
        %v6852 = vshrl.u32 %v6497, 16
        %v6854 = vrot.slane %v6852, 4
        %v6855 = vor.u32 %v6854, %v6850
        %v6856 = vrot.slane %v6855, 4
        %v6858 = vshll.u32 %v6498, 16
        %v6860 = vrot.slane %v6858, 5
        %v6861 = vsel %vm1297, %v6856, %v6860
        %v6863 = vshrl.u32 %v6499, 16
        %v6865 = vrot.slane %v6863, 4
        %v6866 = vshll.u32 %v6499, 16
        %v6868 = vrot.slane %v6866, 5
        %v6869 = vor.u32 %v6865, %v6868
        %v6870 = vrot.slane %v6869, 4
        %v6872 = vshll.u32 %v6500, 16
        %v6874 = vrot.slane %v6872, 5
        %v6875 = vsel %vm1297, %v6870, %v6874
        %v6876 = vshrl.u32 %v6500, 16
        %v6878 = vrot.slane %v6876, 4
        %v6879 = vor.u32 %v6878, %v6874
        %v6880 = vrot.slane %v6879, 4
        %v6882 = vshll.u32 %v6501, 16
        %v6884 = vrot.slane %v6882, 5
        %v6885 = vsel %vm1297, %v6880, %v6884
        %v6886 = vunpack.c.l.b16 %v6515
        %v6887 = vunpack.c.l.b16 %v6525
        %v6888 = vunpack.c.l.b16 %v6539
        %v6889 = vunpack.c.l.b16 %v6549
        %v6890 = vunpack.c.l.b16 %v6563
        %v6891 = vunpack.c.l.b16 %v6573
        %v6892 = vunpack.c.l.b16 %v6587
        %v6893 = vunpack.c.l.b16 %v6597
        %v6894 = vunpack.c.l.b16 %v6611
        %v6895 = vunpack.c.l.b16 %v6621
        %v6896 = vunpack.c.l.b16 %v6635
        %v6897 = vunpack.c.l.b16 %v6645
        %v6898 = vunpack.c.l.b16 %v6659
        %v6899 = vunpack.c.l.b16 %v6669
        %v6900 = vunpack.c.l.b16 %v6683
        %v6901 = vunpack.c.l.b16 %v6693
        %v6902 = vunpack.c.l.b16 %v6707
        %v6903 = vunpack.c.l.b16 %v6717
        %v6904 = vunpack.c.l.b16 %v6731
        %v6905 = vunpack.c.l.b16 %v6741
        %v6906 = vunpack.c.l.b16 %v6755
        %v6907 = vunpack.c.l.b16 %v6765
        %v6908 = vunpack.c.l.b16 %v6779
        %v6909 = vunpack.c.l.b16 %v6789
        %v6910 = vunpack.c.l.b16 %v6803
        %v6911 = vunpack.c.l.b16 %v6813
        %v6912 = vunpack.c.l.b16 %v6827
        %v6913 = vunpack.c.l.b16 %v6837
        %v6914 = vunpack.c.l.b16 %v6851
        %v6915 = vunpack.c.l.b16 %v6861
        %v6916 = vunpack.c.l.b16 %v6875
        %v6917 = vunpack.c.l.b16 %v6885
        %v6918 = vpack.c.b16 %v6887, %v6886
        %v6919 = vpack.c.b16 %v6889, %v6888
        %v6920 = vpack.c.b16 %v6891, %v6890
        %v6921 = vpack.c.b16 %v6893, %v6892
        %v6922 = vpack.c.b16 %v6895, %v6894
        %v6923 = vpack.c.b16 %v6897, %v6896
        %v6924 = vpack.c.b16 %v6899, %v6898
        %v6925 = vpack.c.b16 %v6901, %v6900
        %v6926 = vpack.c.b16 %v6903, %v6902
        %v6927 = vpack.c.b16 %v6905, %v6904
        %v6928 = vpack.c.b16 %v6907, %v6906
        %v6929 = vpack.c.b16 %v6909, %v6908
        %v6930 = vpack.c.b16 %v6911, %v6910
        %v6931 = vpack.c.b16 %v6913, %v6912
        %v6932 = vpack.c.b16 %v6915, %v6914
        %v6933 = vpack.c.b16 %v6917, %v6916
        %6950 = vst [vmem:[#allocation4 + $0x8] sm:$0xff] %v6918
        %6951 = vst [vmem:[#allocation4 + $0x50] sm:$0xff] %v6919
        %6952 = vst [vmem:[#allocation4 + $0x98] sm:$0xff] %v6920
        %6953 = vst [vmem:[#allocation4 + $0xe0] sm:$0xff] %v6921
        %6954 = vst [vmem:[#allocation4 + $0x128] sm:$0xff] %v6922
        %6955 = vst [vmem:[#allocation4 + $0x170] sm:$0xff] %v6923
        %6956 = vst [vmem:[#allocation4 + $0x1b8] sm:$0xff] %v6924
        %6957 = vst [vmem:[#allocation4 + $0x200] sm:$0xff] %v6925
        %6958 = vst [vmem:[#allocation4 + $0x248] sm:$0xff] %v6926
        %6959 = vst [vmem:[#allocation4 + $0x290] sm:$0xff] %v6927
        %6960 = vst [vmem:[#allocation4 + $0x2d8] sm:$0xff] %v6928
        %6961 = vst [vmem:[#allocation4 + $0x320] sm:$0xff] %v6929
        %6962 = vst [vmem:[#allocation4 + $0x368] sm:$0xff] %v6930
        %6963 = vst [vmem:[#allocation4 + $0x3b0] sm:$0xff] %v6931
        %6964 = vst [vmem:[#allocation4 + $0x3f8] sm:$0xff] %v6932
        %6965 = vst [vmem:[#allocation4 + $0x440] sm:$0xff] %v6933
        %v6966 = vld [vmem:[#allocation3] sm:$0xe]
        %v6967 = vld [vmem:[#allocation3 + $0x4] sm:$0xf]
        %v6968 = vld [vmem:[#allocation3 + $0x8] sm:$0x1]
        %v6969 = vld [vmem:[#allocation3 + $0xc] sm:$0xe]
        %v6970 = vld [vmem:[#allocation3 + $0x10] sm:$0xf]
        %v6971 = vld [vmem:[#allocation3 + $0x14] sm:$0x1]
        %v6972 = vld [vmem:[#allocation3 + $0x18] sm:$0xe]
        %v6973 = vld [vmem:[#allocation3 + $0x1c] sm:$0xf]
        %v6974 = vld [vmem:[#allocation3 + $0x20] sm:$0x1]
        %v6975 = vld [vmem:[#allocation3 + $0x24] sm:$0xe]
        %v6976 = vld [vmem:[#allocation3 + $0x28] sm:$0xf]
        %v6977 = vld [vmem:[#allocation3 + $0x2c] sm:$0x1]
        %v6978 = vld [vmem:[#allocation3 + $0x30] sm:$0xe]
        %v6979 = vld [vmem:[#allocation3 + $0x34] sm:$0xf]
        %v6980 = vld [vmem:[#allocation3 + $0x38] sm:$0x1]
        %v6981 = vld [vmem:[#allocation3 + $0x3c] sm:$0xe]
        %v6982 = vld [vmem:[#allocation3 + $0x40] sm:$0xf]
        %v6983 = vld [vmem:[#allocation3 + $0x44] sm:$0x1]
        %v6984 = vld [vmem:[#allocation3 + $0x48] sm:$0xe]
        %v6985 = vld [vmem:[#allocation3 + $0x4c] sm:$0xf]
        %v6986 = vld [vmem:[#allocation3 + $0x50] sm:$0x1]
        %v6987 = vld [vmem:[#allocation3 + $0x54] sm:$0xe]
        %v6988 = vld [vmem:[#allocation3 + $0x58] sm:$0xf]
        %v6989 = vld [vmem:[#allocation3 + $0x5c] sm:$0x1]
        %v6990 = vld [vmem:[#allocation3 + $0x60] sm:$0xe]
        %v6991 = vld [vmem:[#allocation3 + $0x64] sm:$0xf]
        %v6992 = vld [vmem:[#allocation3 + $0x68] sm:$0x1]
        %v6993 = vld [vmem:[#allocation3 + $0x6c] sm:$0xe]
        %v6994 = vld [vmem:[#allocation3 + $0x70] sm:$0xf]
        %v6995 = vld [vmem:[#allocation3 + $0x74] sm:$0x1]
        %v6996 = vld [vmem:[#allocation3 + $0x78] sm:$0xe]
        %v6997 = vld [vmem:[#allocation3 + $0x7c] sm:$0xf]
        %v6998 = vld [vmem:[#allocation3 + $0x80] sm:$0x1]
        %v6999 = vld [vmem:[#allocation3 + $0x84] sm:$0xe]
        %v7000 = vld [vmem:[#allocation3 + $0x88] sm:$0xf]
        %v7001 = vld [vmem:[#allocation3 + $0x8c] sm:$0x1]
        %v7002 = vld [vmem:[#allocation3 + $0x90] sm:$0xe]
        %v7003 = vld [vmem:[#allocation3 + $0x94] sm:$0xf]
        %v7004 = vld [vmem:[#allocation3 + $0x98] sm:$0x1]
        %v7005 = vld [vmem:[#allocation3 + $0x9c] sm:$0xe]
        %v7006 = vld [vmem:[#allocation3 + $0xa0] sm:$0xf]
        %v7007 = vld [vmem:[#allocation3 + $0xa4] sm:$0x1]
        %v7008 = vld [vmem:[#allocation3 + $0xa8] sm:$0xe]
        %v7009 = vld [vmem:[#allocation3 + $0xac] sm:$0xf]
        %v7010 = vld [vmem:[#allocation3 + $0xb0] sm:$0x1]
        %v7011 = vld [vmem:[#allocation3 + $0xb4] sm:$0xe]
        %v7012 = vld [vmem:[#allocation3 + $0xb8] sm:$0xf]
        %v7013 = vld [vmem:[#allocation3 + $0xbc] sm:$0x1]
        %v7062 = vrot.slane %v6966, 5
        %v7063 = vrot.slane %v7062, 4
        %v7064 = vrot.slane %v6967, 5
        %v7065 = vsel %vm1860, %v7063, %v7064
        %v7066 = vrot.slane %v7064, 4
        %v7067 = vrot.slane %v6968, 5
        %v7068 = vsel %vm1860, %v7066, %v7067
        %v7069 = vrot.slane %v6969, 5
        %v7070 = vrot.slane %v7069, 4
        %v7071 = vrot.slane %v6970, 5
        %v7072 = vsel %vm1860, %v7070, %v7071
        %v7073 = vrot.slane %v7071, 4
        %v7074 = vrot.slane %v6971, 5
        %v7075 = vsel %vm1860, %v7073, %v7074
        %v7076 = vrot.slane %v6972, 5
        %v7077 = vrot.slane %v7076, 4
        %v7078 = vrot.slane %v6973, 5
        %v7079 = vsel %vm1860, %v7077, %v7078
        %v7080 = vrot.slane %v7078, 4
        %v7081 = vrot.slane %v6974, 5
        %v7082 = vsel %vm1860, %v7080, %v7081
        %v7083 = vrot.slane %v6975, 5
        %v7084 = vrot.slane %v7083, 4
        %v7085 = vrot.slane %v6976, 5
        %v7086 = vsel %vm1860, %v7084, %v7085
        %v7087 = vrot.slane %v7085, 4
        %v7088 = vrot.slane %v6977, 5
        %v7089 = vsel %vm1860, %v7087, %v7088
        %v7090 = vrot.slane %v6978, 5
        %v7091 = vrot.slane %v7090, 4
        %v7092 = vrot.slane %v6979, 5
        %v7093 = vsel %vm1860, %v7091, %v7092
        %v7094 = vrot.slane %v7092, 4
        %v7095 = vrot.slane %v6980, 5
        %v7096 = vsel %vm1860, %v7094, %v7095
        %v7097 = vrot.slane %v6981, 5
        %v7098 = vrot.slane %v7097, 4
        %v7099 = vrot.slane %v6982, 5
        %v7100 = vsel %vm1860, %v7098, %v7099
        %v7101 = vrot.slane %v7099, 4
        %v7102 = vrot.slane %v6983, 5
        %v7103 = vsel %vm1860, %v7101, %v7102
        %v7104 = vrot.slane %v6984, 5
        %v7105 = vrot.slane %v7104, 4
        %v7106 = vrot.slane %v6985, 5
        %v7107 = vsel %vm1860, %v7105, %v7106
        %v7108 = vrot.slane %v7106, 4
        %v7109 = vrot.slane %v6986, 5
        %v7110 = vsel %vm1860, %v7108, %v7109
        %v7111 = vrot.slane %v6987, 5
        %v7112 = vrot.slane %v7111, 4
        %v7113 = vrot.slane %v6988, 5
        %v7114 = vsel %vm1860, %v7112, %v7113
        %v7115 = vrot.slane %v7113, 4
        %v7116 = vrot.slane %v6989, 5
        %v7117 = vsel %vm1860, %v7115, %v7116
        %v7118 = vrot.slane %v6990, 5
        %v7119 = vrot.slane %v7118, 4
        %v7120 = vrot.slane %v6991, 5
        %v7121 = vsel %vm1860, %v7119, %v7120
        %v7122 = vrot.slane %v7120, 4
        %v7123 = vrot.slane %v6992, 5
        %v7124 = vsel %vm1860, %v7122, %v7123
        %v7125 = vrot.slane %v6993, 5
        %v7126 = vrot.slane %v7125, 4
        %v7127 = vrot.slane %v6994, 5
        %v7128 = vsel %vm1860, %v7126, %v7127
        %v7129 = vrot.slane %v7127, 4
        %v7130 = vrot.slane %v6995, 5
        %v7131 = vsel %vm1860, %v7129, %v7130
        %v7132 = vrot.slane %v6996, 5
        %v7133 = vrot.slane %v7132, 4
        %v7134 = vrot.slane %v6997, 5
        %v7135 = vsel %vm1860, %v7133, %v7134
        %v7136 = vrot.slane %v7134, 4
        %v7137 = vrot.slane %v6998, 5
        %v7138 = vsel %vm1860, %v7136, %v7137
        %v7139 = vrot.slane %v6999, 5
        %v7140 = vrot.slane %v7139, 4
        %v7141 = vrot.slane %v7000, 5
        %v7142 = vsel %vm1860, %v7140, %v7141
        %v7143 = vrot.slane %v7141, 4
        %v7144 = vrot.slane %v7001, 5
        %v7145 = vsel %vm1860, %v7143, %v7144
        %v7146 = vrot.slane %v7002, 5
        %v7147 = vrot.slane %v7146, 4
        %v7148 = vrot.slane %v7003, 5
        %v7149 = vsel %vm1860, %v7147, %v7148
        %v7150 = vrot.slane %v7148, 4
        %v7151 = vrot.slane %v7004, 5
        %v7152 = vsel %vm1860, %v7150, %v7151
        %v7153 = vrot.slane %v7005, 5
        %v7154 = vrot.slane %v7153, 4
        %v7155 = vrot.slane %v7006, 5
        %v7156 = vsel %vm1860, %v7154, %v7155
        %v7157 = vrot.slane %v7155, 4
        %v7158 = vrot.slane %v7007, 5
        %v7159 = vsel %vm1860, %v7157, %v7158
        %v7160 = vrot.slane %v7008, 5
        %v7161 = vrot.slane %v7160, 4
        %v7162 = vrot.slane %v7009, 5
        %v7163 = vsel %vm1860, %v7161, %v7162
        %v7164 = vrot.slane %v7162, 4
        %v7165 = vrot.slane %v7010, 5
        %v7166 = vsel %vm1860, %v7164, %v7165
        %v7167 = vrot.slane %v7011, 5
        %v7168 = vrot.slane %v7167, 4
        %v7169 = vrot.slane %v7012, 5
        %v7170 = vsel %vm1860, %v7168, %v7169
        %v7171 = vrot.slane %v7169, 4
        %v7172 = vrot.slane %v7013, 5
        %v7173 = vsel %vm1860, %v7171, %v7172
        %v7174 = vunpack.c.l.b16 %v7065
        %v7175 = vunpack.c.l.b16 %v7068
        %v7176 = vunpack.c.l.b16 %v7072
        %v7177 = vunpack.c.l.b16 %v7075
        %v7178 = vunpack.c.l.b16 %v7079
        %v7179 = vunpack.c.l.b16 %v7082
        %v7180 = vunpack.c.l.b16 %v7086
        %v7181 = vunpack.c.l.b16 %v7089
        %v7182 = vunpack.c.l.b16 %v7093
        %v7183 = vunpack.c.l.b16 %v7096
        %v7184 = vunpack.c.l.b16 %v7100
        %v7185 = vunpack.c.l.b16 %v7103
        %v7186 = vunpack.c.l.b16 %v7107
        %v7187 = vunpack.c.l.b16 %v7110
        %v7188 = vunpack.c.l.b16 %v7114
        %v7189 = vunpack.c.l.b16 %v7117
        %v7190 = vunpack.c.l.b16 %v7121
        %v7191 = vunpack.c.l.b16 %v7124
        %v7192 = vunpack.c.l.b16 %v7128
        %v7193 = vunpack.c.l.b16 %v7131
        %v7194 = vunpack.c.l.b16 %v7135
        %v7195 = vunpack.c.l.b16 %v7138
        %v7196 = vunpack.c.l.b16 %v7142
        %v7197 = vunpack.c.l.b16 %v7145
        %v7198 = vunpack.c.l.b16 %v7149
        %v7199 = vunpack.c.l.b16 %v7152
        %v7200 = vunpack.c.l.b16 %v7156
        %v7201 = vunpack.c.l.b16 %v7159
        %v7202 = vunpack.c.l.b16 %v7163
        %v7203 = vunpack.c.l.b16 %v7166
        %v7204 = vunpack.c.l.b16 %v7170
        %v7205 = vunpack.c.l.b16 %v7173
        %v7206 = vpack.c.b16 %v7175, %v7174
        %v7207 = vpack.c.b16 %v7177, %v7176
        %v7208 = vpack.c.b16 %v7179, %v7178
        %v7209 = vpack.c.b16 %v7181, %v7180
        %v7210 = vpack.c.b16 %v7183, %v7182
        %v7211 = vpack.c.b16 %v7185, %v7184
        %v7212 = vpack.c.b16 %v7187, %v7186
        %v7213 = vpack.c.b16 %v7189, %v7188
        %v7214 = vpack.c.b16 %v7191, %v7190
        %v7215 = vpack.c.b16 %v7193, %v7192
        %v7216 = vpack.c.b16 %v7195, %v7194
        %v7217 = vpack.c.b16 %v7197, %v7196
        %v7218 = vpack.c.b16 %v7199, %v7198
        %v7219 = vpack.c.b16 %v7201, %v7200
        %v7220 = vpack.c.b16 %v7203, %v7202
        %v7221 = vpack.c.b16 %v7205, %v7204
        %7238 = vst [vmem:[#allocation4 + $0x10] sm:$0xff] %v7206
        %7239 = vst [vmem:[#allocation4 + $0x58] sm:$0xff] %v7207
        %7240 = vst [vmem:[#allocation4 + $0xa0] sm:$0xff] %v7208
        %7241 = vst [vmem:[#allocation4 + $0xe8] sm:$0xff] %v7209
        %7242 = vst [vmem:[#allocation4 + $0x130] sm:$0xff] %v7210
        %7243 = vst [vmem:[#allocation4 + $0x178] sm:$0xff] %v7211
        %7244 = vst [vmem:[#allocation4 + $0x1c0] sm:$0xff] %v7212
        %7245 = vst [vmem:[#allocation4 + $0x208] sm:$0xff] %v7213
        %7246 = vst [vmem:[#allocation4 + $0x250] sm:$0xff] %v7214
        %7247 = vst [vmem:[#allocation4 + $0x298] sm:$0xff] %v7215
        %7248 = vst [vmem:[#allocation4 + $0x2e0] sm:$0xff] %v7216
        %7249 = vst [vmem:[#allocation4 + $0x328] sm:$0xff] %v7217
        %7250 = vst [vmem:[#allocation4 + $0x370] sm:$0xff] %v7218
        %7251 = vst [vmem:[#allocation4 + $0x3b8] sm:$0xff] %v7219
        %7252 = vst [vmem:[#allocation4 + $0x400] sm:$0xff] %v7220
        %7253 = vst [vmem:[#allocation4 + $0x448] sm:$0xff] %v7221
        %v7254 = vld [vmem:[%s6197] sm:$0xf]
        %v7255 = vld [vmem:[%s6197 + $0x4] sm:$0xf]
        %v7256 = vld [vmem:[%s6197 + $0xc] sm:$0xf]
        %v7257 = vld [vmem:[%s6197 + $0x10] sm:$0xf]
        %v7258 = vld [vmem:[%s6197 + $0x18] sm:$0xf]
        %v7259 = vld [vmem:[%s6197 + $0x1c] sm:$0xf]
        %v7260 = vld [vmem:[%s6197 + $0x24] sm:$0xf]
        %v7261 = vld [vmem:[%s6197 + $0x28] sm:$0xf]
        %v7262 = vld [vmem:[%s6197 + $0x30] sm:$0xf]
        %v7263 = vld [vmem:[%s6197 + $0x34] sm:$0xf]
        %v7264 = vld [vmem:[%s6197 + $0x3c] sm:$0xf]
        %v7265 = vld [vmem:[%s6197 + $0x40] sm:$0xf]
        %v7266 = vld [vmem:[%s6197 + $0x48] sm:$0xf]
        %v7267 = vld [vmem:[%s6197 + $0x4c] sm:$0xf]
        %v7268 = vld [vmem:[%s6197 + $0x54] sm:$0xf]
        %v7269 = vld [vmem:[%s6197 + $0x58] sm:$0xf]
        %v7270 = vld [vmem:[%s6197 + $0x60] sm:$0xf]
        %v7271 = vld [vmem:[%s6197 + $0x64] sm:$0xf]
        %v7272 = vld [vmem:[%s6197 + $0x6c] sm:$0xf]
        %v7273 = vld [vmem:[%s6197 + $0x70] sm:$0xf]
        %v7274 = vld [vmem:[%s6197 + $0x78] sm:$0xf]
        %v7275 = vld [vmem:[%s6197 + $0x7c] sm:$0xf]
        %v7276 = vld [vmem:[%s6197 + $0x84] sm:$0xf]
        %v7277 = vld [vmem:[%s6197 + $0x88] sm:$0xf]
        %v7278 = vld [vmem:[%s6197 + $0x90] sm:$0xf]
        %v7279 = vld [vmem:[%s6197 + $0x94] sm:$0xf]
        %v7280 = vld [vmem:[%s6197 + $0x9c] sm:$0xf]
        %v7281 = vld [vmem:[%s6197 + $0xa0] sm:$0xf]
        %v7282 = vld [vmem:[%s6197 + $0xa8] sm:$0xf]
        %v7283 = vld [vmem:[%s6197 + $0xac] sm:$0xf]
        %v7284 = vld [vmem:[%s6197 + $0xb4] sm:$0xf]
        %v7285 = vld [vmem:[%s6197 + $0xb8] sm:$0xf]
        %v7318 = vunpack.c.l.b16 %v7254
        %v7319 = vunpack.c.l.b16 %v7255
        %v7320 = vunpack.c.l.b16 %v7256
        %v7321 = vunpack.c.l.b16 %v7257
        %v7322 = vunpack.c.l.b16 %v7258
        %v7323 = vunpack.c.l.b16 %v7259
        %v7324 = vunpack.c.l.b16 %v7260
        %v7325 = vunpack.c.l.b16 %v7261
        %v7326 = vunpack.c.l.b16 %v7262
        %v7327 = vunpack.c.l.b16 %v7263
        %v7328 = vunpack.c.l.b16 %v7264
        %v7329 = vunpack.c.l.b16 %v7265
        %v7330 = vunpack.c.l.b16 %v7266
        %v7331 = vunpack.c.l.b16 %v7267
        %v7332 = vunpack.c.l.b16 %v7268
        %v7333 = vunpack.c.l.b16 %v7269
        %v7334 = vunpack.c.l.b16 %v7270
        %v7335 = vunpack.c.l.b16 %v7271
        %v7336 = vunpack.c.l.b16 %v7272
        %v7337 = vunpack.c.l.b16 %v7273
        %v7338 = vunpack.c.l.b16 %v7274
        %v7339 = vunpack.c.l.b16 %v7275
        %v7340 = vunpack.c.l.b16 %v7276
        %v7341 = vunpack.c.l.b16 %v7277
        %v7342 = vunpack.c.l.b16 %v7278
        %v7343 = vunpack.c.l.b16 %v7279
        %v7344 = vunpack.c.l.b16 %v7280
        %v7345 = vunpack.c.l.b16 %v7281
        %v7346 = vunpack.c.l.b16 %v7282
        %v7347 = vunpack.c.l.b16 %v7283
        %v7348 = vunpack.c.l.b16 %v7284
        %v7349 = vunpack.c.l.b16 %v7285
        %v7350 = vpack.c.b16 %v7319, %v7318
        %v7351 = vpack.c.b16 %v7321, %v7320
        %v7352 = vpack.c.b16 %v7323, %v7322
        %v7353 = vpack.c.b16 %v7325, %v7324
        %v7354 = vpack.c.b16 %v7327, %v7326
        %v7355 = vpack.c.b16 %v7329, %v7328
        %v7356 = vpack.c.b16 %v7331, %v7330
        %v7357 = vpack.c.b16 %v7333, %v7332
        %v7358 = vpack.c.b16 %v7335, %v7334
        %v7359 = vpack.c.b16 %v7337, %v7336
        %v7360 = vpack.c.b16 %v7339, %v7338
        %v7361 = vpack.c.b16 %v7341, %v7340
        %v7362 = vpack.c.b16 %v7343, %v7342
        %v7363 = vpack.c.b16 %v7345, %v7344
        %v7364 = vpack.c.b16 %v7347, %v7346
        %v7365 = vpack.c.b16 %v7349, %v7348
        %7382 = vst [vmem:[#allocation4 + $0x18] sm:$0xff] %v7350
        %7383 = vst [vmem:[#allocation4 + $0x60] sm:$0xff] %v7351
        %7384 = vst [vmem:[#allocation4 + $0xa8] sm:$0xff] %v7352
        %7385 = vst [vmem:[#allocation4 + $0xf0] sm:$0xff] %v7353
        %7386 = vst [vmem:[#allocation4 + $0x138] sm:$0xff] %v7354
        %7387 = vst [vmem:[#allocation4 + $0x180] sm:$0xff] %v7355
        %7388 = vst [vmem:[#allocation4 + $0x1c8] sm:$0xff] %v7356
        %7389 = vst [vmem:[#allocation4 + $0x210] sm:$0xff] %v7357
        %7390 = vst [vmem:[#allocation4 + $0x258] sm:$0xff] %v7358
        %7391 = vst [vmem:[#allocation4 + $0x2a0] sm:$0xff] %v7359
        %7392 = vst [vmem:[#allocation4 + $0x2e8] sm:$0xff] %v7360
        %7393 = vst [vmem:[#allocation4 + $0x330] sm:$0xff] %v7361
        %7394 = vst [vmem:[#allocation4 + $0x378] sm:$0xff] %v7362
        %7395 = vst [vmem:[#allocation4 + $0x3c0] sm:$0xff] %v7363
        %7396 = vst [vmem:[#allocation4 + $0x408] sm:$0xff] %v7364
        %7397 = vst [vmem:[#allocation4 + $0x450] sm:$0xff] %v7365
        %v7398 = vld [vmem:[%s6197] sm:$0xf]
        %v7399 = vld [vmem:[%s6197 + $0x4] sm:$0xf]
        %v7400 = vld [vmem:[%s6197 + $0x8] sm:$0x1]
        %v7401 = vld [vmem:[%s6197 + $0xc] sm:$0xf]
        %v7402 = vld [vmem:[%s6197 + $0x10] sm:$0xf]
        %v7403 = vld [vmem:[%s6197 + $0x14] sm:$0x1]
        %v7404 = vld [vmem:[%s6197 + $0x18] sm:$0xf]
        %v7405 = vld [vmem:[%s6197 + $0x1c] sm:$0xf]
        %v7406 = vld [vmem:[%s6197 + $0x20] sm:$0x1]
        %v7407 = vld [vmem:[%s6197 + $0x24] sm:$0xf]
        %v7408 = vld [vmem:[%s6197 + $0x28] sm:$0xf]
        %v7409 = vld [vmem:[%s6197 + $0x2c] sm:$0x1]
        %v7410 = vld [vmem:[%s6197 + $0x30] sm:$0xf]
        %v7411 = vld [vmem:[%s6197 + $0x34] sm:$0xf]
        %v7412 = vld [vmem:[%s6197 + $0x38] sm:$0x1]
        %v7413 = vld [vmem:[%s6197 + $0x3c] sm:$0xf]
        %v7414 = vld [vmem:[%s6197 + $0x40] sm:$0xf]
        %v7415 = vld [vmem:[%s6197 + $0x44] sm:$0x1]
        %v7416 = vld [vmem:[%s6197 + $0x48] sm:$0xf]
        %v7417 = vld [vmem:[%s6197 + $0x4c] sm:$0xf]
        %v7418 = vld [vmem:[%s6197 + $0x50] sm:$0x1]
        %v7419 = vld [vmem:[%s6197 + $0x54] sm:$0xf]
        %v7420 = vld [vmem:[%s6197 + $0x58] sm:$0xf]
        %v7421 = vld [vmem:[%s6197 + $0x5c] sm:$0x1]
        %v7422 = vld [vmem:[%s6197 + $0x60] sm:$0xf]
        %v7423 = vld [vmem:[%s6197 + $0x64] sm:$0xf]
        %v7424 = vld [vmem:[%s6197 + $0x68] sm:$0x1]
        %v7425 = vld [vmem:[%s6197 + $0x6c] sm:$0xf]
        %v7426 = vld [vmem:[%s6197 + $0x70] sm:$0xf]
        %v7427 = vld [vmem:[%s6197 + $0x74] sm:$0x1]
        %v7428 = vld [vmem:[%s6197 + $0x78] sm:$0xf]
        %v7429 = vld [vmem:[%s6197 + $0x7c] sm:$0xf]
        %v7430 = vld [vmem:[%s6197 + $0x80] sm:$0x1]
        %v7431 = vld [vmem:[%s6197 + $0x84] sm:$0xf]
        %v7432 = vld [vmem:[%s6197 + $0x88] sm:$0xf]
        %v7433 = vld [vmem:[%s6197 + $0x8c] sm:$0x1]
        %v7434 = vld [vmem:[%s6197 + $0x90] sm:$0xf]
        %v7435 = vld [vmem:[%s6197 + $0x94] sm:$0xf]
        %v7436 = vld [vmem:[%s6197 + $0x98] sm:$0x1]
        %v7437 = vld [vmem:[%s6197 + $0x9c] sm:$0xf]
        %v7438 = vld [vmem:[%s6197 + $0xa0] sm:$0xf]
        %v7439 = vld [vmem:[%s6197 + $0xa4] sm:$0x1]
        %v7440 = vld [vmem:[%s6197 + $0xa8] sm:$0xf]
        %v7441 = vld [vmem:[%s6197 + $0xac] sm:$0xf]
        %v7442 = vld [vmem:[%s6197 + $0xb0] sm:$0x1]
        %v7443 = vld [vmem:[%s6197 + $0xb4] sm:$0xf]
        %v7444 = vld [vmem:[%s6197 + $0xb8] sm:$0xf]
        %v7445 = vld [vmem:[%s6197 + $0xbc] sm:$0x1]
        %v7447 = vshrl.u32 %v7398, 16
        %v7449 = vrot.slane %v7447, 4
        %v7450 = vshll.u32 %v7398, 16
        %v7452 = vrot.slane %v7450, 5
        %v7453 = vor.u32 %v7449, %v7452
        %v7454 = vrot.slane %v7453, 4
        %v7456 = vshll.u32 %v7399, 16
        %v7458 = vrot.slane %v7456, 5
        %v7459 = vsel %vm1297, %v7454, %v7458
        %v7460 = vshrl.u32 %v7399, 16
        %v7462 = vrot.slane %v7460, 4
        %v7463 = vor.u32 %v7462, %v7458
        %v7464 = vrot.slane %v7463, 4
        %v7466 = vshll.u32 %v7400, 16
        %v7468 = vrot.slane %v7466, 5
        %v7469 = vsel %vm1297, %v7464, %v7468
        %v7471 = vshrl.u32 %v7401, 16
        %v7473 = vrot.slane %v7471, 4
        %v7474 = vshll.u32 %v7401, 16
        %v7476 = vrot.slane %v7474, 5
        %v7477 = vor.u32 %v7473, %v7476
        %v7478 = vrot.slane %v7477, 4
        %v7480 = vshll.u32 %v7402, 16
        %v7482 = vrot.slane %v7480, 5
        %v7483 = vsel %vm1297, %v7478, %v7482
        %v7484 = vshrl.u32 %v7402, 16
        %v7486 = vrot.slane %v7484, 4
        %v7487 = vor.u32 %v7486, %v7482
        %v7488 = vrot.slane %v7487, 4
        %v7490 = vshll.u32 %v7403, 16
        %v7492 = vrot.slane %v7490, 5
        %v7493 = vsel %vm1297, %v7488, %v7492
        %v7495 = vshrl.u32 %v7404, 16
        %v7497 = vrot.slane %v7495, 4
        %v7498 = vshll.u32 %v7404, 16
        %v7500 = vrot.slane %v7498, 5
        %v7501 = vor.u32 %v7497, %v7500
        %v7502 = vrot.slane %v7501, 4
        %v7504 = vshll.u32 %v7405, 16
        %v7506 = vrot.slane %v7504, 5
        %v7507 = vsel %vm1297, %v7502, %v7506
        %v7508 = vshrl.u32 %v7405, 16
        %v7510 = vrot.slane %v7508, 4
        %v7511 = vor.u32 %v7510, %v7506
        %v7512 = vrot.slane %v7511, 4
        %v7514 = vshll.u32 %v7406, 16
        %v7516 = vrot.slane %v7514, 5
        %v7517 = vsel %vm1297, %v7512, %v7516
        %v7519 = vshrl.u32 %v7407, 16
        %v7521 = vrot.slane %v7519, 4
        %v7522 = vshll.u32 %v7407, 16
        %v7524 = vrot.slane %v7522, 5
        %v7525 = vor.u32 %v7521, %v7524
        %v7526 = vrot.slane %v7525, 4
        %v7528 = vshll.u32 %v7408, 16
        %v7530 = vrot.slane %v7528, 5
        %v7531 = vsel %vm1297, %v7526, %v7530
        %v7532 = vshrl.u32 %v7408, 16
        %v7534 = vrot.slane %v7532, 4
        %v7535 = vor.u32 %v7534, %v7530
        %v7536 = vrot.slane %v7535, 4
        %v7538 = vshll.u32 %v7409, 16
        %v7540 = vrot.slane %v7538, 5
        %v7541 = vsel %vm1297, %v7536, %v7540
        %v7543 = vshrl.u32 %v7410, 16
        %v7545 = vrot.slane %v7543, 4
        %v7546 = vshll.u32 %v7410, 16
        %v7548 = vrot.slane %v7546, 5
        %v7549 = vor.u32 %v7545, %v7548
        %v7550 = vrot.slane %v7549, 4
        %v7552 = vshll.u32 %v7411, 16
        %v7554 = vrot.slane %v7552, 5
        %v7555 = vsel %vm1297, %v7550, %v7554
        %v7556 = vshrl.u32 %v7411, 16
        %v7558 = vrot.slane %v7556, 4
        %v7559 = vor.u32 %v7558, %v7554
        %v7560 = vrot.slane %v7559, 4
        %v7562 = vshll.u32 %v7412, 16
        %v7564 = vrot.slane %v7562, 5
        %v7565 = vsel %vm1297, %v7560, %v7564
        %v7567 = vshrl.u32 %v7413, 16
        %v7569 = vrot.slane %v7567, 4
        %v7570 = vshll.u32 %v7413, 16
        %v7572 = vrot.slane %v7570, 5
        %v7573 = vor.u32 %v7569, %v7572
        %v7574 = vrot.slane %v7573, 4
        %v7576 = vshll.u32 %v7414, 16
        %v7578 = vrot.slane %v7576, 5
        %v7579 = vsel %vm1297, %v7574, %v7578
        %v7580 = vshrl.u32 %v7414, 16
        %v7582 = vrot.slane %v7580, 4
        %v7583 = vor.u32 %v7582, %v7578
        %v7584 = vrot.slane %v7583, 4
        %v7586 = vshll.u32 %v7415, 16
        %v7588 = vrot.slane %v7586, 5
        %v7589 = vsel %vm1297, %v7584, %v7588
        %v7591 = vshrl.u32 %v7416, 16
        %v7593 = vrot.slane %v7591, 4
        %v7594 = vshll.u32 %v7416, 16
        %v7596 = vrot.slane %v7594, 5
        %v7597 = vor.u32 %v7593, %v7596
        %v7598 = vrot.slane %v7597, 4
        %v7600 = vshll.u32 %v7417, 16
        %v7602 = vrot.slane %v7600, 5
        %v7603 = vsel %vm1297, %v7598, %v7602
        %v7604 = vshrl.u32 %v7417, 16
        %v7606 = vrot.slane %v7604, 4
        %v7607 = vor.u32 %v7606, %v7602
        %v7608 = vrot.slane %v7607, 4
        %v7610 = vshll.u32 %v7418, 16
        %v7612 = vrot.slane %v7610, 5
        %v7613 = vsel %vm1297, %v7608, %v7612
        %v7615 = vshrl.u32 %v7419, 16
        %v7617 = vrot.slane %v7615, 4
        %v7618 = vshll.u32 %v7419, 16
        %v7620 = vrot.slane %v7618, 5
        %v7621 = vor.u32 %v7617, %v7620
        %v7622 = vrot.slane %v7621, 4
        %v7624 = vshll.u32 %v7420, 16
        %v7626 = vrot.slane %v7624, 5
        %v7627 = vsel %vm1297, %v7622, %v7626
        %v7628 = vshrl.u32 %v7420, 16
        %v7630 = vrot.slane %v7628, 4
        %v7631 = vor.u32 %v7630, %v7626
        %v7632 = vrot.slane %v7631, 4
        %v7634 = vshll.u32 %v7421, 16
        %v7636 = vrot.slane %v7634, 5
        %v7637 = vsel %vm1297, %v7632, %v7636
        %v7639 = vshrl.u32 %v7422, 16
        %v7641 = vrot.slane %v7639, 4
        %v7642 = vshll.u32 %v7422, 16
        %v7644 = vrot.slane %v7642, 5
        %v7645 = vor.u32 %v7641, %v7644
        %v7646 = vrot.slane %v7645, 4
        %v7648 = vshll.u32 %v7423, 16
        %v7650 = vrot.slane %v7648, 5
        %v7651 = vsel %vm1297, %v7646, %v7650
        %v7652 = vshrl.u32 %v7423, 16
        %v7654 = vrot.slane %v7652, 4
        %v7655 = vor.u32 %v7654, %v7650
        %v7656 = vrot.slane %v7655, 4
        %v7658 = vshll.u32 %v7424, 16
        %v7660 = vrot.slane %v7658, 5
        %v7661 = vsel %vm1297, %v7656, %v7660
        %v7663 = vshrl.u32 %v7425, 16
        %v7665 = vrot.slane %v7663, 4
        %v7666 = vshll.u32 %v7425, 16
        %v7668 = vrot.slane %v7666, 5
        %v7669 = vor.u32 %v7665, %v7668
        %v7670 = vrot.slane %v7669, 4
        %v7672 = vshll.u32 %v7426, 16
        %v7674 = vrot.slane %v7672, 5
        %v7675 = vsel %vm1297, %v7670, %v7674
        %v7676 = vshrl.u32 %v7426, 16
        %v7678 = vrot.slane %v7676, 4
        %v7679 = vor.u32 %v7678, %v7674
        %v7680 = vrot.slane %v7679, 4
        %v7682 = vshll.u32 %v7427, 16
        %v7684 = vrot.slane %v7682, 5
        %v7685 = vsel %vm1297, %v7680, %v7684
        %v7687 = vshrl.u32 %v7428, 16
        %v7689 = vrot.slane %v7687, 4
        %v7690 = vshll.u32 %v7428, 16
        %v7692 = vrot.slane %v7690, 5
        %v7693 = vor.u32 %v7689, %v7692
        %v7694 = vrot.slane %v7693, 4
        %v7696 = vshll.u32 %v7429, 16
        %v7698 = vrot.slane %v7696, 5
        %v7699 = vsel %vm1297, %v7694, %v7698
        %v7700 = vshrl.u32 %v7429, 16
        %v7702 = vrot.slane %v7700, 4
        %v7703 = vor.u32 %v7702, %v7698
        %v7704 = vrot.slane %v7703, 4
        %v7706 = vshll.u32 %v7430, 16
        %v7708 = vrot.slane %v7706, 5
        %v7709 = vsel %vm1297, %v7704, %v7708
        %v7711 = vshrl.u32 %v7431, 16
        %v7713 = vrot.slane %v7711, 4
        %v7714 = vshll.u32 %v7431, 16
        %v7716 = vrot.slane %v7714, 5
        %v7717 = vor.u32 %v7713, %v7716
        %v7718 = vrot.slane %v7717, 4
        %v7720 = vshll.u32 %v7432, 16
        %v7722 = vrot.slane %v7720, 5
        %v7723 = vsel %vm1297, %v7718, %v7722
        %v7724 = vshrl.u32 %v7432, 16
        %v7726 = vrot.slane %v7724, 4
        %v7727 = vor.u32 %v7726, %v7722
        %v7728 = vrot.slane %v7727, 4
        %v7730 = vshll.u32 %v7433, 16
        %v7732 = vrot.slane %v7730, 5
        %v7733 = vsel %vm1297, %v7728, %v7732
        %v7735 = vshrl.u32 %v7434, 16
        %v7737 = vrot.slane %v7735, 4
        %v7738 = vshll.u32 %v7434, 16
        %v7740 = vrot.slane %v7738, 5
        %v7741 = vor.u32 %v7737, %v7740
        %v7742 = vrot.slane %v7741, 4
        %v7744 = vshll.u32 %v7435, 16
        %v7746 = vrot.slane %v7744, 5
        %v7747 = vsel %vm1297, %v7742, %v7746
        %v7748 = vshrl.u32 %v7435, 16
        %v7750 = vrot.slane %v7748, 4
        %v7751 = vor.u32 %v7750, %v7746
        %v7752 = vrot.slane %v7751, 4
        %v7754 = vshll.u32 %v7436, 16
        %v7756 = vrot.slane %v7754, 5
        %v7757 = vsel %vm1297, %v7752, %v7756
        %v7759 = vshrl.u32 %v7437, 16
        %v7761 = vrot.slane %v7759, 4
        %v7762 = vshll.u32 %v7437, 16
        %v7764 = vrot.slane %v7762, 5
        %v7765 = vor.u32 %v7761, %v7764
        %v7766 = vrot.slane %v7765, 4
        %v7768 = vshll.u32 %v7438, 16
        %v7770 = vrot.slane %v7768, 5
        %v7771 = vsel %vm1297, %v7766, %v7770
        %v7772 = vshrl.u32 %v7438, 16
        %v7774 = vrot.slane %v7772, 4
        %v7775 = vor.u32 %v7774, %v7770
        %v7776 = vrot.slane %v7775, 4
        %v7778 = vshll.u32 %v7439, 16
        %v7780 = vrot.slane %v7778, 5
        %v7781 = vsel %vm1297, %v7776, %v7780
        %v7783 = vshrl.u32 %v7440, 16
        %v7785 = vrot.slane %v7783, 4
        %v7786 = vshll.u32 %v7440, 16
        %v7788 = vrot.slane %v7786, 5
        %v7789 = vor.u32 %v7785, %v7788
        %v7790 = vrot.slane %v7789, 4
        %v7792 = vshll.u32 %v7441, 16
        %v7794 = vrot.slane %v7792, 5
        %v7795 = vsel %vm1297, %v7790, %v7794
        %v7796 = vshrl.u32 %v7441, 16
        %v7798 = vrot.slane %v7796, 4
        %v7799 = vor.u32 %v7798, %v7794
        %v7800 = vrot.slane %v7799, 4
        %v7802 = vshll.u32 %v7442, 16
        %v7804 = vrot.slane %v7802, 5
        %v7805 = vsel %vm1297, %v7800, %v7804
        %v7807 = vshrl.u32 %v7443, 16
        %v7809 = vrot.slane %v7807, 4
        %v7810 = vshll.u32 %v7443, 16
        %v7812 = vrot.slane %v7810, 5
        %v7813 = vor.u32 %v7809, %v7812
        %v7814 = vrot.slane %v7813, 4
        %v7816 = vshll.u32 %v7444, 16
        %v7818 = vrot.slane %v7816, 5
        %v7819 = vsel %vm1297, %v7814, %v7818
        %v7820 = vshrl.u32 %v7444, 16
        %v7822 = vrot.slane %v7820, 4
        %v7823 = vor.u32 %v7822, %v7818
        %v7824 = vrot.slane %v7823, 4
        %v7826 = vshll.u32 %v7445, 16
        %v7828 = vrot.slane %v7826, 5
        %v7829 = vsel %vm1297, %v7824, %v7828
        %v7830 = vunpack.c.l.b16 %v7459
        %v7831 = vunpack.c.l.b16 %v7469
        %v7832 = vunpack.c.l.b16 %v7483
        %v7833 = vunpack.c.l.b16 %v7493
        %v7834 = vunpack.c.l.b16 %v7507
        %v7835 = vunpack.c.l.b16 %v7517
        %v7836 = vunpack.c.l.b16 %v7531
        %v7837 = vunpack.c.l.b16 %v7541
        %v7838 = vunpack.c.l.b16 %v7555
        %v7839 = vunpack.c.l.b16 %v7565
        %v7840 = vunpack.c.l.b16 %v7579
        %v7841 = vunpack.c.l.b16 %v7589
        %v7842 = vunpack.c.l.b16 %v7603
        %v7843 = vunpack.c.l.b16 %v7613
        %v7844 = vunpack.c.l.b16 %v7627
        %v7845 = vunpack.c.l.b16 %v7637
        %v7846 = vunpack.c.l.b16 %v7651
        %v7847 = vunpack.c.l.b16 %v7661
        %v7848 = vunpack.c.l.b16 %v7675
        %v7849 = vunpack.c.l.b16 %v7685
        %v7850 = vunpack.c.l.b16 %v7699
        %v7851 = vunpack.c.l.b16 %v7709
        %v7852 = vunpack.c.l.b16 %v7723
        %v7853 = vunpack.c.l.b16 %v7733
        %v7854 = vunpack.c.l.b16 %v7747
        %v7855 = vunpack.c.l.b16 %v7757
        %v7856 = vunpack.c.l.b16 %v7771
        %v7857 = vunpack.c.l.b16 %v7781
        %v7858 = vunpack.c.l.b16 %v7795
        %v7859 = vunpack.c.l.b16 %v7805
        %v7860 = vunpack.c.l.b16 %v7819
        %v7861 = vunpack.c.l.b16 %v7829
        %v7862 = vpack.c.b16 %v7831, %v7830
        %v7863 = vpack.c.b16 %v7833, %v7832
        %v7864 = vpack.c.b16 %v7835, %v7834
        %v7865 = vpack.c.b16 %v7837, %v7836
        %v7866 = vpack.c.b16 %v7839, %v7838
        %v7867 = vpack.c.b16 %v7841, %v7840
        %v7868 = vpack.c.b16 %v7843, %v7842
        %v7869 = vpack.c.b16 %v7845, %v7844
        %v7870 = vpack.c.b16 %v7847, %v7846
        %v7871 = vpack.c.b16 %v7849, %v7848
        %v7872 = vpack.c.b16 %v7851, %v7850
        %v7873 = vpack.c.b16 %v7853, %v7852
        %v7874 = vpack.c.b16 %v7855, %v7854
        %v7875 = vpack.c.b16 %v7857, %v7856
        %v7876 = vpack.c.b16 %v7859, %v7858
        %v7877 = vpack.c.b16 %v7861, %v7860
        %7894 = vst [vmem:[#allocation4 + $0x20] sm:$0xff] %v7862
        %7895 = vst [vmem:[#allocation4 + $0x68] sm:$0xff] %v7863
        %7896 = vst [vmem:[#allocation4 + $0xb0] sm:$0xff] %v7864
        %7897 = vst [vmem:[#allocation4 + $0xf8] sm:$0xff] %v7865
        %7898 = vst [vmem:[#allocation4 + $0x140] sm:$0xff] %v7866
        %7899 = vst [vmem:[#allocation4 + $0x188] sm:$0xff] %v7867
        %7900 = vst [vmem:[#allocation4 + $0x1d0] sm:$0xff] %v7868
        %7901 = vst [vmem:[#allocation4 + $0x218] sm:$0xff] %v7869
        %7902 = vst [vmem:[#allocation4 + $0x260] sm:$0xff] %v7870
        %7903 = vst [vmem:[#allocation4 + $0x2a8] sm:$0xff] %v7871
        %7904 = vst [vmem:[#allocation4 + $0x2f0] sm:$0xff] %v7872
        %7905 = vst [vmem:[#allocation4 + $0x338] sm:$0xff] %v7873
        %7906 = vst [vmem:[#allocation4 + $0x380] sm:$0xff] %v7874
        %7907 = vst [vmem:[#allocation4 + $0x3c8] sm:$0xff] %v7875
        %7908 = vst [vmem:[#allocation4 + $0x410] sm:$0xff] %v7876
        %7909 = vst [vmem:[#allocation4 + $0x458] sm:$0xff] %v7877
        %v7910 = vld [vmem:[%s6197] sm:$0xe]
        %v7911 = vld [vmem:[%s6197 + $0x4] sm:$0xf]
        %v7912 = vld [vmem:[%s6197 + $0x8] sm:$0x1]
        %v7913 = vld [vmem:[%s6197 + $0xc] sm:$0xe]
        %v7914 = vld [vmem:[%s6197 + $0x10] sm:$0xf]
        %v7915 = vld [vmem:[%s6197 + $0x14] sm:$0x1]
        %v7916 = vld [vmem:[%s6197 + $0x18] sm:$0xe]
        %v7917 = vld [vmem:[%s6197 + $0x1c] sm:$0xf]
        %v7918 = vld [vmem:[%s6197 + $0x20] sm:$0x1]
        %v7919 = vld [vmem:[%s6197 + $0x24] sm:$0xe]
        %v7920 = vld [vmem:[%s6197 + $0x28] sm:$0xf]
        %v7921 = vld [vmem:[%s6197 + $0x2c] sm:$0x1]
        %v7922 = vld [vmem:[%s6197 + $0x30] sm:$0xe]
        %v7923 = vld [vmem:[%s6197 + $0x34] sm:$0xf]
        %v7924 = vld [vmem:[%s6197 + $0x38] sm:$0x1]
        %v7925 = vld [vmem:[%s6197 + $0x3c] sm:$0xe]
        %v7926 = vld [vmem:[%s6197 + $0x40] sm:$0xf]
        %v7927 = vld [vmem:[%s6197 + $0x44] sm:$0x1]
        %v7928 = vld [vmem:[%s6197 + $0x48] sm:$0xe]
        %v7929 = vld [vmem:[%s6197 + $0x4c] sm:$0xf]
        %v7930 = vld [vmem:[%s6197 + $0x50] sm:$0x1]
        %v7931 = vld [vmem:[%s6197 + $0x54] sm:$0xe]
        %v7932 = vld [vmem:[%s6197 + $0x58] sm:$0xf]
        %v7933 = vld [vmem:[%s6197 + $0x5c] sm:$0x1]
        %v7934 = vld [vmem:[%s6197 + $0x60] sm:$0xe]
        %v7935 = vld [vmem:[%s6197 + $0x64] sm:$0xf]
        %v7936 = vld [vmem:[%s6197 + $0x68] sm:$0x1]
        %v7937 = vld [vmem:[%s6197 + $0x6c] sm:$0xe]
        %v7938 = vld [vmem:[%s6197 + $0x70] sm:$0xf]
        %v7939 = vld [vmem:[%s6197 + $0x74] sm:$0x1]
        %v7940 = vld [vmem:[%s6197 + $0x78] sm:$0xe]
        %v7941 = vld [vmem:[%s6197 + $0x7c] sm:$0xf]
        %v7942 = vld [vmem:[%s6197 + $0x80] sm:$0x1]
        %v7943 = vld [vmem:[%s6197 + $0x84] sm:$0xe]
        %v7944 = vld [vmem:[%s6197 + $0x88] sm:$0xf]
        %v7945 = vld [vmem:[%s6197 + $0x8c] sm:$0x1]
        %v7946 = vld [vmem:[%s6197 + $0x90] sm:$0xe]
        %v7947 = vld [vmem:[%s6197 + $0x94] sm:$0xf]
        %v7948 = vld [vmem:[%s6197 + $0x98] sm:$0x1]
        %v7949 = vld [vmem:[%s6197 + $0x9c] sm:$0xe]
        %v7950 = vld [vmem:[%s6197 + $0xa0] sm:$0xf]
        %v7951 = vld [vmem:[%s6197 + $0xa4] sm:$0x1]
        %v7952 = vld [vmem:[%s6197 + $0xa8] sm:$0xe]
        %v7953 = vld [vmem:[%s6197 + $0xac] sm:$0xf]
        %v7954 = vld [vmem:[%s6197 + $0xb0] sm:$0x1]
        %v7955 = vld [vmem:[%s6197 + $0xb4] sm:$0xe]
        %v7956 = vld [vmem:[%s6197 + $0xb8] sm:$0xf]
        %v7957 = vld [vmem:[%s6197 + $0xbc] sm:$0x1]
        %v8006 = vrot.slane %v7910, 5
        %v8007 = vrot.slane %v8006, 4
        %v8008 = vrot.slane %v7911, 5
        %v8009 = vsel %vm1860, %v8007, %v8008
        %v8010 = vrot.slane %v8008, 4
        %v8011 = vrot.slane %v7912, 5
        %v8012 = vsel %vm1860, %v8010, %v8011
        %v8013 = vrot.slane %v7913, 5
        %v8014 = vrot.slane %v8013, 4
        %v8015 = vrot.slane %v7914, 5
        %v8016 = vsel %vm1860, %v8014, %v8015
        %v8017 = vrot.slane %v8015, 4
        %v8018 = vrot.slane %v7915, 5
        %v8019 = vsel %vm1860, %v8017, %v8018
        %v8020 = vrot.slane %v7916, 5
        %v8021 = vrot.slane %v8020, 4
        %v8022 = vrot.slane %v7917, 5
        %v8023 = vsel %vm1860, %v8021, %v8022
        %v8024 = vrot.slane %v8022, 4
        %v8025 = vrot.slane %v7918, 5
        %v8026 = vsel %vm1860, %v8024, %v8025
        %v8027 = vrot.slane %v7919, 5
        %v8028 = vrot.slane %v8027, 4
        %v8029 = vrot.slane %v7920, 5
        %v8030 = vsel %vm1860, %v8028, %v8029
        %v8031 = vrot.slane %v8029, 4
        %v8032 = vrot.slane %v7921, 5
        %v8033 = vsel %vm1860, %v8031, %v8032
        %v8034 = vrot.slane %v7922, 5
        %v8035 = vrot.slane %v8034, 4
        %v8036 = vrot.slane %v7923, 5
        %v8037 = vsel %vm1860, %v8035, %v8036
        %v8038 = vrot.slane %v8036, 4
        %v8039 = vrot.slane %v7924, 5
        %v8040 = vsel %vm1860, %v8038, %v8039
        %v8041 = vrot.slane %v7925, 5
        %v8042 = vrot.slane %v8041, 4
        %v8043 = vrot.slane %v7926, 5
        %v8044 = vsel %vm1860, %v8042, %v8043
        %v8045 = vrot.slane %v8043, 4
        %v8046 = vrot.slane %v7927, 5
        %v8047 = vsel %vm1860, %v8045, %v8046
        %v8048 = vrot.slane %v7928, 5
        %v8049 = vrot.slane %v8048, 4
        %v8050 = vrot.slane %v7929, 5
        %v8051 = vsel %vm1860, %v8049, %v8050
        %v8052 = vrot.slane %v8050, 4
        %v8053 = vrot.slane %v7930, 5
        %v8054 = vsel %vm1860, %v8052, %v8053
        %v8055 = vrot.slane %v7931, 5
        %v8056 = vrot.slane %v8055, 4
        %v8057 = vrot.slane %v7932, 5
        %v8058 = vsel %vm1860, %v8056, %v8057
        %v8059 = vrot.slane %v8057, 4
        %v8060 = vrot.slane %v7933, 5
        %v8061 = vsel %vm1860, %v8059, %v8060
        %v8062 = vrot.slane %v7934, 5
        %v8063 = vrot.slane %v8062, 4
        %v8064 = vrot.slane %v7935, 5
        %v8065 = vsel %vm1860, %v8063, %v8064
        %v8066 = vrot.slane %v8064, 4
        %v8067 = vrot.slane %v7936, 5
        %v8068 = vsel %vm1860, %v8066, %v8067
        %v8069 = vrot.slane %v7937, 5
        %v8070 = vrot.slane %v8069, 4
        %v8071 = vrot.slane %v7938, 5
        %v8072 = vsel %vm1860, %v8070, %v8071
        %v8073 = vrot.slane %v8071, 4
        %v8074 = vrot.slane %v7939, 5
        %v8075 = vsel %vm1860, %v8073, %v8074
        %v8076 = vrot.slane %v7940, 5
        %v8077 = vrot.slane %v8076, 4
        %v8078 = vrot.slane %v7941, 5
        %v8079 = vsel %vm1860, %v8077, %v8078
        %v8080 = vrot.slane %v8078, 4
        %v8081 = vrot.slane %v7942, 5
        %v8082 = vsel %vm1860, %v8080, %v8081
        %v8083 = vrot.slane %v7943, 5
        %v8084 = vrot.slane %v8083, 4
        %v8085 = vrot.slane %v7944, 5
        %v8086 = vsel %vm1860, %v8084, %v8085
        %v8087 = vrot.slane %v8085, 4
        %v8088 = vrot.slane %v7945, 5
        %v8089 = vsel %vm1860, %v8087, %v8088
        %v8090 = vrot.slane %v7946, 5
        %v8091 = vrot.slane %v8090, 4
        %v8092 = vrot.slane %v7947, 5
        %v8093 = vsel %vm1860, %v8091, %v8092
        %v8094 = vrot.slane %v8092, 4
        %v8095 = vrot.slane %v7948, 5
        %v8096 = vsel %vm1860, %v8094, %v8095
        %v8097 = vrot.slane %v7949, 5
        %v8098 = vrot.slane %v8097, 4
        %v8099 = vrot.slane %v7950, 5
        %v8100 = vsel %vm1860, %v8098, %v8099
        %v8101 = vrot.slane %v8099, 4
        %v8102 = vrot.slane %v7951, 5
        %v8103 = vsel %vm1860, %v8101, %v8102
        %v8104 = vrot.slane %v7952, 5
        %v8105 = vrot.slane %v8104, 4
        %v8106 = vrot.slane %v7953, 5
        %v8107 = vsel %vm1860, %v8105, %v8106
        %v8108 = vrot.slane %v8106, 4
        %v8109 = vrot.slane %v7954, 5
        %v8110 = vsel %vm1860, %v8108, %v8109
        %v8111 = vrot.slane %v7955, 5
        %v8112 = vrot.slane %v8111, 4
        %v8113 = vrot.slane %v7956, 5
        %v8114 = vsel %vm1860, %v8112, %v8113
        %v8115 = vrot.slane %v8113, 4
        %v8116 = vrot.slane %v7957, 5
        %v8117 = vsel %vm1860, %v8115, %v8116
        %v8118 = vunpack.c.l.b16 %v8009
        %v8119 = vunpack.c.l.b16 %v8012
        %v8120 = vunpack.c.l.b16 %v8016
        %v8121 = vunpack.c.l.b16 %v8019
        %v8122 = vunpack.c.l.b16 %v8023
        %v8123 = vunpack.c.l.b16 %v8026
        %v8124 = vunpack.c.l.b16 %v8030
        %v8125 = vunpack.c.l.b16 %v8033
        %v8126 = vunpack.c.l.b16 %v8037
        %v8127 = vunpack.c.l.b16 %v8040
        %v8128 = vunpack.c.l.b16 %v8044
        %v8129 = vunpack.c.l.b16 %v8047
        %v8130 = vunpack.c.l.b16 %v8051
        %v8131 = vunpack.c.l.b16 %v8054
        %v8132 = vunpack.c.l.b16 %v8058
        %v8133 = vunpack.c.l.b16 %v8061
        %v8134 = vunpack.c.l.b16 %v8065
        %v8135 = vunpack.c.l.b16 %v8068
        %v8136 = vunpack.c.l.b16 %v8072
        %v8137 = vunpack.c.l.b16 %v8075
        %v8138 = vunpack.c.l.b16 %v8079
        %v8139 = vunpack.c.l.b16 %v8082
        %v8140 = vunpack.c.l.b16 %v8086
        %v8141 = vunpack.c.l.b16 %v8089
        %v8142 = vunpack.c.l.b16 %v8093
        %v8143 = vunpack.c.l.b16 %v8096
        %v8144 = vunpack.c.l.b16 %v8100
        %v8145 = vunpack.c.l.b16 %v8103
        %v8146 = vunpack.c.l.b16 %v8107
        %v8147 = vunpack.c.l.b16 %v8110
        %v8148 = vunpack.c.l.b16 %v8114
        %v8149 = vunpack.c.l.b16 %v8117
        %v8150 = vpack.c.b16 %v8119, %v8118
        %v8151 = vpack.c.b16 %v8121, %v8120
        %v8152 = vpack.c.b16 %v8123, %v8122
        %v8153 = vpack.c.b16 %v8125, %v8124
        %v8154 = vpack.c.b16 %v8127, %v8126
        %v8155 = vpack.c.b16 %v8129, %v8128
        %v8156 = vpack.c.b16 %v8131, %v8130
        %v8157 = vpack.c.b16 %v8133, %v8132
        %v8158 = vpack.c.b16 %v8135, %v8134
        %v8159 = vpack.c.b16 %v8137, %v8136
        %v8160 = vpack.c.b16 %v8139, %v8138
        %v8161 = vpack.c.b16 %v8141, %v8140
        %v8162 = vpack.c.b16 %v8143, %v8142
        %v8163 = vpack.c.b16 %v8145, %v8144
        %v8164 = vpack.c.b16 %v8147, %v8146
        %v8165 = vpack.c.b16 %v8149, %v8148
        %8182 = vst [vmem:[#allocation4 + $0x28] sm:$0xff] %v8150
        %8183 = vst [vmem:[#allocation4 + $0x70] sm:$0xff] %v8151
        %8184 = vst [vmem:[#allocation4 + $0xb8] sm:$0xff] %v8152
        %8185 = vst [vmem:[#allocation4 + $0x100] sm:$0xff] %v8153
        %8186 = vst [vmem:[#allocation4 + $0x148] sm:$0xff] %v8154
        %8187 = vst [vmem:[#allocation4 + $0x190] sm:$0xff] %v8155
        %8188 = vst [vmem:[#allocation4 + $0x1d8] sm:$0xff] %v8156
        %8189 = vst [vmem:[#allocation4 + $0x220] sm:$0xff] %v8157
        %8190 = vst [vmem:[#allocation4 + $0x268] sm:$0xff] %v8158
        %8191 = vst [vmem:[#allocation4 + $0x2b0] sm:$0xff] %v8159
        %8192 = vst [vmem:[#allocation4 + $0x2f8] sm:$0xff] %v8160
        %8193 = vst [vmem:[#allocation4 + $0x340] sm:$0xff] %v8161
        %8194 = vst [vmem:[#allocation4 + $0x388] sm:$0xff] %v8162
        %8195 = vst [vmem:[#allocation4 + $0x3d0] sm:$0xff] %v8163
        %8196 = vst [vmem:[#allocation4 + $0x418] sm:$0xff] %v8164
        %8197 = vst [vmem:[#allocation4 + $0x460] sm:$0xff] %v8165
        %s8198 = scalar_lea.vmem [#allocation3], 24
        %v8199 = vld [vmem:[%s8198] sm:$0xf]
        %v8200 = vld [vmem:[%s8198 + $0x4] sm:$0xf]
        %v8201 = vld [vmem:[%s8198 + $0xc] sm:$0xf]
        %v8202 = vld [vmem:[%s8198 + $0x10] sm:$0xf]
        %v8203 = vld [vmem:[%s8198 + $0x18] sm:$0xf]
        %v8204 = vld [vmem:[%s8198 + $0x1c] sm:$0xf]
        %v8205 = vld [vmem:[%s8198 + $0x24] sm:$0xf]
        %v8206 = vld [vmem:[%s8198 + $0x28] sm:$0xf]
        %v8207 = vld [vmem:[%s8198 + $0x30] sm:$0xf]
        %v8208 = vld [vmem:[%s8198 + $0x34] sm:$0xf]
        %v8209 = vld [vmem:[%s8198 + $0x3c] sm:$0xf]
        %v8210 = vld [vmem:[%s8198 + $0x40] sm:$0xf]
        %v8211 = vld [vmem:[%s8198 + $0x48] sm:$0xf]
        %v8212 = vld [vmem:[%s8198 + $0x4c] sm:$0xf]
        %v8213 = vld [vmem:[%s8198 + $0x54] sm:$0xf]
        %v8214 = vld [vmem:[%s8198 + $0x58] sm:$0xf]
        %v8215 = vld [vmem:[%s8198 + $0x60] sm:$0xf]
        %v8216 = vld [vmem:[%s8198 + $0x64] sm:$0xf]
        %v8217 = vld [vmem:[%s8198 + $0x6c] sm:$0xf]
        %v8218 = vld [vmem:[%s8198 + $0x70] sm:$0xf]
        %v8219 = vld [vmem:[%s8198 + $0x78] sm:$0xf]
        %v8220 = vld [vmem:[%s8198 + $0x7c] sm:$0xf]
        %v8221 = vld [vmem:[%s8198 + $0x84] sm:$0xf]
        %v8222 = vld [vmem:[%s8198 + $0x88] sm:$0xf]
        %v8223 = vld [vmem:[%s8198 + $0x90] sm:$0xf]
        %v8224 = vld [vmem:[%s8198 + $0x94] sm:$0xf]
        %v8225 = vld [vmem:[%s8198 + $0x9c] sm:$0xf]
        %v8226 = vld [vmem:[%s8198 + $0xa0] sm:$0xf]
        %v8227 = vld [vmem:[%s8198 + $0xa8] sm:$0xf]
        %v8228 = vld [vmem:[%s8198 + $0xac] sm:$0xf]
        %v8229 = vld [vmem:[%s8198 + $0xb4] sm:$0xf]
        %v8230 = vld [vmem:[%s8198 + $0xb8] sm:$0xf]
        %v8263 = vunpack.c.l.b16 %v8199
        %v8264 = vunpack.c.l.b16 %v8200
        %v8265 = vunpack.c.l.b16 %v8201
        %v8266 = vunpack.c.l.b16 %v8202
        %v8267 = vunpack.c.l.b16 %v8203
        %v8268 = vunpack.c.l.b16 %v8204
        %v8269 = vunpack.c.l.b16 %v8205
        %v8270 = vunpack.c.l.b16 %v8206
        %v8271 = vunpack.c.l.b16 %v8207
        %v8272 = vunpack.c.l.b16 %v8208
        %v8273 = vunpack.c.l.b16 %v8209
        %v8274 = vunpack.c.l.b16 %v8210
        %v8275 = vunpack.c.l.b16 %v8211
        %v8276 = vunpack.c.l.b16 %v8212
        %v8277 = vunpack.c.l.b16 %v8213
        %v8278 = vunpack.c.l.b16 %v8214
        %v8279 = vunpack.c.l.b16 %v8215
        %v8280 = vunpack.c.l.b16 %v8216
        %v8281 = vunpack.c.l.b16 %v8217
        %v8282 = vunpack.c.l.b16 %v8218
        %v8283 = vunpack.c.l.b16 %v8219
        %v8284 = vunpack.c.l.b16 %v8220
        %v8285 = vunpack.c.l.b16 %v8221
        %v8286 = vunpack.c.l.b16 %v8222
        %v8287 = vunpack.c.l.b16 %v8223
        %v8288 = vunpack.c.l.b16 %v8224
        %v8289 = vunpack.c.l.b16 %v8225
        %v8290 = vunpack.c.l.b16 %v8226
        %v8291 = vunpack.c.l.b16 %v8227
        %v8292 = vunpack.c.l.b16 %v8228
        %v8293 = vunpack.c.l.b16 %v8229
        %v8294 = vunpack.c.l.b16 %v8230
        %v8295 = vpack.c.b16 %v8264, %v8263
        %v8296 = vpack.c.b16 %v8266, %v8265
        %v8297 = vpack.c.b16 %v8268, %v8267
        %v8298 = vpack.c.b16 %v8270, %v8269
        %v8299 = vpack.c.b16 %v8272, %v8271
        %v8300 = vpack.c.b16 %v8274, %v8273
        %v8301 = vpack.c.b16 %v8276, %v8275
        %v8302 = vpack.c.b16 %v8278, %v8277
        %v8303 = vpack.c.b16 %v8280, %v8279
        %v8304 = vpack.c.b16 %v8282, %v8281
        %v8305 = vpack.c.b16 %v8284, %v8283
        %v8306 = vpack.c.b16 %v8286, %v8285
        %v8307 = vpack.c.b16 %v8288, %v8287
        %v8308 = vpack.c.b16 %v8290, %v8289
        %v8309 = vpack.c.b16 %v8292, %v8291
        %v8310 = vpack.c.b16 %v8294, %v8293
        %8327 = vst [vmem:[#allocation4 + $0x30] sm:$0xff] %v8295
        %8328 = vst [vmem:[#allocation4 + $0x78] sm:$0xff] %v8296
        %8329 = vst [vmem:[#allocation4 + $0xc0] sm:$0xff] %v8297
        %8330 = vst [vmem:[#allocation4 + $0x108] sm:$0xff] %v8298
        %8331 = vst [vmem:[#allocation4 + $0x150] sm:$0xff] %v8299
        %8332 = vst [vmem:[#allocation4 + $0x198] sm:$0xff] %v8300
        %8333 = vst [vmem:[#allocation4 + $0x1e0] sm:$0xff] %v8301
        %8334 = vst [vmem:[#allocation4 + $0x228] sm:$0xff] %v8302
        %8335 = vst [vmem:[#allocation4 + $0x270] sm:$0xff] %v8303
        %8336 = vst [vmem:[#allocation4 + $0x2b8] sm:$0xff] %v8304
        %8337 = vst [vmem:[#allocation4 + $0x300] sm:$0xff] %v8305
        %8338 = vst [vmem:[#allocation4 + $0x348] sm:$0xff] %v8306
        %8339 = vst [vmem:[#allocation4 + $0x390] sm:$0xff] %v8307
        %8340 = vst [vmem:[#allocation4 + $0x3d8] sm:$0xff] %v8308
        %8341 = vst [vmem:[#allocation4 + $0x420] sm:$0xff] %v8309
        %8342 = vst [vmem:[#allocation4 + $0x468] sm:$0xff] %v8310
        %v8343 = vld [vmem:[%s8198] sm:$0xf]
        %v8344 = vld [vmem:[%s8198 + $0x4] sm:$0xf]
        %v8345 = vld [vmem:[%s8198 + $0x8] sm:$0x1]
        %v8346 = vld [vmem:[%s8198 + $0xc] sm:$0xf]
        %v8347 = vld [vmem:[%s8198 + $0x10] sm:$0xf]
        %v8348 = vld [vmem:[%s8198 + $0x14] sm:$0x1]
        %v8349 = vld [vmem:[%s8198 + $0x18] sm:$0xf]
        %v8350 = vld [vmem:[%s8198 + $0x1c] sm:$0xf]
        %v8351 = vld [vmem:[%s8198 + $0x20] sm:$0x1]
        %v8352 = vld [vmem:[%s8198 + $0x24] sm:$0xf]
        %v8353 = vld [vmem:[%s8198 + $0x28] sm:$0xf]
        %v8354 = vld [vmem:[%s8198 + $0x2c] sm:$0x1]
        %v8355 = vld [vmem:[%s8198 + $0x30] sm:$0xf]
        %v8356 = vld [vmem:[%s8198 + $0x34] sm:$0xf]
        %v8357 = vld [vmem:[%s8198 + $0x38] sm:$0x1]
        %v8358 = vld [vmem:[%s8198 + $0x3c] sm:$0xf]
        %v8359 = vld [vmem:[%s8198 + $0x40] sm:$0xf]
        %v8360 = vld [vmem:[%s8198 + $0x44] sm:$0x1]
        %v8361 = vld [vmem:[%s8198 + $0x48] sm:$0xf]
        %v8362 = vld [vmem:[%s8198 + $0x4c] sm:$0xf]
        %v8363 = vld [vmem:[%s8198 + $0x50] sm:$0x1]
        %v8364 = vld [vmem:[%s8198 + $0x54] sm:$0xf]
        %v8365 = vld [vmem:[%s8198 + $0x58] sm:$0xf]
        %v8366 = vld [vmem:[%s8198 + $0x5c] sm:$0x1]
        %v8367 = vld [vmem:[%s8198 + $0x60] sm:$0xf]
        %v8368 = vld [vmem:[%s8198 + $0x64] sm:$0xf]
        %v8369 = vld [vmem:[%s8198 + $0x68] sm:$0x1]
        %v8370 = vld [vmem:[%s8198 + $0x6c] sm:$0xf]
        %v8371 = vld [vmem:[%s8198 + $0x70] sm:$0xf]
        %v8372 = vld [vmem:[%s8198 + $0x74] sm:$0x1]
        %v8373 = vld [vmem:[%s8198 + $0x78] sm:$0xf]
        %v8374 = vld [vmem:[%s8198 + $0x7c] sm:$0xf]
        %v8375 = vld [vmem:[%s8198 + $0x80] sm:$0x1]
        %v8376 = vld [vmem:[%s8198 + $0x84] sm:$0xf]
        %v8377 = vld [vmem:[%s8198 + $0x88] sm:$0xf]
        %v8378 = vld [vmem:[%s8198 + $0x8c] sm:$0x1]
        %v8379 = vld [vmem:[%s8198 + $0x90] sm:$0xf]
        %v8380 = vld [vmem:[%s8198 + $0x94] sm:$0xf]
        %v8381 = vld [vmem:[%s8198 + $0x98] sm:$0x1]
        %v8382 = vld [vmem:[%s8198 + $0x9c] sm:$0xf]
        %v8383 = vld [vmem:[%s8198 + $0xa0] sm:$0xf]
        %v8384 = vld [vmem:[%s8198 + $0xa4] sm:$0x1]
        %v8385 = vld [vmem:[%s8198 + $0xa8] sm:$0xf]
        %v8386 = vld [vmem:[%s8198 + $0xac] sm:$0xf]
        %v8387 = vld [vmem:[%s8198 + $0xb0] sm:$0x1]
        %v8388 = vld [vmem:[%s8198 + $0xb4] sm:$0xf]
        %v8389 = vld [vmem:[%s8198 + $0xb8] sm:$0xf]
        %v8390 = vld [vmem:[%s8198 + $0xbc] sm:$0x1]
        %v8392 = vshrl.u32 %v8343, 16
        %v8394 = vrot.slane %v8392, 4
        %v8395 = vshll.u32 %v8343, 16
        %v8397 = vrot.slane %v8395, 5
        %v8398 = vor.u32 %v8394, %v8397
        %v8399 = vrot.slane %v8398, 4
        %v8401 = vshll.u32 %v8344, 16
        %v8403 = vrot.slane %v8401, 5
        %v8404 = vsel %vm1297, %v8399, %v8403
        %v8405 = vshrl.u32 %v8344, 16
        %v8407 = vrot.slane %v8405, 4
        %v8408 = vor.u32 %v8407, %v8403
        %v8409 = vrot.slane %v8408, 4
        %v8411 = vshll.u32 %v8345, 16
        %v8413 = vrot.slane %v8411, 5
        %v8414 = vsel %vm1297, %v8409, %v8413
        %v8416 = vshrl.u32 %v8346, 16
        %v8418 = vrot.slane %v8416, 4
        %v8419 = vshll.u32 %v8346, 16
        %v8421 = vrot.slane %v8419, 5
        %v8422 = vor.u32 %v8418, %v8421
        %v8423 = vrot.slane %v8422, 4
        %v8425 = vshll.u32 %v8347, 16
        %v8427 = vrot.slane %v8425, 5
        %v8428 = vsel %vm1297, %v8423, %v8427
        %v8429 = vshrl.u32 %v8347, 16
        %v8431 = vrot.slane %v8429, 4
        %v8432 = vor.u32 %v8431, %v8427
        %v8433 = vrot.slane %v8432, 4
        %v8435 = vshll.u32 %v8348, 16
        %v8437 = vrot.slane %v8435, 5
        %v8438 = vsel %vm1297, %v8433, %v8437
        %v8440 = vshrl.u32 %v8349, 16
        %v8442 = vrot.slane %v8440, 4
        %v8443 = vshll.u32 %v8349, 16
        %v8445 = vrot.slane %v8443, 5
        %v8446 = vor.u32 %v8442, %v8445
        %v8447 = vrot.slane %v8446, 4
        %v8449 = vshll.u32 %v8350, 16
        %v8451 = vrot.slane %v8449, 5
        %v8452 = vsel %vm1297, %v8447, %v8451
        %v8453 = vshrl.u32 %v8350, 16
        %v8455 = vrot.slane %v8453, 4
        %v8456 = vor.u32 %v8455, %v8451
        %v8457 = vrot.slane %v8456, 4
        %v8459 = vshll.u32 %v8351, 16
        %v8461 = vrot.slane %v8459, 5
        %v8462 = vsel %vm1297, %v8457, %v8461
        %v8464 = vshrl.u32 %v8352, 16
        %v8466 = vrot.slane %v8464, 4
        %v8467 = vshll.u32 %v8352, 16
        %v8469 = vrot.slane %v8467, 5
        %v8470 = vor.u32 %v8466, %v8469
        %v8471 = vrot.slane %v8470, 4
        %v8473 = vshll.u32 %v8353, 16
        %v8475 = vrot.slane %v8473, 5
        %v8476 = vsel %vm1297, %v8471, %v8475
        %v8477 = vshrl.u32 %v8353, 16
        %v8479 = vrot.slane %v8477, 4
        %v8480 = vor.u32 %v8479, %v8475
        %v8481 = vrot.slane %v8480, 4
        %v8483 = vshll.u32 %v8354, 16
        %v8485 = vrot.slane %v8483, 5
        %v8486 = vsel %vm1297, %v8481, %v8485
        %v8488 = vshrl.u32 %v8355, 16
        %v8490 = vrot.slane %v8488, 4
        %v8491 = vshll.u32 %v8355, 16
        %v8493 = vrot.slane %v8491, 5
        %v8494 = vor.u32 %v8490, %v8493
        %v8495 = vrot.slane %v8494, 4
        %v8497 = vshll.u32 %v8356, 16
        %v8499 = vrot.slane %v8497, 5
        %v8500 = vsel %vm1297, %v8495, %v8499
        %v8501 = vshrl.u32 %v8356, 16
        %v8503 = vrot.slane %v8501, 4
        %v8504 = vor.u32 %v8503, %v8499
        %v8505 = vrot.slane %v8504, 4
        %v8507 = vshll.u32 %v8357, 16
        %v8509 = vrot.slane %v8507, 5
        %v8510 = vsel %vm1297, %v8505, %v8509
        %v8512 = vshrl.u32 %v8358, 16
        %v8514 = vrot.slane %v8512, 4
        %v8515 = vshll.u32 %v8358, 16
        %v8517 = vrot.slane %v8515, 5
        %v8518 = vor.u32 %v8514, %v8517
        %v8519 = vrot.slane %v8518, 4
        %v8521 = vshll.u32 %v8359, 16
        %v8523 = vrot.slane %v8521, 5
        %v8524 = vsel %vm1297, %v8519, %v8523
        %v8525 = vshrl.u32 %v8359, 16
        %v8527 = vrot.slane %v8525, 4
        %v8528 = vor.u32 %v8527, %v8523
        %v8529 = vrot.slane %v8528, 4
        %v8531 = vshll.u32 %v8360, 16
        %v8533 = vrot.slane %v8531, 5
        %v8534 = vsel %vm1297, %v8529, %v8533
        %v8536 = vshrl.u32 %v8361, 16
        %v8538 = vrot.slane %v8536, 4
        %v8539 = vshll.u32 %v8361, 16
        %v8541 = vrot.slane %v8539, 5
        %v8542 = vor.u32 %v8538, %v8541
        %v8543 = vrot.slane %v8542, 4
        %v8545 = vshll.u32 %v8362, 16
        %v8547 = vrot.slane %v8545, 5
        %v8548 = vsel %vm1297, %v8543, %v8547
        %v8549 = vshrl.u32 %v8362, 16
        %v8551 = vrot.slane %v8549, 4
        %v8552 = vor.u32 %v8551, %v8547
        %v8553 = vrot.slane %v8552, 4
        %v8555 = vshll.u32 %v8363, 16
        %v8557 = vrot.slane %v8555, 5
        %v8558 = vsel %vm1297, %v8553, %v8557
        %v8560 = vshrl.u32 %v8364, 16
        %v8562 = vrot.slane %v8560, 4
        %v8563 = vshll.u32 %v8364, 16
        %v8565 = vrot.slane %v8563, 5
        %v8566 = vor.u32 %v8562, %v8565
        %v8567 = vrot.slane %v8566, 4
        %v8569 = vshll.u32 %v8365, 16
        %v8571 = vrot.slane %v8569, 5
        %v8572 = vsel %vm1297, %v8567, %v8571
        %v8573 = vshrl.u32 %v8365, 16
        %v8575 = vrot.slane %v8573, 4
        %v8576 = vor.u32 %v8575, %v8571
        %v8577 = vrot.slane %v8576, 4
        %v8579 = vshll.u32 %v8366, 16
        %v8581 = vrot.slane %v8579, 5
        %v8582 = vsel %vm1297, %v8577, %v8581
        %v8584 = vshrl.u32 %v8367, 16
        %v8586 = vrot.slane %v8584, 4
        %v8587 = vshll.u32 %v8367, 16
        %v8589 = vrot.slane %v8587, 5
        %v8590 = vor.u32 %v8586, %v8589
        %v8591 = vrot.slane %v8590, 4
        %v8593 = vshll.u32 %v8368, 16
        %v8595 = vrot.slane %v8593, 5
        %v8596 = vsel %vm1297, %v8591, %v8595
        %v8597 = vshrl.u32 %v8368, 16
        %v8599 = vrot.slane %v8597, 4
        %v8600 = vor.u32 %v8599, %v8595
        %v8601 = vrot.slane %v8600, 4
        %v8603 = vshll.u32 %v8369, 16
        %v8605 = vrot.slane %v8603, 5
        %v8606 = vsel %vm1297, %v8601, %v8605
        %v8608 = vshrl.u32 %v8370, 16
        %v8610 = vrot.slane %v8608, 4
        %v8611 = vshll.u32 %v8370, 16
        %v8613 = vrot.slane %v8611, 5
        %v8614 = vor.u32 %v8610, %v8613
        %v8615 = vrot.slane %v8614, 4
        %v8617 = vshll.u32 %v8371, 16
        %v8619 = vrot.slane %v8617, 5
        %v8620 = vsel %vm1297, %v8615, %v8619
        %v8621 = vshrl.u32 %v8371, 16
        %v8623 = vrot.slane %v8621, 4
        %v8624 = vor.u32 %v8623, %v8619
        %v8625 = vrot.slane %v8624, 4
        %v8627 = vshll.u32 %v8372, 16
        %v8629 = vrot.slane %v8627, 5
        %v8630 = vsel %vm1297, %v8625, %v8629
        %v8632 = vshrl.u32 %v8373, 16
        %v8634 = vrot.slane %v8632, 4
        %v8635 = vshll.u32 %v8373, 16
        %v8637 = vrot.slane %v8635, 5
        %v8638 = vor.u32 %v8634, %v8637
        %v8639 = vrot.slane %v8638, 4
        %v8641 = vshll.u32 %v8374, 16
        %v8643 = vrot.slane %v8641, 5
        %v8644 = vsel %vm1297, %v8639, %v8643
        %v8645 = vshrl.u32 %v8374, 16
        %v8647 = vrot.slane %v8645, 4
        %v8648 = vor.u32 %v8647, %v8643
        %v8649 = vrot.slane %v8648, 4
        %v8651 = vshll.u32 %v8375, 16
        %v8653 = vrot.slane %v8651, 5
        %v8654 = vsel %vm1297, %v8649, %v8653
        %v8656 = vshrl.u32 %v8376, 16
        %v8658 = vrot.slane %v8656, 4
        %v8659 = vshll.u32 %v8376, 16
        %v8661 = vrot.slane %v8659, 5
        %v8662 = vor.u32 %v8658, %v8661
        %v8663 = vrot.slane %v8662, 4
        %v8665 = vshll.u32 %v8377, 16
        %v8667 = vrot.slane %v8665, 5
        %v8668 = vsel %vm1297, %v8663, %v8667
        %v8669 = vshrl.u32 %v8377, 16
        %v8671 = vrot.slane %v8669, 4
        %v8672 = vor.u32 %v8671, %v8667
        %v8673 = vrot.slane %v8672, 4
        %v8675 = vshll.u32 %v8378, 16
        %v8677 = vrot.slane %v8675, 5
        %v8678 = vsel %vm1297, %v8673, %v8677
        %v8680 = vshrl.u32 %v8379, 16
        %v8682 = vrot.slane %v8680, 4
        %v8683 = vshll.u32 %v8379, 16
        %v8685 = vrot.slane %v8683, 5
        %v8686 = vor.u32 %v8682, %v8685
        %v8687 = vrot.slane %v8686, 4
        %v8689 = vshll.u32 %v8380, 16
        %v8691 = vrot.slane %v8689, 5
        %v8692 = vsel %vm1297, %v8687, %v8691
        %v8693 = vshrl.u32 %v8380, 16
        %v8695 = vrot.slane %v8693, 4
        %v8696 = vor.u32 %v8695, %v8691
        %v8697 = vrot.slane %v8696, 4
        %v8699 = vshll.u32 %v8381, 16
        %v8701 = vrot.slane %v8699, 5
        %v8702 = vsel %vm1297, %v8697, %v8701
        %v8704 = vshrl.u32 %v8382, 16
        %v8706 = vrot.slane %v8704, 4
        %v8707 = vshll.u32 %v8382, 16
        %v8709 = vrot.slane %v8707, 5
        %v8710 = vor.u32 %v8706, %v8709
        %v8711 = vrot.slane %v8710, 4
        %v8713 = vshll.u32 %v8383, 16
        %v8715 = vrot.slane %v8713, 5
        %v8716 = vsel %vm1297, %v8711, %v8715
        %v8717 = vshrl.u32 %v8383, 16
        %v8719 = vrot.slane %v8717, 4
        %v8720 = vor.u32 %v8719, %v8715
        %v8721 = vrot.slane %v8720, 4
        %v8723 = vshll.u32 %v8384, 16
        %v8725 = vrot.slane %v8723, 5
        %v8726 = vsel %vm1297, %v8721, %v8725
        %v8728 = vshrl.u32 %v8385, 16
        %v8730 = vrot.slane %v8728, 4
        %v8731 = vshll.u32 %v8385, 16
        %v8733 = vrot.slane %v8731, 5
        %v8734 = vor.u32 %v8730, %v8733
        %v8735 = vrot.slane %v8734, 4
        %v8737 = vshll.u32 %v8386, 16
        %v8739 = vrot.slane %v8737, 5
        %v8740 = vsel %vm1297, %v8735, %v8739
        %v8741 = vshrl.u32 %v8386, 16
        %v8743 = vrot.slane %v8741, 4
        %v8744 = vor.u32 %v8743, %v8739
        %v8745 = vrot.slane %v8744, 4
        %v8747 = vshll.u32 %v8387, 16
        %v8749 = vrot.slane %v8747, 5
        %v8750 = vsel %vm1297, %v8745, %v8749
        %v8752 = vshrl.u32 %v8388, 16
        %v8754 = vrot.slane %v8752, 4
        %v8755 = vshll.u32 %v8388, 16
        %v8757 = vrot.slane %v8755, 5
        %v8758 = vor.u32 %v8754, %v8757
        %v8759 = vrot.slane %v8758, 4
        %v8761 = vshll.u32 %v8389, 16
        %v8763 = vrot.slane %v8761, 5
        %v8764 = vsel %vm1297, %v8759, %v8763
        %v8765 = vshrl.u32 %v8389, 16
        %v8767 = vrot.slane %v8765, 4
        %v8768 = vor.u32 %v8767, %v8763
        %v8769 = vrot.slane %v8768, 4
        %v8771 = vshll.u32 %v8390, 16
        %v8773 = vrot.slane %v8771, 5
        %v8774 = vsel %vm1297, %v8769, %v8773
        %v8775 = vunpack.c.l.b16 %v8404
        %v8776 = vunpack.c.l.b16 %v8414
        %v8777 = vunpack.c.l.b16 %v8428
        %v8778 = vunpack.c.l.b16 %v8438
        %v8779 = vunpack.c.l.b16 %v8452
        %v8780 = vunpack.c.l.b16 %v8462
        %v8781 = vunpack.c.l.b16 %v8476
        %v8782 = vunpack.c.l.b16 %v8486
        %v8783 = vunpack.c.l.b16 %v8500
        %v8784 = vunpack.c.l.b16 %v8510
        %v8785 = vunpack.c.l.b16 %v8524
        %v8786 = vunpack.c.l.b16 %v8534
        %v8787 = vunpack.c.l.b16 %v8548
        %v8788 = vunpack.c.l.b16 %v8558
        %v8789 = vunpack.c.l.b16 %v8572
        %v8790 = vunpack.c.l.b16 %v8582
        %v8791 = vunpack.c.l.b16 %v8596
        %v8792 = vunpack.c.l.b16 %v8606
        %v8793 = vunpack.c.l.b16 %v8620
        %v8794 = vunpack.c.l.b16 %v8630
        %v8795 = vunpack.c.l.b16 %v8644
        %v8796 = vunpack.c.l.b16 %v8654
        %v8797 = vunpack.c.l.b16 %v8668
        %v8798 = vunpack.c.l.b16 %v8678
        %v8799 = vunpack.c.l.b16 %v8692
        %v8800 = vunpack.c.l.b16 %v8702
        %v8801 = vunpack.c.l.b16 %v8716
        %v8802 = vunpack.c.l.b16 %v8726
        %v8803 = vunpack.c.l.b16 %v8740
        %v8804 = vunpack.c.l.b16 %v8750
        %v8805 = vunpack.c.l.b16 %v8764
        %v8806 = vunpack.c.l.b16 %v8774
        %v8807 = vpack.c.b16 %v8776, %v8775
        %v8808 = vpack.c.b16 %v8778, %v8777
        %v8809 = vpack.c.b16 %v8780, %v8779
        %v8810 = vpack.c.b16 %v8782, %v8781
        %v8811 = vpack.c.b16 %v8784, %v8783
        %v8812 = vpack.c.b16 %v8786, %v8785
        %v8813 = vpack.c.b16 %v8788, %v8787
        %v8814 = vpack.c.b16 %v8790, %v8789
        %v8815 = vpack.c.b16 %v8792, %v8791
        %v8816 = vpack.c.b16 %v8794, %v8793
        %v8817 = vpack.c.b16 %v8796, %v8795
        %v8818 = vpack.c.b16 %v8798, %v8797
        %v8819 = vpack.c.b16 %v8800, %v8799
        %v8820 = vpack.c.b16 %v8802, %v8801
        %v8821 = vpack.c.b16 %v8804, %v8803
        %v8822 = vpack.c.b16 %v8806, %v8805
        %8839 = vst [vmem:[#allocation4 + $0x38] sm:$0xff] %v8807
        %8840 = vst [vmem:[#allocation4 + $0x80] sm:$0xff] %v8808
        %8841 = vst [vmem:[#allocation4 + $0xc8] sm:$0xff] %v8809
        %8842 = vst [vmem:[#allocation4 + $0x110] sm:$0xff] %v8810
        %8843 = vst [vmem:[#allocation4 + $0x158] sm:$0xff] %v8811
        %8844 = vst [vmem:[#allocation4 + $0x1a0] sm:$0xff] %v8812
        %8845 = vst [vmem:[#allocation4 + $0x1e8] sm:$0xff] %v8813
        %8846 = vst [vmem:[#allocation4 + $0x230] sm:$0xff] %v8814
        %8847 = vst [vmem:[#allocation4 + $0x278] sm:$0xff] %v8815
        %8848 = vst [vmem:[#allocation4 + $0x2c0] sm:$0xff] %v8816
        %8849 = vst [vmem:[#allocation4 + $0x308] sm:$0xff] %v8817
        %8850 = vst [vmem:[#allocation4 + $0x350] sm:$0xff] %v8818
        %8851 = vst [vmem:[#allocation4 + $0x398] sm:$0xff] %v8819
        %8852 = vst [vmem:[#allocation4 + $0x3e0] sm:$0xff] %v8820
        %8853 = vst [vmem:[#allocation4 + $0x428] sm:$0xff] %v8821
        %8854 = vst [vmem:[#allocation4 + $0x470] sm:$0xff] %v8822
        %v8855 = vld [vmem:[%s8198] sm:$0xe]
        %v8856 = vld [vmem:[%s8198 + $0x4] sm:$0xf]
        %v8857 = vld [vmem:[%s8198 + $0x8] sm:$0x1]
        %v8858 = vld [vmem:[%s8198 + $0xc] sm:$0xe]
        %v8859 = vld [vmem:[%s8198 + $0x10] sm:$0xf]
        %v8860 = vld [vmem:[%s8198 + $0x14] sm:$0x1]
        %v8861 = vld [vmem:[%s8198 + $0x18] sm:$0xe]
        %v8862 = vld [vmem:[%s8198 + $0x1c] sm:$0xf]
        %v8863 = vld [vmem:[%s8198 + $0x20] sm:$0x1]
        %v8864 = vld [vmem:[%s8198 + $0x24] sm:$0xe]
        %v8865 = vld [vmem:[%s8198 + $0x28] sm:$0xf]
        %v8866 = vld [vmem:[%s8198 + $0x2c] sm:$0x1]
        %v8867 = vld [vmem:[%s8198 + $0x30] sm:$0xe]
        %v8868 = vld [vmem:[%s8198 + $0x34] sm:$0xf]
        %v8869 = vld [vmem:[%s8198 + $0x38] sm:$0x1]
        %v8870 = vld [vmem:[%s8198 + $0x3c] sm:$0xe]
        %v8871 = vld [vmem:[%s8198 + $0x40] sm:$0xf]
        %v8872 = vld [vmem:[%s8198 + $0x44] sm:$0x1]
        %v8873 = vld [vmem:[%s8198 + $0x48] sm:$0xe]
        %v8874 = vld [vmem:[%s8198 + $0x4c] sm:$0xf]
        %v8875 = vld [vmem:[%s8198 + $0x50] sm:$0x1]
        %v8876 = vld [vmem:[%s8198 + $0x54] sm:$0xe]
        %v8877 = vld [vmem:[%s8198 + $0x58] sm:$0xf]
        %v8878 = vld [vmem:[%s8198 + $0x5c] sm:$0x1]
        %v8879 = vld [vmem:[%s8198 + $0x60] sm:$0xe]
        %v8880 = vld [vmem:[%s8198 + $0x64] sm:$0xf]
        %v8881 = vld [vmem:[%s8198 + $0x68] sm:$0x1]
        %v8882 = vld [vmem:[%s8198 + $0x6c] sm:$0xe]
        %v8883 = vld [vmem:[%s8198 + $0x70] sm:$0xf]
        %v8884 = vld [vmem:[%s8198 + $0x74] sm:$0x1]
        %v8885 = vld [vmem:[%s8198 + $0x78] sm:$0xe]
        %v8886 = vld [vmem:[%s8198 + $0x7c] sm:$0xf]
        %v8887 = vld [vmem:[%s8198 + $0x80] sm:$0x1]
        %v8888 = vld [vmem:[%s8198 + $0x84] sm:$0xe]
        %v8889 = vld [vmem:[%s8198 + $0x88] sm:$0xf]
        %v8890 = vld [vmem:[%s8198 + $0x8c] sm:$0x1]
        %v8891 = vld [vmem:[%s8198 + $0x90] sm:$0xe]
        %v8892 = vld [vmem:[%s8198 + $0x94] sm:$0xf]
        %v8893 = vld [vmem:[%s8198 + $0x98] sm:$0x1]
        %v8894 = vld [vmem:[%s8198 + $0x9c] sm:$0xe]
        %v8895 = vld [vmem:[%s8198 + $0xa0] sm:$0xf]
        %v8896 = vld [vmem:[%s8198 + $0xa4] sm:$0x1]
        %v8897 = vld [vmem:[%s8198 + $0xa8] sm:$0xe]
        %v8898 = vld [vmem:[%s8198 + $0xac] sm:$0xf]
        %v8899 = vld [vmem:[%s8198 + $0xb0] sm:$0x1]
        %v8900 = vld [vmem:[%s8198 + $0xb4] sm:$0xe]
        %v8901 = vld [vmem:[%s8198 + $0xb8] sm:$0xf]
        %v8902 = vld [vmem:[%s8198 + $0xbc] sm:$0x1]
        %v8951 = vrot.slane %v8855, 5
        %v8952 = vrot.slane %v8951, 4
        %v8953 = vrot.slane %v8856, 5
        %v8954 = vsel %vm1860, %v8952, %v8953
        %v8955 = vrot.slane %v8953, 4
        %v8956 = vrot.slane %v8857, 5
        %v8957 = vsel %vm1860, %v8955, %v8956
        %v8958 = vrot.slane %v8858, 5
        %v8959 = vrot.slane %v8958, 4
        %v8960 = vrot.slane %v8859, 5
        %v8961 = vsel %vm1860, %v8959, %v8960
        %v8962 = vrot.slane %v8960, 4
        %v8963 = vrot.slane %v8860, 5
        %v8964 = vsel %vm1860, %v8962, %v8963
        %v8965 = vrot.slane %v8861, 5
        %v8966 = vrot.slane %v8965, 4
        %v8967 = vrot.slane %v8862, 5
        %v8968 = vsel %vm1860, %v8966, %v8967
        %v8969 = vrot.slane %v8967, 4
        %v8970 = vrot.slane %v8863, 5
        %v8971 = vsel %vm1860, %v8969, %v8970
        %v8972 = vrot.slane %v8864, 5
        %v8973 = vrot.slane %v8972, 4
        %v8974 = vrot.slane %v8865, 5
        %v8975 = vsel %vm1860, %v8973, %v8974
        %v8976 = vrot.slane %v8974, 4
        %v8977 = vrot.slane %v8866, 5
        %v8978 = vsel %vm1860, %v8976, %v8977
        %v8979 = vrot.slane %v8867, 5
        %v8980 = vrot.slane %v8979, 4
        %v8981 = vrot.slane %v8868, 5
        %v8982 = vsel %vm1860, %v8980, %v8981
        %v8983 = vrot.slane %v8981, 4
        %v8984 = vrot.slane %v8869, 5
        %v8985 = vsel %vm1860, %v8983, %v8984
        %v8986 = vrot.slane %v8870, 5
        %v8987 = vrot.slane %v8986, 4
        %v8988 = vrot.slane %v8871, 5
        %v8989 = vsel %vm1860, %v8987, %v8988
        %v8990 = vrot.slane %v8988, 4
        %v8991 = vrot.slane %v8872, 5
        %v8992 = vsel %vm1860, %v8990, %v8991
        %v8993 = vrot.slane %v8873, 5
        %v8994 = vrot.slane %v8993, 4
        %v8995 = vrot.slane %v8874, 5
        %v8996 = vsel %vm1860, %v8994, %v8995
        %v8997 = vrot.slane %v8995, 4
        %v8998 = vrot.slane %v8875, 5
        %v8999 = vsel %vm1860, %v8997, %v8998
        %v9000 = vrot.slane %v8876, 5
        %v9001 = vrot.slane %v9000, 4
        %v9002 = vrot.slane %v8877, 5
        %v9003 = vsel %vm1860, %v9001, %v9002
        %v9004 = vrot.slane %v9002, 4
        %v9005 = vrot.slane %v8878, 5
        %v9006 = vsel %vm1860, %v9004, %v9005
        %v9007 = vrot.slane %v8879, 5
        %v9008 = vrot.slane %v9007, 4
        %v9009 = vrot.slane %v8880, 5
        %v9010 = vsel %vm1860, %v9008, %v9009
        %v9011 = vrot.slane %v9009, 4
        %v9012 = vrot.slane %v8881, 5
        %v9013 = vsel %vm1860, %v9011, %v9012
        %v9014 = vrot.slane %v8882, 5
        %v9015 = vrot.slane %v9014, 4
        %v9016 = vrot.slane %v8883, 5
        %v9017 = vsel %vm1860, %v9015, %v9016
        %v9018 = vrot.slane %v9016, 4
        %v9019 = vrot.slane %v8884, 5
        %v9020 = vsel %vm1860, %v9018, %v9019
        %v9021 = vrot.slane %v8885, 5
        %v9022 = vrot.slane %v9021, 4
        %v9023 = vrot.slane %v8886, 5
        %v9024 = vsel %vm1860, %v9022, %v9023
        %v9025 = vrot.slane %v9023, 4
        %v9026 = vrot.slane %v8887, 5
        %v9027 = vsel %vm1860, %v9025, %v9026
        %v9028 = vrot.slane %v8888, 5
        %v9029 = vrot.slane %v9028, 4
        %v9030 = vrot.slane %v8889, 5
        %v9031 = vsel %vm1860, %v9029, %v9030
        %v9032 = vrot.slane %v9030, 4
        %v9033 = vrot.slane %v8890, 5
        %v9034 = vsel %vm1860, %v9032, %v9033
        %v9035 = vrot.slane %v8891, 5
        %v9036 = vrot.slane %v9035, 4
        %v9037 = vrot.slane %v8892, 5
        %v9038 = vsel %vm1860, %v9036, %v9037
        %v9039 = vrot.slane %v9037, 4
        %v9040 = vrot.slane %v8893, 5
        %v9041 = vsel %vm1860, %v9039, %v9040
        %v9042 = vrot.slane %v8894, 5
        %v9043 = vrot.slane %v9042, 4
        %v9044 = vrot.slane %v8895, 5
        %v9045 = vsel %vm1860, %v9043, %v9044
        %v9046 = vrot.slane %v9044, 4
        %v9047 = vrot.slane %v8896, 5
        %v9048 = vsel %vm1860, %v9046, %v9047
        %v9049 = vrot.slane %v8897, 5
        %v9050 = vrot.slane %v9049, 4
        %v9051 = vrot.slane %v8898, 5
        %v9052 = vsel %vm1860, %v9050, %v9051
        %v9053 = vrot.slane %v9051, 4
        %v9054 = vrot.slane %v8899, 5
        %v9055 = vsel %vm1860, %v9053, %v9054
        %v9056 = vrot.slane %v8900, 5
        %v9057 = vrot.slane %v9056, 4
        %v9058 = vrot.slane %v8901, 5
        %v9059 = vsel %vm1860, %v9057, %v9058
        %v9060 = vrot.slane %v9058, 4
        %v9061 = vrot.slane %v8902, 5
        %v9062 = vsel %vm1860, %v9060, %v9061
        %v9063 = vunpack.c.l.b16 %v8954
        %v9064 = vunpack.c.l.b16 %v8957
        %v9065 = vunpack.c.l.b16 %v8961
        %v9066 = vunpack.c.l.b16 %v8964
        %v9067 = vunpack.c.l.b16 %v8968
        %v9068 = vunpack.c.l.b16 %v8971
        %v9069 = vunpack.c.l.b16 %v8975
        %v9070 = vunpack.c.l.b16 %v8978
        %v9071 = vunpack.c.l.b16 %v8982
        %v9072 = vunpack.c.l.b16 %v8985
        %v9073 = vunpack.c.l.b16 %v8989
        %v9074 = vunpack.c.l.b16 %v8992
        %v9075 = vunpack.c.l.b16 %v8996
        %v9076 = vunpack.c.l.b16 %v8999
        %v9077 = vunpack.c.l.b16 %v9003
        %v9078 = vunpack.c.l.b16 %v9006
        %v9079 = vunpack.c.l.b16 %v9010
        %v9080 = vunpack.c.l.b16 %v9013
        %v9081 = vunpack.c.l.b16 %v9017
        %v9082 = vunpack.c.l.b16 %v9020
        %v9083 = vunpack.c.l.b16 %v9024
        %v9084 = vunpack.c.l.b16 %v9027
        %v9085 = vunpack.c.l.b16 %v9031
        %v9086 = vunpack.c.l.b16 %v9034
        %v9087 = vunpack.c.l.b16 %v9038
        %v9088 = vunpack.c.l.b16 %v9041
        %v9089 = vunpack.c.l.b16 %v9045
        %v9090 = vunpack.c.l.b16 %v9048
        %v9091 = vunpack.c.l.b16 %v9052
        %v9092 = vunpack.c.l.b16 %v9055
        %v9093 = vunpack.c.l.b16 %v9059
        %v9094 = vunpack.c.l.b16 %v9062
        %v9095 = vpack.c.b16 %v9064, %v9063
        %v9096 = vpack.c.b16 %v9066, %v9065
        %v9097 = vpack.c.b16 %v9068, %v9067
        %v9098 = vpack.c.b16 %v9070, %v9069
        %v9099 = vpack.c.b16 %v9072, %v9071
        %v9100 = vpack.c.b16 %v9074, %v9073
        %v9101 = vpack.c.b16 %v9076, %v9075
        %v9102 = vpack.c.b16 %v9078, %v9077
        %v9103 = vpack.c.b16 %v9080, %v9079
        %v9104 = vpack.c.b16 %v9082, %v9081
        %v9105 = vpack.c.b16 %v9084, %v9083
        %v9106 = vpack.c.b16 %v9086, %v9085
        %v9107 = vpack.c.b16 %v9088, %v9087
        %v9108 = vpack.c.b16 %v9090, %v9089
        %v9109 = vpack.c.b16 %v9092, %v9091
        %v9110 = vpack.c.b16 %v9094, %v9093
        %9127 = vst [vmem:[#allocation4 + $0x40] sm:$0xff] %v9095
        %9128 = vst [vmem:[#allocation4 + $0x88] sm:$0xff] %v9096
        %9129 = vst [vmem:[#allocation4 + $0xd0] sm:$0xff] %v9097
        %9130 = vst [vmem:[#allocation4 + $0x118] sm:$0xff] %v9098
        %9131 = vst [vmem:[#allocation4 + $0x160] sm:$0xff] %v9099
        %9132 = vst [vmem:[#allocation4 + $0x1a8] sm:$0xff] %v9100
        %9133 = vst [vmem:[#allocation4 + $0x1f0] sm:$0xff] %v9101
        %9134 = vst [vmem:[#allocation4 + $0x238] sm:$0xff] %v9102
        %9135 = vst [vmem:[#allocation4 + $0x280] sm:$0xff] %v9103
        %9136 = vst [vmem:[#allocation4 + $0x2c8] sm:$0xff] %v9104
        %9137 = vst [vmem:[#allocation4 + $0x310] sm:$0xff] %v9105
        %9138 = vst [vmem:[#allocation4 + $0x358] sm:$0xff] %v9106
        %9139 = vst [vmem:[#allocation4 + $0x3a0] sm:$0xff] %v9107
        %9140 = vst [vmem:[#allocation4 + $0x3e8] sm:$0xff] %v9108
        %9141 = vst [vmem:[#allocation4 + $0x430] sm:$0xff] %v9109
        %9142 = vst [vmem:[#allocation4 + $0x478] sm:$0xff] %v9110
        %v9143 = vld [vmem:[%s300] sm:$0xff]
        %v9144 = vld [vmem:[%s300 + $0x8] sm:$0xff]
        %v9145 = vld [vmem:[%s300 + $0x10] sm:$0xff]
        %v9146 = vld [vmem:[%s300 + $0x18] sm:$0xff]
        %v9147 = vld [vmem:[%s300 + $0x20] sm:$0xff]
        %v9148 = vld [vmem:[%s300 + $0x28] sm:$0xff]
        %v9149 = vld [vmem:[%s300 + $0x30] sm:$0xff]
        %v9150 = vld [vmem:[%s300 + $0x38] sm:$0xff]
        %v9151 = vld [vmem:[%s300 + $0x40] sm:$0xff]
        %v9152 = vld [vmem:[%s300 + $0x48] sm:$0xff]
        %v9153 = vld [vmem:[%s300 + $0x50] sm:$0xff]
        %v9154 = vld [vmem:[%s300 + $0x58] sm:$0xff]
        %v9155 = vld [vmem:[%s300 + $0x60] sm:$0xff]
        %v9156 = vld [vmem:[%s300 + $0x68] sm:$0xff]
        %v9157 = vld [vmem:[%s300 + $0x70] sm:$0xff]
        %v9158 = vld [vmem:[%s300 + $0x78] sm:$0xff]
        %v9159 = vld [vmem:[%s300 + $0x80] sm:$0xff]
        %v9160 = vld [vmem:[%s300 + $0x88] sm:$0xff]
        %v9161 = vld [vmem:[%s300 + $0x90] sm:$0xff]
        %v9162 = vld [vmem:[%s300 + $0x98] sm:$0xff]
        %v9163 = vld [vmem:[%s300 + $0xa0] sm:$0xff]
        %v9164 = vld [vmem:[%s300 + $0xa8] sm:$0xff]
        %v9165 = vld [vmem:[%s300 + $0xb0] sm:$0xff]
        %v9166 = vld [vmem:[%s300 + $0xb8] sm:$0xff]
        %v9167 = vld [vmem:[%s300 + $0xc0] sm:$0xff]
        %v9168 = vld [vmem:[%s300 + $0xc8] sm:$0xff]
        %v9169 = vld [vmem:[%s300 + $0xd0] sm:$0xff]
        %v9170 = vld [vmem:[%s300 + $0xd8] sm:$0xff]
        %v9171 = vld [vmem:[%s300 + $0xe0] sm:$0xff]
        %v9172 = vld [vmem:[%s300 + $0xe8] sm:$0xff]
        %v9173 = vld [vmem:[%s300 + $0xf0] sm:$0xff]
        %v9174 = vld [vmem:[%s300 + $0xf8] sm:$0xff]
        %v9175 = vld [vmem:[#allocation4] sm:$0xff]
        %v9176 = vld [vmem:[#allocation4 + $0x8] sm:$0xff]
        %v9177 = vld [vmem:[#allocation4 + $0x10] sm:$0xff]
        %v9178 = vld [vmem:[#allocation4 + $0x18] sm:$0xff]
        %v9179 = vld [vmem:[#allocation4 + $0x20] sm:$0xff]
        %v9180 = vld [vmem:[#allocation4 + $0x28] sm:$0xff]
        %v9181 = vld [vmem:[#allocation4 + $0x30] sm:$0xff]
        %v9182 = vld [vmem:[#allocation4 + $0x38] sm:$0xff]
        %v9183 = vld [vmem:[#allocation4 + $0x40] sm:$0xff]
        %v9184 = vld [vmem:[#allocation4 + $0x48] sm:$0xff]
        %v9185 = vld [vmem:[#allocation4 + $0x50] sm:$0xff]
        %v9186 = vld [vmem:[#allocation4 + $0x58] sm:$0xff]
        %v9187 = vld [vmem:[#allocation4 + $0x60] sm:$0xff]
        %v9188 = vld [vmem:[#allocation4 + $0x68] sm:$0xff]
        %v9189 = vld [vmem:[#allocation4 + $0x70] sm:$0xff]
        %v9190 = vld [vmem:[#allocation4 + $0x78] sm:$0xff]
        %v9191 = vld [vmem:[#allocation4 + $0x80] sm:$0xff]
        %v9192 = vld [vmem:[#allocation4 + $0x88] sm:$0xff]
        %v9193 = vld [vmem:[#allocation4 + $0x90] sm:$0xff]
        %v9194 = vld [vmem:[#allocation4 + $0x98] sm:$0xff]
        %v9195 = vld [vmem:[#allocation4 + $0xa0] sm:$0xff]
        %v9196 = vld [vmem:[#allocation4 + $0xa8] sm:$0xff]
        %v9197 = vld [vmem:[#allocation4 + $0xb0] sm:$0xff]
        %v9198 = vld [vmem:[#allocation4 + $0xb8] sm:$0xff]
        %v9199 = vld [vmem:[#allocation4 + $0xc0] sm:$0xff]
        %v9200 = vld [vmem:[#allocation4 + $0xc8] sm:$0xff]
        %v9201 = vld [vmem:[#allocation4 + $0xd0] sm:$0xff]
        %v9202 = vld [vmem:[#allocation4 + $0xd8] sm:$0xff]
        %v9203 = vld [vmem:[#allocation4 + $0xe0] sm:$0xff]
        %v9204 = vld [vmem:[#allocation4 + $0xe8] sm:$0xff]
        %v9205 = vld [vmem:[#allocation4 + $0xf0] sm:$0xff]
        %v9206 = vld [vmem:[#allocation4 + $0xf8] sm:$0xff]
        %v9207 = vld [vmem:[#allocation4 + $0x100] sm:$0xff]
        %v9208 = vld [vmem:[#allocation4 + $0x108] sm:$0xff]
        %v9209 = vld [vmem:[#allocation4 + $0x110] sm:$0xff]
        %v9210 = vld [vmem:[#allocation4 + $0x118] sm:$0xff]
        %v9211 = vld [vmem:[#allocation4 + $0x120] sm:$0xff]
        %v9212 = vld [vmem:[#allocation4 + $0x128] sm:$0xff]
        %v9213 = vld [vmem:[#allocation4 + $0x130] sm:$0xff]
        %v9214 = vld [vmem:[#allocation4 + $0x138] sm:$0xff]
        %v9215 = vld [vmem:[#allocation4 + $0x140] sm:$0xff]
        %v9216 = vld [vmem:[#allocation4 + $0x148] sm:$0xff]
        %v9217 = vld [vmem:[#allocation4 + $0x150] sm:$0xff]
        %v9218 = vld [vmem:[#allocation4 + $0x158] sm:$0xff]
        %v9219 = vld [vmem:[#allocation4 + $0x160] sm:$0xff]
        %v9220 = vld [vmem:[#allocation4 + $0x168] sm:$0xff]
        %v9221 = vld [vmem:[#allocation4 + $0x170] sm:$0xff]
        %v9222 = vld [vmem:[#allocation4 + $0x178] sm:$0xff]
        %v9223 = vld [vmem:[#allocation4 + $0x180] sm:$0xff]
        %v9224 = vld [vmem:[#allocation4 + $0x188] sm:$0xff]
        %v9225 = vld [vmem:[#allocation4 + $0x190] sm:$0xff]
        %v9226 = vld [vmem:[#allocation4 + $0x198] sm:$0xff]
        %v9227 = vld [vmem:[#allocation4 + $0x1a0] sm:$0xff]
        %v9228 = vld [vmem:[#allocation4 + $0x1a8] sm:$0xff]
        %v9229 = vld [vmem:[#allocation4 + $0x1b0] sm:$0xff]
        %v9230 = vld [vmem:[#allocation4 + $0x1b8] sm:$0xff]
        %v9231 = vld [vmem:[#allocation4 + $0x1c0] sm:$0xff]
        %v9232 = vld [vmem:[#allocation4 + $0x1c8] sm:$0xff]
        %v9233 = vld [vmem:[#allocation4 + $0x1d0] sm:$0xff]
        %v9234 = vld [vmem:[#allocation4 + $0x1d8] sm:$0xff]
        %v9235 = vld [vmem:[#allocation4 + $0x1e0] sm:$0xff]
        %v9236 = vld [vmem:[#allocation4 + $0x1e8] sm:$0xff]
        %v9237 = vld [vmem:[#allocation4 + $0x1f0] sm:$0xff]
        %v9238 = vld [vmem:[#allocation4 + $0x1f8] sm:$0xff]
        %v9239 = vld [vmem:[#allocation4 + $0x200] sm:$0xff]
        %v9240 = vld [vmem:[#allocation4 + $0x208] sm:$0xff]
        %v9241 = vld [vmem:[#allocation4 + $0x210] sm:$0xff]
        %v9242 = vld [vmem:[#allocation4 + $0x218] sm:$0xff]
        %v9243 = vld [vmem:[#allocation4 + $0x220] sm:$0xff]
        %v9244 = vld [vmem:[#allocation4 + $0x228] sm:$0xff]
        %v9245 = vld [vmem:[#allocation4 + $0x230] sm:$0xff]
        %v9246 = vld [vmem:[#allocation4 + $0x238] sm:$0xff]
        %v9247 = vld [vmem:[#allocation4 + $0x240] sm:$0xff]
        %v9248 = vld [vmem:[#allocation4 + $0x248] sm:$0xff]
        %v9249 = vld [vmem:[#allocation4 + $0x250] sm:$0xff]
        %v9250 = vld [vmem:[#allocation4 + $0x258] sm:$0xff]
        %v9251 = vld [vmem:[#allocation4 + $0x260] sm:$0xff]
        %v9252 = vld [vmem:[#allocation4 + $0x268] sm:$0xff]
        %v9253 = vld [vmem:[#allocation4 + $0x270] sm:$0xff]
        %v9254 = vld [vmem:[#allocation4 + $0x278] sm:$0xff]
        %v9255 = vld [vmem:[#allocation4 + $0x280] sm:$0xff]
        %v9256 = vld [vmem:[#allocation4 + $0x288] sm:$0xff]
        %v9257 = vld [vmem:[#allocation4 + $0x290] sm:$0xff]
        %v9258 = vld [vmem:[#allocation4 + $0x298] sm:$0xff]
        %v9259 = vld [vmem:[#allocation4 + $0x2a0] sm:$0xff]
        %v9260 = vld [vmem:[#allocation4 + $0x2a8] sm:$0xff]
        %v9261 = vld [vmem:[#allocation4 + $0x2b0] sm:$0xff]
        %v9262 = vld [vmem:[#allocation4 + $0x2b8] sm:$0xff]
        %v9263 = vld [vmem:[#allocation4 + $0x2c0] sm:$0xff]
        %v9264 = vld [vmem:[#allocation4 + $0x2c8] sm:$0xff]
        %v9265 = vld [vmem:[#allocation4 + $0x2d0] sm:$0xff]
        %v9266 = vld [vmem:[#allocation4 + $0x2d8] sm:$0xff]
        %v9267 = vld [vmem:[#allocation4 + $0x2e0] sm:$0xff]
        %v9268 = vld [vmem:[#allocation4 + $0x2e8] sm:$0xff]
        %v9269 = vld [vmem:[#allocation4 + $0x2f0] sm:$0xff]
        %v9270 = vld [vmem:[#allocation4 + $0x2f8] sm:$0xff]
        %v9271 = vld [vmem:[#allocation4 + $0x300] sm:$0xff]
        %v9272 = vld [vmem:[#allocation4 + $0x308] sm:$0xff]
        %v9273 = vld [vmem:[#allocation4 + $0x310] sm:$0xff]
        %v9274 = vld [vmem:[#allocation4 + $0x318] sm:$0xff]
        %v9275 = vld [vmem:[#allocation4 + $0x320] sm:$0xff]
        %v9276 = vld [vmem:[#allocation4 + $0x328] sm:$0xff]
        %v9277 = vld [vmem:[#allocation4 + $0x330] sm:$0xff]
        %v9278 = vld [vmem:[#allocation4 + $0x338] sm:$0xff]
        %v9279 = vld [vmem:[#allocation4 + $0x340] sm:$0xff]
        %v9280 = vld [vmem:[#allocation4 + $0x348] sm:$0xff]
        %v9281 = vld [vmem:[#allocation4 + $0x350] sm:$0xff]
        %v9282 = vld [vmem:[#allocation4 + $0x358] sm:$0xff]
        %v9283 = vld [vmem:[#allocation4 + $0x360] sm:$0xff]
        %v9284 = vld [vmem:[#allocation4 + $0x368] sm:$0xff]
        %v9285 = vld [vmem:[#allocation4 + $0x370] sm:$0xff]
        %v9286 = vld [vmem:[#allocation4 + $0x378] sm:$0xff]
        %v9287 = vld [vmem:[#allocation4 + $0x380] sm:$0xff]
        %v9288 = vld [vmem:[#allocation4 + $0x388] sm:$0xff]
        %v9289 = vld [vmem:[#allocation4 + $0x390] sm:$0xff]
        %v9290 = vld [vmem:[#allocation4 + $0x398] sm:$0xff]
        %v9291 = vld [vmem:[#allocation4 + $0x3a0] sm:$0xff]
        %v9292 = vld [vmem:[#allocation4 + $0x3a8] sm:$0xff]
        %v9293 = vld [vmem:[#allocation4 + $0x3b0] sm:$0xff]
        %v9294 = vld [vmem:[#allocation4 + $0x3b8] sm:$0xff]
        %v9295 = vld [vmem:[#allocation4 + $0x3c0] sm:$0xff]
        %v9296 = vld [vmem:[#allocation4 + $0x3c8] sm:$0xff]
        %v9297 = vld [vmem:[#allocation4 + $0x3d0] sm:$0xff]
        %v9298 = vld [vmem:[#allocation4 + $0x3d8] sm:$0xff]
        %v9299 = vld [vmem:[#allocation4 + $0x3e0] sm:$0xff]
        %v9300 = vld [vmem:[#allocation4 + $0x3e8] sm:$0xff]
        %v9301 = vld [vmem:[#allocation4 + $0x3f0] sm:$0xff]
        %v9302 = vld [vmem:[#allocation4 + $0x3f8] sm:$0xff]
        %v9303 = vld [vmem:[#allocation4 + $0x400] sm:$0xff]
        %v9304 = vld [vmem:[#allocation4 + $0x408] sm:$0xff]
        %v9305 = vld [vmem:[#allocation4 + $0x410] sm:$0xff]
        %v9306 = vld [vmem:[#allocation4 + $0x418] sm:$0xff]
        %v9307 = vld [vmem:[#allocation4 + $0x420] sm:$0xff]
        %v9308 = vld [vmem:[#allocation4 + $0x428] sm:$0xff]
        %v9309 = vld [vmem:[#allocation4 + $0x430] sm:$0xff]
        %v9310 = vld [vmem:[#allocation4 + $0x438] sm:$0xff]
        %v9311 = vld [vmem:[#allocation4 + $0x440] sm:$0xff]
        %v9312 = vld [vmem:[#allocation4 + $0x448] sm:$0xff]
        %v9313 = vld [vmem:[#allocation4 + $0x450] sm:$0xff]
        %v9314 = vld [vmem:[#allocation4 + $0x458] sm:$0xff]
        %v9315 = vld [vmem:[#allocation4 + $0x460] sm:$0xff]
        %v9316 = vld [vmem:[#allocation4 + $0x468] sm:$0xff]
        %v9317 = vld [vmem:[#allocation4 + $0x470] sm:$0xff]
        %v9318 = vld [vmem:[#allocation4 + $0x478] sm:$0xff]
        %v9319 = vld [vmem:[#allocation11] sm:$0xf]
        %v9320 = vld [vmem:[#allocation11 + $0x4] sm:$0xf]
        %v9321 = vld [vmem:[#allocation11 + $0x8] sm:$0xf]
        %v9322 = vld [vmem:[#allocation11 + $0xc] sm:$0xf]
        %v9323 = vld [vmem:[#allocation11 + $0x10] sm:$0xf]
        %v9324 = vld [vmem:[#allocation11 + $0x14] sm:$0xf]
        %v9325 = vld [vmem:[#allocation11 + $0x18] sm:$0xf]
        %v9326 = vld [vmem:[#allocation11 + $0x1c] sm:$0xf]
        %v9327 = vld [vmem:[#allocation11 + $0x20] sm:$0xf]
        %v9328 = vld [vmem:[#allocation11 + $0x24] sm:$0xf]
        %v9329 = vld [vmem:[#allocation11 + $0x28] sm:$0xf]
        %v9330 = vld [vmem:[#allocation11 + $0x2c] sm:$0xf]
        %v9331 = vld [vmem:[#allocation11 + $0x30] sm:$0xf]
        %v9332 = vld [vmem:[#allocation11 + $0x34] sm:$0xf]
        %v9333 = vld [vmem:[#allocation11 + $0x38] sm:$0xf]
        %v9334 = vld [vmem:[#allocation11 + $0x3c] sm:$0xf]
        %v9335 = vld [vmem:[#allocation11 + $0x40] sm:$0xf]
        %v9336 = vld [vmem:[#allocation11 + $0x44] sm:$0xf]
        %v9337 = vld [vmem:[#allocation11 + $0x48] sm:$0xf]
        %v9338 = vld [vmem:[#allocation11 + $0x4c] sm:$0xf]
        %v9339 = vld [vmem:[#allocation11 + $0x50] sm:$0xf]
        %v9340 = vld [vmem:[#allocation11 + $0x54] sm:$0xf]
        %v9341 = vld [vmem:[#allocation11 + $0x58] sm:$0xf]
        %v9342 = vld [vmem:[#allocation11 + $0x5c] sm:$0xf]
        %v9343 = vld [vmem:[#allocation11 + $0x60] sm:$0xf]
        %v9344 = vld [vmem:[#allocation11 + $0x64] sm:$0xf]
        %v9345 = vld [vmem:[#allocation11 + $0x68] sm:$0xf]
        %v9346 = vld [vmem:[#allocation11 + $0x6c] sm:$0xf]
        %v9347 = vld [vmem:[#allocation11 + $0x70] sm:$0xf]
        %v9348 = vld [vmem:[#allocation11 + $0x74] sm:$0xf]
        %v9349 = vld [vmem:[#allocation11 + $0x78] sm:$0xf]
        %v9350 = vld [vmem:[#allocation11 + $0x7c] sm:$0xf]
        %v9351 = vld [vmem:[#allocation11 + $0x80] sm:$0xf]
        %v9352 = vld [vmem:[#allocation11 + $0x84] sm:$0xf]
        %v9353 = vld [vmem:[#allocation11 + $0x88] sm:$0xf]
        %v9354 = vld [vmem:[#allocation11 + $0x8c] sm:$0xf]
        %v9355 = vld [vmem:[#allocation11 + $0x90] sm:$0xf]
        %v9356 = vld [vmem:[#allocation11 + $0x94] sm:$0xf]
        %v9357 = vld [vmem:[#allocation11 + $0x98] sm:$0xf]
        %v9358 = vld [vmem:[#allocation11 + $0x9c] sm:$0xf]
        %v9359 = vld [vmem:[#allocation11 + $0xa0] sm:$0xf]
        %v9360 = vld [vmem:[#allocation11 + $0xa4] sm:$0xf]
        %v9361 = vld [vmem:[#allocation11 + $0xa8] sm:$0xf]
        %v9362 = vld [vmem:[#allocation11 + $0xac] sm:$0xf]
        %v9363 = vld [vmem:[#allocation11 + $0xb0] sm:$0xf]
        %v9364 = vld [vmem:[#allocation11 + $0xb4] sm:$0xf]
        %v9365 = vld [vmem:[#allocation11 + $0xb8] sm:$0xf]
        %v9366 = vld [vmem:[#allocation11 + $0xbc] sm:$0xf]
        %v9367 = vld [vmem:[#allocation11 + $0xc0] sm:$0xf]
        %v9368 = vld [vmem:[#allocation11 + $0xc4] sm:$0xf]
        %v9369 = vld [vmem:[#allocation11 + $0xc8] sm:$0xf]
        %v9370 = vld [vmem:[#allocation11 + $0xcc] sm:$0xf]
        %v9371 = vld [vmem:[#allocation11 + $0xd0] sm:$0xf]
        %v9372 = vld [vmem:[#allocation11 + $0xd4] sm:$0xf]
        %v9373 = vld [vmem:[#allocation11 + $0xd8] sm:$0xf]
        %v9374 = vld [vmem:[#allocation11 + $0xdc] sm:$0xf]
        %v9375 = vld [vmem:[#allocation11 + $0xe0] sm:$0xf]
        %v9376 = vld [vmem:[#allocation11 + $0xe4] sm:$0xf]
        %v9377 = vld [vmem:[#allocation11 + $0xe8] sm:$0xf]
        %v9378 = vld [vmem:[#allocation11 + $0xec] sm:$0xf]
        %v9379 = vld [vmem:[#allocation11 + $0xf0] sm:$0xf]
        %v9380 = vld [vmem:[#allocation11 + $0xf4] sm:$0xf]
        %v9381 = vld [vmem:[#allocation11 + $0xf8] sm:$0xf]
        %v9382 = vld [vmem:[#allocation11 + $0xfc] sm:$0xf]
        %v9383 = vld [vmem:[#allocation11 + $0x100] sm:$0xf]
        %v9384 = vld [vmem:[#allocation11 + $0x104] sm:$0xf]
        %v9385 = vld [vmem:[#allocation11 + $0x108] sm:$0xf]
        %v9386 = vld [vmem:[#allocation11 + $0x10c] sm:$0xf]
        %v9387 = vld [vmem:[#allocation11 + $0x110] sm:$0xf]
        %v9388 = vld [vmem:[#allocation11 + $0x114] sm:$0xf]
        %v9389 = vld [vmem:[#allocation11 + $0x118] sm:$0xf]
        %v9390 = vld [vmem:[#allocation11 + $0x11c] sm:$0xf]
        %v9391 = vld [vmem:[#allocation11 + $0x120] sm:$0xf]
        %v9392 = vld [vmem:[#allocation11 + $0x124] sm:$0xf]
        %v9393 = vld [vmem:[#allocation11 + $0x128] sm:$0xf]
        %v9394 = vld [vmem:[#allocation11 + $0x12c] sm:$0xf]
        %v9395 = vld [vmem:[#allocation11 + $0x130] sm:$0xf]
        %v9396 = vld [vmem:[#allocation11 + $0x134] sm:$0xf]
        %v9397 = vld [vmem:[#allocation11 + $0x138] sm:$0xf]
        %v9398 = vld [vmem:[#allocation11 + $0x13c] sm:$0xf]
        %v9399 = vld [vmem:[#allocation11 + $0x140] sm:$0xf]
        %v9400 = vld [vmem:[#allocation11 + $0x144] sm:$0xf]
        %v9401 = vld [vmem:[#allocation11 + $0x148] sm:$0xf]
        %v9402 = vld [vmem:[#allocation11 + $0x14c] sm:$0xf]
        %v9403 = vld [vmem:[#allocation11 + $0x150] sm:$0xf]
        %v9404 = vld [vmem:[#allocation11 + $0x154] sm:$0xf]
        %v9405 = vld [vmem:[#allocation11 + $0x158] sm:$0xf]
        %v9406 = vld [vmem:[#allocation11 + $0x15c] sm:$0xf]
        %v9407 = vld [vmem:[#allocation11 + $0x160] sm:$0xf]
        %v9408 = vld [vmem:[#allocation11 + $0x164] sm:$0xf]
        %v9409 = vld [vmem:[#allocation11 + $0x168] sm:$0xf]
        %v9410 = vld [vmem:[#allocation11 + $0x16c] sm:$0xf]
        %v9411 = vld [vmem:[#allocation11 + $0x170] sm:$0xf]
        %v9412 = vld [vmem:[#allocation11 + $0x174] sm:$0xf]
        %v9413 = vld [vmem:[#allocation11 + $0x178] sm:$0xf]
        %v9414 = vld [vmem:[#allocation11 + $0x17c] sm:$0xf]
        %v9415 = vld [vmem:[#allocation11 + $0x180] sm:$0xf]
        %v9416 = vld [vmem:[#allocation11 + $0x184] sm:$0xf]
        %v9417 = vld [vmem:[#allocation11 + $0x188] sm:$0xf]
        %v9418 = vld [vmem:[#allocation11 + $0x18c] sm:$0xf]
        %v9419 = vld [vmem:[#allocation11 + $0x190] sm:$0xf]
        %v9420 = vld [vmem:[#allocation11 + $0x194] sm:$0xf]
        %v9421 = vld [vmem:[#allocation11 + $0x198] sm:$0xf]
        %v9422 = vld [vmem:[#allocation11 + $0x19c] sm:$0xf]
        %v9423 = vld [vmem:[#allocation11 + $0x1a0] sm:$0xf]
        %v9424 = vld [vmem:[#allocation11 + $0x1a4] sm:$0xf]
        %v9425 = vld [vmem:[#allocation11 + $0x1a8] sm:$0xf]
        %v9426 = vld [vmem:[#allocation11 + $0x1ac] sm:$0xf]
        %v9427 = vld [vmem:[#allocation11 + $0x1b0] sm:$0xf]
        %v9428 = vld [vmem:[#allocation11 + $0x1b4] sm:$0xf]
        %v9429 = vld [vmem:[#allocation11 + $0x1b8] sm:$0xf]
        %v9430 = vld [vmem:[#allocation11 + $0x1bc] sm:$0xf]
        %v9431 = vld [vmem:[#allocation11 + $0x1c0] sm:$0xf]
        %v9432 = vld [vmem:[#allocation11 + $0x1c4] sm:$0xf]
        %v9433 = vld [vmem:[#allocation11 + $0x1c8] sm:$0xf]
        %v9434 = vld [vmem:[#allocation11 + $0x1cc] sm:$0xf]
        %v9435 = vld [vmem:[#allocation11 + $0x1d0] sm:$0xf]
        %v9436 = vld [vmem:[#allocation11 + $0x1d4] sm:$0xf]
        %v9437 = vld [vmem:[#allocation11 + $0x1d8] sm:$0xf]
        %v9438 = vld [vmem:[#allocation11 + $0x1dc] sm:$0xf]
        %v9439 = vld [vmem:[#allocation11 + $0x1e0] sm:$0xf]
        %v9440 = vld [vmem:[#allocation11 + $0x1e4] sm:$0xf]
        %v9441 = vld [vmem:[#allocation11 + $0x1e8] sm:$0xf]
        %v9442 = vld [vmem:[#allocation11 + $0x1ec] sm:$0xf]
        %v9443 = vld [vmem:[#allocation11 + $0x1f0] sm:$0xf]
        %v9444 = vld [vmem:[#allocation11 + $0x1f4] sm:$0xf]
        %v9445 = vld [vmem:[#allocation11 + $0x1f8] sm:$0xf]
        %v9446 = vld [vmem:[#allocation11 + $0x1fc] sm:$0xf]
        %v9447 = vld [vmem:[#allocation11 + $0x200] sm:$0xf]
        %v9448 = vld [vmem:[#allocation11 + $0x204] sm:$0xf]
        %v9449 = vld [vmem:[#allocation11 + $0x208] sm:$0xf]
        %v9450 = vld [vmem:[#allocation11 + $0x20c] sm:$0xf]
        %v9451 = vld [vmem:[#allocation11 + $0x210] sm:$0xf]
        %v9452 = vld [vmem:[#allocation11 + $0x214] sm:$0xf]
        %v9453 = vld [vmem:[#allocation11 + $0x218] sm:$0xf]
        %v9454 = vld [vmem:[#allocation11 + $0x21c] sm:$0xf]
        %v9455 = vld [vmem:[#allocation11 + $0x220] sm:$0xf]
        %v9456 = vld [vmem:[#allocation11 + $0x224] sm:$0xf]
        %v9457 = vld [vmem:[#allocation11 + $0x228] sm:$0xf]
        %v9458 = vld [vmem:[#allocation11 + $0x22c] sm:$0xf]
        %v9459 = vld [vmem:[#allocation11 + $0x230] sm:$0xf]
        %v9460 = vld [vmem:[#allocation11 + $0x234] sm:$0xf]
        %v9461 = vld [vmem:[#allocation11 + $0x238] sm:$0xf]
        %v9462 = vld [vmem:[#allocation11 + $0x23c] sm:$0xf]
        %v9463 = vld [vmem:[%s6] sm:$0x1]
        %v9465 = vlaneseq
        %v9466 = vshrl.u32 %v9465, 7
        %v9467 = vsub.s32 0, %v9466
        %v9468 = vrot.slane %v9463, %v9467
        %v9614 = vunpack.c.l.b16 %v9319
        %v9615 = vunpack.c.l.b16 %v9320
        %v9616 = vunpack.c.l.b16 %v9321
        %v9617 = vunpack.c.l.b16 %v9322
        %v9618 = vunpack.c.l.b16 %v9323
        %v9619 = vunpack.c.l.b16 %v9324
        %v9620 = vunpack.c.l.b16 %v9325
        %v9621 = vunpack.c.l.b16 %v9326
        %v9622 = vunpack.c.l.b16 %v9327
        %v9623 = vunpack.c.l.b16 %v9328
        %v9624 = vunpack.c.l.b16 %v9329
        %v9625 = vunpack.c.l.b16 %v9330
        %v9626 = vunpack.c.l.b16 %v9331
        %v9627 = vunpack.c.l.b16 %v9332
        %v9628 = vunpack.c.l.b16 %v9333
        %v9629 = vunpack.c.l.b16 %v9334
        %v9630 = vunpack.c.l.b16 %v9335
        %v9631 = vunpack.c.l.b16 %v9336
        %v9632 = vunpack.c.l.b16 %v9337
        %v9633 = vunpack.c.l.b16 %v9338
        %v9634 = vunpack.c.l.b16 %v9339
        %v9635 = vunpack.c.l.b16 %v9340
        %v9636 = vunpack.c.l.b16 %v9341
        %v9637 = vunpack.c.l.b16 %v9342
        %v9638 = vunpack.c.l.b16 %v9343
        %v9639 = vunpack.c.l.b16 %v9344
        %v9640 = vunpack.c.l.b16 %v9345
        %v9641 = vunpack.c.l.b16 %v9346
        %v9642 = vunpack.c.l.b16 %v9347
        %v9643 = vunpack.c.l.b16 %v9348
        %v9644 = vunpack.c.l.b16 %v9349
        %v9645 = vunpack.c.l.b16 %v9350
        %v9646 = vunpack.c.l.b16 %v9351
        %v9647 = vunpack.c.l.b16 %v9352
        %v9648 = vunpack.c.l.b16 %v9353
        %v9649 = vunpack.c.l.b16 %v9354
        %v9650 = vunpack.c.l.b16 %v9355
        %v9651 = vunpack.c.l.b16 %v9356
        %v9652 = vunpack.c.l.b16 %v9357
        %v9653 = vunpack.c.l.b16 %v9358
        %v9654 = vunpack.c.l.b16 %v9359
        %v9655 = vunpack.c.l.b16 %v9360
        %v9656 = vunpack.c.l.b16 %v9361
        %v9657 = vunpack.c.l.b16 %v9362
        %v9658 = vunpack.c.l.b16 %v9363
        %v9659 = vunpack.c.l.b16 %v9364
        %v9660 = vunpack.c.l.b16 %v9365
        %v9661 = vunpack.c.l.b16 %v9366
        %v9662 = vunpack.c.l.b16 %v9367
        %v9663 = vunpack.c.l.b16 %v9368
        %v9664 = vunpack.c.l.b16 %v9369
        %v9665 = vunpack.c.l.b16 %v9370
        %v9666 = vunpack.c.l.b16 %v9371
        %v9667 = vunpack.c.l.b16 %v9372
        %v9668 = vunpack.c.l.b16 %v9373
        %v9669 = vunpack.c.l.b16 %v9374
        %v9670 = vunpack.c.l.b16 %v9375
        %v9671 = vunpack.c.l.b16 %v9376
        %v9672 = vunpack.c.l.b16 %v9377
        %v9673 = vunpack.c.l.b16 %v9378
        %v9674 = vunpack.c.l.b16 %v9379
        %v9675 = vunpack.c.l.b16 %v9380
        %v9676 = vunpack.c.l.b16 %v9381
        %v9677 = vunpack.c.l.b16 %v9382
        %v9678 = vunpack.c.l.b16 %v9383
        %v9679 = vunpack.c.l.b16 %v9384
        %v9680 = vunpack.c.l.b16 %v9385
        %v9681 = vunpack.c.l.b16 %v9386
        %v9682 = vunpack.c.l.b16 %v9387
        %v9683 = vunpack.c.l.b16 %v9388
        %v9684 = vunpack.c.l.b16 %v9389
        %v9685 = vunpack.c.l.b16 %v9390
        %v9686 = vunpack.c.l.b16 %v9391
        %v9687 = vunpack.c.l.b16 %v9392
        %v9688 = vunpack.c.l.b16 %v9393
        %v9689 = vunpack.c.l.b16 %v9394
        %v9690 = vunpack.c.l.b16 %v9395
        %v9691 = vunpack.c.l.b16 %v9396
        %v9692 = vunpack.c.l.b16 %v9397
        %v9693 = vunpack.c.l.b16 %v9398
        %v9694 = vunpack.c.l.b16 %v9399
        %v9695 = vunpack.c.l.b16 %v9400
        %v9696 = vunpack.c.l.b16 %v9401
        %v9697 = vunpack.c.l.b16 %v9402
        %v9698 = vunpack.c.l.b16 %v9403
        %v9699 = vunpack.c.l.b16 %v9404
        %v9700 = vunpack.c.l.b16 %v9405
        %v9701 = vunpack.c.l.b16 %v9406
        %v9702 = vunpack.c.l.b16 %v9407
        %v9703 = vunpack.c.l.b16 %v9408
        %v9704 = vunpack.c.l.b16 %v9409
        %v9705 = vunpack.c.l.b16 %v9410
        %v9706 = vunpack.c.l.b16 %v9411
        %v9707 = vunpack.c.l.b16 %v9412
        %v9708 = vunpack.c.l.b16 %v9413
        %v9709 = vunpack.c.l.b16 %v9414
        %v9710 = vunpack.c.l.b16 %v9415
        %v9711 = vunpack.c.l.b16 %v9416
        %v9712 = vunpack.c.l.b16 %v9417
        %v9713 = vunpack.c.l.b16 %v9418
        %v9714 = vunpack.c.l.b16 %v9419
        %v9715 = vunpack.c.l.b16 %v9420
        %v9716 = vunpack.c.l.b16 %v9421
        %v9717 = vunpack.c.l.b16 %v9422
        %v9718 = vunpack.c.l.b16 %v9423
        %v9719 = vunpack.c.l.b16 %v9424
        %v9720 = vunpack.c.l.b16 %v9425
        %v9721 = vunpack.c.l.b16 %v9426
        %v9722 = vunpack.c.l.b16 %v9427
        %v9723 = vunpack.c.l.b16 %v9428
        %v9724 = vunpack.c.l.b16 %v9429
        %v9725 = vunpack.c.l.b16 %v9430
        %v9726 = vunpack.c.l.b16 %v9431
        %v9727 = vunpack.c.l.b16 %v9432
        %v9728 = vunpack.c.l.b16 %v9433
        %v9729 = vunpack.c.l.b16 %v9434
        %v9730 = vunpack.c.l.b16 %v9435
        %v9731 = vunpack.c.l.b16 %v9436
        %v9732 = vunpack.c.l.b16 %v9437
        %v9733 = vunpack.c.l.b16 %v9438
        %v9734 = vunpack.c.l.b16 %v9439
        %v9735 = vunpack.c.l.b16 %v9440
        %v9736 = vunpack.c.l.b16 %v9441
        %v9737 = vunpack.c.l.b16 %v9442
        %v9738 = vunpack.c.l.b16 %v9443
        %v9739 = vunpack.c.l.b16 %v9444
        %v9740 = vunpack.c.l.b16 %v9445
        %v9741 = vunpack.c.l.b16 %v9446
        %v9742 = vunpack.c.l.b16 %v9447
        %v9743 = vunpack.c.l.b16 %v9448
        %v9744 = vunpack.c.l.b16 %v9449
        %v9745 = vunpack.c.l.b16 %v9450
        %v9746 = vunpack.c.l.b16 %v9451
        %v9747 = vunpack.c.l.b16 %v9452
        %v9748 = vunpack.c.l.b16 %v9453
        %v9749 = vunpack.c.l.b16 %v9454
        %v9750 = vunpack.c.l.b16 %v9455
        %v9751 = vunpack.c.l.b16 %v9456
        %v9752 = vunpack.c.l.b16 %v9457
        %v9753 = vunpack.c.l.b16 %v9458
        %v9754 = vunpack.c.l.b16 %v9459
        %v9755 = vunpack.c.l.b16 %v9460
        %v9756 = vunpack.c.l.b16 %v9461
        %v9757 = vunpack.c.l.b16 %v9462
        %v9758 = vpack.c.b16 %v9615, %v9614
        %v9759 = vpack.c.b16 %v9617, %v9616
        %v9760 = vpack.c.b16 %v9619, %v9618
        %v9761 = vpack.c.b16 %v9621, %v9620
        %v9762 = vpack.c.b16 %v9623, %v9622
        %v9763 = vpack.c.b16 %v9625, %v9624
        %v9764 = vpack.c.b16 %v9627, %v9626
        %v9765 = vpack.c.b16 %v9629, %v9628
        %v9766 = vpack.c.b16 %v9631, %v9630
        %v9767 = vpack.c.b16 %v9633, %v9632
        %v9768 = vpack.c.b16 %v9635, %v9634
        %v9769 = vpack.c.b16 %v9637, %v9636
        %v9770 = vpack.c.b16 %v9639, %v9638
        %v9771 = vpack.c.b16 %v9641, %v9640
        %v9772 = vpack.c.b16 %v9643, %v9642
        %v9773 = vpack.c.b16 %v9645, %v9644
        %v9774 = vpack.c.b16 %v9647, %v9646
        %v9775 = vpack.c.b16 %v9649, %v9648
        %v9776 = vpack.c.b16 %v9651, %v9650
        %v9777 = vpack.c.b16 %v9653, %v9652
        %v9778 = vpack.c.b16 %v9655, %v9654
        %v9779 = vpack.c.b16 %v9657, %v9656
        %v9780 = vpack.c.b16 %v9659, %v9658
        %v9781 = vpack.c.b16 %v9661, %v9660
        %v9782 = vpack.c.b16 %v9663, %v9662
        %v9783 = vpack.c.b16 %v9665, %v9664
        %v9784 = vpack.c.b16 %v9667, %v9666
        %v9785 = vpack.c.b16 %v9669, %v9668
        %v9786 = vpack.c.b16 %v9671, %v9670
        %v9787 = vpack.c.b16 %v9673, %v9672
        %v9788 = vpack.c.b16 %v9675, %v9674
        %v9789 = vpack.c.b16 %v9677, %v9676
        %v9790 = vpack.c.b16 %v9679, %v9678
        %v9791 = vpack.c.b16 %v9681, %v9680
        %v9792 = vpack.c.b16 %v9683, %v9682
        %v9793 = vpack.c.b16 %v9685, %v9684
        %v9794 = vpack.c.b16 %v9687, %v9686
        %v9795 = vpack.c.b16 %v9689, %v9688
        %v9796 = vpack.c.b16 %v9691, %v9690
        %v9797 = vpack.c.b16 %v9693, %v9692
        %v9798 = vpack.c.b16 %v9695, %v9694
        %v9799 = vpack.c.b16 %v9697, %v9696
        %v9800 = vpack.c.b16 %v9699, %v9698
        %v9801 = vpack.c.b16 %v9701, %v9700
        %v9802 = vpack.c.b16 %v9703, %v9702
        %v9803 = vpack.c.b16 %v9705, %v9704
        %v9804 = vpack.c.b16 %v9707, %v9706
        %v9805 = vpack.c.b16 %v9709, %v9708
        %v9806 = vpack.c.b16 %v9711, %v9710
        %v9807 = vpack.c.b16 %v9713, %v9712
        %v9808 = vpack.c.b16 %v9715, %v9714
        %v9809 = vpack.c.b16 %v9717, %v9716
        %v9810 = vpack.c.b16 %v9719, %v9718
        %v9811 = vpack.c.b16 %v9721, %v9720
        %v9812 = vpack.c.b16 %v9723, %v9722
        %v9813 = vpack.c.b16 %v9725, %v9724
        %v9814 = vpack.c.b16 %v9727, %v9726
        %v9815 = vpack.c.b16 %v9729, %v9728
        %v9816 = vpack.c.b16 %v9731, %v9730
        %v9817 = vpack.c.b16 %v9733, %v9732
        %v9818 = vpack.c.b16 %v9735, %v9734
        %v9819 = vpack.c.b16 %v9737, %v9736
        %v9820 = vpack.c.b16 %v9739, %v9738
        %v9821 = vpack.c.b16 %v9741, %v9740
        %v9822 = vpack.c.b16 %v9743, %v9742
        %v9823 = vpack.c.b16 %v9745, %v9744
        %v9824 = vpack.c.b16 %v9747, %v9746
        %v9825 = vpack.c.b16 %v9749, %v9748
        %v9826 = vpack.c.b16 %v9751, %v9750
        %v9827 = vpack.c.b16 %v9753, %v9752
        %v9828 = vpack.c.b16 %v9755, %v9754
        %v9829 = vpack.c.b16 %v9757, %v9756
        %9902 = vmatprep.subr.bf16.mxu0 0
        %9903 = vmatpush1.bf16.msra.mxu0 %v9758
        %9904 = vmatprep.subr.bf16.mxu0 0
        %9905 = vmatpush1.bf16.msra.mxu0 %v9759
        %9906 = vmatprep.subr.bf16.mxu0 0
        %9907 = vmatpush1.bf16.msra.mxu0 %v9760
        %9908 = vmatprep.subr.bf16.mxu0 0
        %9909 = vmatpush1.bf16.msra.mxu0 %v9761
        %9910 = vmatprep.subr.bf16.mxu0 0
        %9911 = vmatpush1.bf16.msra.mxu0 %v9762
        %9912 = vmatprep.subr.bf16.mxu0 0
        %9913 = vmatpush1.bf16.msra.mxu0 %v9763
        %9914 = vmatprep.subr.bf16.mxu0 0
        %9915 = vmatpush1.bf16.msra.mxu0 %v9764
        %9916 = vmatprep.subr.bf16.mxu0 0
        %9917 = vmatpush1.bf16.msra.mxu0 %v9765
        %9918 = vmatprep.subr.bf16.mxu0 0
        %9919 = vmatpush1.bf16.msra.mxu0 %v9766
        %9920 = vmatprep.subr.bf16.mxu0 0
        %9921 = vmatpush1.bf16.msra.mxu0 %v9767
        %9922 = vmatprep.subr.bf16.mxu0 0
        %9923 = vmatpush1.bf16.msra.mxu0 %v9768
        %9924 = vmatprep.subr.bf16.mxu0 0
        %9925 = vmatpush1.bf16.msra.mxu0 %v9769
        %9926 = vmatprep.subr.bf16.mxu0 0
        %9927 = vmatpush1.bf16.msra.mxu0 %v9770
        %9928 = vmatprep.subr.bf16.mxu0 0
        %9929 = vmatpush1.bf16.msra.mxu0 %v9771
        %9930 = vmatprep.subr.bf16.mxu0 0
        %9931 = vmatpush1.bf16.msra.mxu0 %v9772
        %9932 = vmatprep.subr.bf16.mxu0 0
        %9933 = vmatpush1.bf16.msra.mxu0 %v9773
        %9934 = vmatprep.mubr.bf16.mxu0 %v9176
        %9935 = vmatmul.mubr.bf16.gmra.mrb[0].mxu0 %v9175
        %v9936 = vpop.f32.mrb[0].mxu0
        %v9937 = vadd.f32 %v9468, %v9936
        %v9938 = vpop.f32.mrb[0].mxu0
        %v9939 = vpop.f32.mrb[0].mxu0
        %v9940 = vadd.f32 %v9468, %v9939
        %v9941 = vpop.f32.mrb[0].mxu0
        %9942 = vmatprep.mubr.bf16.mxu0 %v9185
        %9943 = vmatmul.mubr.bf16.gmra.mrb[0].mxu0 %v9184
        %v9944 = vpop.f32.mrb[0].mxu0
        %v9945 = vadd.f32 %v9468, %v9944
        %v9946 = vpop.f32.mrb[0].mxu0
        %v9947 = vpop.f32.mrb[0].mxu0
        %v9948 = vadd.f32 %v9468, %v9947
        %v9949 = vpop.f32.mrb[0].mxu0
        %9950 = vmatprep.mubr.bf16.mxu0 %v9194
        %9951 = vmatmul.mubr.bf16.gmra.mrb[0].mxu0 %v9193
        %v9952 = vpop.f32.mrb[0].mxu0
        %v9953 = vadd.f32 %v9468, %v9952
        %v9954 = vpop.f32.mrb[0].mxu0
        %v9955 = vpop.f32.mrb[0].mxu0
        %v9956 = vadd.f32 %v9468, %v9955
        %v9957 = vpop.f32.mrb[0].mxu0
        %9958 = vmatprep.mubr.bf16.mxu0 %v9203
        %9959 = vmatmul.mubr.bf16.gmra.mrb[0].mxu0 %v9202
        %v9960 = vpop.f32.mrb[0].mxu0
        %v9961 = vadd.f32 %v9468, %v9960
        %v9962 = vpop.f32.mrb[0].mxu0
        %v9963 = vpop.f32.mrb[0].mxu0
        %v9964 = vadd.f32 %v9468, %v9963
        %v9965 = vpop.f32.mrb[0].mxu0
        %9966 = vmatprep.mubr.bf16.mxu0 %v9212
        %9967 = vmatmul.mubr.bf16.gmra.mrb[0].mxu0 %v9211
        %v9968 = vpop.f32.mrb[0].mxu0
        %v9969 = vadd.f32 %v9468, %v9968
        %v9970 = vpop.f32.mrb[0].mxu0
        %v9971 = vpop.f32.mrb[0].mxu0
        %v9972 = vadd.f32 %v9468, %v9971
        %v9973 = vpop.f32.mrb[0].mxu0
        %9974 = vmatprep.mubr.bf16.mxu0 %v9221
        %9975 = vmatmul.mubr.bf16.gmra.mrb[0].mxu0 %v9220
        %v9976 = vpop.f32.mrb[0].mxu0
        %v9977 = vadd.f32 %v9468, %v9976
        %v9978 = vpop.f32.mrb[0].mxu0
        %v9979 = vpop.f32.mrb[0].mxu0
        %v9980 = vadd.f32 %v9468, %v9979
        %v9981 = vpop.f32.mrb[0].mxu0
        %9982 = vmatprep.mubr.bf16.mxu0 %v9230
        %9983 = vmatmul.mubr.bf16.gmra.mrb[0].mxu0 %v9229
        %v9984 = vpop.f32.mrb[0].mxu0
        %v9985 = vadd.f32 %v9468, %v9984
        %v9986 = vpop.f32.mrb[0].mxu0
        %v9987 = vpop.f32.mrb[0].mxu0
        %v9988 = vadd.f32 %v9468, %v9987
        %v9989 = vpop.f32.mrb[0].mxu0
        %9990 = vmatprep.mubr.bf16.mxu0 %v9239
        %9991 = vmatmul.mubr.bf16.gmra.mrb[0].mxu0 %v9238
        %v9992 = vpop.f32.mrb[0].mxu0
        %v9993 = vadd.f32 %v9468, %v9992
        %v9994 = vpop.f32.mrb[0].mxu0
        %v9995 = vpop.f32.mrb[0].mxu0
        %v9996 = vadd.f32 %v9468, %v9995
        %v9997 = vpop.f32.mrb[0].mxu0
        %9998 = vmatprep.mubr.bf16.mxu0 %v9248
        %9999 = vmatmul.mubr.bf16.gmra.mrb[0].mxu0 %v9247
        %v10000 = vpop.f32.mrb[0].mxu0
        %v10001 = vadd.f32 %v9468, %v10000
        %v10002 = vpop.f32.mrb[0].mxu0
        %v10003 = vpop.f32.mrb[0].mxu0
        %v10004 = vadd.f32 %v9468, %v10003
        %v10005 = vpop.f32.mrb[0].mxu0
        %10006 = vmatprep.mubr.bf16.mxu0 %v9257
        %10007 = vmatmul.mubr.bf16.gmra.mrb[0].mxu0 %v9256
        %v10008 = vpop.f32.mrb[0].mxu0
        %v10009 = vadd.f32 %v9468, %v10008
        %v10010 = vpop.f32.mrb[0].mxu0
        %v10011 = vpop.f32.mrb[0].mxu0
        %v10012 = vadd.f32 %v9468, %v10011
        %v10013 = vpop.f32.mrb[0].mxu0
        %10014 = vmatprep.mubr.bf16.mxu0 %v9266
        %10015 = vmatmul.mubr.bf16.gmra.mrb[0].mxu0 %v9265
        %v10016 = vpop.f32.mrb[0].mxu0
        %v10017 = vadd.f32 %v9468, %v10016
        %v10018 = vpop.f32.mrb[0].mxu0
        %v10019 = vpop.f32.mrb[0].mxu0
        %v10020 = vadd.f32 %v9468, %v10019
        %v10021 = vpop.f32.mrb[0].mxu0
        %10022 = vmatprep.mubr.bf16.mxu0 %v9275
        %10023 = vmatmul.mubr.bf16.gmra.mrb[0].mxu0 %v9274
        %v10024 = vpop.f32.mrb[0].mxu0
        %v10025 = vadd.f32 %v9468, %v10024
        %v10026 = vpop.f32.mrb[0].mxu0
        %v10027 = vpop.f32.mrb[0].mxu0
        %v10028 = vadd.f32 %v9468, %v10027
        %v10029 = vpop.f32.mrb[0].mxu0
        %10030 = vmatprep.mubr.bf16.mxu0 %v9284
        %10031 = vmatmul.mubr.bf16.gmra.mrb[0].mxu0 %v9283
        %v10032 = vpop.f32.mrb[0].mxu0
        %v10033 = vadd.f32 %v9468, %v10032
        %v10034 = vpop.f32.mrb[0].mxu0
        %v10035 = vpop.f32.mrb[0].mxu0
        %v10036 = vadd.f32 %v9468, %v10035
        %v10037 = vpop.f32.mrb[0].mxu0
        %10038 = vmatprep.mubr.bf16.mxu0 %v9293
        %10039 = vmatmul.mubr.bf16.gmra.mrb[0].mxu0 %v9292
        %v10040 = vpop.f32.mrb[0].mxu0
        %v10041 = vadd.f32 %v9468, %v10040
        %v10042 = vpop.f32.mrb[0].mxu0
        %v10043 = vpop.f32.mrb[0].mxu0
        %v10044 = vadd.f32 %v9468, %v10043
        %v10045 = vpop.f32.mrb[0].mxu0
        %10046 = vmatprep.mubr.bf16.mxu0 %v9302
        %10047 = vmatmul.mubr.bf16.gmra.mrb[0].mxu0 %v9301
        %v10048 = vpop.f32.mrb[0].mxu0
        %v10049 = vadd.f32 %v9468, %v10048
        %v10050 = vpop.f32.mrb[0].mxu0
        %v10051 = vpop.f32.mrb[0].mxu0
        %v10052 = vadd.f32 %v9468, %v10051
        %v10053 = vpop.f32.mrb[0].mxu0
        %10054 = vmatprep.mubr.bf16.mxu0 %v9311
        %10055 = vmatmul.mubr.bf16.gmra.mrb[0].mxu0 %v9310
        %v10056 = vpop.f32.mrb[0].mxu0
        %v10057 = vadd.f32 %v9468, %v10056
        %v10058 = vpop.f32.mrb[0].mxu0
        %v10059 = vpop.f32.mrb[0].mxu0
        %v10060 = vadd.f32 %v9468, %v10059
        %v10061 = vpop.f32.mrb[0].mxu0
        %10062 = vdwg.mxu0
        %10063 = vmatprep.subr.bf16.mxu0 0
        %10064 = vmatpush1.bf16.msra.mxu0 %v9774
        %10065 = vmatprep.subr.bf16.mxu0 0
        %10066 = vmatpush1.bf16.msra.mxu0 %v9775
        %10067 = vmatprep.subr.bf16.mxu0 0
        %10068 = vmatpush1.bf16.msra.mxu0 %v9776
        %10069 = vmatprep.subr.bf16.mxu0 0
        %10070 = vmatpush1.bf16.msra.mxu0 %v9777
        %10071 = vmatprep.subr.bf16.mxu0 0
        %10072 = vmatpush1.bf16.msra.mxu0 %v9778
        %10073 = vmatprep.subr.bf16.mxu0 0
        %10074 = vmatpush1.bf16.msra.mxu0 %v9779
        %10075 = vmatprep.subr.bf16.mxu0 0
        %10076 = vmatpush1.bf16.msra.mxu0 %v9780
        %10077 = vmatprep.subr.bf16.mxu0 0
        %10078 = vmatpush1.bf16.msra.mxu0 %v9781
        %10079 = vmatprep.subr.bf16.mxu0 0
        %10080 = vmatpush1.bf16.msra.mxu0 %v9782
        %10081 = vmatprep.subr.bf16.mxu0 0
        %10082 = vmatpush1.bf16.msra.mxu0 %v9783
        %10083 = vmatprep.subr.bf16.mxu0 0
        %10084 = vmatpush1.bf16.msra.mxu0 %v9784
        %10085 = vmatprep.subr.bf16.mxu0 0
        %10086 = vmatpush1.bf16.msra.mxu0 %v9785
        %10087 = vmatprep.subr.bf16.mxu0 0
        %10088 = vmatpush1.bf16.msra.mxu0 %v9786
        %10089 = vmatprep.subr.bf16.mxu0 0
        %10090 = vmatpush1.bf16.msra.mxu0 %v9787
        %10091 = vmatprep.subr.bf16.mxu0 0
        %10092 = vmatpush1.bf16.msra.mxu0 %v9788
        %10093 = vmatprep.subr.bf16.mxu0 0
        %10094 = vmatpush1.bf16.msra.mxu0 %v9789
        %10095 = vmatprep.mubr.bf16.mxu0 %v9178
        %10096 = vmatmul.mubr.bf16.gmra.mrb[0].mxu0 %v9177
        %v10097 = vpop.f32.mrb[0].mxu0
        %v10098 = vadd.f32 %v9937, %v10097
        %v10099 = vpop.f32.mrb[0].mxu0
        %v10100 = vpop.f32.mrb[0].mxu0
        %v10101 = vadd.f32 %v9940, %v10100
        %v10102 = vpop.f32.mrb[0].mxu0
        %10103 = vmatprep.mubr.bf16.mxu0 %v9187
        %10104 = vmatmul.mubr.bf16.gmra.mrb[0].mxu0 %v9186
        %v10105 = vpop.f32.mrb[0].mxu0
        %v10106 = vadd.f32 %v9945, %v10105
        %v10107 = vpop.f32.mrb[0].mxu0
        %v10108 = vpop.f32.mrb[0].mxu0
        %v10109 = vadd.f32 %v9948, %v10108
        %v10110 = vpop.f32.mrb[0].mxu0
        %10111 = vmatprep.mubr.bf16.mxu0 %v9196
        %10112 = vmatmul.mubr.bf16.gmra.mrb[0].mxu0 %v9195
        %v10113 = vpop.f32.mrb[0].mxu0
        %v10114 = vadd.f32 %v9953, %v10113
        %v10115 = vpop.f32.mrb[0].mxu0
        %v10116 = vpop.f32.mrb[0].mxu0
        %v10117 = vadd.f32 %v9956, %v10116
        %v10118 = vpop.f32.mrb[0].mxu0
        %10119 = vmatprep.mubr.bf16.mxu0 %v9205
        %10120 = vmatmul.mubr.bf16.gmra.mrb[0].mxu0 %v9204
        %v10121 = vpop.f32.mrb[0].mxu0
        %v10122 = vadd.f32 %v9961, %v10121
        %v10123 = vpop.f32.mrb[0].mxu0
        %v10124 = vpop.f32.mrb[0].mxu0
        %v10125 = vadd.f32 %v9964, %v10124
        %v10126 = vpop.f32.mrb[0].mxu0
        %10127 = vmatprep.mubr.bf16.mxu0 %v9214
        %10128 = vmatmul.mubr.bf16.gmra.mrb[0].mxu0 %v9213
        %v10129 = vpop.f32.mrb[0].mxu0
        %v10130 = vadd.f32 %v9969, %v10129
        %v10131 = vpop.f32.mrb[0].mxu0
        %v10132 = vpop.f32.mrb[0].mxu0
        %v10133 = vadd.f32 %v9972, %v10132
        %v10134 = vpop.f32.mrb[0].mxu0
        %10135 = vmatprep.mubr.bf16.mxu0 %v9223
        %10136 = vmatmul.mubr.bf16.gmra.mrb[0].mxu0 %v9222
        %v10137 = vpop.f32.mrb[0].mxu0
        %v10138 = vadd.f32 %v9977, %v10137
        %v10139 = vpop.f32.mrb[0].mxu0
        %v10140 = vpop.f32.mrb[0].mxu0
        %v10141 = vadd.f32 %v9980, %v10140
        %v10142 = vpop.f32.mrb[0].mxu0
        %10143 = vmatprep.mubr.bf16.mxu0 %v9232
        %10144 = vmatmul.mubr.bf16.gmra.mrb[0].mxu0 %v9231
        %v10145 = vpop.f32.mrb[0].mxu0
        %v10146 = vadd.f32 %v9985, %v10145
        %v10147 = vpop.f32.mrb[0].mxu0
        %v10148 = vpop.f32.mrb[0].mxu0
        %v10149 = vadd.f32 %v9988, %v10148
        %v10150 = vpop.f32.mrb[0].mxu0
        %10151 = vmatprep.mubr.bf16.mxu0 %v9241
        %10152 = vmatmul.mubr.bf16.gmra.mrb[0].mxu0 %v9240
        %v10153 = vpop.f32.mrb[0].mxu0
        %v10154 = vadd.f32 %v9993, %v10153
        %v10155 = vpop.f32.mrb[0].mxu0
        %v10156 = vpop.f32.mrb[0].mxu0
        %v10157 = vadd.f32 %v9996, %v10156
        %v10158 = vpop.f32.mrb[0].mxu0
        %10159 = vmatprep.mubr.bf16.mxu0 %v9250
        %10160 = vmatmul.mubr.bf16.gmra.mrb[0].mxu0 %v9249
        %v10161 = vpop.f32.mrb[0].mxu0
        %v10162 = vadd.f32 %v10001, %v10161
        %v10163 = vpop.f32.mrb[0].mxu0
        %v10164 = vpop.f32.mrb[0].mxu0
        %v10165 = vadd.f32 %v10004, %v10164
        %v10166 = vpop.f32.mrb[0].mxu0
        %10167 = vmatprep.mubr.bf16.mxu0 %v9259
        %10168 = vmatmul.mubr.bf16.gmra.mrb[0].mxu0 %v9258
        %v10169 = vpop.f32.mrb[0].mxu0
        %v10170 = vadd.f32 %v10009, %v10169
        %v10171 = vpop.f32.mrb[0].mxu0
        %v10172 = vpop.f32.mrb[0].mxu0
        %v10173 = vadd.f32 %v10012, %v10172
        %v10174 = vpop.f32.mrb[0].mxu0
        %10175 = vmatprep.mubr.bf16.mxu0 %v9268
        %10176 = vmatmul.mubr.bf16.gmra.mrb[0].mxu0 %v9267
        %v10177 = vpop.f32.mrb[0].mxu0
        %v10178 = vadd.f32 %v10017, %v10177
        %v10179 = vpop.f32.mrb[0].mxu0
        %v10180 = vpop.f32.mrb[0].mxu0
        %v10181 = vadd.f32 %v10020, %v10180
        %v10182 = vpop.f32.mrb[0].mxu0
        %10183 = vmatprep.mubr.bf16.mxu0 %v9277
        %10184 = vmatmul.mubr.bf16.gmra.mrb[0].mxu0 %v9276
        %v10185 = vpop.f32.mrb[0].mxu0
        %v10186 = vadd.f32 %v10025, %v10185
        %v10187 = vpop.f32.mrb[0].mxu0
        %v10188 = vpop.f32.mrb[0].mxu0
        %v10189 = vadd.f32 %v10028, %v10188
        %v10190 = vpop.f32.mrb[0].mxu0
        %10191 = vmatprep.mubr.bf16.mxu0 %v9286
        %10192 = vmatmul.mubr.bf16.gmra.mrb[0].mxu0 %v9285
        %v10193 = vpop.f32.mrb[0].mxu0
        %v10194 = vadd.f32 %v10033, %v10193
        %v10195 = vpop.f32.mrb[0].mxu0
        %v10196 = vpop.f32.mrb[0].mxu0
        %v10197 = vadd.f32 %v10036, %v10196
        %v10198 = vpop.f32.mrb[0].mxu0
        %10199 = vmatprep.mubr.bf16.mxu0 %v9295
        %10200 = vmatmul.mubr.bf16.gmra.mrb[0].mxu0 %v9294
        %v10201 = vpop.f32.mrb[0].mxu0
        %v10202 = vadd.f32 %v10041, %v10201
        %v10203 = vpop.f32.mrb[0].mxu0
        %v10204 = vpop.f32.mrb[0].mxu0
        %v10205 = vadd.f32 %v10044, %v10204
        %v10206 = vpop.f32.mrb[0].mxu0
        %10207 = vmatprep.mubr.bf16.mxu0 %v9304
        %10208 = vmatmul.mubr.bf16.gmra.mrb[0].mxu0 %v9303
        %v10209 = vpop.f32.mrb[0].mxu0
        %v10210 = vadd.f32 %v10049, %v10209
        %v10211 = vpop.f32.mrb[0].mxu0
        %v10212 = vpop.f32.mrb[0].mxu0
        %v10213 = vadd.f32 %v10052, %v10212
        %v10214 = vpop.f32.mrb[0].mxu0
        %10215 = vmatprep.mubr.bf16.mxu0 %v9313
        %10216 = vmatmul.mubr.bf16.gmra.mrb[0].mxu0 %v9312
        %v10217 = vpop.f32.mrb[0].mxu0
        %v10218 = vadd.f32 %v10057, %v10217
        %v10219 = vpop.f32.mrb[0].mxu0
        %v10220 = vpop.f32.mrb[0].mxu0
        %v10221 = vadd.f32 %v10060, %v10220
        %v10222 = vpop.f32.mrb[0].mxu0
        %10223 = vdwg.mxu0
        %10224 = vmatprep.subr.bf16.mxu0 0
        %10225 = vmatpush1.bf16.msra.mxu0 %v9790
        %10226 = vmatprep.subr.bf16.mxu0 0
        %10227 = vmatpush1.bf16.msra.mxu0 %v9791
        %10228 = vmatprep.subr.bf16.mxu0 0
        %10229 = vmatpush1.bf16.msra.mxu0 %v9792
        %10230 = vmatprep.subr.bf16.mxu0 0
        %10231 = vmatpush1.bf16.msra.mxu0 %v9793
        %10232 = vmatprep.subr.bf16.mxu0 0
        %10233 = vmatpush1.bf16.msra.mxu0 %v9794
        %10234 = vmatprep.subr.bf16.mxu0 0
        %10235 = vmatpush1.bf16.msra.mxu0 %v9795
        %10236 = vmatprep.subr.bf16.mxu0 0
        %10237 = vmatpush1.bf16.msra.mxu0 %v9796
        %10238 = vmatprep.subr.bf16.mxu0 0
        %10239 = vmatpush1.bf16.msra.mxu0 %v9797
        %10240 = vmatprep.subr.bf16.mxu0 0
        %10241 = vmatpush1.bf16.msra.mxu0 %v9798
        %10242 = vmatprep.subr.bf16.mxu0 0
        %10243 = vmatpush1.bf16.msra.mxu0 %v9799
        %10244 = vmatprep.subr.bf16.mxu0 0
        %10245 = vmatpush1.bf16.msra.mxu0 %v9800
        %10246 = vmatprep.subr.bf16.mxu0 0
        %10247 = vmatpush1.bf16.msra.mxu0 %v9801
        %10248 = vmatprep.subr.bf16.mxu0 0
        %10249 = vmatpush1.bf16.msra.mxu0 %v9802
        %10250 = vmatprep.subr.bf16.mxu0 0
        %10251 = vmatpush1.bf16.msra.mxu0 %v9803
        %10252 = vmatprep.subr.bf16.mxu0 0
        %10253 = vmatpush1.bf16.msra.mxu0 %v9804
        %10254 = vmatprep.subr.bf16.mxu0 0
        %10255 = vmatpush1.bf16.msra.mxu0 %v9805
        %10256 = vmatprep.mubr.bf16.mxu0 %v9180
        %10257 = vmatmul.mubr.bf16.gmra.mrb[0].mxu0 %v9179
        %v10258 = vpop.f32.mrb[0].mxu0
        %v10259 = vadd.f32 %v10098, %v10258
        %v10260 = vpop.f32.mrb[0].mxu0
        %v10261 = vpop.f32.mrb[0].mxu0
        %v10262 = vadd.f32 %v10101, %v10261
        %v10263 = vpop.f32.mrb[0].mxu0
        %10264 = vmatprep.mubr.bf16.mxu0 %v9189
        %10265 = vmatmul.mubr.bf16.gmra.mrb[0].mxu0 %v9188
        %v10266 = vpop.f32.mrb[0].mxu0
        %v10267 = vadd.f32 %v10106, %v10266
        %v10268 = vpop.f32.mrb[0].mxu0
        %v10269 = vpop.f32.mrb[0].mxu0
        %v10270 = vadd.f32 %v10109, %v10269
        %v10271 = vpop.f32.mrb[0].mxu0
        %10272 = vmatprep.mubr.bf16.mxu0 %v9198
        %10273 = vmatmul.mubr.bf16.gmra.mrb[0].mxu0 %v9197
        %v10274 = vpop.f32.mrb[0].mxu0
        %v10275 = vadd.f32 %v10114, %v10274
        %v10276 = vpop.f32.mrb[0].mxu0
        %v10277 = vpop.f32.mrb[0].mxu0
        %v10278 = vadd.f32 %v10117, %v10277
        %v10279 = vpop.f32.mrb[0].mxu0
        %10280 = vmatprep.mubr.bf16.mxu0 %v9207
        %10281 = vmatmul.mubr.bf16.gmra.mrb[0].mxu0 %v9206
        %v10282 = vpop.f32.mrb[0].mxu0
        %v10283 = vadd.f32 %v10122, %v10282
        %v10284 = vpop.f32.mrb[0].mxu0
        %v10285 = vpop.f32.mrb[0].mxu0
        %v10286 = vadd.f32 %v10125, %v10285
        %v10287 = vpop.f32.mrb[0].mxu0
        %10288 = vmatprep.mubr.bf16.mxu0 %v9216
        %10289 = vmatmul.mubr.bf16.gmra.mrb[0].mxu0 %v9215
        %v10290 = vpop.f32.mrb[0].mxu0
        %v10291 = vadd.f32 %v10130, %v10290
        %v10292 = vpop.f32.mrb[0].mxu0
        %v10293 = vpop.f32.mrb[0].mxu0
        %v10294 = vadd.f32 %v10133, %v10293
        %v10295 = vpop.f32.mrb[0].mxu0
        %10296 = vmatprep.mubr.bf16.mxu0 %v9225
        %10297 = vmatmul.mubr.bf16.gmra.mrb[0].mxu0 %v9224
        %v10298 = vpop.f32.mrb[0].mxu0
        %v10299 = vadd.f32 %v10138, %v10298
        %v10300 = vpop.f32.mrb[0].mxu0
        %v10301 = vpop.f32.mrb[0].mxu0
        %v10302 = vadd.f32 %v10141, %v10301
        %v10303 = vpop.f32.mrb[0].mxu0
        %10304 = vmatprep.mubr.bf16.mxu0 %v9234
        %10305 = vmatmul.mubr.bf16.gmra.mrb[0].mxu0 %v9233
        %v10306 = vpop.f32.mrb[0].mxu0
        %v10307 = vadd.f32 %v10146, %v10306
        %v10308 = vpop.f32.mrb[0].mxu0
        %v10309 = vpop.f32.mrb[0].mxu0
        %v10310 = vadd.f32 %v10149, %v10309
        %v10311 = vpop.f32.mrb[0].mxu0
        %10312 = vmatprep.mubr.bf16.mxu0 %v9243
        %10313 = vmatmul.mubr.bf16.gmra.mrb[0].mxu0 %v9242
        %v10314 = vpop.f32.mrb[0].mxu0
        %v10315 = vadd.f32 %v10154, %v10314
        %v10316 = vpop.f32.mrb[0].mxu0
        %v10317 = vpop.f32.mrb[0].mxu0
        %v10318 = vadd.f32 %v10157, %v10317
        %v10319 = vpop.f32.mrb[0].mxu0
        %10320 = vmatprep.mubr.bf16.mxu0 %v9252
        %10321 = vmatmul.mubr.bf16.gmra.mrb[0].mxu0 %v9251
        %v10322 = vpop.f32.mrb[0].mxu0
        %v10323 = vadd.f32 %v10162, %v10322
        %v10324 = vpop.f32.mrb[0].mxu0
        %v10325 = vpop.f32.mrb[0].mxu0
        %v10326 = vadd.f32 %v10165, %v10325
        %v10327 = vpop.f32.mrb[0].mxu0
        %10328 = vmatprep.mubr.bf16.mxu0 %v9261
        %10329 = vmatmul.mubr.bf16.gmra.mrb[0].mxu0 %v9260
        %v10330 = vpop.f32.mrb[0].mxu0
        %v10331 = vadd.f32 %v10170, %v10330
        %v10332 = vpop.f32.mrb[0].mxu0
        %v10333 = vpop.f32.mrb[0].mxu0
        %v10334 = vadd.f32 %v10173, %v10333
        %v10335 = vpop.f32.mrb[0].mxu0
        %10336 = vmatprep.mubr.bf16.mxu0 %v9270
        %10337 = vmatmul.mubr.bf16.gmra.mrb[0].mxu0 %v9269
        %v10338 = vpop.f32.mrb[0].mxu0
        %v10339 = vadd.f32 %v10178, %v10338
        %v10340 = vpop.f32.mrb[0].mxu0
        %v10341 = vpop.f32.mrb[0].mxu0
        %v10342 = vadd.f32 %v10181, %v10341
        %v10343 = vpop.f32.mrb[0].mxu0
        %10344 = vmatprep.mubr.bf16.mxu0 %v9279
        %10345 = vmatmul.mubr.bf16.gmra.mrb[0].mxu0 %v9278
        %v10346 = vpop.f32.mrb[0].mxu0
        %v10347 = vadd.f32 %v10186, %v10346
        %v10348 = vpop.f32.mrb[0].mxu0
        %v10349 = vpop.f32.mrb[0].mxu0
        %v10350 = vadd.f32 %v10189, %v10349
        %v10351 = vpop.f32.mrb[0].mxu0
        %10352 = vmatprep.mubr.bf16.mxu0 %v9288
        %10353 = vmatmul.mubr.bf16.gmra.mrb[0].mxu0 %v9287
        %v10354 = vpop.f32.mrb[0].mxu0
        %v10355 = vadd.f32 %v10194, %v10354
        %v10356 = vpop.f32.mrb[0].mxu0
        %v10357 = vpop.f32.mrb[0].mxu0
        %v10358 = vadd.f32 %v10197, %v10357
        %v10359 = vpop.f32.mrb[0].mxu0
        %10360 = vmatprep.mubr.bf16.mxu0 %v9297
        %10361 = vmatmul.mubr.bf16.gmra.mrb[0].mxu0 %v9296
        %v10362 = vpop.f32.mrb[0].mxu0
        %v10363 = vadd.f32 %v10202, %v10362
        %v10364 = vpop.f32.mrb[0].mxu0
        %v10365 = vpop.f32.mrb[0].mxu0
        %v10366 = vadd.f32 %v10205, %v10365
        %v10367 = vpop.f32.mrb[0].mxu0
        %10368 = vmatprep.mubr.bf16.mxu0 %v9306
        %10369 = vmatmul.mubr.bf16.gmra.mrb[0].mxu0 %v9305
        %v10370 = vpop.f32.mrb[0].mxu0
        %v10371 = vadd.f32 %v10210, %v10370
        %v10372 = vpop.f32.mrb[0].mxu0
        %v10373 = vpop.f32.mrb[0].mxu0
        %v10374 = vadd.f32 %v10213, %v10373
        %v10375 = vpop.f32.mrb[0].mxu0
        %10376 = vmatprep.mubr.bf16.mxu0 %v9315
        %10377 = vmatmul.mubr.bf16.gmra.mrb[0].mxu0 %v9314
        %v10378 = vpop.f32.mrb[0].mxu0
        %v10379 = vadd.f32 %v10218, %v10378
        %v10380 = vpop.f32.mrb[0].mxu0
        %v10381 = vpop.f32.mrb[0].mxu0
        %v10382 = vadd.f32 %v10221, %v10381
        %v10383 = vpop.f32.mrb[0].mxu0
        %10384 = vdwg.mxu0
        %10385 = vmatprep.subr.bf16.mxu0 0
        %10386 = vmatpush1.bf16.msra.mxu0 %v9806
        %10387 = vmatprep.subr.bf16.mxu0 0
        %10388 = vmatpush1.bf16.msra.mxu0 %v9807
        %10389 = vmatprep.subr.bf16.mxu0 0
        %10390 = vmatpush1.bf16.msra.mxu0 %v9808
        %10391 = vmatprep.subr.bf16.mxu0 0
        %10392 = vmatpush1.bf16.msra.mxu0 %v9809
        %10393 = vmatprep.subr.bf16.mxu0 0
        %10394 = vmatpush1.bf16.msra.mxu0 %v9810
        %10395 = vmatprep.subr.bf16.mxu0 0
        %10396 = vmatpush1.bf16.msra.mxu0 %v9811
        %10397 = vmatprep.subr.bf16.mxu0 0
        %10398 = vmatpush1.bf16.msra.mxu0 %v9812
        %10399 = vmatprep.subr.bf16.mxu0 0
        %10400 = vmatpush1.bf16.msra.mxu0 %v9813
        %10401 = vmatprep.subr.bf16.mxu0 0
        %10402 = vmatpush1.bf16.msra.mxu0 %v9814
        %10403 = vmatprep.subr.bf16.mxu0 0
        %10404 = vmatpush1.bf16.msra.mxu0 %v9815
        %10405 = vmatprep.subr.bf16.mxu0 0
        %10406 = vmatpush1.bf16.msra.mxu0 %v9816
        %10407 = vmatprep.subr.bf16.mxu0 0
        %10408 = vmatpush1.bf16.msra.mxu0 %v9817
        %10409 = vmatprep.subr.bf16.mxu0 0
        %10410 = vmatpush1.bf16.msra.mxu0 %v9818
        %10411 = vmatprep.subr.bf16.mxu0 0
        %10412 = vmatpush1.bf16.msra.mxu0 %v9819
        %10413 = vmatprep.subr.bf16.mxu0 0
        %10414 = vmatpush1.bf16.msra.mxu0 %v9820
        %10415 = vmatprep.subr.bf16.mxu0 0
        %10416 = vmatpush1.bf16.msra.mxu0 %v9821
        %10417 = vmatprep.mubr.bf16.mxu0 %v9182
        %10418 = vmatmul.mubr.bf16.gmra.mrb[0].mxu0 %v9181
        %v10419 = vpop.f32.mrb[0].mxu0
        %v10420 = vadd.f32 %v10259, %v10419
        %v10421 = vpop.f32.mrb[0].mxu0
        %v10422 = vpop.f32.mrb[0].mxu0
        %v10423 = vadd.f32 %v10262, %v10422
        %v10424 = vpop.f32.mrb[0].mxu0
        %10425 = vmatprep.mubr.bf16.mxu0 %v9191
        %10426 = vmatmul.mubr.bf16.gmra.mrb[0].mxu0 %v9190
        %v10427 = vpop.f32.mrb[0].mxu0
        %v10428 = vadd.f32 %v10267, %v10427
        %v10429 = vpop.f32.mrb[0].mxu0
        %v10430 = vpop.f32.mrb[0].mxu0
        %v10431 = vadd.f32 %v10270, %v10430
        %v10432 = vpop.f32.mrb[0].mxu0
        %10433 = vmatprep.mubr.bf16.mxu0 %v9200
        %10434 = vmatmul.mubr.bf16.gmra.mrb[0].mxu0 %v9199
        %v10435 = vpop.f32.mrb[0].mxu0
        %v10436 = vadd.f32 %v10275, %v10435
        %v10437 = vpop.f32.mrb[0].mxu0
        %v10438 = vpop.f32.mrb[0].mxu0
        %v10439 = vadd.f32 %v10278, %v10438
        %v10440 = vpop.f32.mrb[0].mxu0
        %10441 = vmatprep.mubr.bf16.mxu0 %v9209
        %10442 = vmatmul.mubr.bf16.gmra.mrb[0].mxu0 %v9208
        %v10443 = vpop.f32.mrb[0].mxu0
        %v10444 = vadd.f32 %v10283, %v10443
        %v10445 = vpop.f32.mrb[0].mxu0
        %v10446 = vpop.f32.mrb[0].mxu0
        %v10447 = vadd.f32 %v10286, %v10446
        %v10448 = vpop.f32.mrb[0].mxu0
        %10449 = vmatprep.mubr.bf16.mxu0 %v9218
        %10450 = vmatmul.mubr.bf16.gmra.mrb[0].mxu0 %v9217
        %v10451 = vpop.f32.mrb[0].mxu0
        %v10452 = vadd.f32 %v10291, %v10451
        %v10453 = vpop.f32.mrb[0].mxu0
        %v10454 = vpop.f32.mrb[0].mxu0
        %v10455 = vadd.f32 %v10294, %v10454
        %v10456 = vpop.f32.mrb[0].mxu0
        %10457 = vmatprep.mubr.bf16.mxu0 %v9227
        %10458 = vmatmul.mubr.bf16.gmra.mrb[0].mxu0 %v9226
        %v10459 = vpop.f32.mrb[0].mxu0
        %v10460 = vadd.f32 %v10299, %v10459
        %v10461 = vpop.f32.mrb[0].mxu0
        %v10462 = vpop.f32.mrb[0].mxu0
        %v10463 = vadd.f32 %v10302, %v10462
        %v10464 = vpop.f32.mrb[0].mxu0
        %10465 = vmatprep.mubr.bf16.mxu0 %v9236
        %10466 = vmatmul.mubr.bf16.gmra.mrb[0].mxu0 %v9235
        %v10467 = vpop.f32.mrb[0].mxu0
        %v10468 = vadd.f32 %v10307, %v10467
        %v10469 = vpop.f32.mrb[0].mxu0
        %v10470 = vpop.f32.mrb[0].mxu0
        %v10471 = vadd.f32 %v10310, %v10470
        %v10472 = vpop.f32.mrb[0].mxu0
        %10473 = vmatprep.mubr.bf16.mxu0 %v9245
        %10474 = vmatmul.mubr.bf16.gmra.mrb[0].mxu0 %v9244
        %v10475 = vpop.f32.mrb[0].mxu0
        %v10476 = vadd.f32 %v10315, %v10475
        %v10477 = vpop.f32.mrb[0].mxu0
        %v10478 = vpop.f32.mrb[0].mxu0
        %v10479 = vadd.f32 %v10318, %v10478
        %v10480 = vpop.f32.mrb[0].mxu0
        %10481 = vmatprep.mubr.bf16.mxu0 %v9254
        %10482 = vmatmul.mubr.bf16.gmra.mrb[0].mxu0 %v9253
        %v10483 = vpop.f32.mrb[0].mxu0
        %v10484 = vadd.f32 %v10323, %v10483
        %v10485 = vpop.f32.mrb[0].mxu0
        %v10486 = vpop.f32.mrb[0].mxu0
        %v10487 = vadd.f32 %v10326, %v10486
        %v10488 = vpop.f32.mrb[0].mxu0
        %10489 = vmatprep.mubr.bf16.mxu0 %v9263
        %10490 = vmatmul.mubr.bf16.gmra.mrb[0].mxu0 %v9262
        %v10491 = vpop.f32.mrb[0].mxu0
        %v10492 = vadd.f32 %v10331, %v10491
        %v10493 = vpop.f32.mrb[0].mxu0
        %v10494 = vpop.f32.mrb[0].mxu0
        %v10495 = vadd.f32 %v10334, %v10494
        %v10496 = vpop.f32.mrb[0].mxu0
        %10497 = vmatprep.mubr.bf16.mxu0 %v9272
        %10498 = vmatmul.mubr.bf16.gmra.mrb[0].mxu0 %v9271
        %v10499 = vpop.f32.mrb[0].mxu0
        %v10500 = vadd.f32 %v10339, %v10499
        %v10501 = vpop.f32.mrb[0].mxu0
        %v10502 = vpop.f32.mrb[0].mxu0
        %v10503 = vadd.f32 %v10342, %v10502
        %v10504 = vpop.f32.mrb[0].mxu0
        %10505 = vmatprep.mubr.bf16.mxu0 %v9281
        %10506 = vmatmul.mubr.bf16.gmra.mrb[0].mxu0 %v9280
        %v10507 = vpop.f32.mrb[0].mxu0
        %v10508 = vadd.f32 %v10347, %v10507
        %v10509 = vpop.f32.mrb[0].mxu0
        %v10510 = vpop.f32.mrb[0].mxu0
        %v10511 = vadd.f32 %v10350, %v10510
        %v10512 = vpop.f32.mrb[0].mxu0
        %10513 = vmatprep.mubr.bf16.mxu0 %v9290
        %10514 = vmatmul.mubr.bf16.gmra.mrb[0].mxu0 %v9289
        %v10515 = vpop.f32.mrb[0].mxu0
        %v10516 = vadd.f32 %v10355, %v10515
        %v10517 = vpop.f32.mrb[0].mxu0
        %v10518 = vpop.f32.mrb[0].mxu0
        %v10519 = vadd.f32 %v10358, %v10518
        %v10520 = vpop.f32.mrb[0].mxu0
        %10521 = vmatprep.mubr.bf16.mxu0 %v9299
        %10522 = vmatmul.mubr.bf16.gmra.mrb[0].mxu0 %v9298
        %v10523 = vpop.f32.mrb[0].mxu0
        %v10524 = vadd.f32 %v10363, %v10523
        %v10525 = vpop.f32.mrb[0].mxu0
        %v10526 = vpop.f32.mrb[0].mxu0
        %v10527 = vadd.f32 %v10366, %v10526
        %v10528 = vpop.f32.mrb[0].mxu0
        %10529 = vmatprep.mubr.bf16.mxu0 %v9308
        %10530 = vmatmul.mubr.bf16.gmra.mrb[0].mxu0 %v9307
        %v10531 = vpop.f32.mrb[0].mxu0
        %v10532 = vadd.f32 %v10371, %v10531
        %v10533 = vpop.f32.mrb[0].mxu0
        %v10534 = vpop.f32.mrb[0].mxu0
        %v10535 = vadd.f32 %v10374, %v10534
        %v10536 = vpop.f32.mrb[0].mxu0
        %10537 = vmatprep.mubr.bf16.mxu0 %v9317
        %10538 = vmatmul.mubr.bf16.gmra.mrb[0].mxu0 %v9316
        %v10539 = vpop.f32.mrb[0].mxu0
        %v10540 = vadd.f32 %v10379, %v10539
        %v10541 = vpop.f32.mrb[0].mxu0
        %v10542 = vpop.f32.mrb[0].mxu0
        %v10543 = vadd.f32 %v10382, %v10542
        %v10544 = vpop.f32.mrb[0].mxu0
        %10545 = vdwg.mxu0
        %10546 = vmatprep.subr.bf16.mxu0 0
        %10547 = vmatpush1.bf16.msra.mxu0 %v9822
        %10548 = vmatprep.subr.bf16.mxu0 0
        %10549 = vmatpush1.bf16.msra.mxu0 %v9823
        %10550 = vmatprep.subr.bf16.mxu0 0
        %10551 = vmatpush1.bf16.msra.mxu0 %v9824
        %10552 = vmatprep.subr.bf16.mxu0 0
        %10553 = vmatpush1.bf16.msra.mxu0 %v9825
        %10554 = vmatprep.subr.bf16.mxu0 0
        %10555 = vmatpush1.bf16.msra.mxu0 %v9826
        %10556 = vmatprep.subr.bf16.mxu0 0
        %10557 = vmatpush1.bf16.msra.mxu0 %v9827
        %10558 = vmatprep.subr.bf16.mxu0 0
        %10559 = vmatpush1.bf16.msra.mxu0 %v9828
        %10560 = vmatprep.subr.bf16.mxu0 0
        %10561 = vmatpush1.bf16.msra.mxu0 %v9829
        %10562 = vmatprep.subr.bf16.mxu0 0
        %10563 = vmatpush1.bf16.msra.mxu0 0
        %10564 = vmatprep.subr.bf16.mxu0 0
        %10565 = vmatpush1.bf16.msra.mxu0 0
        %10566 = vmatprep.subr.bf16.mxu0 0
        %10567 = vmatpush1.bf16.msra.mxu0 0
        %10568 = vmatprep.subr.bf16.mxu0 0
        %10569 = vmatpush1.bf16.msra.mxu0 0
        %10570 = vmatprep.subr.bf16.mxu0 0
        %10571 = vmatpush1.bf16.msra.mxu0 0
        %10572 = vmatprep.subr.bf16.mxu0 0
        %10573 = vmatpush1.bf16.msra.mxu0 0
        %10574 = vmatprep.subr.bf16.mxu0 0
        %10575 = vmatpush1.bf16.msra.mxu0 0
        %10576 = vmatprep.subr.bf16.mxu0 0
        %10577 = vmatpush1.bf16.msra.mxu0 0
        %10578 = vmatprep.mubr.bf16.mxu0 0
        %10579 = vmatmul.mubr.bf16.gmra.mrb[0].mxu0 %v9183
        %v10580 = vpop.f32.mrb[0].mxu0
        %v10581 = vadd.f32 %v10420, %v10580
        %v10582 = vpop.f32.mrb[0].mxu0
        %v10583 = vpop.f32.mrb[0].mxu0
        %v10584 = vadd.f32 %v10423, %v10583
        %v10585 = vpop.f32.mrb[0].mxu0
        %10586 = vmatprep.mubr.bf16.mxu0 0
        %10587 = vmatmul.mubr.bf16.gmra.mrb[0].mxu0 %v9192
        %v10588 = vpop.f32.mrb[0].mxu0
        %v10589 = vadd.f32 %v10428, %v10588
        %v10590 = vpop.f32.mrb[0].mxu0
        %v10591 = vpop.f32.mrb[0].mxu0
        %v10592 = vadd.f32 %v10431, %v10591
        %v10593 = vpop.f32.mrb[0].mxu0
        %10594 = vmatprep.mubr.bf16.mxu0 0
        %10595 = vmatmul.mubr.bf16.gmra.mrb[0].mxu0 %v9201
        %v10596 = vpop.f32.mrb[0].mxu0
        %v10597 = vadd.f32 %v10436, %v10596
        %v10598 = vpop.f32.mrb[0].mxu0
        %v10599 = vpop.f32.mrb[0].mxu0
        %v10600 = vadd.f32 %v10439, %v10599
        %v10601 = vpop.f32.mrb[0].mxu0
        %10602 = vmatprep.mubr.bf16.mxu0 0
        %10603 = vmatmul.mubr.bf16.gmra.mrb[0].mxu0 %v9210
        %v10604 = vpop.f32.mrb[0].mxu0
        %v10605 = vadd.f32 %v10444, %v10604
        %v10606 = vpop.f32.mrb[0].mxu0
        %v10607 = vpop.f32.mrb[0].mxu0
        %v10608 = vadd.f32 %v10447, %v10607
        %v10609 = vpop.f32.mrb[0].mxu0
        %10610 = vmatprep.mubr.bf16.mxu0 0
        %10611 = vmatmul.mubr.bf16.gmra.mrb[0].mxu0 %v9219
        %v10612 = vpop.f32.mrb[0].mxu0
        %v10613 = vadd.f32 %v10452, %v10612
        %v10614 = vpop.f32.mrb[0].mxu0
        %v10615 = vpop.f32.mrb[0].mxu0
        %v10616 = vadd.f32 %v10455, %v10615
        %v10617 = vpop.f32.mrb[0].mxu0
        %10618 = vmatprep.mubr.bf16.mxu0 0
        %10619 = vmatmul.mubr.bf16.gmra.mrb[0].mxu0 %v9228
        %v10620 = vpop.f32.mrb[0].mxu0
        %v10621 = vadd.f32 %v10460, %v10620
        %v10622 = vpop.f32.mrb[0].mxu0
        %v10623 = vpop.f32.mrb[0].mxu0
        %v10624 = vadd.f32 %v10463, %v10623
        %v10625 = vpop.f32.mrb[0].mxu0
        %10626 = vmatprep.mubr.bf16.mxu0 0
        %10627 = vmatmul.mubr.bf16.gmra.mrb[0].mxu0 %v9237
        %v10628 = vpop.f32.mrb[0].mxu0
        %v10629 = vadd.f32 %v10468, %v10628
        %v10630 = vpop.f32.mrb[0].mxu0
        %v10631 = vpop.f32.mrb[0].mxu0
        %v10632 = vadd.f32 %v10471, %v10631
        %v10633 = vpop.f32.mrb[0].mxu0
        %10634 = vmatprep.mubr.bf16.mxu0 0
        %10635 = vmatmul.mubr.bf16.gmra.mrb[0].mxu0 %v9246
        %v10636 = vpop.f32.mrb[0].mxu0
        %v10637 = vadd.f32 %v10476, %v10636
        %v10638 = vpop.f32.mrb[0].mxu0
        %v10639 = vpop.f32.mrb[0].mxu0
        %v10640 = vadd.f32 %v10479, %v10639
        %v10641 = vpop.f32.mrb[0].mxu0
        %10642 = vmatprep.mubr.bf16.mxu0 0
        %10643 = vmatmul.mubr.bf16.gmra.mrb[0].mxu0 %v9255
        %v10644 = vpop.f32.mrb[0].mxu0
        %v10645 = vadd.f32 %v10484, %v10644
        %v10646 = vpop.f32.mrb[0].mxu0
        %v10647 = vpop.f32.mrb[0].mxu0
        %v10648 = vadd.f32 %v10487, %v10647
        %v10649 = vpop.f32.mrb[0].mxu0
        %10650 = vmatprep.mubr.bf16.mxu0 0
        %10651 = vmatmul.mubr.bf16.gmra.mrb[0].mxu0 %v9264
        %v10652 = vpop.f32.mrb[0].mxu0
        %v10653 = vadd.f32 %v10492, %v10652
        %v10654 = vpop.f32.mrb[0].mxu0
        %v10655 = vpop.f32.mrb[0].mxu0
        %v10656 = vadd.f32 %v10495, %v10655
        %v10657 = vpop.f32.mrb[0].mxu0
        %10658 = vmatprep.mubr.bf16.mxu0 0
        %10659 = vmatmul.mubr.bf16.gmra.mrb[0].mxu0 %v9273
        %v10660 = vpop.f32.mrb[0].mxu0
        %v10661 = vadd.f32 %v10500, %v10660
        %v10662 = vpop.f32.mrb[0].mxu0
        %v10663 = vpop.f32.mrb[0].mxu0
        %v10664 = vadd.f32 %v10503, %v10663
        %v10665 = vpop.f32.mrb[0].mxu0
        %10666 = vmatprep.mubr.bf16.mxu0 0
        %10667 = vmatmul.mubr.bf16.gmra.mrb[0].mxu0 %v9282
        %v10668 = vpop.f32.mrb[0].mxu0
        %v10669 = vadd.f32 %v10508, %v10668
        %v10670 = vpop.f32.mrb[0].mxu0
        %v10671 = vpop.f32.mrb[0].mxu0
        %v10672 = vadd.f32 %v10511, %v10671
        %v10673 = vpop.f32.mrb[0].mxu0
        %10674 = vmatprep.mubr.bf16.mxu0 0
        %10675 = vmatmul.mubr.bf16.gmra.mrb[0].mxu0 %v9291
        %v10676 = vpop.f32.mrb[0].mxu0
        %v10677 = vadd.f32 %v10516, %v10676
        %v10678 = vpop.f32.mrb[0].mxu0
        %v10679 = vpop.f32.mrb[0].mxu0
        %v10680 = vadd.f32 %v10519, %v10679
        %v10681 = vpop.f32.mrb[0].mxu0
        %10682 = vmatprep.mubr.bf16.mxu0 0
        %10683 = vmatmul.mubr.bf16.gmra.mrb[0].mxu0 %v9300
        %v10684 = vpop.f32.mrb[0].mxu0
        %v10685 = vadd.f32 %v10524, %v10684
        %v10686 = vpop.f32.mrb[0].mxu0
        %v10687 = vpop.f32.mrb[0].mxu0
        %v10688 = vadd.f32 %v10527, %v10687
        %v10689 = vpop.f32.mrb[0].mxu0
        %10690 = vmatprep.mubr.bf16.mxu0 0
        %10691 = vmatmul.mubr.bf16.gmra.mrb[0].mxu0 %v9309
        %v10692 = vpop.f32.mrb[0].mxu0
        %v10693 = vadd.f32 %v10532, %v10692
        %v10694 = vpop.f32.mrb[0].mxu0
        %v10695 = vpop.f32.mrb[0].mxu0
        %v10696 = vadd.f32 %v10535, %v10695
        %v10697 = vpop.f32.mrb[0].mxu0
        %10698 = vmatprep.mubr.bf16.mxu0 0
        %10699 = vmatmul.mubr.bf16.gmra.mrb[0].mxu0 %v9318
        %v10700 = vpop.f32.mrb[0].mxu0
        %v10701 = vadd.f32 %v10540, %v10700
        %v10702 = vpop.f32.mrb[0].mxu0
        %v10703 = vpop.f32.mrb[0].mxu0
        %v10704 = vadd.f32 %v10543, %v10703
        %v10705 = vpop.f32.mrb[0].mxu0
        %10706 = vdwg.mxu0
        %v10707 = vadd.f32 %v10581, %v9143
        %v10708 = vadd.f32 %v10584, %v9144
        %v10709 = vadd.f32 %v10589, %v9145
        %v10710 = vadd.f32 %v10592, %v9146
        %v10711 = vadd.f32 %v10597, %v9147
        %v10712 = vadd.f32 %v10600, %v9148
        %v10713 = vadd.f32 %v10605, %v9149
        %v10714 = vadd.f32 %v10608, %v9150
        %v10715 = vadd.f32 %v10613, %v9151
        %v10716 = vadd.f32 %v10616, %v9152
        %v10717 = vadd.f32 %v10621, %v9153
        %v10718 = vadd.f32 %v10624, %v9154
        %v10719 = vadd.f32 %v10629, %v9155
        %v10720 = vadd.f32 %v10632, %v9156
        %v10721 = vadd.f32 %v10637, %v9157
        %v10722 = vadd.f32 %v10640, %v9158
        %v10723 = vadd.f32 %v10645, %v9159
        %v10724 = vadd.f32 %v10648, %v9160
        %v10725 = vadd.f32 %v10653, %v9161
        %v10726 = vadd.f32 %v10656, %v9162
        %v10727 = vadd.f32 %v10661, %v9163
        %v10728 = vadd.f32 %v10664, %v9164
        %v10729 = vadd.f32 %v10669, %v9165
        %v10730 = vadd.f32 %v10672, %v9166
        %v10731 = vadd.f32 %v10677, %v9167
        %v10732 = vadd.f32 %v10680, %v9168
        %v10733 = vadd.f32 %v10685, %v9169
        %v10734 = vadd.f32 %v10688, %v9170
        %v10735 = vadd.f32 %v10693, %v9171
        %v10736 = vadd.f32 %v10696, %v9172
        %v10737 = vadd.f32 %v10701, %v9173
        %v10738 = vadd.f32 %v10704, %v9174
        %10739 = vst [vmem:[%s338] sm:$0xff] %v10707
        %10740 = vst [vmem:[%s338 + $0x8] sm:$0xff] %v10708
        %10741 = vst [vmem:[%s338 + $0x10] sm:$0xff] %v10709
        %10742 = vst [vmem:[%s338 + $0x18] sm:$0xff] %v10710
        %10743 = vst [vmem:[%s338 + $0x20] sm:$0xff] %v10711
        %10744 = vst [vmem:[%s338 + $0x28] sm:$0xff] %v10712
        %10745 = vst [vmem:[%s338 + $0x30] sm:$0xff] %v10713
        %10746 = vst [vmem:[%s338 + $0x38] sm:$0xff] %v10714
        %10747 = vst [vmem:[%s338 + $0x40] sm:$0xff] %v10715
        %10748 = vst [vmem:[%s338 + $0x48] sm:$0xff] %v10716
        %10749 = vst [vmem:[%s338 + $0x50] sm:$0xff] %v10717
        %10750 = vst [vmem:[%s338 + $0x58] sm:$0xff] %v10718
        %10751 = vst [vmem:[%s338 + $0x60] sm:$0xff] %v10719
        %10752 = vst [vmem:[%s338 + $0x68] sm:$0xff] %v10720
        %10753 = vst [vmem:[%s338 + $0x70] sm:$0xff] %v10721
        %10754 = vst [vmem:[%s338 + $0x78] sm:$0xff] %v10722
        %10755 = vst [vmem:[%s338 + $0x80] sm:$0xff] %v10723
        %10756 = vst [vmem:[%s338 + $0x88] sm:$0xff] %v10724
        %10757 = vst [vmem:[%s338 + $0x90] sm:$0xff] %v10725
        %10758 = vst [vmem:[%s338 + $0x98] sm:$0xff] %v10726
        %10759 = vst [vmem:[%s338 + $0xa0] sm:$0xff] %v10727
        %10760 = vst [vmem:[%s338 + $0xa8] sm:$0xff] %v10728
        %10761 = vst [vmem:[%s338 + $0xb0] sm:$0xff] %v10729
        %10762 = vst [vmem:[%s338 + $0xb8] sm:$0xff] %v10730
        %10763 = vst [vmem:[%s338 + $0xc0] sm:$0xff] %v10731
        %10764 = vst [vmem:[%s338 + $0xc8] sm:$0xff] %v10732
        %10765 = vst [vmem:[%s338 + $0xd0] sm:$0xff] %v10733
        %10766 = vst [vmem:[%s338 + $0xd8] sm:$0xff] %v10734
        %10767 = vst [vmem:[%s338 + $0xe0] sm:$0xff] %v10735
        %10768 = vst [vmem:[%s338 + $0xe8] sm:$0xff] %v10736
        %10769 = vst [vmem:[%s338 + $0xf0] sm:$0xff] %v10737
        %10770 = vst [vmem:[%s338 + $0xf8] sm:$0xff] %v10738
        %s10771 = sand.u32 %s186, 1
        %s10772 = scalar_lea.sflag [#allocation7], %s10771
        %s10773 = sand.u32 %s186, 1
        %s10774 = smul.addr %s10773, 256
        %s10775 = scalar_lea.vmem [#allocation13], %s10774
        // Predicated region
        $region65: #{tpu_custom_call.1} parent=47 // pred_check
          %p10776 = pneg %p196
        $region66: #{tpu_custom_call.1} parent=47 // pred_check_branch
          %10778 = sbr.rel (%p10776) target = $region68
        $region67: #{tpu_custom_call.1} parent=47 // pred_region
          %s10780 = ssub.s32 4096, 4096
          %10781 = vsyncadd %s10772, %s10780
          %s10782 = smul.addr %s26, 32
          %s10783 = smul.addr %s10782, 128
          %s10784 = scalar_lea.hbm %s7, %s10783
          %s10785 = sshll.u32 %s10775, 4
          %s10786 = int_to_ptr.vmem [resolvable:$true] %s10785
          %10791 = dma.vmem_to_hbm [thread:$0]  %s10786, 4096, %s10784, %s10772, 128, 128, 8
        $region68: #{tpu_custom_call.1} parent=47 // pred_fallthru
          _
      $region48: #{tpu_custom_call.1} parent=5 // pred_fallthru
        _
      %p10792 = scmp.le.s32.totalorder 2, %s21
      // Predicated region
      $region69: #{tpu_custom_call.1} parent=5 // pred_check
        %p10793 = pneg %p10792
      $region70: #{tpu_custom_call.1} parent=5 // pred_check_branch
        %10795 = sbr.rel (%p10793) target = $region72
      $region71: #{tpu_custom_call.1} parent=5 // pred_region
        %s10796 = ssub.s32 %s21, 2
        // Predicated region
        $region73: #{tpu_custom_call.1} parent=71 // pred_check
          %p10797 = pneg %p202
        $region74: #{tpu_custom_call.1} parent=71 // pred_check_branch
          %10799 = sbr.rel (%p10797) target = $region76
        $region75: #{tpu_custom_call.1} parent=71 // pred_region
          %s10800 = sand.u32 %s187, 1
          %s10801 = scalar_lea.sflag [#allocation7], %s10800
          %s10802 = sand.u32 %s187, 1
          %s10803 = smul.addr %s10802, 256
          %s10804 = scalar_lea.vmem [#allocation13], %s10803
          %10805 = dma.done %s10801, 4096
        $region76: #{tpu_custom_call.1} parent=71 // pred_fallthru
          _
      $region72: #{tpu_custom_call.1} parent=5 // pred_fallthru
        _
    $region6: #{tpu_custom_call.1} parent=1 // loop_footer
      %s25 = sadd.s32 1, %s21
    $region7: #{tpu_custom_call.1} parent=1 // loop_footer_branch
      %20 = sbr.rel target = $region3
    $region8: #{tpu_custom_call.1} parent=1 // loop_exit
      _
    %10806 = vsyncpa [#allocation6], 1
    %s10807 = scalar_lea.sflag [#allocation6], 1
    %10808 = vsyncpa %s10807, 1
    %10809 = vsyncpa [#allocation9], 1
    %s10810 = scalar_lea.sflag [#allocation9], 1
    %10811 = vsyncpa %s10810, 1
    %10812 = vsyncpa [#allocation12], 1
    %10813 = vsyncpa [#allocation7], 1
    %s10814 = scalar_lea.sflag [#allocation7], 1
    %10815 = vsyncpa %s10814, 1

</llo_original>
